<compile_context>
chip_gen: v7x
topology: tpu7x:2x2x1
jax: 0.10.0
libtpu: 0.0.40
codegen_flags: <defaults>
</compile_context>

<pallas_src>
import functools
import math

import jax
import jax.numpy as jnp
from jax import lax
from jax.experimental import pallas as pl
from jax.experimental.pallas import tpu as pltpu


# ----------------------------------------------------------------------------- tiling helper

def _pick_tile(dim, pref, align):
    """Largest tile <= pref that divides dim; full dim if dim <= pref.

    Tiles larger than `pref` fall back to aligned divisors so the (8,128) block
    constraint is always satisfied (full dims are always allowed)."""
    if dim <= pref:
        return dim
    t = (pref // align) * align
    while t >= align:
        if dim % t == 0:
            return t
        t -= align
    return dim  # fallback: full dimension


# ----------------------------------------------------------------------------- fused matmul

def _make_mm_kernel(*, fuse_ln, activation, add_residual, row_affine, ln_eps=1e-5):
    """Tiled matmul kernel with optional fused LayerNorm prologue and
    bias / GELU / residual / per-row affine (RevIN denorm) epilogue."""

    def kernel(*refs):
        idx = 0
        x_ref = refs[idx]; idx += 1
        if fuse_ln:
            g_ref = refs[idx]; bln_ref = refs[idx + 1]; idx += 2
        w_ref = refs[idx]; idx += 1
        b_ref = refs[idx]; idx += 1
        if add_residual:
            res_ref = refs[idx]; idx += 1
        if row_affine:
            sc_ref = refs[idx]; sh_ref = refs[idx + 1]; idx += 2
        o_ref = refs[idx]
        acc_ref = refs[idx + 1]

        k = pl.program_id(2)
        nk = pl.num_programs(2)

        @pl.when(k == 0)
        def _init():
            acc_ref[...] = jnp.zeros_like(acc_ref)

        x = x_ref[...]
        if fuse_ln:
            # LayerNorm over the full row (K is untiled for LN-fused calls).
            mu = jnp.mean(x, axis=-1, keepdims=True)
            xc = x - mu
            var = jnp.mean(xc * xc, axis=-1, keepdims=True)
            x = xc * lax.rsqrt(var + ln_eps) * g_ref[...] + bln_ref[...]

        acc_ref[...] += jnp.dot(x.astype(jnp.bfloat16), w_ref[...],
                                preferred_element_type=jnp.float32)

        @pl.when(k == nk - 1)
        def _fin():
            out = acc_ref[...] + b_ref[...]
            if activation == "gelu":
                # GPT2 "gelu_new" (tanh approximation), in f32.
                c = math.sqrt(2.0 / math.pi)
                out = 0.5 * out * (1.0 + jnp.tanh(c * (out + 0.044715 * out * out * out)))
            if add_residual:
                out = out + res_ref[...]
            if row_affine:
                out = out * sc_ref[...] + sh_ref[...]
            o_ref[...] = out.astype(o_ref.dtype)

    return kernel


def fused_linear(x, w, b, *, ln=None, residual=None, row_affine=None, activation=None,
                 tm_pref=256, tn_pref=256, tk_pref=512):
    """y = act(LN?(x) @ w + b) [+ residual] [* scale + shift]   (all fused in one pallas_call)."""
    Mrows, K = x.shape
    Kw, Ncols = w.shape
    assert K == Kw

    w_bf = w.astype(jnp.bfloat16)            # bf16 MXU operands, f32 accumulation
    b2 = b.reshape(1, Ncols).astype(jnp.float32)

    tm = _pick_tile(Mrows, tm_pref, 8)
    tn = _pick_tile(Ncols, tn_pref, 128)
    tk = K if ln is not None else _pick_tile(K, tk_pref, 128)
    grid = (Mrows // tm, Ncols // tn, K // tk)

    inputs = [x]
    in_specs = [pl.BlockSpec((tm, tk), lambda i, j, kk: (i, kk))]
    if ln is not None:
        g, bl = ln
        inputs += [g.reshape(1, K).astype(jnp.float32), bl.reshape(1, K).astype(jnp.float32)]
        in_specs += [pl.BlockSpec((1, K), lambda i, j, kk: (0, 0)),
                     pl.BlockSpec((1, K), lambda i, j, kk: (0, 0))]
    inputs += [w_bf, b2]
    in_specs += [pl.BlockSpec((tk, tn), lambda i, j, kk: (kk, j)),
                 pl.BlockSpec((1, tn), lambda i, j, kk: (0, j))]
    if residual is not None:
        inputs.append(residual)
        in_specs.append(pl.BlockSpec((tm, tn), lambda i, j, kk: (i, j)))
    if row_affine is not None:
        scale, shift = row_affine
        inputs += [scale, shift]
        in_specs += [pl.BlockSpec((tm, 1), lambda i, j, kk: (i, 0)),
                     pl.BlockSpec((tm, 1), lambda i, j, kk: (i, 0))]

    kernel = _make_mm_kernel(fuse_ln=ln is not None, activation=activation,
                             add_residual=residual is not None,
                             row_affine=row_affine is not None)

    return pl.pallas_call(
        kernel,
        out_shape=jax.ShapeDtypeStruct((Mrows, Ncols), jnp.float32),
        grid=grid,
        in_specs=in_specs,
        out_specs=pl.BlockSpec((tm, tn), lambda i, j, kk: (i, j)),
        scratch_shapes=[pltpu.VMEM((tm, tn), jnp.float32)],
        compiler_params=pltpu.CompilerParams(
            dimension_semantics=("parallel", "parallel", "arbitrary")),
    )(*inputs)


# ----------------------------------------------------------------------------- RevIN kernels

def _revin_kernel(x_ref, xn_ref, mu_ref, sd_ref):
    # x: (rows, L) channel-major, reduce over the (lane-dense) time axis.
    x = x_ref[...]
    mu = jnp.mean(x, axis=-1, keepdims=True)
    xc = x - mu
    mu2 = jnp.mean(xc, axis=-1, keepdims=True)          # matches torch.var(unbiased=False)
    var = jnp.mean((xc - mu2) * (xc - mu2), axis=-1, keepdims=True)
    sd = jnp.sqrt(var + 1e-5)
    xn_ref[...] = xc / sd
    mu_ref[...] = mu
    sd_ref[...] = sd


def revin_norm(xcm):
    Rm, L = xcm.shape
    tr = _pick_tile(Rm, 512, 8)
    spec_x = pl.BlockSpec((tr, L), lambda i: (i, 0))
    spec_s = pl.BlockSpec((tr, 1), lambda i: (i, 0))
    return pl.pallas_call(
        _revin_kernel,
        out_shape=(jax.ShapeDtypeStruct((Rm, L), jnp.float32),
                   jax.ShapeDtypeStruct((Rm, 1), jnp.float32),
                   jax.ShapeDtypeStruct((Rm, 1), jnp.float32)),
        grid=(Rm // tr,),
        in_specs=[spec_x],
        out_specs=(spec_x, spec_s, spec_s),
        compiler_params=pltpu.CompilerParams(dimension_semantics=("parallel",)),
    )(xcm)


# ----------------------------------------------------------------------------- layernorm (ln_f)

def _layernorm_kernel(x_ref, g_ref, b_ref, o_ref):
    x = x_ref[...]
    mu = jnp.mean(x, axis=-1, keepdims=True)
    xc = x - mu
    var = jnp.mean(xc * xc, axis=-1, keepdims=True)
    o_ref[...] = xc * lax.rsqrt(var + 1e-5) * g_ref[...] + b_ref[...]


def layernorm(x, g, b):
    Rr, D = x.shape
    tm = _pick_tile(Rr, 512, 8)
    return pl.pallas_call(
        _layernorm_kernel,
        out_shape=jax.ShapeDtypeStruct((Rr, D), jnp.float32),
        grid=(Rr // tm,),
        in_specs=[pl.BlockSpec((tm, D), lambda i: (i, 0)),
                  pl.BlockSpec((1, D), lambda i: (0, 0)),
                  pl.BlockSpec((1, D), lambda i: (0, 0))],
        out_specs=pl.BlockSpec((tm, D), lambda i: (i, 0)),
        compiler_params=pltpu.CompilerParams(dimension_semantics=("parallel",)),
    )(x, g.reshape(1, D), b.reshape(1, D))


# ----------------------------------------------------------------------------- causal attention

def _attn_kernel(q_ref, k_ref, v_ref, o_ref, *, n_head, scale):
    # Blocks: (tr, N, D) slices taken directly from the fused qkv activation.
    q = q_ref[...]
    k = k_ref[...]
    v = v_ref[...]
    tr, N, D = q.shape
    Dh = D // n_head

    row = lax.broadcasted_iota(jnp.int32, (1, N, N), 1)
    col = lax.broadcasted_iota(jnp.int32, (1, N, N), 2)
    mask = col <= row

    outs = []
    for h in range(n_head):                       # static unroll over heads
        sl = slice(h * Dh, (h + 1) * Dh)
        qh = q[:, :, sl].astype(jnp.bfloat16)
        kh = k[:, :, sl].astype(jnp.bfloat16)
        vh = v[:, :, sl].astype(jnp.bfloat16)
        s = jnp.einsum("rnd,rmd->rnm", qh, kh,
                       preferred_element_type=jnp.float32) * scale
        s = jnp.where(mask, s, -1e30)             # causal mask (f32 scores)
        m = jnp.max(s, axis=-1, keepdims=True)
        p = jnp.exp(s - m)
        denom = jnp.sum(p, axis=-1, keepdims=True)
        p = p * pl.reciprocal(denom, approx=True)
        outs.append(jnp.einsum("rnm,rmd->rnd", p.astype(jnp.bfloat16), vh,
                               preferred_element_type=jnp.float32))
    o_ref[...] = jnp.concatenate(outs, axis=-1)   # lane-dense (tr, N, D) store


def causal_attention(qkv, n_head, d_model):
    R, N, threeD = qkv.shape
    D = d_model
    assert threeD == 3 * D
    tr = _pick_tile(R, 8, 1)                      # a few (b,m) rows per grid step
    spec_q = pl.BlockSpec((tr, N, D), lambda r: (r, 0, 0))
    spec_k = pl.BlockSpec((tr, N, D), lambda r: (r, 0, 1))
    spec_v = pl.BlockSpec((tr, N, D), lambda r: (r, 0, 2))
    return pl.pallas_call(
        functools.partial(_attn_kernel, n_head=n_head, scale=1.0 / math.sqrt(D // n_head)),
        out_shape=jax.ShapeDtypeStruct((R, N, D), jnp.float32),
        grid=(R // tr,),
        in_specs=[spec_q, spec_k, spec_v],
        out_specs=pl.BlockSpec((tr, N, D), lambda r: (r, 0, 0)),
        compiler_params=pltpu.CompilerParams(dimension_semantics=("parallel",)),
    )(qkv, qkv, qkv)


# ----------------------------------------------------------------------------- GPT2 backbone

def gpt2_forward(h, gp, n_head):
    # h: (R, N, D) with R = B*M
    R, N, D = h.shape
    # positional embedding add (cheap JAX elementwise; TODO(synk): could be folded into
    # the in_layer epilogue with a row-structured BlockSpec).
    h = h + gp["wpe"][:N][None]
    # TODO(synk): GPT2 dropout layers are skipped (PyTorch module is left in .train() mode,
    # which would make the forward stochastic); identity (eval-mode) behaviour is used.
    h2 = h.reshape(R * N, D)
    for blk in gp["blocks"]:
        # ln_1 fused into the qkv matmul
        qkv = fused_linear(h2, blk["attn_w"], blk["attn_b"],
                           ln=(blk["ln1_g"], blk["ln1_b"]))          # (R*N, 3D)
        a = causal_attention(qkv.reshape(R, N, 3 * D), n_head, D)    # (R, N, D)
        # attn output projection with fused residual add
        h2 = fused_linear(a.reshape(R * N, D), blk["proj_w"], blk["proj_b"],
                          residual=h2)
        # ln_2 + fc + gelu_new fused, then mlp projection with fused residual add
        m = fused_linear(h2, blk["fc_w"], blk["fc_b"],
                         ln=(blk["ln2_g"], blk["ln2_b"]), activation="gelu")
        h2 = fused_linear(m, blk["mproj_w"], blk["mproj_b"], residual=h2)

    h2 = layernorm(h2, gp["lnf_g"], gp["lnf_b"])
    return h2.reshape(R, N, D)


# ----------------------------------------------------------------------------- full model

def gpt4ts_forward(x, params, cfg):
    B, L, M = x.shape
    P, S, PN, D = cfg["patch_size"], cfg["stride"], cfg["patch_num"], cfg["d_model"]

    # Channel-major (B*M, L) view: lane-dense RevIN reductions + same view used for patching.
    xcm = jnp.transpose(x, (0, 2, 1)).reshape(B * M, L)
    xn, means, stdev = revin_norm(xcm)            # (B*M, L), (B*M, 1), (B*M, 1)

    # ReplicationPad1d((0, stride)) + unfold(patch_size, stride)   (data movement in JAX)
    xpad = jnp.concatenate([xn, jnp.repeat(xn[:, -1:], S, axis=-1)], axis=-1)
    idx = jnp.arange(PN)[:, None] * S + jnp.arange(P)[None, :]
    patches = xpad[:, idx]                        # (B*M, PN, P)

    # in_layer: Linear(patch_size -> d_model)
    h = fused_linear(patches.reshape(B * M * PN, P), params["in_w"], params["in_b"])
    h = h.reshape(B * M, PN, D)

    # GPT2 backbone (gpt_layers blocks), last_hidden_state
    h = gpt2_forward(h, params["gpt2"], cfg["n_head"])

    # out_layer: Linear(d_model * patch_num -> pred_len) with the RevIN de-normalization
    # (out * stdev + means, per (b, m) row) fused into the epilogue.
    out = fused_linear(h.reshape(B * M, PN * D), params["out_w"], params["out_b"],
                       row_affine=(stdev, means))                    # (B*M, pred_len)
    out = out.reshape(B, M, cfg["pred_len"]).transpose(0, 2, 1)      # (B, pred_len, M)
    return out


# ----------------------------------------------------------------------------- params

def init_params(key, cfg):
    D, P, PN = cfg["d_model"], cfg["patch_size"], cfg["patch_num"]
    keys = list(jax.random.split(key, 8 + 4 * cfg["gpt_layers"]))
    it = iter(keys)

    def nrm(shape, scale=0.02):
        return scale * jax.random.normal(next(it), shape, jnp.float32)

    blocks = []
    for _ in range(cfg["gpt_layers"]):
        blocks.append({
            "ln1_g": jnp.ones((D,), jnp.float32), "ln1_b": jnp.zeros((D,), jnp.float32),
            "attn_w": nrm((D, 3 * D)), "attn_b": jnp.zeros((3 * D,), jnp.float32),
            "proj_w": nrm((D, D)), "proj_b": jnp.zeros((D,), jnp.float32),
            "ln2_g": jnp.ones((D,), jnp.float32), "ln2_b": jnp.zeros((D,), jnp.float32),
            "fc_w": nrm((D, 4 * D)), "fc_b": jnp.zeros((4 * D,), jnp.float32),
            "mproj_w": nrm((4 * D, D)), "mproj_b": jnp.zeros((D,), jnp.float32),
        })
    return {
        "in_w": nrm((P, D)), "in_b": jnp.zeros((D,), jnp.float32),
        "out_w": nrm((D * PN, cfg["pred_len"])),
        "out_b": jnp.zeros((cfg["pred_len"],), jnp.float32),
        "gpt2": {
            "wpe": nrm((cfg["n_positions"], D)),
            "lnf_g": jnp.ones((D,), jnp.float32), "lnf_b": jnp.zeros((D,), jnp.float32),
            "blocks": blocks,
        },
    }


# ----------------------------------------------------------------------------- main

if __name__ == "__main__":
    # small, self-consistent config (GPT2 width shrunk; weights are synthetic)
    seq_len, patch_size, stride = 16, 4, 4
    patch_num = (seq_len - patch_size) // stride + 1 + 1   # +1 for the replication pad
    cfg = dict(
        seq_len=seq_len, patch_size=patch_size, stride=stride, patch_num=patch_num,
        d_model=128, n_head=4, gpt_layers=2, pred_len=8, n_positions=64,
    )

    key = jax.random.PRNGKey(0)
    kx, kp = jax.random.split(key)
    B, L, M = 2, seq_len, 4
    x = jax.random.normal(kx, (B, L, M), jnp.float32)
    params = init_params(kp, cfg)

    fwd = jax.jit(functools.partial(gpt4ts_forward, cfg=cfg))
    out = jax.block_until_ready(fwd(x, params))
    assert out.shape == (B, cfg["pred_len"], M)
    assert bool(jnp.all(jnp.isfinite(out)))
    print("KERNEL_OK")
</pallas_src>

<mosaic_0001>
module attributes {stable_mosaic.version = 11 : i64} {
  func.func @_revin_kernel(%arg0: i32, %arg1: memref<8x16xf32, #tpu.memory_space<vmem>>, %arg2: memref<8x16xf32, #tpu.memory_space<vmem>>, %arg3: memref<8x1xf32, #tpu.memory_space<vmem>>, %arg4: memref<8x1xf32, #tpu.memory_space<vmem>>) attributes {dimension_semantics = [#tpu.dimension_semantics<parallel>], iteration_bounds = array<i64: 1>, scalar_prefetch = 0 : i64, scratch_operands = 0 : i64, tpu.core_type = #tpu.core_type<tc>, window_params = [{transform_indices = @transform_0, window_bounds = array<i64: 8, 16>}, {transform_indices = @transform_1, window_bounds = array<i64: 8, 16>}, {transform_indices = @transform_2, window_bounds = array<i64: 8, 1>}, {transform_indices = @transform_3, window_bounds = array<i64: 8, 1>}]} {
    %c0 = arith.constant 0 : index
    %c0_0 = arith.constant 0 : index
    %0 = vector.load %arg1[%c0, %c0_0] : memref<8x16xf32, #tpu.memory_space<vmem>>, vector<8x16xf32>
    %cst = arith.constant dense<0.000000e+00> : vector<8xf32>
    %1 = vector.multi_reduction <add>, %0, %cst [1] : vector<8x16xf32> to vector<8xf32>
    %2 = vector.shape_cast %1 : vector<8xf32> to vector<8x1xf32>
    %cst_1 = arith.constant 1.600000e+01 : f32
    %3 = vector.broadcast %cst_1 : f32 to vector<8x1xf32>
    %4 = arith.divf %2, %3 : vector<8x1xf32>
    %5 = vector.broadcast %4 : vector<8x1xf32> to vector<8x16xf32>
    %6 = arith.subf %0, %5 : vector<8x16xf32>
    %cst_2 = arith.constant dense<0.000000e+00> : vector<8xf32>
    %7 = vector.multi_reduction <add>, %6, %cst_2 [1] : vector<8x16xf32> to vector<8xf32>
    %8 = vector.shape_cast %7 : vector<8xf32> to vector<8x1xf32>
    %cst_3 = arith.constant 1.600000e+01 : f32
    %9 = vector.broadcast %cst_3 : f32 to vector<8x1xf32>
    %10 = arith.divf %8, %9 : vector<8x1xf32>
    %11 = vector.broadcast %10 : vector<8x1xf32> to vector<8x16xf32>
    %12 = arith.subf %6, %11 : vector<8x16xf32>
    %13 = vector.broadcast %10 : vector<8x1xf32> to vector<8x16xf32>
    %14 = arith.subf %6, %13 : vector<8x16xf32>
    %15 = arith.mulf %12, %14 : vector<8x16xf32>
    %cst_4 = arith.constant dense<0.000000e+00> : vector<8xf32>
    %16 = vector.multi_reduction <add>, %15, %cst_4 [1] : vector<8x16xf32> to vector<8xf32>
    %17 = vector.shape_cast %16 : vector<8xf32> to vector<8x1xf32>
    %cst_5 = arith.constant 1.600000e+01 : f32
    %18 = vector.broadcast %cst_5 : f32 to vector<8x1xf32>
    %19 = arith.divf %17, %18 : vector<8x1xf32>
    %cst_6 = arith.constant 9.99999974E-6 : f32
    %20 = vector.broadcast %cst_6 : f32 to vector<8x1xf32>
    %21 = arith.addf %19, %20 : vector<8x1xf32>
    %22 = math.sqrt %21 : vector<8x1xf32>
    %23 = vector.broadcast %22 : vector<8x1xf32> to vector<8x16xf32>
    %24 = arith.divf %6, %23 : vector<8x16xf32>
    %c0_7 = arith.constant 0 : index
    %c0_8 = arith.constant 0 : index
    %25 = vector.load %arg2[%c0_7, %c0_8] : memref<8x16xf32, #tpu.memory_space<vmem>>, vector<8x16xf32>
    tpu.vector_store %arg2[%c0_7, %c0_8], %24 {strides = array<i32>} : memref<8x16xf32, #tpu.memory_space<vmem>>, vector<8x16xf32>,
    %c0_9 = arith.constant 0 : index
    %c0_10 = arith.constant 0 : index
    %26 = vector.load %arg3[%c0_9, %c0_10] : memref<8x1xf32, #tpu.memory_space<vmem>>, vector<8x1xf32>
    tpu.vector_store %arg3[%c0_9, %c0_10], %4 {strides = array<i32>} : memref<8x1xf32, #tpu.memory_space<vmem>>, vector<8x1xf32>,
    %c0_11 = arith.constant 0 : index
    %c0_12 = arith.constant 0 : index
    %27 = vector.load %arg4[%c0_11, %c0_12] : memref<8x1xf32, #tpu.memory_space<vmem>>, vector<8x1xf32>
    tpu.vector_store %arg4[%c0_11, %c0_12], %22 {strides = array<i32>} : memref<8x1xf32, #tpu.memory_space<vmem>>, vector<8x1xf32>,
    return
  }
  func.func @transform_0(%arg0: i32) -> (i32, i32) {
    %c0_i32 = arith.constant 0 : i32
    %c0_i32_0 = arith.constant 0 : i32
    return %arg0, %c0_i32 : i32, i32
  }
  func.func @transform_1(%arg0: i32) -> (i32, i32) {
    %c0_i32 = arith.constant 0 : i32
    %c0_i32_0 = arith.constant 0 : i32
    return %arg0, %c0_i32 : i32, i32
  }
  func.func @transform_2(%arg0: i32) -> (i32, i32) {
    %c0_i32 = arith.constant 0 : i32
    %c0_i32_0 = arith.constant 0 : i32
    return %arg0, %c0_i32 : i32, i32
  }
  func.func @transform_3(%arg0: i32) -> (i32, i32) {
    %c0_i32 = arith.constant 0 : i32
    %c0_i32_0 = arith.constant 0 : i32
    return %arg0, %c0_i32 : i32, i32
  }
}

module attributes {stable_mosaic.version = 11 : i64} {
  func.func @kernel(%arg0: i32, %arg1: i32, %arg2: i32, %arg3: memref<40x4xf32, #tpu.memory_space<vmem>>, %arg4: memref<4x128xbf16, #tpu.memory_space<vmem>>, %arg5: memref<1x128xf32, #tpu.memory_space<vmem>>, %arg6: memref<40x128xf32, #tpu.memory_space<vmem>>, %arg7: memref<40x128xf32, #tpu.memory_space<vmem>>) attributes {dimension_semantics = [#tpu.dimension_semantics<parallel>, #tpu.dimension_semantics<parallel>, #tpu.dimension_semantics<arbitrary>], iteration_bounds = array<i64: 1, 1, 1>, scalar_prefetch = 0 : i64, scratch_operands = 1 : i64, tpu.core_type = #tpu.core_type<tc>, window_params = [{transform_indices = @transform_0, window_bounds = array<i64: 40, 4>}, {transform_indices = @transform_1, window_bounds = array<i64: 4, 128>}, {transform_indices = @transform_2, window_bounds = array<i64: 1, 128>}, {transform_indices = @transform_3, window_bounds = array<i64: 40, 128>}]} {
    %c0_i32 = arith.constant 0 : i32
    %0 = arith.cmpi eq, %arg2, %c0_i32 : i32
    %1 = arith.extui %0 : i1 to i32
    %c0_i32_0 = arith.constant 0 : i32
    %2 = arith.cmpi ne, %1, %c0_i32_0 : i32
    scf.if %2 {
      %cst_10 = arith.constant 0.000000e+00 : f32
      %13 = vector.broadcast %cst_10 : f32 to vector<40x128xf32>
      %c0_11 = arith.constant 0 : index
      %c0_12 = arith.constant 0 : index
      %14 = vector.load %arg7[%c0_11, %c0_12] : memref<40x128xf32, #tpu.memory_space<vmem>>, vector<40x128xf32>
      tpu.vector_store %arg7[%c0_11, %c0_12], %13 {strides = array<i32>} : memref<40x128xf32, #tpu.memory_space<vmem>>, vector<40x128xf32>,
    } else {
    }
    %c0 = arith.constant 0 : index
    %c0_1 = arith.constant 0 : index
    %3 = vector.load %arg3[%c0, %c0_1] : memref<40x4xf32, #tpu.memory_space<vmem>>, vector<40x4xf32>
    %c0_2 = arith.constant 0 : index
    %c0_3 = arith.constant 0 : index
    %4 = vector.load %arg7[%c0_2, %c0_3] : memref<40x128xf32, #tpu.memory_space<vmem>>, vector<40x128xf32>
    %5 = arith.truncf %3 : vector<40x4xf32> to vector<40x4xbf16>
    %c0_4 = arith.constant 0 : index
    %c0_5 = arith.constant 0 : index
    %6 = vector.load %arg4[%c0_4, %c0_5] : memref<4x128xbf16, #tpu.memory_space<vmem>>, vector<4x128xbf16>
    %cst = arith.constant dense<0.000000e+00> : vector<40x128xf32>
    %7 = tpu.matmul %5, %6, %cst {dimension_numbers = #tpu.dot_dimension_numbers<[1], [0], [0], [1], [0, 0, 1, 1], [], []>} : vector<40x4xbf16>, vector<4x128xbf16>, vector<40x128xf32> -> vector<40x128xf32>
    %8 = arith.addf %4, %7 : vector<40x128xf32>
    %c0_6 = arith.constant 0 : index
    %c0_7 = arith.constant 0 : index
    %9 = vector.load %arg7[%c0_6, %c0_7] : memref<40x128xf32, #tpu.memory_space<vmem>>, vector<40x128xf32>
    tpu.vector_store %arg7[%c0_6, %c0_7], %8 {strides = array<i32>} : memref<40x128xf32, #tpu.memory_space<vmem>>, vector<40x128xf32>,
    %c0_i32_8 = arith.constant 0 : i32
    %10 = arith.cmpi eq, %arg2, %c0_i32_8 : i32
    %11 = arith.extui %10 : i1 to i32
    %c0_i32_9 = arith.constant 0 : i32
    %12 = arith.cmpi ne, %11, %c0_i32_9 : i32
    scf.if %12 {
      %c0_10 = arith.constant 0 : index
      %c0_11 = arith.constant 0 : index
      %13 = vector.load %arg7[%c0_10, %c0_11] : memref<40x128xf32, #tpu.memory_space<vmem>>, vector<40x128xf32>
      %c0_12 = arith.constant 0 : index
      %c0_13 = arith.constant 0 : index
      %14 = vector.load %arg5[%c0_12, %c0_13] : memref<1x128xf32, #tpu.memory_space<vmem>>, vector<1x128xf32>
      %15 = vector.broadcast %14 : vector<1x128xf32> to vector<40x128xf32>
      %16 = arith.addf %13, %15 : vector<40x128xf32>
      %c0_14 = arith.constant 0 : index
      %c0_15 = arith.constant 0 : index
      %17 = vector.load %arg6[%c0_14, %c0_15] : memref<40x128xf32, #tpu.memory_space<vmem>>, vector<40x128xf32>
      tpu.vector_store %arg6[%c0_14, %c0_15], %16 {strides = array<i32>} : memref<40x128xf32, #tpu.memory_space<vmem>>, vector<40x128xf32>,
    } else {
    }
    return
  }
  func.func @transform_0(%arg0: i32, %arg1: i32, %arg2: i32) -> (i32, i32) {
    %c0_i32 = arith.constant 0 : i32
    return %arg0, %arg2 : i32, i32
  }
  func.func @transform_1(%arg0: i32, %arg1: i32, %arg2: i32) -> (i32, i32) {
    %c0_i32 = arith.constant 0 : i32
    return %arg2, %arg1 : i32, i32
  }
  func.func @transform_2(%arg0: i32, %arg1: i32, %arg2: i32) -> (i32, i32) {
    %c0_i32 = arith.constant 0 : i32
    %c0_i32_0 = arith.constant 0 : i32
    return %c0_i32, %arg1 : i32, i32
  }
  func.func @transform_3(%arg0: i32, %arg1: i32, %arg2: i32) -> (i32, i32) {
    %c0_i32 = arith.constant 0 : i32
    return %arg0, %arg1 : i32, i32
  }
}

module attributes {stable_mosaic.version = 11 : i64} {
  func.func @kernel(%arg0: i32, %arg1: i32, %arg2: i32, %arg3: memref<40x128xf32, #tpu.memory_space<vmem>>, %arg4: memref<1x128xf32, #tpu.memory_space<vmem>>, %arg5: memref<1x128xf32, #tpu.memory_space<vmem>>, %arg6: memref<128x128xbf16, #tpu.memory_space<vmem>>, %arg7: memref<1x128xf32, #tpu.memory_space<vmem>>, %arg8: memref<40x128xf32, #tpu.memory_space<vmem>>, %arg9: memref<40x128xf32, #tpu.memory_space<vmem>>) attributes {dimension_semantics = [#tpu.dimension_semantics<parallel>, #tpu.dimension_semantics<parallel>, #tpu.dimension_semantics<arbitrary>], iteration_bounds = array<i64: 1, 3, 1>, scalar_prefetch = 0 : i64, scratch_operands = 1 : i64, tpu.core_type = #tpu.core_type<tc>, window_params = [{transform_indices = @transform_0, window_bounds = array<i64: 40, 128>}, {pipeline_mode = #tpu.pipeline_mode<synchronous>, transform_indices = @transform_1, window_bounds = array<i64: 1, 128>}, {pipeline_mode = #tpu.pipeline_mode<synchronous>, transform_indices = @transform_2, window_bounds = array<i64: 1, 128>}, {transform_indices = @transform_3, window_bounds = array<i64: 128, 128>}, {transform_indices = @transform_4, window_bounds = array<i64: 1, 128>}, {transform_indices = @transform_5, window_bounds = array<i64: 40, 128>}]} {
    %c0_i32 = arith.constant 0 : i32
    %0 = arith.cmpi eq, %arg2, %c0_i32 : i32
    %1 = arith.extui %0 : i1 to i32
    %c0_i32_0 = arith.constant 0 : i32
    %2 = arith.cmpi ne, %1, %c0_i32_0 : i32
    scf.if %2 {
      %cst_19 = arith.constant 0.000000e+00 : f32
      %35 = vector.broadcast %cst_19 : f32 to vector<40x128xf32>
      %c0_20 = arith.constant 0 : index
      %c0_21 = arith.constant 0 : index
      %36 = vector.load %arg9[%c0_20, %c0_21] : memref<40x128xf32, #tpu.memory_space<vmem>>, vector<40x128xf32>
      tpu.vector_store %arg9[%c0_20, %c0_21], %35 {strides = array<i32>} : memref<40x128xf32, #tpu.memory_space<vmem>>, vector<40x128xf32>,
    } else {
    }
    %c0 = arith.constant 0 : index
    %c0_1 = arith.constant 0 : index
    %3 = vector.load %arg3[%c0, %c0_1] : memref<40x128xf32, #tpu.memory_space<vmem>>, vector<40x128xf32>
    %cst = arith.constant dense<0.000000e+00> : vector<40xf32>
    %4 = vector.multi_reduction <add>, %3, %cst [1] : vector<40x128xf32> to vector<40xf32>
    %5 = vector.shape_cast %4 : vector<40xf32> to vector<40x1xf32>
    %cst_2 = arith.constant 1.280000e+02 : f32
    %6 = vector.broadcast %cst_2 : f32 to vector<40x1xf32>
    %7 = arith.divf %5, %6 : vector<40x1xf32>
    %8 = vector.broadcast %7 : vector<40x1xf32> to vector<40x128xf32>
    %9 = arith.subf %3, %8 : vector<40x128xf32>
    %10 = arith.mulf %9, %9 : vector<40x128xf32>
    %cst_3 = arith.constant dense<0.000000e+00> : vector<40xf32>
    %11 = vector.multi_reduction <add>, %10, %cst_3 [1] : vector<40x128xf32> to vector<40xf32>
    %12 = vector.shape_cast %11 : vector<40xf32> to vector<40x1xf32>
    %cst_4 = arith.constant 1.280000e+02 : f32
    %13 = vector.broadcast %cst_4 : f32 to vector<40x1xf32>
    %14 = arith.divf %12, %13 : vector<40x1xf32>
    %cst_5 = arith.constant 9.99999974E-6 : f32
    %15 = vector.broadcast %cst_5 : f32 to vector<40x1xf32>
    %16 = arith.addf %14, %15 : vector<40x1xf32>
    %17 = math.rsqrt %16 : vector<40x1xf32>
    %18 = vector.broadcast %17 : vector<40x1xf32> to vector<40x128xf32>
    %19 = arith.mulf %9, %18 : vector<40x128xf32>
    %c0_6 = arith.constant 0 : index
    %c0_7 = arith.constant 0 : index
    %20 = vector.load %arg4[%c0_6, %c0_7] : memref<1x128xf32, #tpu.memory_space<vmem>>, vector<1x128xf32>
    %21 = vector.broadcast %20 : vector<1x128xf32> to vector<40x128xf32>
    %22 = arith.mulf %19, %21 : vector<40x128xf32>
    %c0_8 = arith.constant 0 : index
    %c0_9 = arith.constant 0 : index
    %23 = vector.load %arg5[%c0_8, %c0_9] : memref<1x128xf32, #tpu.memory_space<vmem>>, vector<1x128xf32>
    %24 = vector.broadcast %23 : vector<1x128xf32> to vector<40x128xf32>
    %25 = arith.addf %22, %24 : vector<40x128xf32>
    %c0_10 = arith.constant 0 : index
    %c0_11 = arith.constant 0 : index
    %26 = vector.load %arg9[%c0_10, %c0_11] : memref<40x128xf32, #tpu.memory_space<vmem>>, vector<40x128xf32>
    %27 = arith.truncf %25 : vector<40x128xf32> to vector<40x128xbf16>
    %c0_12 = arith.constant 0 : index
    %c0_13 = arith.constant 0 : index
    %28 = vector.load %arg6[%c0_12, %c0_13] : memref<128x128xbf16, #tpu.memory_space<vmem>>, vector<128x128xbf16>
    %cst_14 = arith.constant dense<0.000000e+00> : vector<40x128xf32>
    %29 = tpu.matmul %27, %28, %cst_14 {dimension_numbers = #tpu.dot_dimension_numbers<[1], [0], [0], [1], [0, 0, 1, 1], [], []>} : vector<40x128xbf16>, vector<128x128xbf16>, vector<40x128xf32> -> vector<40x128xf32>
    %30 = arith.addf %26, %29 : vector<40x128xf32>
    %c0_15 = arith.constant 0 : index
    %c0_16 = arith.constant 0 : index
    %31 = vector.load %arg9[%c0_15, %c0_16] : memref<40x128xf32, #tpu.memory_space<vmem>>, vector<40x128xf32>
    tpu.vector_store %arg9[%c0_15, %c0_16], %30 {strides = array<i32>} : memref<40x128xf32, #tpu.memory_space<vmem>>, vector<40x128xf32>,
    %c0_i32_17 = arith.constant 0 : i32
    %32 = arith.cmpi eq, %arg2, %c0_i32_17 : i32
    %33 = arith.extui %32 : i1 to i32
    %c0_i32_18 = arith.constant 0 : i32
    %34 = arith.cmpi ne, %33, %c0_i32_18 : i32
    scf.if %34 {
      %c0_19 = arith.constant 0 : index
      %c0_20 = arith.constant 0 : index
      %35 = vector.load %arg9[%c0_19, %c0_20] : memref<40x128xf32, #tpu.memory_space<vmem>>, vector<40x128xf32>
      %c0_21 = arith.constant 0 : index
      %c0_22 = arith.constant 0 : index
      %36 = vector.load %arg7[%c0_21, %c0_22] : memref<1x128xf32, #tpu.memory_space<vmem>>, vector<1x128xf32>
      %37 = vector.broadcast %36 : vector<1x128xf32> to vector<40x128xf32>
      %38 = arith.addf %35, %37 : vector<40x128xf32>
      %c0_23 = arith.constant 0 : index
      %c0_24 = arith.constant 0 : index
      %39 = vector.load %arg8[%c0_23, %c0_24] : memref<40x128xf32, #tpu.memory_space<vmem>>, vector<40x128xf32>
      tpu.vector_store %arg8[%c0_23, %c0_24], %38 {strides = array<i32>} : memref<40x128xf32, #tpu.memory_space<vmem>>, vector<40x128xf32>,
    } else {
    }
    return
  }
  func.func @transform_0(%arg0: i32, %arg1: i32, %arg2: i32) -> (i32, i32) {
    %c0_i32 = arith.constant 0 : i32
    return %arg0, %arg2 : i32, i32
  }
  func.func @transform_1(%arg0: i32, %arg1: i32, %arg2: i32) -> (i32, i32) {
    %c0_i32 = arith.constant 0 : i32
    %c0_i32_0 = arith.constant 0 : i32
    %c0_i32_1 = arith.constant 0 : i32
    return %c0_i32, %c0_i32_0 : i32, i32
  }
  func.func @transform_2(%arg0: i32, %arg1: i32, %arg2: i32) -> (i32, i32) {
    %c0_i32 = arith.constant 0 : i32
    %c0_i32_0 = arith.constant 0 : i32
    %c0_i32_1 = arith.constant 0 : i32
    return %c0_i32, %c0_i32_0 : i32, i32
  }
  func.func @transform_3(%arg0: i32, %arg1: i32, %arg2: i32) -> (i32, i32) {
    %c0_i32 = arith.constant 0 : i32
    return %arg2, %arg1 : i32, i32
  }
  func.func @transform_4(%arg0: i32, %arg1: i32, %arg2: i32) -> (i32, i32) {
    %c0_i32 = arith.constant 0 : i32
    %c0_i32_0 = arith.constant 0 : i32
    return %c0_i32, %arg1 : i32, i32
  }
  func.func @transform_5(%arg0: i32, %arg1: i32, %arg2: i32) -> (i32, i32) {
    %c0_i32 = arith.constant 0 : i32
    return %arg0, %arg1 : i32, i32
  }
}

module attributes {stable_mosaic.version = 11 : i64} {
  func.func @kernel(%arg0: i32, %arg1: i32, %arg2: i32, %arg3: memref<40x128xf32, #tpu.memory_space<vmem>>, %arg4: memref<128x128xbf16, #tpu.memory_space<vmem>>, %arg5: memref<1x128xf32, #tpu.memory_space<vmem>>, %arg6: memref<40x128xf32, #tpu.memory_space<vmem>>, %arg7: memref<40x128xf32, #tpu.memory_space<vmem>>, %arg8: memref<40x128xf32, #tpu.memory_space<vmem>>) attributes {dimension_semantics = [#tpu.dimension_semantics<parallel>, #tpu.dimension_semantics<parallel>, #tpu.dimension_semantics<arbitrary>], iteration_bounds = array<i64: 1, 1, 1>, scalar_prefetch = 0 : i64, scratch_operands = 1 : i64, tpu.core_type = #tpu.core_type<tc>, window_params = [{transform_indices = @transform_0, window_bounds = array<i64: 40, 128>}, {transform_indices = @transform_1, window_bounds = array<i64: 128, 128>}, {transform_indices = @transform_2, window_bounds = array<i64: 1, 128>}, {transform_indices = @transform_3, window_bounds = array<i64: 40, 128>}, {transform_indices = @transform_4, window_bounds = array<i64: 40, 128>}]} {
    %c0_i32 = arith.constant 0 : i32
    %0 = arith.cmpi eq, %arg2, %c0_i32 : i32
    %1 = arith.extui %0 : i1 to i32
    %c0_i32_0 = arith.constant 0 : i32
    %2 = arith.cmpi ne, %1, %c0_i32_0 : i32
    scf.if %2 {
      %cst_10 = arith.constant 0.000000e+00 : f32
      %13 = vector.broadcast %cst_10 : f32 to vector<40x128xf32>
      %c0_11 = arith.constant 0 : index
      %c0_12 = arith.constant 0 : index
      %14 = vector.load %arg8[%c0_11, %c0_12] : memref<40x128xf32, #tpu.memory_space<vmem>>, vector<40x128xf32>
      tpu.vector_store %arg8[%c0_11, %c0_12], %13 {strides = array<i32>} : memref<40x128xf32, #tpu.memory_space<vmem>>, vector<40x128xf32>,
    } else {
    }
    %c0 = arith.constant 0 : index
    %c0_1 = arith.constant 0 : index
    %3 = vector.load %arg3[%c0, %c0_1] : memref<40x128xf32, #tpu.memory_space<vmem>>, vector<40x128xf32>
    %c0_2 = arith.constant 0 : index
    %c0_3 = arith.constant 0 : index
    %4 = vector.load %arg8[%c0_2, %c0_3] : memref<40x128xf32, #tpu.memory_space<vmem>>, vector<40x128xf32>
    %5 = arith.truncf %3 : vector<40x128xf32> to vector<40x128xbf16>
    %c0_4 = arith.constant 0 : index
    %c0_5 = arith.constant 0 : index
    %6 = vector.load %arg4[%c0_4, %c0_5] : memref<128x128xbf16, #tpu.memory_space<vmem>>, vector<128x128xbf16>
    %cst = arith.constant dense<0.000000e+00> : vector<40x128xf32>
    %7 = tpu.matmul %5, %6, %cst {dimension_numbers = #tpu.dot_dimension_numbers<[1], [0], [0], [1], [0, 0, 1, 1], [], []>} : vector<40x128xbf16>, vector<128x128xbf16>, vector<40x128xf32> -> vector<40x128xf32>
    %8 = arith.addf %4, %7 : vector<40x128xf32>
    %c0_6 = arith.constant 0 : index
    %c0_7 = arith.constant 0 : index
    %9 = vector.load %arg8[%c0_6, %c0_7] : memref<40x128xf32, #tpu.memory_space<vmem>>, vector<40x128xf32>
    tpu.vector_store %arg8[%c0_6, %c0_7], %8 {strides = array<i32>} : memref<40x128xf32, #tpu.memory_space<vmem>>, vector<40x128xf32>,
    %c0_i32_8 = arith.constant 0 : i32
    %10 = arith.cmpi eq, %arg2, %c0_i32_8 : i32
    %11 = arith.extui %10 : i1 to i32
    %c0_i32_9 = arith.constant 0 : i32
    %12 = arith.cmpi ne, %11, %c0_i32_9 : i32
    scf.if %12 {
      %c0_10 = arith.constant 0 : index
      %c0_11 = arith.constant 0 : index
      %13 = vector.load %arg8[%c0_10, %c0_11] : memref<40x128xf32, #tpu.memory_space<vmem>>, vector<40x128xf32>
      %c0_12 = arith.constant 0 : index
      %c0_13 = arith.constant 0 : index
      %14 = vector.load %arg5[%c0_12, %c0_13] : memref<1x128xf32, #tpu.memory_space<vmem>>, vector<1x128xf32>
      %15 = vector.broadcast %14 : vector<1x128xf32> to vector<40x128xf32>
      %16 = arith.addf %13, %15 : vector<40x128xf32>
      %c0_14 = arith.constant 0 : index
      %c0_15 = arith.constant 0 : index
      %17 = vector.load %arg6[%c0_14, %c0_15] : memref<40x128xf32, #tpu.memory_space<vmem>>, vector<40x128xf32>
      %18 = arith.addf %16, %17 : vector<40x128xf32>
      %c0_16 = arith.constant 0 : index
      %c0_17 = arith.constant 0 : index
      %19 = vector.load %arg7[%c0_16, %c0_17] : memref<40x128xf32, #tpu.memory_space<vmem>>, vector<40x128xf32>
      tpu.vector_store %arg7[%c0_16, %c0_17], %18 {strides = array<i32>} : memref<40x128xf32, #tpu.memory_space<vmem>>, vector<40x128xf32>,
    } else {
    }
    return
  }
  func.func @transform_0(%arg0: i32, %arg1: i32, %arg2: i32) -> (i32, i32) {
    %c0_i32 = arith.constant 0 : i32
    return %arg0, %arg2 : i32, i32
  }
  func.func @transform_1(%arg0: i32, %arg1: i32, %arg2: i32) -> (i32, i32) {
    %c0_i32 = arith.constant 0 : i32
    return %arg2, %arg1 : i32, i32
  }
  func.func @transform_2(%arg0: i32, %arg1: i32, %arg2: i32) -> (i32, i32) {
    %c0_i32 = arith.constant 0 : i32
    %c0_i32_0 = arith.constant 0 : i32
    return %c0_i32, %arg1 : i32, i32
  }
  func.func @transform_3(%arg0: i32, %arg1: i32, %arg2: i32) -> (i32, i32) {
    %c0_i32 = arith.constant 0 : i32
    return %arg0, %arg1 : i32, i32
  }
  func.func @transform_4(%arg0: i32, %arg1: i32, %arg2: i32) -> (i32, i32) {
    %c0_i32 = arith.constant 0 : i32
    return %arg0, %arg1 : i32, i32
  }
}

module attributes {stable_mosaic.version = 11 : i64} {
  func.func @_attn_kernel(%arg0: i32, %arg1: memref<8x5x128xf32, #tpu.memory_space<vmem>>, %arg2: memref<8x5x128xf32, #tpu.memory_space<vmem>>, %arg3: memref<8x5x128xf32, #tpu.memory_space<vmem>>, %arg4: memref<8x5x128xf32, #tpu.memory_space<vmem>>) attributes {dimension_semantics = [#tpu.dimension_semantics<parallel>], iteration_bounds = array<i64: 1>, scalar_prefetch = 0 : i64, scratch_operands = 0 : i64, tpu.core_type = #tpu.core_type<tc>, window_params = [{transform_indices = @transform_0, window_bounds = array<i64: 8, 5, 128>}, {transform_indices = @transform_1, window_bounds = array<i64: 8, 5, 128>}, {transform_indices = @transform_2, window_bounds = array<i64: 8, 5, 128>}, {transform_indices = @transform_3, window_bounds = array<i64: 8, 5, 128>}]} {
    %c0 = arith.constant 0 : index
    %c0_0 = arith.constant 0 : index
    %c0_1 = arith.constant 0 : index
    %0 = vector.load %arg1[%c0, %c0_0, %c0_1] : memref<8x5x128xf32, #tpu.memory_space<vmem>>, vector<8x5x128xf32>
    %c0_2 = arith.constant 0 : index
    %c0_3 = arith.constant 0 : index
    %c0_4 = arith.constant 0 : index
    %1 = vector.load %arg2[%c0_2, %c0_3, %c0_4] : memref<8x5x128xf32, #tpu.memory_space<vmem>>, vector<8x5x128xf32>
    %c0_5 = arith.constant 0 : index
    %c0_6 = arith.constant 0 : index
    %c0_7 = arith.constant 0 : index
    %2 = vector.load %arg3[%c0_5, %c0_6, %c0_7] : memref<8x5x128xf32, #tpu.memory_space<vmem>>, vector<8x5x128xf32>
    %3 = tpu.iota {dimensions = array<i32: 1>} : vector<1x5x5xi32>
    %4 = tpu.iota {dimensions = array<i32: 2>} : vector<1x5x5xi32>
    %5 = arith.cmpi sle, %4, %3 : vector<1x5x5xi32>
    %6 = vector.extract_strided_slice %0 {offsets = [0, 0, 0], sizes = [8, 5, 32], strides = [1, 1, 1]} : vector<8x5x128xf32> to vector<8x5x32xf32>
    %7 = arith.truncf %6 : vector<8x5x32xf32> to vector<8x5x32xbf16>
    %8 = vector.extract_strided_slice %1 {offsets = [0, 0, 0], sizes = [8, 5, 32], strides = [1, 1, 1]} : vector<8x5x128xf32> to vector<8x5x32xf32>
    %9 = arith.truncf %8 : vector<8x5x32xf32> to vector<8x5x32xbf16>
    %10 = vector.extract_strided_slice %2 {offsets = [0, 0, 0], sizes = [8, 5, 32], strides = [1, 1, 1]} : vector<8x5x128xf32> to vector<8x5x32xf32>
    %11 = arith.truncf %10 : vector<8x5x32xf32> to vector<8x5x32xbf16>
    "tpu.trace_start"() <{level = 10 : i32, message = "rnd,rmd->rnm"}> : () -> ()
    %cst = arith.constant dense<0.000000e+00> : vector<8x5x5xf32>
    %12 = tpu.matmul %7, %9, %cst {dimension_numbers = #tpu.dot_dimension_numbers<[2], [2], [1], [1], [0, 0, 0, 1, 1, 1], [0], [0]>} : vector<8x5x32xbf16>, vector<8x5x32xbf16>, vector<8x5x5xf32> -> vector<8x5x5xf32>
    "tpu.trace_stop"() : () -> ()
    %cst_8 = arith.constant 0.176776692 : f32
    %13 = vector.broadcast %cst_8 : f32 to vector<8x5x5xf32>
    %14 = arith.mulf %12, %13 : vector<8x5x5xf32>
    %cst_9 = arith.constant -1.000000e+30 : f32
    %15 = vector.shape_cast %5 : vector<1x5x5xi1> to vector<1x5x5xi1>
    %16 = vector.broadcast %15 : vector<1x5x5xi1> to vector<8x5x5xi1>
    %17 = vector.broadcast %cst_9 : f32 to vector<8x5x5xf32>
    %18 = arith.select %16, %14, %17 : vector<8x5x5xi1>, vector<8x5x5xf32>
    %cst_10 = arith.constant dense<0xFF800000> : vector<8x5xf32>
    %19 = vector.multi_reduction <maximumf>, %18, %cst_10 [2] : vector<8x5x5xf32> to vector<8x5xf32>
    %20 = vector.shape_cast %19 : vector<8x5xf32> to vector<8x5x1xf32>
    %21 = vector.broadcast %20 : vector<8x5x1xf32> to vector<8x5x5xf32>
    %22 = arith.subf %18, %21 : vector<8x5x5xf32>
    %23 = math.exp %22 : vector<8x5x5xf32>
    %cst_11 = arith.constant dense<0.000000e+00> : vector<8x5xf32>
    %24 = vector.multi_reduction <add>, %23, %cst_11 [2] : vector<8x5x5xf32> to vector<8x5xf32>
    %25 = vector.shape_cast %24 : vector<8x5xf32> to vector<8x5x1xf32>
    %26 = tpu.reciprocal %25 {approx = true} : vector<8x5x1xf32> -> vector<8x5x1xf32>
    %27 = vector.broadcast %26 : vector<8x5x1xf32> to vector<8x5x5xf32>
    %28 = arith.mulf %23, %27 : vector<8x5x5xf32>
    %29 = arith.truncf %28 : vector<8x5x5xf32> to vector<8x5x5xbf16>
    "tpu.trace_start"() <{level = 10 : i32, message = "rnm,rmd->rnd"}> : () -> ()
    %cst_12 = arith.constant dense<0.000000e+00> : vector<8x5x32xf32>
    %30 = tpu.matmul %29, %11, %cst_12 {dimension_numbers = #tpu.dot_dimension_numbers<[2], [1], [1], [2], [0, 0, 0, 1, 1, 2], [0], [0]>} : vector<8x5x5xbf16>, vector<8x5x32xbf16>, vector<8x5x32xf32> -> vector<8x5x32xf32>
    "tpu.trace_stop"() : () -> ()
    %31 = vector.extract_strided_slice %0 {offsets = [0, 0, 32], sizes = [8, 5, 32], strides = [1, 1, 1]} : vector<8x5x128xf32> to vector<8x5x32xf32>
    %32 = arith.truncf %31 : vector<8x5x32xf32> to vector<8x5x32xbf16>
    %33 = vector.extract_strided_slice %1 {offsets = [0, 0, 32], sizes = [8, 5, 32], strides = [1, 1, 1]} : vector<8x5x128xf32> to vector<8x5x32xf32>
    %34 = arith.truncf %33 : vector<8x5x32xf32> to vector<8x5x32xbf16>
    %35 = vector.extract_strided_slice %2 {offsets = [0, 0, 32], sizes = [8, 5, 32], strides = [1, 1, 1]} : vector<8x5x128xf32> to vector<8x5x32xf32>
    %36 = arith.truncf %35 : vector<8x5x32xf32> to vector<8x5x32xbf16>
    "tpu.trace_start"() <{level = 10 : i32, message = "rnd,rmd->rnm"}> : () -> ()
    %cst_13 = arith.constant dense<0.000000e+00> : vector<8x5x5xf32>
    %37 = tpu.matmul %32, %34, %cst_13 {dimension_numbers = #tpu.dot_dimension_numbers<[2], [2], [1], [1], [0, 0, 0, 1, 1, 1], [0], [0]>} : vector<8x5x32xbf16>, vector<8x5x32xbf16>, vector<8x5x5xf32> -> vector<8x5x5xf32>
    "tpu.trace_stop"() : () -> ()
    %cst_14 = arith.constant 0.176776692 : f32
    %38 = vector.broadcast %cst_14 : f32 to vector<8x5x5xf32>
    %39 = arith.mulf %37, %38 : vector<8x5x5xf32>
    %cst_15 = arith.constant -1.000000e+30 : f32
    %40 = vector.shape_cast %5 : vector<1x5x5xi1> to vector<1x5x5xi1>
    %41 = vector.broadcast %40 : vector<1x5x5xi1> to vector<8x5x5xi1>
    %42 = vector.broadcast %cst_15 : f32 to vector<8x5x5xf32>
    %43 = arith.select %41, %39, %42 : vector<8x5x5xi1>, vector<8x5x5xf32>
    %cst_16 = arith.constant dense<0xFF800000> : vector<8x5xf32>
    %44 = vector.multi_reduction <maximumf>, %43, %cst_16 [2] : vector<8x5x5xf32> to vector<8x5xf32>
    %45 = vector.shape_cast %44 : vector<8x5xf32> to vector<8x5x1xf32>
    %46 = vector.broadcast %45 : vector<8x5x1xf32> to vector<8x5x5xf32>
    %47 = arith.subf %43, %46 : vector<8x5x5xf32>
    %48 = math.exp %47 : vector<8x5x5xf32>
    %cst_17 = arith.constant dense<0.000000e+00> : vector<8x5xf32>
    %49 = vector.multi_reduction <add>, %48, %cst_17 [2] : vector<8x5x5xf32> to vector<8x5xf32>
    %50 = vector.shape_cast %49 : vector<8x5xf32> to vector<8x5x1xf32>
    %51 = tpu.reciprocal %50 {approx = true} : vector<8x5x1xf32> -> vector<8x5x1xf32>
    %52 = vector.broadcast %51 : vector<8x5x1xf32> to vector<8x5x5xf32>
    %53 = arith.mulf %48, %52 : vector<8x5x5xf32>
    %54 = arith.truncf %53 : vector<8x5x5xf32> to vector<8x5x5xbf16>
    "tpu.trace_start"() <{level = 10 : i32, message = "rnm,rmd->rnd"}> : () -> ()
    %cst_18 = arith.constant dense<0.000000e+00> : vector<8x5x32xf32>
    %55 = tpu.matmul %54, %36, %cst_18 {dimension_numbers = #tpu.dot_dimension_numbers<[2], [1], [1], [2], [0, 0, 0, 1, 1, 2], [0], [0]>} : vector<8x5x5xbf16>, vector<8x5x32xbf16>, vector<8x5x32xf32> -> vector<8x5x32xf32>
    "tpu.trace_stop"() : () -> ()
    %56 = vector.extract_strided_slice %0 {offsets = [0, 0, 64], sizes = [8, 5, 32], strides = [1, 1, 1]} : vector<8x5x128xf32> to vector<8x5x32xf32>
    %57 = arith.truncf %56 : vector<8x5x32xf32> to vector<8x5x32xbf16>
    %58 = vector.extract_strided_slice %1 {offsets = [0, 0, 64], sizes = [8, 5, 32], strides = [1, 1, 1]} : vector<8x5x128xf32> to vector<8x5x32xf32>
    %59 = arith.truncf %58 : vector<8x5x32xf32> to vector<8x5x32xbf16>
    %60 = vector.extract_strided_slice %2 {offsets = [0, 0, 64], sizes = [8, 5, 32], strides = [1, 1, 1]} : vector<8x5x128xf32> to vector<8x5x32xf32>
    %61 = arith.truncf %60 : vector<8x5x32xf32> to vector<8x5x32xbf16>
    "tpu.trace_start"() <{level = 10 : i32, message = "rnd,rmd->rnm"}> : () -> ()
    %cst_19 = arith.constant dense<0.000000e+00> : vector<8x5x5xf32>
    %62 = tpu.matmul %57, %59, %cst_19 {dimension_numbers = #tpu.dot_dimension_numbers<[2], [2], [1], [1], [0, 0, 0, 1, 1, 1], [0], [0]>} : vector<8x5x32xbf16>, vector<8x5x32xbf16>, vector<8x5x5xf32> -> vector<8x5x5xf32>
    "tpu.trace_stop"() : () -> ()
    %cst_20 = arith.constant 0.176776692 : f32
    %63 = vector.broadcast %cst_20 : f32 to vector<8x5x5xf32>
    %64 = arith.mulf %62, %63 : vector<8x5x5xf32>
    %cst_21 = arith.constant -1.000000e+30 : f32
    %65 = vector.shape_cast %5 : vector<1x5x5xi1> to vector<1x5x5xi1>
    %66 = vector.broadcast %65 : vector<1x5x5xi1> to vector<8x5x5xi1>
    %67 = vector.broadcast %cst_21 : f32 to vector<8x5x5xf32>
    %68 = arith.select %66, %64, %67 : vector<8x5x5xi1>, vector<8x5x5xf32>
    %cst_22 = arith.constant dense<0xFF800000> : vector<8x5xf32>
    %69 = vector.multi_reduction <maximumf>, %68, %cst_22 [2] : vector<8x5x5xf32> to vector<8x5xf32>
    %70 = vector.shape_cast %69 : vector<8x5xf32> to vector<8x5x1xf32>
    %71 = vector.broadcast %70 : vector<8x5x1xf32> to vector<8x5x5xf32>
    %72 = arith.subf %68, %71 : vector<8x5x5xf32>
    %73 = math.exp %72 : vector<8x5x5xf32>
    %cst_23 = arith.constant dense<0.000000e+00> : vector<8x5xf32>
    %74 = vector.multi_reduction <add>, %73, %cst_23 [2] : vector<8x5x5xf32> to vector<8x5xf32>
    %75 = vector.shape_cast %74 : vector<8x5xf32> to vector<8x5x1xf32>
    %76 = tpu.reciprocal %75 {approx = true} : vector<8x5x1xf32> -> vector<8x5x1xf32>
    %77 = vector.broadcast %76 : vector<8x5x1xf32> to vector<8x5x5xf32>
    %78 = arith.mulf %73, %77 : vector<8x5x5xf32>
    %79 = arith.truncf %78 : vector<8x5x5xf32> to vector<8x5x5xbf16>
    "tpu.trace_start"() <{level = 10 : i32, message = "rnm,rmd->rnd"}> : () -> ()
    %cst_24 = arith.constant dense<0.000000e+00> : vector<8x5x32xf32>
    %80 = tpu.matmul %79, %61, %cst_24 {dimension_numbers = #tpu.dot_dimension_numbers<[2], [1], [1], [2], [0, 0, 0, 1, 1, 2], [0], [0]>} : vector<8x5x5xbf16>, vector<8x5x32xbf16>, vector<8x5x32xf32> -> vector<8x5x32xf32>
    "tpu.trace_stop"() : () -> ()
    %81 = vector.extract_strided_slice %0 {offsets = [0, 0, 96], sizes = [8, 5, 32], strides = [1, 1, 1]} : vector<8x5x128xf32> to vector<8x5x32xf32>
    %82 = arith.truncf %81 : vector<8x5x32xf32> to vector<8x5x32xbf16>
    %83 = vector.extract_strided_slice %1 {offsets = [0, 0, 96], sizes = [8, 5, 32], strides = [1, 1, 1]} : vector<8x5x128xf32> to vector<8x5x32xf32>
    %84 = arith.truncf %83 : vector<8x5x32xf32> to vector<8x5x32xbf16>
    %85 = vector.extract_strided_slice %2 {offsets = [0, 0, 96], sizes = [8, 5, 32], strides = [1, 1, 1]} : vector<8x5x128xf32> to vector<8x5x32xf32>
    %86 = arith.truncf %85 : vector<8x5x32xf32> to vector<8x5x32xbf16>
    "tpu.trace_start"() <{level = 10 : i32, message = "rnd,rmd->rnm"}> : () -> ()
    %cst_25 = arith.constant dense<0.000000e+00> : vector<8x5x5xf32>
    %87 = tpu.matmul %82, %84, %cst_25 {dimension_numbers = #tpu.dot_dimension_numbers<[2], [2], [1], [1], [0, 0, 0, 1, 1, 1], [0], [0]>} : vector<8x5x32xbf16>, vector<8x5x32xbf16>, vector<8x5x5xf32> -> vector<8x5x5xf32>
    "tpu.trace_stop"() : () -> ()
    %cst_26 = arith.constant 0.176776692 : f32
    %88 = vector.broadcast %cst_26 : f32 to vector<8x5x5xf32>
    %89 = arith.mulf %87, %88 : vector<8x5x5xf32>
    %cst_27 = arith.constant -1.000000e+30 : f32
    %90 = vector.shape_cast %5 : vector<1x5x5xi1> to vector<1x5x5xi1>
    %91 = vector.broadcast %90 : vector<1x5x5xi1> to vector<8x5x5xi1>
    %92 = vector.broadcast %cst_27 : f32 to vector<8x5x5xf32>
    %93 = arith.select %91, %89, %92 : vector<8x5x5xi1>, vector<8x5x5xf32>
    %cst_28 = arith.constant dense<0xFF800000> : vector<8x5xf32>
    %94 = vector.multi_reduction <maximumf>, %93, %cst_28 [2] : vector<8x5x5xf32> to vector<8x5xf32>
    %95 = vector.shape_cast %94 : vector<8x5xf32> to vector<8x5x1xf32>
    %96 = vector.broadcast %95 : vector<8x5x1xf32> to vector<8x5x5xf32>
    %97 = arith.subf %93, %96 : vector<8x5x5xf32>
    %98 = math.exp %97 : vector<8x5x5xf32>
    %cst_29 = arith.constant dense<0.000000e+00> : vector<8x5xf32>
    %99 = vector.multi_reduction <add>, %98, %cst_29 [2] : vector<8x5x5xf32> to vector<8x5xf32>
    %100 = vector.shape_cast %99 : vector<8x5xf32> to vector<8x5x1xf32>
    %101 = tpu.reciprocal %100 {approx = true} : vector<8x5x1xf32> -> vector<8x5x1xf32>
    %102 = vector.broadcast %101 : vector<8x5x1xf32> to vector<8x5x5xf32>
    %103 = arith.mulf %98, %102 : vector<8x5x5xf32>
    %104 = arith.truncf %103 : vector<8x5x5xf32> to vector<8x5x5xbf16>
    "tpu.trace_start"() <{level = 10 : i32, message = "rnm,rmd->rnd"}> : () -> ()
    %cst_30 = arith.constant dense<0.000000e+00> : vector<8x5x32xf32>
    %105 = tpu.matmul %104, %86, %cst_30 {dimension_numbers = #tpu.dot_dimension_numbers<[2], [1], [1], [2], [0, 0, 0, 1, 1, 2], [0], [0]>} : vector<8x5x5xbf16>, vector<8x5x32xbf16>, vector<8x5x32xf32> -> vector<8x5x32xf32>
    "tpu.trace_stop"() : () -> ()
    %106 = tpu.concatenate %30, %55, %80, %105 in 2 : vector<8x5x32xf32>, vector<8x5x32xf32>, vector<8x5x32xf32>, vector<8x5x32xf32> -> vector<8x5x128xf32>
    %c0_31 = arith.constant 0 : index
    %c0_32 = arith.constant 0 : index
    %c0_33 = arith.constant 0 : index
    %107 = vector.load %arg4[%c0_31, %c0_32, %c0_33] : memref<8x5x128xf32, #tpu.memory_space<vmem>>, vector<8x5x128xf32>
    tpu.vector_store %arg4[%c0_31, %c0_32, %c0_33], %106 {strides = array<i32>} : memref<8x5x128xf32, #tpu.memory_space<vmem>>, vector<8x5x128xf32>,
    return
  }
  func.func @transform_0(%arg0: i32) -> (i32, i32, i32) {
    %c0_i32 = arith.constant 0 : i32
    %c0_i32_0 = arith.constant 0 : i32
    %c0_i32_1 = arith.constant 0 : i32
    return %arg0, %c0_i32, %c0_i32_0 : i32, i32, i32
  }
  func.func @transform_1(%arg0: i32) -> (i32, i32, i32) {
    %c0_i32 = arith.constant 0 : i32
    %c1_i32 = arith.constant 1 : i32
    %c0_i32_0 = arith.constant 0 : i32
    return %arg0, %c0_i32, %c1_i32 : i32, i32, i32
  }
  func.func @transform_2(%arg0: i32) -> (i32, i32, i32) {
    %c0_i32 = arith.constant 0 : i32
    %c2_i32 = arith.constant 2 : i32
    %c0_i32_0 = arith.constant 0 : i32
    return %arg0, %c0_i32, %c2_i32 : i32, i32, i32
  }
  func.func @transform_3(%arg0: i32) -> (i32, i32, i32) {
    %c0_i32 = arith.constant 0 : i32
    %c0_i32_0 = arith.constant 0 : i32
    %c0_i32_1 = arith.constant 0 : i32
    return %arg0, %c0_i32, %c0_i32_0 : i32, i32, i32
  }
}

module attributes {stable_mosaic.version = 11 : i64} {
  func.func @kernel(%arg0: i32, %arg1: i32, %arg2: i32, %arg3: memref<40x128xf32, #tpu.memory_space<vmem>>, %arg4: memref<1x128xf32, #tpu.memory_space<vmem>>, %arg5: memref<1x128xf32, #tpu.memory_space<vmem>>, %arg6: memref<128x256xbf16, #tpu.memory_space<vmem>>, %arg7: memref<1x256xf32, #tpu.memory_space<vmem>>, %arg8: memref<40x256xf32, #tpu.memory_space<vmem>>, %arg9: memref<40x256xf32, #tpu.memory_space<vmem>>) attributes {dimension_semantics = [#tpu.dimension_semantics<parallel>, #tpu.dimension_semantics<parallel>, #tpu.dimension_semantics<arbitrary>], iteration_bounds = array<i64: 1, 2, 1>, scalar_prefetch = 0 : i64, scratch_operands = 1 : i64, tpu.core_type = #tpu.core_type<tc>, window_params = [{transform_indices = @transform_0, window_bounds = array<i64: 40, 128>}, {pipeline_mode = #tpu.pipeline_mode<synchronous>, transform_indices = @transform_1, window_bounds = array<i64: 1, 128>}, {pipeline_mode = #tpu.pipeline_mode<synchronous>, transform_indices = @transform_2, window_bounds = array<i64: 1, 128>}, {transform_indices = @transform_3, window_bounds = array<i64: 128, 256>}, {transform_indices = @transform_4, window_bounds = array<i64: 1, 256>}, {transform_indices = @transform_5, window_bounds = array<i64: 40, 256>}]} {
    %c0_i32 = arith.constant 0 : i32
    %0 = arith.cmpi eq, %arg2, %c0_i32 : i32
    %1 = arith.extui %0 : i1 to i32
    %c0_i32_0 = arith.constant 0 : i32
    %2 = arith.cmpi ne, %1, %c0_i32_0 : i32
    scf.if %2 {
      %cst_19 = arith.constant 0.000000e+00 : f32
      %35 = vector.broadcast %cst_19 : f32 to vector<40x256xf32>
      %c0_20 = arith.constant 0 : index
      %c0_21 = arith.constant 0 : index
      %36 = vector.load %arg9[%c0_20, %c0_21] : memref<40x256xf32, #tpu.memory_space<vmem>>, vector<40x256xf32>
      tpu.vector_store %arg9[%c0_20, %c0_21], %35 {strides = array<i32>} : memref<40x256xf32, #tpu.memory_space<vmem>>, vector<40x256xf32>,
    } else {
    }
    %c0 = arith.constant 0 : index
    %c0_1 = arith.constant 0 : index
    %3 = vector.load %arg3[%c0, %c0_1] : memref<40x128xf32, #tpu.memory_space<vmem>>, vector<40x128xf32>
    %cst = arith.constant dense<0.000000e+00> : vector<40xf32>
    %4 = vector.multi_reduction <add>, %3, %cst [1] : vector<40x128xf32> to vector<40xf32>
    %5 = vector.shape_cast %4 : vector<40xf32> to vector<40x1xf32>
    %cst_2 = arith.constant 1.280000e+02 : f32
    %6 = vector.broadcast %cst_2 : f32 to vector<40x1xf32>
    %7 = arith.divf %5, %6 : vector<40x1xf32>
    %8 = vector.broadcast %7 : vector<40x1xf32> to vector<40x128xf32>
    %9 = arith.subf %3, %8 : vector<40x128xf32>
    %10 = arith.mulf %9, %9 : vector<40x128xf32>
    %cst_3 = arith.constant dense<0.000000e+00> : vector<40xf32>
    %11 = vector.multi_reduction <add>, %10, %cst_3 [1] : vector<40x128xf32> to vector<40xf32>
    %12 = vector.shape_cast %11 : vector<40xf32> to vector<40x1xf32>
    %cst_4 = arith.constant 1.280000e+02 : f32
    %13 = vector.broadcast %cst_4 : f32 to vector<40x1xf32>
    %14 = arith.divf %12, %13 : vector<40x1xf32>
    %cst_5 = arith.constant 9.99999974E-6 : f32
    %15 = vector.broadcast %cst_5 : f32 to vector<40x1xf32>
    %16 = arith.addf %14, %15 : vector<40x1xf32>
    %17 = math.rsqrt %16 : vector<40x1xf32>
    %18 = vector.broadcast %17 : vector<40x1xf32> to vector<40x128xf32>
    %19 = arith.mulf %9, %18 : vector<40x128xf32>
    %c0_6 = arith.constant 0 : index
    %c0_7 = arith.constant 0 : index
    %20 = vector.load %arg4[%c0_6, %c0_7] : memref<1x128xf32, #tpu.memory_space<vmem>>, vector<1x128xf32>
    %21 = vector.broadcast %20 : vector<1x128xf32> to vector<40x128xf32>
    %22 = arith.mulf %19, %21 : vector<40x128xf32>
    %c0_8 = arith.constant 0 : index
    %c0_9 = arith.constant 0 : index
    %23 = vector.load %arg5[%c0_8, %c0_9] : memref<1x128xf32, #tpu.memory_space<vmem>>, vector<1x128xf32>
    %24 = vector.broadcast %23 : vector<1x128xf32> to vector<40x128xf32>
    %25 = arith.addf %22, %24 : vector<40x128xf32>
    %c0_10 = arith.constant 0 : index
    %c0_11 = arith.constant 0 : index
    %26 = vector.load %arg9[%c0_10, %c0_11] : memref<40x256xf32, #tpu.memory_space<vmem>>, vector<40x256xf32>
    %27 = arith.truncf %25 : vector<40x128xf32> to vector<40x128xbf16>
    %c0_12 = arith.constant 0 : index
    %c0_13 = arith.constant 0 : index
    %28 = vector.load %arg6[%c0_12, %c0_13] : memref<128x256xbf16, #tpu.memory_space<vmem>>, vector<128x256xbf16>
    %cst_14 = arith.constant dense<0.000000e+00> : vector<40x256xf32>
    %29 = tpu.matmul %27, %28, %cst_14 {dimension_numbers = #tpu.dot_dimension_numbers<[1], [0], [0], [1], [0, 0, 1, 1], [], []>} : vector<40x128xbf16>, vector<128x256xbf16>, vector<40x256xf32> -> vector<40x256xf32>
    %30 = arith.addf %26, %29 : vector<40x256xf32>
    %c0_15 = arith.constant 0 : index
    %c0_16 = arith.constant 0 : index
    %31 = vector.load %arg9[%c0_15, %c0_16] : memref<40x256xf32, #tpu.memory_space<vmem>>, vector<40x256xf32>
    tpu.vector_store %arg9[%c0_15, %c0_16], %30 {strides = array<i32>} : memref<40x256xf32, #tpu.memory_space<vmem>>, vector<40x256xf32>,
    %c0_i32_17 = arith.constant 0 : i32
    %32 = arith.cmpi eq, %arg2, %c0_i32_17 : i32
    %33 = arith.extui %32 : i1 to i32
    %c0_i32_18 = arith.constant 0 : i32
    %34 = arith.cmpi ne, %33, %c0_i32_18 : i32
    scf.if %34 {
      %c0_19 = arith.constant 0 : index
      %c0_20 = arith.constant 0 : index
      %35 = vector.load %arg9[%c0_19, %c0_20] : memref<40x256xf32, #tpu.memory_space<vmem>>, vector<40x256xf32>
      %c0_21 = arith.constant 0 : index
      %c0_22 = arith.constant 0 : index
      %36 = vector.load %arg7[%c0_21, %c0_22] : memref<1x256xf32, #tpu.memory_space<vmem>>, vector<1x256xf32>
      %37 = vector.broadcast %36 : vector<1x256xf32> to vector<40x256xf32>
      %38 = arith.addf %35, %37 : vector<40x256xf32>
      %cst_23 = arith.constant 5.000000e-01 : f32
      %39 = vector.broadcast %cst_23 : f32 to vector<40x256xf32>
      %40 = arith.mulf %39, %38 : vector<40x256xf32>
      %cst_24 = arith.constant 4.471500e-02 : f32
      %41 = vector.broadcast %cst_24 : f32 to vector<40x256xf32>
      %42 = arith.mulf %41, %38 : vector<40x256xf32>
      %43 = arith.mulf %42, %38 : vector<40x256xf32>
      %44 = arith.mulf %43, %38 : vector<40x256xf32>
      %45 = arith.addf %38, %44 : vector<40x256xf32>
      %cst_25 = arith.constant 0.797884583 : f32
      %46 = vector.broadcast %cst_25 : f32 to vector<40x256xf32>
      %47 = arith.mulf %46, %45 : vector<40x256xf32>
      %48 = math.tanh %47 : vector<40x256xf32>
      %cst_26 = arith.constant 1.000000e+00 : f32
      %49 = vector.broadcast %cst_26 : f32 to vector<40x256xf32>
      %50 = arith.addf %49, %48 : vector<40x256xf32>
      %51 = arith.mulf %40, %50 : vector<40x256xf32>
      %c0_27 = arith.constant 0 : index
      %c0_28 = arith.constant 0 : index
      %52 = vector.load %arg8[%c0_27, %c0_28] : memref<40x256xf32, #tpu.memory_space<vmem>>, vector<40x256xf32>
      tpu.vector_store %arg8[%c0_27, %c0_28], %51 {strides = array<i32>} : memref<40x256xf32, #tpu.memory_space<vmem>>, vector<40x256xf32>,
    } else {
    }
    return
  }
  func.func @transform_0(%arg0: i32, %arg1: i32, %arg2: i32) -> (i32, i32) {
    %c0_i32 = arith.constant 0 : i32
    return %arg0, %arg2 : i32, i32
  }
  func.func @transform_1(%arg0: i32, %arg1: i32, %arg2: i32) -> (i32, i32) {
    %c0_i32 = arith.constant 0 : i32
    %c0_i32_0 = arith.constant 0 : i32
    %c0_i32_1 = arith.constant 0 : i32
    return %c0_i32, %c0_i32_0 : i32, i32
  }
  func.func @transform_2(%arg0: i32, %arg1: i32, %arg2: i32) -> (i32, i32) {
    %c0_i32 = arith.constant 0 : i32
    %c0_i32_0 = arith.constant 0 : i32
    %c0_i32_1 = arith.constant 0 : i32
    return %c0_i32, %c0_i32_0 : i32, i32
  }
  func.func @transform_3(%arg0: i32, %arg1: i32, %arg2: i32) -> (i32, i32) {
    %c0_i32 = arith.constant 0 : i32
    return %arg2, %arg1 : i32, i32
  }
  func.func @transform_4(%arg0: i32, %arg1: i32, %arg2: i32) -> (i32, i32) {
    %c0_i32 = arith.constant 0 : i32
    %c0_i32_0 = arith.constant 0 : i32
    return %c0_i32, %arg1 : i32, i32
  }
  func.func @transform_5(%arg0: i32, %arg1: i32, %arg2: i32) -> (i32, i32) {
    %c0_i32 = arith.constant 0 : i32
    return %arg0, %arg1 : i32, i32
  }
}

module attributes {stable_mosaic.version = 11 : i64} {
  func.func @kernel(%arg0: i32, %arg1: i32, %arg2: i32, %arg3: memref<40x512xf32, #tpu.memory_space<vmem>>, %arg4: memref<512x128xbf16, #tpu.memory_space<vmem>>, %arg5: memref<1x128xf32, #tpu.memory_space<vmem>>, %arg6: memref<40x128xf32, #tpu.memory_space<vmem>>, %arg7: memref<40x128xf32, #tpu.memory_space<vmem>>, %arg8: memref<40x128xf32, #tpu.memory_space<vmem>>) attributes {dimension_semantics = [#tpu.dimension_semantics<parallel>, #tpu.dimension_semantics<parallel>, #tpu.dimension_semantics<arbitrary>], iteration_bounds = array<i64: 1, 1, 1>, scalar_prefetch = 0 : i64, scratch_operands = 1 : i64, tpu.core_type = #tpu.core_type<tc>, window_params = [{transform_indices = @transform_0, window_bounds = array<i64: 40, 512>}, {transform_indices = @transform_1, window_bounds = array<i64: 512, 128>}, {transform_indices = @transform_2, window_bounds = array<i64: 1, 128>}, {transform_indices = @transform_3, window_bounds = array<i64: 40, 128>}, {transform_indices = @transform_4, window_bounds = array<i64: 40, 128>}]} {
    %c0_i32 = arith.constant 0 : i32
    %0 = arith.cmpi eq, %arg2, %c0_i32 : i32
    %1 = arith.extui %0 : i1 to i32
    %c0_i32_0 = arith.constant 0 : i32
    %2 = arith.cmpi ne, %1, %c0_i32_0 : i32
    scf.if %2 {
      %cst_10 = arith.constant 0.000000e+00 : f32
      %13 = vector.broadcast %cst_10 : f32 to vector<40x128xf32>
      %c0_11 = arith.constant 0 : index
      %c0_12 = arith.constant 0 : index
      %14 = vector.load %arg8[%c0_11, %c0_12] : memref<40x128xf32, #tpu.memory_space<vmem>>, vector<40x128xf32>
      tpu.vector_store %arg8[%c0_11, %c0_12], %13 {strides = array<i32>} : memref<40x128xf32, #tpu.memory_space<vmem>>, vector<40x128xf32>,
    } else {
    }
    %c0 = arith.constant 0 : index
    %c0_1 = arith.constant 0 : index
    %3 = vector.load %arg3[%c0, %c0_1] : memref<40x512xf32, #tpu.memory_space<vmem>>, vector<40x512xf32>
    %c0_2 = arith.constant 0 : index
    %c0_3 = arith.constant 0 : index
    %4 = vector.load %arg8[%c0_2, %c0_3] : memref<40x128xf32, #tpu.memory_space<vmem>>, vector<40x128xf32>
    %5 = arith.truncf %3 : vector<40x512xf32> to vector<40x512xbf16>
    %c0_4 = arith.constant 0 : index
    %c0_5 = arith.constant 0 : index
    %6 = vector.load %arg4[%c0_4, %c0_5] : memref<512x128xbf16, #tpu.memory_space<vmem>>, vector<512x128xbf16>
    %cst = arith.constant dense<0.000000e+00> : vector<40x128xf32>
    %7 = tpu.matmul %5, %6, %cst {dimension_numbers = #tpu.dot_dimension_numbers<[1], [0], [0], [1], [0, 0, 1, 1], [], []>} : vector<40x512xbf16>, vector<512x128xbf16>, vector<40x128xf32> -> vector<40x128xf32>
    %8 = arith.addf %4, %7 : vector<40x128xf32>
    %c0_6 = arith.constant 0 : index
    %c0_7 = arith.constant 0 : index
    %9 = vector.load %arg8[%c0_6, %c0_7] : memref<40x128xf32, #tpu.memory_space<vmem>>, vector<40x128xf32>
    tpu.vector_store %arg8[%c0_6, %c0_7], %8 {strides = array<i32>} : memref<40x128xf32, #tpu.memory_space<vmem>>, vector<40x128xf32>,
    %c0_i32_8 = arith.constant 0 : i32
    %10 = arith.cmpi eq, %arg2, %c0_i32_8 : i32
    %11 = arith.extui %10 : i1 to i32
    %c0_i32_9 = arith.constant 0 : i32
    %12 = arith.cmpi ne, %11, %c0_i32_9 : i32
    scf.if %12 {
      %c0_10 = arith.constant 0 : index
      %c0_11 = arith.constant 0 : index
      %13 = vector.load %arg8[%c0_10, %c0_11] : memref<40x128xf32, #tpu.memory_space<vmem>>, vector<40x128xf32>
      %c0_12 = arith.constant 0 : index
      %c0_13 = arith.constant 0 : index
      %14 = vector.load %arg5[%c0_12, %c0_13] : memref<1x128xf32, #tpu.memory_space<vmem>>, vector<1x128xf32>
      %15 = vector.broadcast %14 : vector<1x128xf32> to vector<40x128xf32>
      %16 = arith.addf %13, %15 : vector<40x128xf32>
      %c0_14 = arith.constant 0 : index
      %c0_15 = arith.constant 0 : index
      %17 = vector.load %arg6[%c0_14, %c0_15] : memref<40x128xf32, #tpu.memory_space<vmem>>, vector<40x128xf32>
      %18 = arith.addf %16, %17 : vector<40x128xf32>
      %c0_16 = arith.constant 0 : index
      %c0_17 = arith.constant 0 : index
      %19 = vector.load %arg7[%c0_16, %c0_17] : memref<40x128xf32, #tpu.memory_space<vmem>>, vector<40x128xf32>
      tpu.vector_store %arg7[%c0_16, %c0_17], %18 {strides = array<i32>} : memref<40x128xf32, #tpu.memory_space<vmem>>, vector<40x128xf32>,
    } else {
    }
    return
  }
  func.func @transform_0(%arg0: i32, %arg1: i32, %arg2: i32) -> (i32, i32) {
    %c0_i32 = arith.constant 0 : i32
    return %arg0, %arg2 : i32, i32
  }
  func.func @transform_1(%arg0: i32, %arg1: i32, %arg2: i32) -> (i32, i32) {
    %c0_i32 = arith.constant 0 : i32
    return %arg2, %arg1 : i32, i32
  }
  func.func @transform_2(%arg0: i32, %arg1: i32, %arg2: i32) -> (i32, i32) {
    %c0_i32 = arith.constant 0 : i32
    %c0_i32_0 = arith.constant 0 : i32
    return %c0_i32, %arg1 : i32, i32
  }
  func.func @transform_3(%arg0: i32, %arg1: i32, %arg2: i32) -> (i32, i32) {
    %c0_i32 = arith.constant 0 : i32
    return %arg0, %arg1 : i32, i32
  }
  func.func @transform_4(%arg0: i32, %arg1: i32, %arg2: i32) -> (i32, i32) {
    %c0_i32 = arith.constant 0 : i32
    return %arg0, %arg1 : i32, i32
  }
}

module attributes {stable_mosaic.version = 11 : i64} {
  func.func @_layernorm_kernel(%arg0: i32, %arg1: memref<40x128xf32, #tpu.memory_space<vmem>>, %arg2: memref<1x128xf32, #tpu.memory_space<vmem>>, %arg3: memref<1x128xf32, #tpu.memory_space<vmem>>, %arg4: memref<40x128xf32, #tpu.memory_space<vmem>>) attributes {dimension_semantics = [#tpu.dimension_semantics<parallel>], iteration_bounds = array<i64: 1>, scalar_prefetch = 0 : i64, scratch_operands = 0 : i64, tpu.core_type = #tpu.core_type<tc>, window_params = [{transform_indices = @transform_0, window_bounds = array<i64: 40, 128>}, {pipeline_mode = #tpu.pipeline_mode<synchronous>, transform_indices = @transform_1, window_bounds = array<i64: 1, 128>}, {pipeline_mode = #tpu.pipeline_mode<synchronous>, transform_indices = @transform_2, window_bounds = array<i64: 1, 128>}, {transform_indices = @transform_3, window_bounds = array<i64: 40, 128>}]} {
    %c0 = arith.constant 0 : index
    %c0_0 = arith.constant 0 : index
    %0 = vector.load %arg1[%c0, %c0_0] : memref<40x128xf32, #tpu.memory_space<vmem>>, vector<40x128xf32>
    %cst = arith.constant dense<0.000000e+00> : vector<40xf32>
    %1 = vector.multi_reduction <add>, %0, %cst [1] : vector<40x128xf32> to vector<40xf32>
    %2 = vector.shape_cast %1 : vector<40xf32> to vector<40x1xf32>
    %cst_1 = arith.constant 1.280000e+02 : f32
    %3 = vector.broadcast %cst_1 : f32 to vector<40x1xf32>
    %4 = arith.divf %2, %3 : vector<40x1xf32>
    %5 = vector.broadcast %4 : vector<40x1xf32> to vector<40x128xf32>
    %6 = arith.subf %0, %5 : vector<40x128xf32>
    %7 = arith.mulf %6, %6 : vector<40x128xf32>
    %cst_2 = arith.constant dense<0.000000e+00> : vector<40xf32>
    %8 = vector.multi_reduction <add>, %7, %cst_2 [1] : vector<40x128xf32> to vector<40xf32>
    %9 = vector.shape_cast %8 : vector<40xf32> to vector<40x1xf32>
    %cst_3 = arith.constant 1.280000e+02 : f32
    %10 = vector.broadcast %cst_3 : f32 to vector<40x1xf32>
    %11 = arith.divf %9, %10 : vector<40x1xf32>
    %cst_4 = arith.constant 9.99999974E-6 : f32
    %12 = vector.broadcast %cst_4 : f32 to vector<40x1xf32>
    %13 = arith.addf %11, %12 : vector<40x1xf32>
    %14 = math.rsqrt %13 : vector<40x1xf32>
    %15 = vector.broadcast %14 : vector<40x1xf32> to vector<40x128xf32>
    %16 = arith.mulf %6, %15 : vector<40x128xf32>
    %c0_5 = arith.constant 0 : index
    %c0_6 = arith.constant 0 : index
    %17 = vector.load %arg2[%c0_5, %c0_6] : memref<1x128xf32, #tpu.memory_space<vmem>>, vector<1x128xf32>
    %18 = vector.broadcast %17 : vector<1x128xf32> to vector<40x128xf32>
    %19 = arith.mulf %16, %18 : vector<40x128xf32>
    %c0_7 = arith.constant 0 : index
    %c0_8 = arith.constant 0 : index
    %20 = vector.load %arg3[%c0_7, %c0_8] : memref<1x128xf32, #tpu.memory_space<vmem>>, vector<1x128xf32>
    %21 = vector.broadcast %20 : vector<1x128xf32> to vector<40x128xf32>
    %22 = arith.addf %19, %21 : vector<40x128xf32>
    %c0_9 = arith.constant 0 : index
    %c0_10 = arith.constant 0 : index
    %23 = vector.load %arg4[%c0_9, %c0_10] : memref<40x128xf32, #tpu.memory_space<vmem>>, vector<40x128xf32>
    tpu.vector_store %arg4[%c0_9, %c0_10], %22 {strides = array<i32>} : memref<40x128xf32, #tpu.memory_space<vmem>>, vector<40x128xf32>,
    return
  }
  func.func @transform_0(%arg0: i32) -> (i32, i32) {
    %c0_i32 = arith.constant 0 : i32
    %c0_i32_0 = arith.constant 0 : i32
    return %arg0, %c0_i32 : i32, i32
  }
  func.func @transform_1(%arg0: i32) -> (i32, i32) {
    %c0_i32 = arith.constant 0 : i32
    %c0_i32_0 = arith.constant 0 : i32
    %c0_i32_1 = arith.constant 0 : i32
    return %c0_i32, %c0_i32_0 : i32, i32
  }
  func.func @transform_2(%arg0: i32) -> (i32, i32) {
    %c0_i32 = arith.constant 0 : i32
    %c0_i32_0 = arith.constant 0 : i32
    %c0_i32_1 = arith.constant 0 : i32
    return %c0_i32, %c0_i32_0 : i32, i32
  }
  func.func @transform_3(%arg0: i32) -> (i32, i32) {
    %c0_i32 = arith.constant 0 : i32
    %c0_i32_0 = arith.constant 0 : i32
    return %arg0, %c0_i32 : i32, i32
  }
}

module attributes {stable_mosaic.version = 11 : i64} {
  func.func @kernel(%arg0: i32, %arg1: i32, %arg2: i32, %arg3: memref<8x128xf32, #tpu.memory_space<vmem>>, %arg4: memref<128x8xbf16, #tpu.memory_space<vmem>>, %arg5: memref<1x8xf32, #tpu.memory_space<vmem>>, %arg6: memref<8x1xf32, #tpu.memory_space<vmem>>, %arg7: memref<8x1xf32, #tpu.memory_space<vmem>>, %arg8: memref<8x8xf32, #tpu.memory_space<vmem>>, %arg9: memref<8x8xf32, #tpu.memory_space<vmem>>) attributes {dimension_semantics = [#tpu.dimension_semantics<parallel>, #tpu.dimension_semantics<parallel>, #tpu.dimension_semantics<arbitrary>], iteration_bounds = array<i64: 1, 1, 5>, scalar_prefetch = 0 : i64, scratch_operands = 1 : i64, tpu.core_type = #tpu.core_type<tc>, window_params = [{transform_indices = @transform_0, window_bounds = array<i64: 8, 128>}, {transform_indices = @transform_1, window_bounds = array<i64: 128, 8>}, {transform_indices = @transform_2, window_bounds = array<i64: 1, 8>}, {transform_indices = @transform_3, window_bounds = array<i64: 8, 1>}, {transform_indices = @transform_4, window_bounds = array<i64: 8, 1>}, {transform_indices = @transform_5, window_bounds = array<i64: 8, 8>}]} {
    %c0_i32 = arith.constant 0 : i32
    %0 = arith.cmpi eq, %arg2, %c0_i32 : i32
    %1 = arith.extui %0 : i1 to i32
    %c0_i32_0 = arith.constant 0 : i32
    %2 = arith.cmpi ne, %1, %c0_i32_0 : i32
    scf.if %2 {
      %cst_9 = arith.constant 0.000000e+00 : f32
      %13 = vector.broadcast %cst_9 : f32 to vector<8x8xf32>
      %c0_10 = arith.constant 0 : index
      %c0_11 = arith.constant 0 : index
      %14 = vector.load %arg9[%c0_10, %c0_11] : memref<8x8xf32, #tpu.memory_space<vmem>>, vector<8x8xf32>
      tpu.vector_store %arg9[%c0_10, %c0_11], %13 {strides = array<i32>} : memref<8x8xf32, #tpu.memory_space<vmem>>, vector<8x8xf32>,
    } else {
    }
    %c0 = arith.constant 0 : index
    %c0_1 = arith.constant 0 : index
    %3 = vector.load %arg3[%c0, %c0_1] : memref<8x128xf32, #tpu.memory_space<vmem>>, vector<8x128xf32>
    %c0_2 = arith.constant 0 : index
    %c0_3 = arith.constant 0 : index
    %4 = vector.load %arg9[%c0_2, %c0_3] : memref<8x8xf32, #tpu.memory_space<vmem>>, vector<8x8xf32>
    %5 = arith.truncf %3 : vector<8x128xf32> to vector<8x128xbf16>
    %c0_4 = arith.constant 0 : index
    %c0_5 = arith.constant 0 : index
    %6 = vector.load %arg4[%c0_4, %c0_5] : memref<128x8xbf16, #tpu.memory_space<vmem>>, vector<128x8xbf16>
    %cst = arith.constant dense<0.000000e+00> : vector<8x8xf32>
    %7 = tpu.matmul %5, %6, %cst {dimension_numbers = #tpu.dot_dimension_numbers<[1], [0], [0], [1], [0, 0, 1, 1], [], []>} : vector<8x128xbf16>, vector<128x8xbf16>, vector<8x8xf32> -> vector<8x8xf32>
    %8 = arith.addf %4, %7 : vector<8x8xf32>
    %c0_6 = arith.constant 0 : index
    %c0_7 = arith.constant 0 : index
    %9 = vector.load %arg9[%c0_6, %c0_7] : memref<8x8xf32, #tpu.memory_space<vmem>>, vector<8x8xf32>
    tpu.vector_store %arg9[%c0_6, %c0_7], %8 {strides = array<i32>} : memref<8x8xf32, #tpu.memory_space<vmem>>, vector<8x8xf32>,
    %c4_i32 = arith.constant 4 : i32
    %10 = arith.cmpi eq, %arg2, %c4_i32 : i32
    %11 = arith.extui %10 : i1 to i32
    %c0_i32_8 = arith.constant 0 : i32
    %12 = arith.cmpi ne, %11, %c0_i32_8 : i32
    scf.if %12 {
      %c0_9 = arith.constant 0 : index
      %c0_10 = arith.constant 0 : index
      %13 = vector.load %arg9[%c0_9, %c0_10] : memref<8x8xf32, #tpu.memory_space<vmem>>, vector<8x8xf32>
      %c0_11 = arith.constant 0 : index
      %c0_12 = arith.constant 0 : index
      %14 = vector.load %arg5[%c0_11, %c0_12] : memref<1x8xf32, #tpu.memory_space<vmem>>, vector<1x8xf32>
      %15 = vector.broadcast %14 : vector<1x8xf32> to vector<8x8xf32>
      %16 = arith.addf %13, %15 : vector<8x8xf32>
      %c0_13 = arith.constant 0 : index
      %c0_14 = arith.constant 0 : index
      %17 = vector.load %arg6[%c0_13, %c0_14] : memref<8x1xf32, #tpu.memory_space<vmem>>, vector<8x1xf32>
      %18 = vector.broadcast %17 : vector<8x1xf32> to vector<8x8xf32>
      %19 = arith.mulf %16, %18 : vector<8x8xf32>
      %c0_15 = arith.constant 0 : index
      %c0_16 = arith.constant 0 : index
      %20 = vector.load %arg7[%c0_15, %c0_16] : memref<8x1xf32, #tpu.memory_space<vmem>>, vector<8x1xf32>
      %21 = vector.broadcast %20 : vector<8x1xf32> to vector<8x8xf32>
      %22 = arith.addf %19, %21 : vector<8x8xf32>
      %c0_17 = arith.constant 0 : index
      %c0_18 = arith.constant 0 : index
      %23 = vector.load %arg8[%c0_17, %c0_18] : memref<8x8xf32, #tpu.memory_space<vmem>>, vector<8x8xf32>
      tpu.vector_store %arg8[%c0_17, %c0_18], %22 {strides = array<i32>} : memref<8x8xf32, #tpu.memory_space<vmem>>, vector<8x8xf32>,
    } else {
    }
    return
  }
  func.func @transform_0(%arg0: i32, %arg1: i32, %arg2: i32) -> (i32, i32) {
    %c0_i32 = arith.constant 0 : i32
    return %arg0, %arg2 : i32, i32
  }
  func.func @transform_1(%arg0: i32, %arg1: i32, %arg2: i32) -> (i32, i32) {
    %c0_i32 = arith.constant 0 : i32
    return %arg2, %arg1 : i32, i32
  }
  func.func @transform_2(%arg0: i32, %arg1: i32, %arg2: i32) -> (i32, i32) {
    %c0_i32 = arith.constant 0 : i32
    %c0_i32_0 = arith.constant 0 : i32
    return %c0_i32, %arg1 : i32, i32
  }
  func.func @transform_3(%arg0: i32, %arg1: i32, %arg2: i32) -> (i32, i32) {
    %c0_i32 = arith.constant 0 : i32
    %c0_i32_0 = arith.constant 0 : i32
    return %arg0, %c0_i32 : i32, i32
  }
  func.func @transform_4(%arg0: i32, %arg1: i32, %arg2: i32) -> (i32, i32) {
    %c0_i32 = arith.constant 0 : i32
    %c0_i32_0 = arith.constant 0 : i32
    return %arg0, %c0_i32 : i32, i32
  }
  func.func @transform_5(%arg0: i32, %arg1: i32, %arg2: i32) -> (i32, i32) {
    %c0_i32 = arith.constant 0 : i32
    return %arg0, %arg1 : i32, i32
  }
}

</mosaic_0001>

<llo_original>
// kernel: gpt4ts_forward.14
$region0: #{gpt4ts_forward.14}
  #allocation0 [shape = 'u32[]', space=smem, size = 0x4, offset = 0x4, fixed_abs, tag = 'smem constant byte address 0x4 - core index']
  #allocation1 [shape = 'u32[144,128]{1,0:T(1,128)}', space=vmem, size = 0x12000, scoped, tag = 'internal scratch']
  %s0 = inlined_call_operand.vmem [shape: f32[8,16], index: 0, kind: input, shape index: {}]
  %s1 = inlined_call_operand.vmem [shape: f32[8,16], index: 1, kind: output, shape index: {0}]
  %s2 = inlined_call_operand.vmem [shape: f32[8,1], index: 2, kind: output, shape index: {1}]
  %s3 = inlined_call_operand.vmem [shape: f32[8,1], index: 3, kind: output, shape index: {2}]
  %4 = xla_tuple %s1, %s2, %s3
  %s5 = sld [smem:[#allocation0]]
  $region30: #{gpt4ts_forward.14} parent=0
    _
  %s7 = ssub.s32 1, %s5
  %s8 = scalar_select 0, %s7, %s5
  // Predicated region
  $region2: #{gpt4ts_forward.14} parent=0 // pred_check
    _
  $region3: #{gpt4ts_forward.14} parent=0 // pred_check_branch
    %10 = sbr.rel (0) target = $region5
  $region4: #{gpt4ts_forward.14} parent=0 // pred_region
    _
  $region5: #{gpt4ts_forward.14} parent=0 // pred_fallthru
    _
  %v11 = vld [vmem:[%s0] sm:$0xff]
  %vm12 = vcmask 130048
  %v13 = vsel %vm12, %v11, 0.0
  %14 = vadd.xlane.f32.xlu0 %v13
  %v15 = vpop.xlane.xlu0 %14
  %v16 = vrcp.pop 16.0
  %v17 = vmul.f32 %v15, %v16
  %v18 = vsub.f32 %v11, %v17
  %v19 = vsel %vm12, %v18, 0.0
  %20 = vadd.xlane.f32.xlu0 %v19
  %v21 = vpop.xlane.xlu0 %20
  %v22 = vmul.f32 %v21, %v16
  %v23 = vsub.f32 %v18, %v22
  %v24 = vmul.f32 %v23, %v23
  %v25 = vsel %vm12, %v24, 0.0
  %26 = vadd.xlane.f32.xlu0 %v25
  %v27 = vpop.xlane.xlu0 %26
  %v28 = vmul.f32 %v27, %v16
  %v29 = vadd.f32 %v28, 1e-05
  %v30 = vrsqrt.pop %v29
  %v31 = vmul.f32 %v29, %v30
  %vm32 = vcmp.eq.f32.partialorder %v29, inf
  %v33 = vsel %vm32, %v29, %v31
  %vm34 = vcmp.eq.f32.partialorder %v29, 0.0
  %v35 = vand.u32 %v29, 2147483648
  %v36 = vsel %vm34, %v35, %v33
  %v37 = vrcp.pop %v36
  %v38 = vmul.f32 %v18, %v37
  %39 = vst.msk [vmem:[%s1] sm:$0xff] %vm12, %v38
  %vm40 = vcmask 7168
  %41 = vst.msk [vmem:[%s2] sm:$0xff] %vm40, %v17
  %42 = vst.msk [vmem:[%s3] sm:$0xff] %vm40, %v36
  // Predicated region
  $region6: #{gpt4ts_forward.14} parent=0 // pred_check
    _
  $region7: #{gpt4ts_forward.14} parent=0 // pred_check_branch
    %44 = sbr.rel (0) target = $region9
  $region8: #{gpt4ts_forward.14} parent=0 // pred_region
    _
  $region9: #{gpt4ts_forward.14} parent=0 // pred_fallthru
    _
  // Predicated region
  $region10: #{gpt4ts_forward.14} parent=0 // pred_check
    _
  $region11: #{gpt4ts_forward.14} parent=0 // pred_check_branch
    %46 = sbr.rel (0) target = $region13
  $region12: #{gpt4ts_forward.14} parent=0 // pred_region
    _
  $region13: #{gpt4ts_forward.14} parent=0 // pred_fallthru
    _
  // Predicated region
  $region14: #{gpt4ts_forward.14} parent=0 // pred_check
    _
  $region15: #{gpt4ts_forward.14} parent=0 // pred_check_branch
    %48 = sbr.rel (0) target = $region17
  $region16: #{gpt4ts_forward.14} parent=0 // pred_region
    _
  $region17: #{gpt4ts_forward.14} parent=0 // pred_fallthru
    _
  // Predicated region
  $region18: #{gpt4ts_forward.14} parent=0 // pred_check
    _
  $region19: #{gpt4ts_forward.14} parent=0 // pred_check_branch
    %50 = sbr.rel (0) target = $region21
  $region20: #{gpt4ts_forward.14} parent=0 // pred_region
    _
  $region21: #{gpt4ts_forward.14} parent=0 // pred_fallthru
    _
  // Predicated region
  $region22: #{gpt4ts_forward.14} parent=0 // pred_check
    _
  $region23: #{gpt4ts_forward.14} parent=0 // pred_check_branch
    %52 = sbr.rel (0) target = $region25
  $region24: #{gpt4ts_forward.14} parent=0 // pred_region
    _
  $region25: #{gpt4ts_forward.14} parent=0 // pred_fallthru
    _
  // Predicated region
  $region26: #{gpt4ts_forward.14} parent=0 // pred_check
    _
  $region27: #{gpt4ts_forward.14} parent=0 // pred_check_branch
    %54 = sbr.rel (0) target = $region29
  $region28: #{gpt4ts_forward.14} parent=0 // pred_region
    _
  $region29: #{gpt4ts_forward.14} parent=0 // pred_fallthru
    _

// kernel: gpt4ts_forward.15
$region0: #{gpt4ts_forward.15}
  #allocation0 [shape = 'u32[]', space=smem, size = 0x4, offset = 0x4, fixed_abs, tag = 'smem constant byte address 0x4 - core index']
  #allocation1 [shape = 'u32[144,128]{1,0:T(1,128)}', space=vmem, size = 0x12000, scoped, tag = 'internal scratch']
  #allocation2 [shape = 'f32[40,128]{1,0:T(8,128)}', space=vmem, size = 0x5000, scoped, tag = 'scratch operand']
  %s0 = inlined_call_operand.vmem [shape: f32[40,4], index: 0, kind: input, shape index: {}]
  %s1 = inlined_call_operand.vmem [shape: bf16[4,128], index: 1, kind: input, shape index: {}]
  %s2 = inlined_call_operand.vmem [shape: f32[1,128], index: 2, kind: input, shape index: {}]
  %s3 = inlined_call_operand.vmem [shape: f32[40,128], index: 3, kind: output, shape index: {}]
  %s4 = sld [smem:[#allocation0]]
  $region30: #{gpt4ts_forward.15} parent=0
    _
  %s6 = ssub.s32 1, %s4
  %s7 = scalar_select 0, %s6, %s4
  // Predicated region
  $region2: #{gpt4ts_forward.15} parent=0 // pred_check
    _
  $region3: #{gpt4ts_forward.15} parent=0 // pred_check_branch
    %9 = sbr.rel (0) target = $region5
  $region4: #{gpt4ts_forward.15} parent=0 // pred_region
    _
  $region5: #{gpt4ts_forward.15} parent=0 // pred_fallthru
    _
  // Predicated region
  $region6: #{gpt4ts_forward.15} parent=0 // pred_check
    _
  $region7: #{gpt4ts_forward.15} parent=0 // pred_check_branch
    %11 = sbr.rel (0) target = $region9
  $region8: #{gpt4ts_forward.15} parent=0 // pred_region
    _
  $region9: #{gpt4ts_forward.15} parent=0 // pred_fallthru
    _
  // Predicated region
  $region10: #{gpt4ts_forward.15} parent=0 // pred_check
    _
  $region11: #{gpt4ts_forward.15} parent=0 // pred_check_branch
    %13 = sbr.rel (0) target = $region13
  $region12: #{gpt4ts_forward.15} parent=0 // pred_region
    _
  $region13: #{gpt4ts_forward.15} parent=0 // pred_fallthru
    _
  %p15 = scmp.eq.s32.totalorder 0, 0
  // Predicated region
  $region14: #{gpt4ts_forward.15} parent=0 // pred_check
    %p16 = pneg %p15
  $region15: #{gpt4ts_forward.15} parent=0 // pred_check_branch
    %18 = sbr.rel (%p16) target = $region17
  $region16: #{gpt4ts_forward.15} parent=0 // pred_region
    %19 = vst [vmem:[#allocation2] sm:$0xff] 0.0
    %20 = vst [vmem:[#allocation2 + $0x8] sm:$0xff] 0.0
    %21 = vst [vmem:[#allocation2 + $0x10] sm:$0xff] 0.0
    %22 = vst [vmem:[#allocation2 + $0x18] sm:$0xff] 0.0
    %23 = vst [vmem:[#allocation2 + $0x20] sm:$0xff] 0.0
  $region17: #{gpt4ts_forward.15} parent=0 // pred_fallthru
    _
  %v24 = vld [vmem:[%s0] sm:$0xff]
  %v25 = vld [vmem:[%s0 + $0x8] sm:$0xff]
  %v26 = vld [vmem:[%s0 + $0x10] sm:$0xff]
  %v27 = vld [vmem:[%s0 + $0x18] sm:$0xff]
  %v28 = vld [vmem:[%s0 + $0x20] sm:$0xff]
  %v29 = vld [vmem:[#allocation2] sm:$0xff]
  %v30 = vld [vmem:[#allocation2 + $0x8] sm:$0xff]
  %v31 = vld [vmem:[#allocation2 + $0x10] sm:$0xff]
  %v32 = vld [vmem:[#allocation2 + $0x18] sm:$0xff]
  %v33 = vld [vmem:[#allocation2 + $0x20] sm:$0xff]
  %v34 = vpack.c.bf16 %v25, %v24
  %v35 = vpack.c.bf16 %v27, %v26
  %v36 = vpack.c.bf16 %v28, %v28
  %v37 = vld [vmem:[%s1] sm:$0x3]
  %vm38 = vcmask 31744
  %v40 = vsel %vm38, %v34, 0
  %v43 = vsel %vm38, %v35, 0
  %v46 = vsel %vm38, %v36, 0
  %vm48 = vcmask 1041408
  %v50 = vsel %vm48, %v37, 0
  %52 = vmatprep.subr.bf16.mxu0 0
  %53 = vmatpush1.bf16.msra.mxu0 %v50
  %54 = vmatprep.subr.bf16.mxu0 0
  %55 = vmatpush1.bf16.msra.mxu0 0
  %56 = vmatprep.subr.bf16.mxu0 0
  %57 = vmatpush1.bf16.msra.mxu0 0
  %58 = vmatprep.subr.bf16.mxu0 0
  %59 = vmatpush1.bf16.msra.mxu0 0
  %60 = vmatprep.subr.bf16.mxu0 0
  %61 = vmatpush1.bf16.msra.mxu0 0
  %62 = vmatprep.subr.bf16.mxu0 0
  %63 = vmatpush1.bf16.msra.mxu0 0
  %64 = vmatprep.subr.bf16.mxu0 0
  %65 = vmatpush1.bf16.msra.mxu0 0
  %66 = vmatprep.subr.bf16.mxu0 0
  %67 = vmatpush1.bf16.msra.mxu0 0
  %68 = vmatprep.subr.bf16.mxu0 0
  %69 = vmatpush1.bf16.msra.mxu0 0
  %70 = vmatprep.subr.bf16.mxu0 0
  %71 = vmatpush1.bf16.msra.mxu0 0
  %72 = vmatprep.subr.bf16.mxu0 0
  %73 = vmatpush1.bf16.msra.mxu0 0
  %74 = vmatprep.subr.bf16.mxu0 0
  %75 = vmatpush1.bf16.msra.mxu0 0
  %76 = vmatprep.subr.bf16.mxu0 0
  %77 = vmatpush1.bf16.msra.mxu0 0
  %78 = vmatprep.subr.bf16.mxu0 0
  %79 = vmatpush1.bf16.msra.mxu0 0
  %80 = vmatprep.subr.bf16.mxu0 0
  %81 = vmatpush1.bf16.msra.mxu0 0
  %82 = vmatprep.subr.bf16.mxu0 0
  %83 = vmatpush1.bf16.msra.mxu0 0
  %84 = vmatprep.mubr.bf16.mxu0 0
  %85 = vmatmul.mubr.bf16.gmra.mrb[0].mxu0 %v40
  %v86 = vpop.f32.mrb[0].mxu0
  %v87 = vadd.f32 0.0, %v86
  %v88 = vpop.f32.mrb[0].mxu0
  %v89 = vpop.f32.mrb[0].mxu0
  %v90 = vadd.f32 0.0, %v89
  %v91 = vpop.f32.mrb[0].mxu0
  %92 = vmatprep.mubr.bf16.mxu0 0
  %93 = vmatmul.mubr.bf16.gmra.mrb[0].mxu0 %v43
  %v94 = vpop.f32.mrb[0].mxu0
  %v95 = vadd.f32 0.0, %v94
  %v96 = vpop.f32.mrb[0].mxu0
  %v97 = vpop.f32.mrb[0].mxu0
  %v98 = vadd.f32 0.0, %v97
  %v99 = vpop.f32.mrb[0].mxu0
  %100 = vmatprep.mubr.bf16.mxu0 0
  %101 = vmatmul.mubr.bf16.gmra.mrb[0].mxu0 %v46
  %v102 = vpop.f32.mrb[0].mxu0
  %v103 = vadd.f32 0.0, %v102
  %v104 = vpop.f32.mrb[0].mxu0
  %v105 = vpop.f32.mrb[0].mxu0
  %v106 = vpop.f32.mrb[0].mxu0
  %107 = vdwg.mxu0
  %v108 = vadd.f32 %v29, %v87
  %v109 = vadd.f32 %v30, %v90
  %v110 = vadd.f32 %v31, %v95
  %v111 = vadd.f32 %v32, %v98
  %v112 = vadd.f32 %v33, %v103
  %113 = vst [vmem:[#allocation2] sm:$0xff] %v108
  %114 = vst [vmem:[#allocation2 + $0x8] sm:$0xff] %v109
  %115 = vst [vmem:[#allocation2 + $0x10] sm:$0xff] %v110
  %116 = vst [vmem:[#allocation2 + $0x18] sm:$0xff] %v111
  %117 = vst [vmem:[#allocation2 + $0x20] sm:$0xff] %v112
  // Predicated region
  $region18: #{gpt4ts_forward.15} parent=0 // pred_check
    %p118 = pneg %p15
  $region19: #{gpt4ts_forward.15} parent=0 // pred_check_branch
    %120 = sbr.rel (%p118) target = $region21
  $region20: #{gpt4ts_forward.15} parent=0 // pred_region
    %v121 = vld [vmem:[#allocation2] sm:$0xff]
    %v122 = vld [vmem:[#allocation2 + $0x8] sm:$0xff]
    %v123 = vld [vmem:[#allocation2 + $0x10] sm:$0xff]
    %v124 = vld [vmem:[#allocation2 + $0x18] sm:$0xff]
    %v125 = vld [vmem:[#allocation2 + $0x20] sm:$0xff]
    %v126 = vld [vmem:[%s2] sm:$0x1]
    %v128 = vlaneseq
    %v129 = vshrl.u32 %v128, 7
    %v130 = vsub.s32 0, %v129
    %v131 = vrot.slane %v126, %v130
    %v133 = vadd.f32 %v121, %v131
    %v134 = vadd.f32 %v122, %v131
    %v135 = vadd.f32 %v123, %v131
    %v136 = vadd.f32 %v124, %v131
    %v137 = vadd.f32 %v125, %v131
    %138 = vst [vmem:[%s3] sm:$0xff] %v133
    %139 = vst [vmem:[%s3 + $0x8] sm:$0xff] %v134
    %140 = vst [vmem:[%s3 + $0x10] sm:$0xff] %v135
    %141 = vst [vmem:[%s3 + $0x18] sm:$0xff] %v136
    %142 = vst [vmem:[%s3 + $0x20] sm:$0xff] %v137
  $region21: #{gpt4ts_forward.15} parent=0 // pred_fallthru
    _
  // Predicated region
  $region22: #{gpt4ts_forward.15} parent=0 // pred_check
    _
  $region23: #{gpt4ts_forward.15} parent=0 // pred_check_branch
    %144 = sbr.rel (0) target = $region25
  $region24: #{gpt4ts_forward.15} parent=0 // pred_region
    _
  $region25: #{gpt4ts_forward.15} parent=0 // pred_fallthru
    _
  // Predicated region
  $region26: #{gpt4ts_forward.15} parent=0 // pred_check
    _
  $region27: #{gpt4ts_forward.15} parent=0 // pred_check_branch
    %146 = sbr.rel (0) target = $region29
  $region28: #{gpt4ts_forward.15} parent=0 // pred_region
    _
  $region29: #{gpt4ts_forward.15} parent=0 // pred_fallthru
    _

// kernel: gpt4ts_forward.18
$region0: #{gpt4ts_forward.18}
  #allocation0 [shape = 'u32[]', space=smem, size = 0x4, offset = 0x4, fixed_abs, tag = 'smem constant byte address 0x4 - core index']
  #allocation1 [shape = 'u32[144,128]{1,0:T(1,128)}', space=vmem, size = 0x12000, scoped, tag = 'internal scratch']
  #allocation2 [shape = 'f32[40,128]{1,0:T(8,128)}', space=vmem, size = 0x5000, scoped, tag = 'scratch operand']
  %s0 = inlined_call_operand.vmem [shape: f32[40,128], index: 0, kind: input, shape index: {}]
  %s1 = inlined_call_operand.vmem [shape: bf16[128,128], index: 1, kind: input, shape index: {}]
  %s2 = inlined_call_operand.vmem [shape: f32[1,128], index: 2, kind: input, shape index: {}]
  %s3 = inlined_call_operand.vmem [shape: f32[40,128], index: 3, kind: input, shape index: {}]
  %s4 = inlined_call_operand.vmem [shape: f32[40,128], index: 4, kind: output, shape index: {}]
  %s5 = sld [smem:[#allocation0]]
  $region34: #{gpt4ts_forward.18} parent=0
    _
  %s7 = ssub.s32 1, %s5
  %s8 = scalar_select 0, %s7, %s5
  // Predicated region
  $region2: #{gpt4ts_forward.18} parent=0 // pred_check
    _
  $region3: #{gpt4ts_forward.18} parent=0 // pred_check_branch
    %10 = sbr.rel (0) target = $region5
  $region4: #{gpt4ts_forward.18} parent=0 // pred_region
    _
  $region5: #{gpt4ts_forward.18} parent=0 // pred_fallthru
    _
  // Predicated region
  $region6: #{gpt4ts_forward.18} parent=0 // pred_check
    _
  $region7: #{gpt4ts_forward.18} parent=0 // pred_check_branch
    %12 = sbr.rel (0) target = $region9
  $region8: #{gpt4ts_forward.18} parent=0 // pred_region
    _
  $region9: #{gpt4ts_forward.18} parent=0 // pred_fallthru
    _
  // Predicated region
  $region10: #{gpt4ts_forward.18} parent=0 // pred_check
    _
  $region11: #{gpt4ts_forward.18} parent=0 // pred_check_branch
    %14 = sbr.rel (0) target = $region13
  $region12: #{gpt4ts_forward.18} parent=0 // pred_region
    _
  $region13: #{gpt4ts_forward.18} parent=0 // pred_fallthru
    _
  // Predicated region
  $region14: #{gpt4ts_forward.18} parent=0 // pred_check
    _
  $region15: #{gpt4ts_forward.18} parent=0 // pred_check_branch
    %16 = sbr.rel (0) target = $region17
  $region16: #{gpt4ts_forward.18} parent=0 // pred_region
    _
  $region17: #{gpt4ts_forward.18} parent=0 // pred_fallthru
    _
  %p18 = scmp.eq.s32.totalorder 0, 0
  // Predicated region
  $region18: #{gpt4ts_forward.18} parent=0 // pred_check
    %p19 = pneg %p18
  $region19: #{gpt4ts_forward.18} parent=0 // pred_check_branch
    %21 = sbr.rel (%p19) target = $region21
  $region20: #{gpt4ts_forward.18} parent=0 // pred_region
    %22 = vst [vmem:[#allocation2] sm:$0xff] 0.0
    %23 = vst [vmem:[#allocation2 + $0x8] sm:$0xff] 0.0
    %24 = vst [vmem:[#allocation2 + $0x10] sm:$0xff] 0.0
    %25 = vst [vmem:[#allocation2 + $0x18] sm:$0xff] 0.0
    %26 = vst [vmem:[#allocation2 + $0x20] sm:$0xff] 0.0
  $region21: #{gpt4ts_forward.18} parent=0 // pred_fallthru
    _
  %v27 = vld [vmem:[%s0] sm:$0xff]
  %v28 = vld [vmem:[%s0 + $0x8] sm:$0xff]
  %v29 = vld [vmem:[%s0 + $0x10] sm:$0xff]
  %v30 = vld [vmem:[%s0 + $0x18] sm:$0xff]
  %v31 = vld [vmem:[%s0 + $0x20] sm:$0xff]
  %v32 = vld [vmem:[#allocation2] sm:$0xff]
  %v33 = vld [vmem:[#allocation2 + $0x8] sm:$0xff]
  %v34 = vld [vmem:[#allocation2 + $0x10] sm:$0xff]
  %v35 = vld [vmem:[#allocation2 + $0x18] sm:$0xff]
  %v36 = vld [vmem:[#allocation2 + $0x20] sm:$0xff]
  %v37 = vpack.c.bf16 %v28, %v27
  %v38 = vpack.c.bf16 %v30, %v29
  %v39 = vpack.c.bf16 %v31, %v31
  %v40 = vld [vmem:[%s1] sm:$0xf]
  %v41 = vld [vmem:[%s1 + $0x4] sm:$0xf]
  %v42 = vld [vmem:[%s1 + $0x8] sm:$0xf]
  %v43 = vld [vmem:[%s1 + $0xc] sm:$0xf]
  %v44 = vld [vmem:[%s1 + $0x10] sm:$0xf]
  %v45 = vld [vmem:[%s1 + $0x14] sm:$0xf]
  %v46 = vld [vmem:[%s1 + $0x18] sm:$0xf]
  %v47 = vld [vmem:[%s1 + $0x1c] sm:$0xf]
  %v48 = vld [vmem:[%s1 + $0x20] sm:$0xf]
  %v49 = vld [vmem:[%s1 + $0x24] sm:$0xf]
  %v50 = vld [vmem:[%s1 + $0x28] sm:$0xf]
  %v51 = vld [vmem:[%s1 + $0x2c] sm:$0xf]
  %v52 = vld [vmem:[%s1 + $0x30] sm:$0xf]
  %v53 = vld [vmem:[%s1 + $0x34] sm:$0xf]
  %v54 = vld [vmem:[%s1 + $0x38] sm:$0xf]
  %v55 = vld [vmem:[%s1 + $0x3c] sm:$0xf]
  %v72 = vunpack.c.l.b16 %v40
  %v73 = vunpack.c.l.b16 %v41
  %v74 = vunpack.c.l.b16 %v42
  %v75 = vunpack.c.l.b16 %v43
  %v76 = vunpack.c.l.b16 %v44
  %v77 = vunpack.c.l.b16 %v45
  %v78 = vunpack.c.l.b16 %v46
  %v79 = vunpack.c.l.b16 %v47
  %v80 = vunpack.c.l.b16 %v48
  %v81 = vunpack.c.l.b16 %v49
  %v82 = vunpack.c.l.b16 %v50
  %v83 = vunpack.c.l.b16 %v51
  %v84 = vunpack.c.l.b16 %v52
  %v85 = vunpack.c.l.b16 %v53
  %v86 = vunpack.c.l.b16 %v54
  %v87 = vunpack.c.l.b16 %v55
  %v88 = vpack.c.b16 %v73, %v72
  %v89 = vpack.c.b16 %v75, %v74
  %v90 = vpack.c.b16 %v77, %v76
  %v91 = vpack.c.b16 %v79, %v78
  %v92 = vpack.c.b16 %v81, %v80
  %v93 = vpack.c.b16 %v83, %v82
  %v94 = vpack.c.b16 %v85, %v84
  %v95 = vpack.c.b16 %v87, %v86
  %104 = vmatprep.subr.bf16.mxu0 0
  %105 = vmatpush1.bf16.msra.mxu0 %v88
  %106 = vmatprep.subr.bf16.mxu0 0
  %107 = vmatpush1.bf16.msra.mxu0 %v89
  %108 = vmatprep.subr.bf16.mxu0 0
  %109 = vmatpush1.bf16.msra.mxu0 %v90
  %110 = vmatprep.subr.bf16.mxu0 0
  %111 = vmatpush1.bf16.msra.mxu0 %v91
  %112 = vmatprep.subr.bf16.mxu0 0
  %113 = vmatpush1.bf16.msra.mxu0 %v92
  %114 = vmatprep.subr.bf16.mxu0 0
  %115 = vmatpush1.bf16.msra.mxu0 %v93
  %116 = vmatprep.subr.bf16.mxu0 0
  %117 = vmatpush1.bf16.msra.mxu0 %v94
  %118 = vmatprep.subr.bf16.mxu0 0
  %119 = vmatpush1.bf16.msra.mxu0 %v95
  %120 = vmatprep.subr.bf16.mxu0 0
  %121 = vmatpush1.bf16.msra.mxu0 0
  %122 = vmatprep.subr.bf16.mxu0 0
  %123 = vmatpush1.bf16.msra.mxu0 0
  %124 = vmatprep.subr.bf16.mxu0 0
  %125 = vmatpush1.bf16.msra.mxu0 0
  %126 = vmatprep.subr.bf16.mxu0 0
  %127 = vmatpush1.bf16.msra.mxu0 0
  %128 = vmatprep.subr.bf16.mxu0 0
  %129 = vmatpush1.bf16.msra.mxu0 0
  %130 = vmatprep.subr.bf16.mxu0 0
  %131 = vmatpush1.bf16.msra.mxu0 0
  %132 = vmatprep.subr.bf16.mxu0 0
  %133 = vmatpush1.bf16.msra.mxu0 0
  %134 = vmatprep.subr.bf16.mxu0 0
  %135 = vmatpush1.bf16.msra.mxu0 0
  %136 = vmatprep.mubr.bf16.mxu0 0
  %137 = vmatmul.mubr.bf16.gmra.mrb[0].mxu0 %v37
  %v138 = vpop.f32.mrb[0].mxu0
  %v139 = vadd.f32 0.0, %v138
  %v140 = vpop.f32.mrb[0].mxu0
  %v141 = vpop.f32.mrb[0].mxu0
  %v142 = vadd.f32 0.0, %v141
  %v143 = vpop.f32.mrb[0].mxu0
  %144 = vmatprep.mubr.bf16.mxu0 0
  %145 = vmatmul.mubr.bf16.gmra.mrb[0].mxu0 %v38
  %v146 = vpop.f32.mrb[0].mxu0
  %v147 = vadd.f32 0.0, %v146
  %v148 = vpop.f32.mrb[0].mxu0
  %v149 = vpop.f32.mrb[0].mxu0
  %v150 = vadd.f32 0.0, %v149
  %v151 = vpop.f32.mrb[0].mxu0
  %152 = vmatprep.mubr.bf16.mxu0 0
  %153 = vmatmul.mubr.bf16.gmra.mrb[0].mxu0 %v39
  %v154 = vpop.f32.mrb[0].mxu0
  %v155 = vadd.f32 0.0, %v154
  %v156 = vpop.f32.mrb[0].mxu0
  %v157 = vpop.f32.mrb[0].mxu0
  %v158 = vpop.f32.mrb[0].mxu0
  %159 = vdwg.mxu0
  %v160 = vadd.f32 %v32, %v139
  %v161 = vadd.f32 %v33, %v142
  %v162 = vadd.f32 %v34, %v147
  %v163 = vadd.f32 %v35, %v150
  %v164 = vadd.f32 %v36, %v155
  %165 = vst [vmem:[#allocation2] sm:$0xff] %v160
  %166 = vst [vmem:[#allocation2 + $0x8] sm:$0xff] %v161
  %167 = vst [vmem:[#allocation2 + $0x10] sm:$0xff] %v162
  %168 = vst [vmem:[#allocation2 + $0x18] sm:$0xff] %v163
  %169 = vst [vmem:[#allocation2 + $0x20] sm:$0xff] %v164
  // Predicated region
  $region22: #{gpt4ts_forward.18} parent=0 // pred_check
    %p170 = pneg %p18
  $region23: #{gpt4ts_forward.18} parent=0 // pred_check_branch
    %172 = sbr.rel (%p170) target = $region25
  $region24: #{gpt4ts_forward.18} parent=0 // pred_region
    %v173 = vld [vmem:[#allocation2] sm:$0xff]
    %v174 = vld [vmem:[#allocation2 + $0x8] sm:$0xff]
    %v175 = vld [vmem:[#allocation2 + $0x10] sm:$0xff]
    %v176 = vld [vmem:[#allocation2 + $0x18] sm:$0xff]
    %v177 = vld [vmem:[#allocation2 + $0x20] sm:$0xff]
    %v178 = vld [vmem:[%s2] sm:$0x1]
    %v180 = vlaneseq
    %v181 = vshrl.u32 %v180, 7
    %v182 = vsub.s32 0, %v181
    %v183 = vrot.slane %v178, %v182
    %v185 = vadd.f32 %v173, %v183
    %v186 = vadd.f32 %v174, %v183
    %v187 = vadd.f32 %v175, %v183
    %v188 = vadd.f32 %v176, %v183
    %v189 = vadd.f32 %v177, %v183
    %v190 = vld [vmem:[%s3] sm:$0xff]
    %v191 = vld [vmem:[%s3 + $0x8] sm:$0xff]
    %v192 = vld [vmem:[%s3 + $0x10] sm:$0xff]
    %v193 = vld [vmem:[%s3 + $0x18] sm:$0xff]
    %v194 = vld [vmem:[%s3 + $0x20] sm:$0xff]
    %v195 = vadd.f32 %v185, %v190
    %v196 = vadd.f32 %v186, %v191
    %v197 = vadd.f32 %v187, %v192
    %v198 = vadd.f32 %v188, %v193
    %v199 = vadd.f32 %v189, %v194
    %200 = vst [vmem:[%s4] sm:$0xff] %v195
    %201 = vst [vmem:[%s4 + $0x8] sm:$0xff] %v196
    %202 = vst [vmem:[%s4 + $0x10] sm:$0xff] %v197
    %203 = vst [vmem:[%s4 + $0x18] sm:$0xff] %v198
    %204 = vst [vmem:[%s4 + $0x20] sm:$0xff] %v199
  $region25: #{gpt4ts_forward.18} parent=0 // pred_fallthru
    _
  // Predicated region
  $region26: #{gpt4ts_forward.18} parent=0 // pred_check
    _
  $region27: #{gpt4ts_forward.18} parent=0 // pred_check_branch
    %206 = sbr.rel (0) target = $region29
  $region28: #{gpt4ts_forward.18} parent=0 // pred_region
    _
  $region29: #{gpt4ts_forward.18} parent=0 // pred_fallthru
    _
  // Predicated region
  $region30: #{gpt4ts_forward.18} parent=0 // pred_check
    _
  $region31: #{gpt4ts_forward.18} parent=0 // pred_check_branch
    %208 = sbr.rel (0) target = $region33
  $region32: #{gpt4ts_forward.18} parent=0 // pred_region
    _
  $region33: #{gpt4ts_forward.18} parent=0 // pred_fallthru
    _

// kernel: gpt4ts_forward.16
$region0: #{gpt4ts_forward.16}
  #allocation0 [shape = 'u32[]', space=smem, size = 0x4, offset = 0x4, fixed_abs, tag = 'smem constant byte address 0x4 - core index']
  #allocation1 [shape = 'u32[144,128]{1,0:T(1,128)}', space=vmem, size = 0x12000, scoped, tag = 'internal scratch']
  #allocation2 [shape = 'f32[40,128]{1,0:T(8,128)}', space=vmem, size = 0x5000, scoped, tag = 'scratch operand']
  %s0 = inlined_call_operand.vmem [shape: f32[40,128], index: 0, kind: input, shape index: {}]
  %s1 = inlined_call_operand.vmem [shape: f32[1,128], index: 1, kind: input, shape index: {}]
  %s2 = inlined_call_operand.vmem [shape: f32[1,128], index: 2, kind: input, shape index: {}]
  %s3 = inlined_call_operand.vmem [shape: bf16[128,384], index: 3, kind: input, shape index: {}]
  %s4 = inlined_call_operand.vmem [shape: f32[1,384], index: 4, kind: input, shape index: {}]
  %s5 = inlined_call_operand.vmem [shape: f32[40,384], index: 5, kind: output, shape index: {}]
  %s6 = sld [smem:[#allocation0]]
  $region136: #{gpt4ts_forward.16} parent=0
    _
  %s8 = ssub.s32 1, %s6
  %s9 = scalar_select 0, %s8, %s6
  $region1: #{gpt4ts_forward.16} parent=0
    #allocation3 [shape = 'u8[65536]{0}', space=vmem, size = 0x10000, scoped, tag = 'input window, operand 3']
    #allocation4 [shape = 'u8[40960]{0}', space=vmem, size = 0xa000, scoped, tag = 'output window, operand 0']
    loop: start=0, step=1, limit=5
    $region2: #{gpt4ts_forward.16} parent=1 // loop_pre_header
      _
    $region3: #{gpt4ts_forward.16} parent=1 // loop_header
      %s11 = sphi 0, %s15
      %p12 = scmp.ge.s32.totalorder %s11, 5
      %s18 = sphi 0, %s37
      %s19 = sphi 0, %s33
      %s20 = sphi 0, %s29
      %s21 = sphi 0, %s18
      %s22 = sphi 0, %s19
      %s23 = sphi 0, %s20
      %s24 = sphi 0, %s21
      %s25 = sphi 0, %s22
      %s26 = sphi 0, %s23
      %s42 = sphi 0, %s44
      %s45 = sphi 0, %s42
      %s46 = sphi 0, %s45
      %s62 = sphi 0, %s46
      %s66 = sphi 0, %s66
      %s68 = sphi 0, %s66
      %s69 = sphi 0, %s68
      %s83 = sphi 0, %s69
      %s87 = sphi 0, %s87
      %s89 = sphi 0, %s87
      %s90 = sphi 0, %s89
      %s104 = sphi 0, %s90
      %s112 = sphi 0, %s114
      %s115 = sphi 0, %s112
      %s116 = sphi 0, %s115
      %s132 = sphi 0, %s116
      %s138 = sphi 0, %s140
      %s141 = sphi 0, %s138
      %s142 = sphi 0, %s141
      %s158 = sphi 0, %s142
      %s166 = sphi 0, %s168
      %s169 = sphi 0, %s166
      %s170 = sphi 0, %s169
      %s186 = sphi 0, %s170
    $region4: #{gpt4ts_forward.16} parent=1 // loop_header_branch
      %14 = sbr.rel (%p12) target = $region8
    $region5: #{gpt4ts_forward.16} parent=1 // loop_body
      %s16 = ssub.s32 %s11, 1
      %s17 = ssub.s32 %s11, 2
      %s27 = sadd.s32 1, %s20
      %p28 = scmp.ge.s32.totalorder %s27, 1
      %s29 = scalar_select %p28, 0, %s27
      %s30 = sadd.s32 1, %s19
      %s31 = scalar_select %p28, %s30, %s19
      %p32 = scmp.ge.s32.totalorder %s31, 3
      %s33 = scalar_select %p32, 0, %s31
      %s34 = sadd.s32 1, %s18
      %s35 = scalar_select %p32, %s34, %s18
      %p36 = scmp.ge.s32.totalorder %s35, 1
      %s37 = scalar_select %p36, 0, %s35
      %s38 = ssub.s32 %s18, %s37
      %s39 = ssub.s32 %s20, %s29
      %s40 = sor.u32 %s38, %s39
      %p41 = scmp.eq.s32.totalorder %s40, 0
      %s43 = sadd.s32 %s42, 1
      %s44 = scalar_select %p41, %s42, %s43
      %p47 = pneg %p41
      %p48 = scmp.eq.s32.totalorder %s11, 2
      %p49 = por %p47, %p48
      %p50 = scmp.ne.s32.totalorder %s42, %s45
      %p51 = scmp.eq.s32.totalorder %s11, 0
      %p52 = por %p50, %p51
      %p53 = scmp.ne.s32.totalorder %s42, %s45
      %p54 = scmp.eq.s32.totalorder %s16, 2
      %p55 = por %p53, %p54
      %p56 = scmp.ne.s32.totalorder %s45, %s46
      %p57 = scmp.eq.s32.totalorder %s16, 0
      %p58 = por %p56, %p57
      %p59 = scmp.ne.s32.totalorder %s45, %s46
      %p60 = scmp.eq.s32.totalorder %s17, 2
      %p61 = por %p59, %p60
      %p63 = scmp.ne.s32.totalorder %s46, %s62
      %p64 = scmp.eq.s32.totalorder %s17, 0
      %p65 = por %p63, %p64
      %s67 = sadd.s32 %s66, 1
      %p70 = scmp.eq.s32.totalorder %s11, 2
      %p71 = scmp.ne.s32.totalorder %s66, %s68
      %p72 = scmp.eq.s32.totalorder %s11, 0
      %p73 = por %p71, %p72
      %p74 = scmp.ne.s32.totalorder %s66, %s68
      %p75 = scmp.eq.s32.totalorder %s16, 2
      %p76 = por %p74, %p75
      %p77 = scmp.ne.s32.totalorder %s68, %s69
      %p78 = scmp.eq.s32.totalorder %s16, 0
      %p79 = por %p77, %p78
      %p80 = scmp.ne.s32.totalorder %s68, %s69
      %p81 = scmp.eq.s32.totalorder %s17, 2
      %p82 = por %p80, %p81
      %p84 = scmp.ne.s32.totalorder %s69, %s83
      %p85 = scmp.eq.s32.totalorder %s17, 0
      %p86 = por %p84, %p85
      %s88 = sadd.s32 %s87, 1
      %p91 = scmp.eq.s32.totalorder %s11, 2
      %p92 = scmp.ne.s32.totalorder %s87, %s89
      %p93 = scmp.eq.s32.totalorder %s11, 0
      %p94 = por %p92, %p93
      %p95 = scmp.ne.s32.totalorder %s87, %s89
      %p96 = scmp.eq.s32.totalorder %s16, 2
      %p97 = por %p95, %p96
      %p98 = scmp.ne.s32.totalorder %s89, %s90
      %p99 = scmp.eq.s32.totalorder %s16, 0
      %p100 = por %p98, %p99
      %p101 = scmp.ne.s32.totalorder %s89, %s90
      %p102 = scmp.eq.s32.totalorder %s17, 2
      %p103 = por %p101, %p102
      %p105 = scmp.ne.s32.totalorder %s90, %s104
      %p106 = scmp.eq.s32.totalorder %s17, 0
      %p107 = por %p105, %p106
      %s108 = ssub.s32 %s20, %s29
      %s109 = ssub.s32 %s19, %s33
      %s110 = sor.u32 %s108, %s109
      %p111 = scmp.eq.s32.totalorder %s110, 0
      %s113 = sadd.s32 %s112, 1
      %s114 = scalar_select %p111, %s112, %s113
      %p117 = pneg %p111
      %p118 = scmp.eq.s32.totalorder %s11, 2
      %p119 = por %p117, %p118
      %p120 = scmp.ne.s32.totalorder %s112, %s115
      %p121 = scmp.eq.s32.totalorder %s11, 0
      %p122 = por %p120, %p121
      %p123 = scmp.ne.s32.totalorder %s112, %s115
      %p124 = scmp.eq.s32.totalorder %s16, 2
      %p125 = por %p123, %p124
      %p126 = scmp.ne.s32.totalorder %s115, %s116
      %p127 = scmp.eq.s32.totalorder %s16, 0
      %p128 = por %p126, %p127
      %p129 = scmp.ne.s32.totalorder %s115, %s116
      %p130 = scmp.eq.s32.totalorder %s17, 2
      %p131 = por %p129, %p130
      %p133 = scmp.ne.s32.totalorder %s116, %s132
      %p134 = scmp.eq.s32.totalorder %s17, 0
      %p135 = por %p133, %p134
      %s136 = ssub.s32 %s19, %s33
      %p137 = scmp.eq.s32.totalorder %s136, 0
      %s139 = sadd.s32 %s138, 1
      %s140 = scalar_select %p137, %s138, %s139
      %p143 = pneg %p137
      %p144 = scmp.eq.s32.totalorder %s11, 2
      %p145 = por %p143, %p144
      %p146 = scmp.ne.s32.totalorder %s138, %s141
      %p147 = scmp.eq.s32.totalorder %s11, 0
      %p148 = por %p146, %p147
      %p149 = scmp.ne.s32.totalorder %s138, %s141
      %p150 = scmp.eq.s32.totalorder %s16, 2
      %p151 = por %p149, %p150
      %p152 = scmp.ne.s32.totalorder %s141, %s142
      %p153 = scmp.eq.s32.totalorder %s16, 0
      %p154 = por %p152, %p153
      %p155 = scmp.ne.s32.totalorder %s141, %s142
      %p156 = scmp.eq.s32.totalorder %s17, 2
      %p157 = por %p155, %p156
      %p159 = scmp.ne.s32.totalorder %s142, %s158
      %p160 = scmp.eq.s32.totalorder %s17, 0
      %p161 = por %p159, %p160
      %s162 = ssub.s32 %s18, %s37
      %s163 = ssub.s32 %s19, %s33
      %s164 = sor.u32 %s162, %s163
      %p165 = scmp.eq.s32.totalorder %s164, 0
      %s167 = sadd.s32 %s166, 1
      %s168 = scalar_select %p165, %s166, %s167
      %p171 = pneg %p165
      %p172 = scmp.eq.s32.totalorder %s11, 2
      %p173 = por %p171, %p172
      %p174 = scmp.ne.s32.totalorder %s166, %s169
      %p175 = scmp.eq.s32.totalorder %s11, 0
      %p176 = por %p174, %p175
      %p177 = scmp.ne.s32.totalorder %s166, %s169
      %p178 = scmp.eq.s32.totalorder %s16, 2
      %p179 = por %p177, %p178
      %p180 = scmp.ne.s32.totalorder %s169, %s170
      %p181 = scmp.eq.s32.totalorder %s16, 0
      %p182 = por %p180, %p181
      %p183 = scmp.ne.s32.totalorder %s169, %s170
      %p184 = scmp.eq.s32.totalorder %s17, 2
      %p185 = por %p183, %p184
      %p187 = scmp.ne.s32.totalorder %s170, %s186
      %p188 = scmp.eq.s32.totalorder %s17, 0
      %p189 = por %p187, %p188
      %p190 = scmp.le.s32.totalorder 1, %s11
      %p191 = scmp.lt.s32.totalorder %s11, 4
      %p192 = pnand %p190, %p191
      %p193 = pneg %p192
      // Predicated region
      $region9: #{gpt4ts_forward.16} parent=5 // pred_check
        _
      $region10: #{gpt4ts_forward.16} parent=5 // pred_check_branch
        %195 = sbr.rel (%p192) target = $region12
      $region11: #{gpt4ts_forward.16} parent=5 // pred_region
        %s196 = ssub.s32 %s11, 1
        // Predicated region
        $region13: #{gpt4ts_forward.16} parent=11 // pred_check
          %p197 = pneg %p58
        $region14: #{gpt4ts_forward.16} parent=11 // pred_check_branch
          %199 = sbr.rel (%p197) target = $region16
        $region15: #{gpt4ts_forward.16} parent=11 // pred_region
          %s200 = smul.u32 5, %s21
          %p201 = scmp.lt.s32.totalorder %s200, 4
          %s202 = scalar_select %p201, %s200, 4
          %p203 = scmp.lt.s32.totalorder %s23, 0
          %s204 = scalar_select %p203, %s23, 0
          %s205 = sadd.s32 %s204, %s202
          %s206 = smul.addr %s205, 8
          %s207 = scalar_lea.vmem %s0, %s206
          %s208 = smul.u32 5, %s21
        $region16: #{gpt4ts_forward.16} parent=11 // pred_fallthru
          _
        // Predicated region
        $region17: #{gpt4ts_forward.16} parent=11 // pred_check
          %p209 = pneg %p79
        $region18: #{gpt4ts_forward.16} parent=11 // pred_check_branch
          %211 = sbr.rel (%p209) target = $region20
        $region19: #{gpt4ts_forward.16} parent=11 // pred_region
          _
        $region20: #{gpt4ts_forward.16} parent=11 // pred_fallthru
          _
        // Predicated region
        $region21: #{gpt4ts_forward.16} parent=11 // pred_check
          %p212 = pneg %p100
        $region22: #{gpt4ts_forward.16} parent=11 // pred_check_branch
          %214 = sbr.rel (%p212) target = $region24
        $region23: #{gpt4ts_forward.16} parent=11 // pred_region
          _
        $region24: #{gpt4ts_forward.16} parent=11 // pred_fallthru
          _
      $region12: #{gpt4ts_forward.16} parent=5 // pred_fallthru
        _
      %p215 = scmp.lt.s32.totalorder %s11, 3
      // Predicated region
      $region25: #{gpt4ts_forward.16} parent=5 // pred_check
        %p216 = pneg %p215
      $region26: #{gpt4ts_forward.16} parent=5 // pred_check_branch
        %218 = sbr.rel (%p216) target = $region28
      $region27: #{gpt4ts_forward.16} parent=5 // pred_region
        // Predicated region
        $region29: #{gpt4ts_forward.16} parent=27 // pred_check
          %p219 = pneg %p122
        $region30: #{gpt4ts_forward.16} parent=27 // pred_check_branch
          %221 = sbr.rel (%p219) target = $region32
        $region31: #{gpt4ts_forward.16} parent=27 // pred_region
          %s222 = sand.u32 %s112, 1
          %s223 = sand.u32 %s112, 1
          %s224 = smul.addr %s223, 64
          %s225 = scalar_lea.vmem [#allocation3], %s224
          %s226 = smul.u32 16, %s20
          %s227 = smul.addr %s226, 3
          %s228 = sadd.s32 %s19, %s227
          %s229 = smul.addr %s228, 4
          %s230 = scalar_lea.vmem %s3, %s229
          // Predicated region
          $region33: #{gpt4ts_forward.16} parent=31 // pred_check
            _
          $region34: #{gpt4ts_forward.16} parent=31 // pred_check_branch
            %232 = sbr.rel (0) target = $region36
          $region35: #{gpt4ts_forward.16} parent=31 // pred_region
            // Predicated region
            $region37: #{gpt4ts_forward.16} parent=35 // pred_check
              _
            $region38: #{gpt4ts_forward.16} parent=35 // pred_check_branch
              %234 = sbr.rel target = $region40
            $region39: #{gpt4ts_forward.16} parent=35 // pred_region
              // Predicated region
              $region52: #{gpt4ts_forward.16} parent=39 // pred_check
                _
              $region53: #{gpt4ts_forward.16} parent=39 // pred_check_branch
                %279 = sbr.rel (0) target = $region55
              $region54: #{gpt4ts_forward.16} parent=39 // pred_region
                loop: start=0, step=1, limit=1
                $region56: #{gpt4ts_forward.16} parent=54 // loop_pre_header
                  _
                $region57: #{gpt4ts_forward.16} parent=54 // loop_header
                  %s281 = sphi 0, %s285
                  %p282 = scmp.ge.s32.totalorder %s281, 1
                  %s286 = sphi %s230, %s230
                  %s287 = sphi %s225, %s225
                $region58: #{gpt4ts_forward.16} parent=54 // loop_header_branch
                  %284 = sbr.rel (%p282) target = $region62
                $region59: #{gpt4ts_forward.16} parent=54 // loop_body
                  _
                $region60: #{gpt4ts_forward.16} parent=54 // loop_footer
                  %s285 = sadd.s32 1, %s281
                $region61: #{gpt4ts_forward.16} parent=54 // loop_footer_branch
                  %280 = sbr.rel target = $region57
                $region62: #{gpt4ts_forward.16} parent=54 // loop_exit
                  _
                loop: start=0, step=1, limit=1
                $region63: #{gpt4ts_forward.16} parent=54 // loop_pre_header
                  _
                $region64: #{gpt4ts_forward.16} parent=54 // loop_header
                  %s290 = sphi 0, %s294
                  %p291 = scmp.ge.s32.totalorder %s290, 1
                  %s295 = sphi %s230, %s230
                  %s296 = sphi %s225, %s225
                $region65: #{gpt4ts_forward.16} parent=54 // loop_header_branch
                  %293 = sbr.rel (%p291) target = $region69
                $region66: #{gpt4ts_forward.16} parent=54 // loop_body
                  %v297 = vld [vmem:[%s295] sm:$0xf]
                  %298 = vst [vmem:[%s296] sm:$0xf] %v297
                  %v299 = vld [vmem:[%s295 + $0xc] sm:$0xf]
                  %300 = vst [vmem:[%s296 + $0x4] sm:$0xf] %v299
                  %v301 = vld [vmem:[%s295 + $0x18] sm:$0xf]
                  %302 = vst [vmem:[%s296 + $0x8] sm:$0xf] %v301
                  %v303 = vld [vmem:[%s295 + $0x24] sm:$0xf]
                  %304 = vst [vmem:[%s296 + $0xc] sm:$0xf] %v303
                  %v305 = vld [vmem:[%s295 + $0x30] sm:$0xf]
                  %306 = vst [vmem:[%s296 + $0x10] sm:$0xf] %v305
                  %v307 = vld [vmem:[%s295 + $0x3c] sm:$0xf]
                  %308 = vst [vmem:[%s296 + $0x14] sm:$0xf] %v307
                  %v309 = vld [vmem:[%s295 + $0x48] sm:$0xf]
                  %310 = vst [vmem:[%s296 + $0x18] sm:$0xf] %v309
                  %v311 = vld [vmem:[%s295 + $0x54] sm:$0xf]
                  %312 = vst [vmem:[%s296 + $0x1c] sm:$0xf] %v311
                  %v313 = vld [vmem:[%s295 + $0x60] sm:$0xf]
                  %314 = vst [vmem:[%s296 + $0x20] sm:$0xf] %v313
                  %v315 = vld [vmem:[%s295 + $0x6c] sm:$0xf]
                  %316 = vst [vmem:[%s296 + $0x24] sm:$0xf] %v315
                  %v317 = vld [vmem:[%s295 + $0x78] sm:$0xf]
                  %318 = vst [vmem:[%s296 + $0x28] sm:$0xf] %v317
                  %v319 = vld [vmem:[%s295 + $0x84] sm:$0xf]
                  %320 = vst [vmem:[%s296 + $0x2c] sm:$0xf] %v319
                  %v321 = vld [vmem:[%s295 + $0x90] sm:$0xf]
                  %322 = vst [vmem:[%s296 + $0x30] sm:$0xf] %v321
                  %v323 = vld [vmem:[%s295 + $0x9c] sm:$0xf]
                  %324 = vst [vmem:[%s296 + $0x34] sm:$0xf] %v323
                  %v325 = vld [vmem:[%s295 + $0xa8] sm:$0xf]
                  %326 = vst [vmem:[%s296 + $0x38] sm:$0xf] %v325
                  %v327 = vld [vmem:[%s295 + $0xb4] sm:$0xf]
                  %328 = vst [vmem:[%s296 + $0x3c] sm:$0xf] %v327
                $region67: #{gpt4ts_forward.16} parent=54 // loop_footer
                  %s294 = sadd.s32 1, %s290
                $region68: #{gpt4ts_forward.16} parent=54 // loop_footer_branch
                  %289 = sbr.rel target = $region64
                $region69: #{gpt4ts_forward.16} parent=54 // loop_exit
                  _
              $region55: #{gpt4ts_forward.16} parent=39 // pred_fallthru
                _
            $region40: #{gpt4ts_forward.16} parent=35 // pred_fallthru
              _
            // Predicated region
            $region41: #{gpt4ts_forward.16} parent=35 // pred_check
              _
            $region42: #{gpt4ts_forward.16} parent=35 // pred_check_branch
              %236 = sbr.rel (0) target = $region44
            $region43: #{gpt4ts_forward.16} parent=35 // pred_region
              loop: start=0, step=1, limit=1
              $region45: #{gpt4ts_forward.16} parent=43 // loop_pre_header
                _
              $region46: #{gpt4ts_forward.16} parent=43 // loop_header
                %s239 = sphi 0, %s243
                %p240 = scmp.ge.s32.totalorder %s239, 1
                %s244 = sphi %s230, %s230
                %s245 = sphi %s225, %s225
              $region47: #{gpt4ts_forward.16} parent=43 // loop_header_branch
                %242 = sbr.rel (%p240) target = $region51
              $region48: #{gpt4ts_forward.16} parent=43 // loop_body
                %v246 = vld [vmem:[%s244] sm:$0xf]
                %247 = vst [vmem:[%s245] sm:$0xf] %v246
                %v248 = vld [vmem:[%s244 + $0xc] sm:$0xf]
                %249 = vst [vmem:[%s245 + $0x4] sm:$0xf] %v248
                %v250 = vld [vmem:[%s244 + $0x18] sm:$0xf]
                %251 = vst [vmem:[%s245 + $0x8] sm:$0xf] %v250
                %v252 = vld [vmem:[%s244 + $0x24] sm:$0xf]
                %253 = vst [vmem:[%s245 + $0xc] sm:$0xf] %v252
                %v254 = vld [vmem:[%s244 + $0x30] sm:$0xf]
                %255 = vst [vmem:[%s245 + $0x10] sm:$0xf] %v254
                %v256 = vld [vmem:[%s244 + $0x3c] sm:$0xf]
                %257 = vst [vmem:[%s245 + $0x14] sm:$0xf] %v256
                %v258 = vld [vmem:[%s244 + $0x48] sm:$0xf]
                %259 = vst [vmem:[%s245 + $0x18] sm:$0xf] %v258
                %v260 = vld [vmem:[%s244 + $0x54] sm:$0xf]
                %261 = vst [vmem:[%s245 + $0x1c] sm:$0xf] %v260
                %v262 = vld [vmem:[%s244 + $0x60] sm:$0xf]
                %263 = vst [vmem:[%s245 + $0x20] sm:$0xf] %v262
                %v264 = vld [vmem:[%s244 + $0x6c] sm:$0xf]
                %265 = vst [vmem:[%s245 + $0x24] sm:$0xf] %v264
                %v266 = vld [vmem:[%s244 + $0x78] sm:$0xf]
                %267 = vst [vmem:[%s245 + $0x28] sm:$0xf] %v266
                %v268 = vld [vmem:[%s244 + $0x84] sm:$0xf]
                %269 = vst [vmem:[%s245 + $0x2c] sm:$0xf] %v268
                %v270 = vld [vmem:[%s244 + $0x90] sm:$0xf]
                %271 = vst [vmem:[%s245 + $0x30] sm:$0xf] %v270
                %v272 = vld [vmem:[%s244 + $0x9c] sm:$0xf]
                %273 = vst [vmem:[%s245 + $0x34] sm:$0xf] %v272
                %v274 = vld [vmem:[%s244 + $0xa8] sm:$0xf]
                %275 = vst [vmem:[%s245 + $0x38] sm:$0xf] %v274
                %v276 = vld [vmem:[%s244 + $0xb4] sm:$0xf]
                %277 = vst [vmem:[%s245 + $0x3c] sm:$0xf] %v276
              $region49: #{gpt4ts_forward.16} parent=43 // loop_footer
                %s243 = sadd.s32 1, %s239
              $region50: #{gpt4ts_forward.16} parent=43 // loop_footer_branch
                %238 = sbr.rel target = $region46
              $region51: #{gpt4ts_forward.16} parent=43 // loop_exit
                _
            $region44: #{gpt4ts_forward.16} parent=35 // pred_fallthru
              _
          $region36: #{gpt4ts_forward.16} parent=31 // pred_fallthru
            _
          %329 = vnop
        $region32: #{gpt4ts_forward.16} parent=27 // pred_fallthru
          _
        // Predicated region
        $region70: #{gpt4ts_forward.16} parent=27 // pred_check
          %p330 = pneg %p148
        $region71: #{gpt4ts_forward.16} parent=27 // pred_check_branch
          %332 = sbr.rel (%p330) target = $region73
        $region72: #{gpt4ts_forward.16} parent=27 // pred_region
          %p333 = scmp.lt.s32.totalorder %s19, 2
          %s334 = scalar_select %p333, %s19, 2
          %s335 = scalar_lea.vmem %s4, %s334
        $region73: #{gpt4ts_forward.16} parent=27 // pred_fallthru
          _
      $region28: #{gpt4ts_forward.16} parent=5 // pred_fallthru
        _
      %p336 = scmp.le.s32.totalorder 1, %s11
      %p337 = scmp.lt.s32.totalorder %s11, 4
      %p338 = pnand %p336, %p337
      %p339 = pneg %p338
      // Predicated region
      $region74: #{gpt4ts_forward.16} parent=5 // pred_check
        _
      $region75: #{gpt4ts_forward.16} parent=5 // pred_check_branch
        %341 = sbr.rel (%p338) target = $region77
      $region76: #{gpt4ts_forward.16} parent=5 // pred_region
        %s342 = ssub.s32 %s11, 1
        %s343 = sand.u32 %s115, 1
        %s344 = sand.u32 %s115, 1
        %s345 = smul.addr %s344, 64
        %s346 = scalar_lea.vmem [#allocation3], %s345
        // Predicated region
        $region78: #{gpt4ts_forward.16} parent=76 // pred_check
          %p347 = pneg %p128
        $region79: #{gpt4ts_forward.16} parent=76 // pred_check_branch
          %349 = sbr.rel (%p347) target = $region81
        $region80: #{gpt4ts_forward.16} parent=76 // pred_region
          _
        $region81: #{gpt4ts_forward.16} parent=76 // pred_fallthru
          _
        %s350 = smul.u32 5, %s21
        %p351 = scmp.lt.s32.totalorder %s350, 4
        %s352 = scalar_select %p351, %s350, 4
        %p353 = scmp.lt.s32.totalorder %s23, 0
        %s354 = scalar_select %p353, %s23, 0
        %s355 = sadd.s32 %s354, %s352
        %s356 = smul.addr %s355, 8
        %s357 = scalar_lea.vmem %s0, %s356
        %p358 = pneg %p58
        %p359 = pneg %p55
        %p360 = pneg %p79
        %p361 = pneg %p76
        %p362 = pneg %p100
        %p363 = pneg %p97
        %s364 = sand.u32 %s115, 1
        %s365 = sand.u32 %s115, 1
        %s366 = smul.addr %s365, 64
        %s367 = scalar_lea.vmem [#allocation3], %s366
        %p368 = pneg %p128
        %p369 = pneg %p125
        %p370 = scmp.lt.s32.totalorder %s22, 2
        %s371 = scalar_select %p370, %s22, 2
        %s372 = scalar_lea.vmem %s4, %s371
        %p373 = pneg %p154
        %p374 = pneg %p151
        %p375 = pneg %p182
        %p376 = pneg %p179
        %s377 = sand.u32 %s169, 1
        %s378 = sand.u32 %s169, 1
        %s379 = smul.addr %s378, 40
        %s380 = scalar_lea.vmem [#allocation4], %s379
        %s381 = smul.u32 5, %s21
        %p382 = scmp.lt.s32.totalorder %s381, 4
        %s383 = scalar_select %p382, %s381, 4
        %p384 = scmp.lt.s32.totalorder %s23, 0
        %s385 = scalar_select %p384, %s23, 0
        %s386 = sadd.s32 %s385, %s383
        %s387 = smul.addr %s386, 8
        %s388 = scalar_lea.vmem %s0, %s387
        %s389 = smul.u32 5, %s21
        %s390 = smul.u32 16, %s23
        %p391 = scmp.lt.s32.totalorder %s22, 2
        %s392 = scalar_select %p391, %s22, 2
        %s393 = scalar_lea.vmem %s4, %s392
        %s394 = smul.u32 5, %s21
        %p396 = scmp.eq.s32.totalorder %s23, 0
        // Predicated region
        $region82: #{gpt4ts_forward.16} parent=76 // pred_check
          %p397 = pneg %p396
        $region83: #{gpt4ts_forward.16} parent=76 // pred_check_branch
          %399 = sbr.rel (%p397) target = $region85
        $region84: #{gpt4ts_forward.16} parent=76 // pred_region
          %400 = vst [vmem:[#allocation2] sm:$0xff] 0.0
          %401 = vst [vmem:[#allocation2 + $0x8] sm:$0xff] 0.0
          %402 = vst [vmem:[#allocation2 + $0x10] sm:$0xff] 0.0
          %403 = vst [vmem:[#allocation2 + $0x18] sm:$0xff] 0.0
          %404 = vst [vmem:[#allocation2 + $0x20] sm:$0xff] 0.0
        $region85: #{gpt4ts_forward.16} parent=76 // pred_fallthru
          _
        %v405 = vld [vmem:[%s388] sm:$0xff]
        %v406 = vld [vmem:[%s388 + $0x8] sm:$0xff]
        %v407 = vld [vmem:[%s388 + $0x10] sm:$0xff]
        %v408 = vld [vmem:[%s388 + $0x18] sm:$0xff]
        %v409 = vld [vmem:[%s388 + $0x20] sm:$0xff]
        %410 = vadd.xlane.f32.xlu0 %v405
        %v411 = vpop.xlane.xlu0 %410
        %412 = vadd.xlane.f32.xlu0 %v406
        %v413 = vpop.xlane.xlu0 %412
        %414 = vadd.xlane.f32.xlu0 %v407
        %v415 = vpop.xlane.xlu0 %414
        %416 = vadd.xlane.f32.xlu0 %v408
        %v417 = vpop.xlane.xlu0 %416
        %418 = vadd.xlane.f32.xlu0 %v409
        %v419 = vpop.xlane.xlu0 %418
        %v420 = vrcp.pop 128.0
        %v421 = vmul.f32 %v411, %v420
        %v422 = vmul.f32 %v413, %v420
        %v423 = vmul.f32 %v415, %v420
        %v424 = vmul.f32 %v417, %v420
        %v425 = vmul.f32 %v419, %v420
        %v426 = vsub.f32 %v405, %v421
        %v427 = vsub.f32 %v406, %v422
        %v428 = vsub.f32 %v407, %v423
        %v429 = vsub.f32 %v408, %v424
        %v430 = vsub.f32 %v409, %v425
        %v431 = vmul.f32 %v426, %v426
        %v432 = vmul.f32 %v427, %v427
        %v433 = vmul.f32 %v428, %v428
        %v434 = vmul.f32 %v429, %v429
        %v435 = vmul.f32 %v430, %v430
        %436 = vadd.xlane.f32.xlu0 %v431
        %v437 = vpop.xlane.xlu0 %436
        %438 = vadd.xlane.f32.xlu0 %v432
        %v439 = vpop.xlane.xlu0 %438
        %440 = vadd.xlane.f32.xlu0 %v433
        %v441 = vpop.xlane.xlu0 %440
        %442 = vadd.xlane.f32.xlu0 %v434
        %v443 = vpop.xlane.xlu0 %442
        %444 = vadd.xlane.f32.xlu0 %v435
        %v445 = vpop.xlane.xlu0 %444
        %v446 = vmul.f32 %v437, %v420
        %v447 = vmul.f32 %v439, %v420
        %v448 = vmul.f32 %v441, %v420
        %v449 = vmul.f32 %v443, %v420
        %v450 = vmul.f32 %v445, %v420
        %v451 = vadd.f32 %v446, 1e-05
        %v452 = vadd.f32 %v447, 1e-05
        %v453 = vadd.f32 %v448, 1e-05
        %v454 = vadd.f32 %v449, 1e-05
        %v455 = vadd.f32 %v450, 1e-05
        %v456 = vrsqrt.pop %v451
        %v457 = vrsqrt.pop %v452
        %v458 = vrsqrt.pop %v453
        %v459 = vrsqrt.pop %v454
        %v460 = vrsqrt.pop %v455
        %v461 = vmul.f32 %v426, %v456
        %v462 = vmul.f32 %v427, %v457
        %v463 = vmul.f32 %v428, %v458
        %v464 = vmul.f32 %v429, %v459
        %v465 = vmul.f32 %v430, %v460
        %v466 = vld [vmem:[%s1] sm:$0x1]
        %v468 = vlaneseq
        %v469 = vshrl.u32 %v468, 7
        %v470 = vsub.s32 0, %v469
        %v471 = vrot.slane %v466, %v470
        %v473 = vmul.f32 %v461, %v471
        %v474 = vmul.f32 %v462, %v471
        %v475 = vmul.f32 %v463, %v471
        %v476 = vmul.f32 %v464, %v471
        %v477 = vmul.f32 %v465, %v471
        %v478 = vld [vmem:[%s2] sm:$0x1]
        %v480 = vlaneseq
        %v481 = vshrl.u32 %v480, 7
        %v482 = vsub.s32 0, %v481
        %v483 = vrot.slane %v478, %v482
        %v485 = vadd.f32 %v473, %v483
        %v486 = vadd.f32 %v474, %v483
        %v487 = vadd.f32 %v475, %v483
        %v488 = vadd.f32 %v476, %v483
        %v489 = vadd.f32 %v477, %v483
        %v490 = vld [vmem:[#allocation2] sm:$0xff]
        %v491 = vld [vmem:[#allocation2 + $0x8] sm:$0xff]
        %v492 = vld [vmem:[#allocation2 + $0x10] sm:$0xff]
        %v493 = vld [vmem:[#allocation2 + $0x18] sm:$0xff]
        %v494 = vld [vmem:[#allocation2 + $0x20] sm:$0xff]
        %v495 = vpack.c.bf16 %v486, %v485
        %v496 = vpack.c.bf16 %v488, %v487
        %v497 = vpack.c.bf16 %v489, %v489
        %v498 = vld [vmem:[%s346] sm:$0xf]
        %v499 = vld [vmem:[%s346 + $0x4] sm:$0xf]
        %v500 = vld [vmem:[%s346 + $0x8] sm:$0xf]
        %v501 = vld [vmem:[%s346 + $0xc] sm:$0xf]
        %v502 = vld [vmem:[%s346 + $0x10] sm:$0xf]
        %v503 = vld [vmem:[%s346 + $0x14] sm:$0xf]
        %v504 = vld [vmem:[%s346 + $0x18] sm:$0xf]
        %v505 = vld [vmem:[%s346 + $0x1c] sm:$0xf]
        %v506 = vld [vmem:[%s346 + $0x20] sm:$0xf]
        %v507 = vld [vmem:[%s346 + $0x24] sm:$0xf]
        %v508 = vld [vmem:[%s346 + $0x28] sm:$0xf]
        %v509 = vld [vmem:[%s346 + $0x2c] sm:$0xf]
        %v510 = vld [vmem:[%s346 + $0x30] sm:$0xf]
        %v511 = vld [vmem:[%s346 + $0x34] sm:$0xf]
        %v512 = vld [vmem:[%s346 + $0x38] sm:$0xf]
        %v513 = vld [vmem:[%s346 + $0x3c] sm:$0xf]
        %v530 = vunpack.c.l.b16 %v498
        %v531 = vunpack.c.l.b16 %v499
        %v532 = vunpack.c.l.b16 %v500
        %v533 = vunpack.c.l.b16 %v501
        %v534 = vunpack.c.l.b16 %v502
        %v535 = vunpack.c.l.b16 %v503
        %v536 = vunpack.c.l.b16 %v504
        %v537 = vunpack.c.l.b16 %v505
        %v538 = vunpack.c.l.b16 %v506
        %v539 = vunpack.c.l.b16 %v507
        %v540 = vunpack.c.l.b16 %v508
        %v541 = vunpack.c.l.b16 %v509
        %v542 = vunpack.c.l.b16 %v510
        %v543 = vunpack.c.l.b16 %v511
        %v544 = vunpack.c.l.b16 %v512
        %v545 = vunpack.c.l.b16 %v513
        %v546 = vpack.c.b16 %v531, %v530
        %v547 = vpack.c.b16 %v533, %v532
        %v548 = vpack.c.b16 %v535, %v534
        %v549 = vpack.c.b16 %v537, %v536
        %v550 = vpack.c.b16 %v539, %v538
        %v551 = vpack.c.b16 %v541, %v540
        %v552 = vpack.c.b16 %v543, %v542
        %v553 = vpack.c.b16 %v545, %v544
        %562 = vmatprep.subr.bf16.mxu0 0
        %563 = vmatpush1.bf16.msra.mxu0 %v546
        %564 = vmatprep.subr.bf16.mxu0 0
        %565 = vmatpush1.bf16.msra.mxu0 %v547
        %566 = vmatprep.subr.bf16.mxu0 0
        %567 = vmatpush1.bf16.msra.mxu0 %v548
        %568 = vmatprep.subr.bf16.mxu0 0
        %569 = vmatpush1.bf16.msra.mxu0 %v549
        %570 = vmatprep.subr.bf16.mxu0 0
        %571 = vmatpush1.bf16.msra.mxu0 %v550
        %572 = vmatprep.subr.bf16.mxu0 0
        %573 = vmatpush1.bf16.msra.mxu0 %v551
        %574 = vmatprep.subr.bf16.mxu0 0
        %575 = vmatpush1.bf16.msra.mxu0 %v552
        %576 = vmatprep.subr.bf16.mxu0 0
        %577 = vmatpush1.bf16.msra.mxu0 %v553
        %578 = vmatprep.subr.bf16.mxu0 0
        %579 = vmatpush1.bf16.msra.mxu0 0
        %580 = vmatprep.subr.bf16.mxu0 0
        %581 = vmatpush1.bf16.msra.mxu0 0
        %582 = vmatprep.subr.bf16.mxu0 0
        %583 = vmatpush1.bf16.msra.mxu0 0
        %584 = vmatprep.subr.bf16.mxu0 0
        %585 = vmatpush1.bf16.msra.mxu0 0
        %586 = vmatprep.subr.bf16.mxu0 0
        %587 = vmatpush1.bf16.msra.mxu0 0
        %588 = vmatprep.subr.bf16.mxu0 0
        %589 = vmatpush1.bf16.msra.mxu0 0
        %590 = vmatprep.subr.bf16.mxu0 0
        %591 = vmatpush1.bf16.msra.mxu0 0
        %592 = vmatprep.subr.bf16.mxu0 0
        %593 = vmatpush1.bf16.msra.mxu0 0
        %594 = vmatprep.mubr.bf16.mxu0 0
        %595 = vmatmul.mubr.bf16.gmra.mrb[0].mxu0 %v495
        %v596 = vpop.f32.mrb[0].mxu0
        %v597 = vadd.f32 0.0, %v596
        %v598 = vpop.f32.mrb[0].mxu0
        %v599 = vpop.f32.mrb[0].mxu0
        %v600 = vadd.f32 0.0, %v599
        %v601 = vpop.f32.mrb[0].mxu0
        %602 = vmatprep.mubr.bf16.mxu0 0
        %603 = vmatmul.mubr.bf16.gmra.mrb[0].mxu0 %v496
        %v604 = vpop.f32.mrb[0].mxu0
        %v605 = vadd.f32 0.0, %v604
        %v606 = vpop.f32.mrb[0].mxu0
        %v607 = vpop.f32.mrb[0].mxu0
        %v608 = vadd.f32 0.0, %v607
        %v609 = vpop.f32.mrb[0].mxu0
        %610 = vmatprep.mubr.bf16.mxu0 0
        %611 = vmatmul.mubr.bf16.gmra.mrb[0].mxu0 %v497
        %v612 = vpop.f32.mrb[0].mxu0
        %v613 = vadd.f32 0.0, %v612
        %v614 = vpop.f32.mrb[0].mxu0
        %v615 = vpop.f32.mrb[0].mxu0
        %v616 = vpop.f32.mrb[0].mxu0
        %617 = vdwg.mxu0
        %v618 = vadd.f32 %v490, %v597
        %v619 = vadd.f32 %v491, %v600
        %v620 = vadd.f32 %v492, %v605
        %v621 = vadd.f32 %v493, %v608
        %v622 = vadd.f32 %v494, %v613
        %623 = vst [vmem:[#allocation2] sm:$0xff] %v618
        %624 = vst [vmem:[#allocation2 + $0x8] sm:$0xff] %v619
        %625 = vst [vmem:[#allocation2 + $0x10] sm:$0xff] %v620
        %626 = vst [vmem:[#allocation2 + $0x18] sm:$0xff] %v621
        %627 = vst [vmem:[#allocation2 + $0x20] sm:$0xff] %v622
        // Predicated region
        $region86: #{gpt4ts_forward.16} parent=76 // pred_check
          %p628 = pneg %p396
        $region87: #{gpt4ts_forward.16} parent=76 // pred_check_branch
          %630 = sbr.rel (%p628) target = $region89
        $region88: #{gpt4ts_forward.16} parent=76 // pred_region
          %v631 = vld [vmem:[#allocation2] sm:$0xff]
          %v632 = vld [vmem:[#allocation2 + $0x8] sm:$0xff]
          %v633 = vld [vmem:[#allocation2 + $0x10] sm:$0xff]
          %v634 = vld [vmem:[#allocation2 + $0x18] sm:$0xff]
          %v635 = vld [vmem:[#allocation2 + $0x20] sm:$0xff]
          %v636 = vld [vmem:[%s393] sm:$0x1]
          %v638 = vlaneseq
          %v639 = vshrl.u32 %v638, 7
          %v640 = vsub.s32 0, %v639
          %v641 = vrot.slane %v636, %v640
          %v643 = vadd.f32 %v631, %v641
          %v644 = vadd.f32 %v632, %v641
          %v645 = vadd.f32 %v633, %v641
          %v646 = vadd.f32 %v634, %v641
          %v647 = vadd.f32 %v635, %v641
          %648 = vst [vmem:[%s380] sm:$0xff] %v643
          %649 = vst [vmem:[%s380 + $0x8] sm:$0xff] %v644
          %650 = vst [vmem:[%s380 + $0x10] sm:$0xff] %v645
          %651 = vst [vmem:[%s380 + $0x18] sm:$0xff] %v646
          %652 = vst [vmem:[%s380 + $0x20] sm:$0xff] %v647
        $region89: #{gpt4ts_forward.16} parent=76 // pred_fallthru
          _
        %s653 = sand.u32 %s169, 1
        %s654 = sand.u32 %s169, 1
        %s655 = smul.addr %s654, 40
        %s656 = scalar_lea.vmem [#allocation4], %s655
        // Predicated region
        $region90: #{gpt4ts_forward.16} parent=76 // pred_check
          %p657 = pneg %p179
        $region91: #{gpt4ts_forward.16} parent=76 // pred_check_branch
          %659 = sbr.rel (%p657) target = $region93
        $region92: #{gpt4ts_forward.16} parent=76 // pred_region
          %s660 = smul.u32 5, %s21
          %s661 = smul.addr %s660, 3
          %s662 = sadd.s32 %s22, %s661
          %s663 = smul.addr %s662, 8
          %s664 = scalar_lea.vmem %s5, %s663
          // Predicated region
          $region94: #{gpt4ts_forward.16} parent=92 // pred_check
            _
          $region95: #{gpt4ts_forward.16} parent=92 // pred_check_branch
            %666 = sbr.rel (0) target = $region97
          $region96: #{gpt4ts_forward.16} parent=92 // pred_region
            // Predicated region
            $region98: #{gpt4ts_forward.16} parent=96 // pred_check
              _
            $region99: #{gpt4ts_forward.16} parent=96 // pred_check_branch
              %668 = sbr.rel (0) target = $region101
            $region100: #{gpt4ts_forward.16} parent=96 // pred_region
              // Predicated region
              $region113: #{gpt4ts_forward.16} parent=100 // pred_check
                _
              $region114: #{gpt4ts_forward.16} parent=100 // pred_check_branch
                %691 = sbr.rel (0) target = $region116
              $region115: #{gpt4ts_forward.16} parent=100 // pred_region
                loop: start=0, step=1, limit=1
                $region117: #{gpt4ts_forward.16} parent=115 // loop_pre_header
                  _
                $region118: #{gpt4ts_forward.16} parent=115 // loop_header
                  %s693 = sphi 0, %s697
                  %p694 = scmp.ge.s32.totalorder %s693, 1
                  %s698 = sphi %s656, %s656
                  %s699 = sphi %s664, %s664
                $region119: #{gpt4ts_forward.16} parent=115 // loop_header_branch
                  %696 = sbr.rel (%p694) target = $region123
                $region120: #{gpt4ts_forward.16} parent=115 // loop_body
                  %v700 = vld [vmem:[%s698] sm:$0xff]
                  %701 = vst [vmem:[%s699] sm:$0xff] %v700
                  %v702 = vld [vmem:[%s698 + $0x8] sm:$0xff]
                  %703 = vst [vmem:[%s699 + $0x18] sm:$0xff] %v702
                  %v704 = vld [vmem:[%s698 + $0x10] sm:$0xff]
                  %705 = vst [vmem:[%s699 + $0x30] sm:$0xff] %v704
                  %v706 = vld [vmem:[%s698 + $0x18] sm:$0xff]
                  %707 = vst [vmem:[%s699 + $0x48] sm:$0xff] %v706
                  %v708 = vld [vmem:[%s698 + $0x20] sm:$0xff]
                  %709 = vst [vmem:[%s699 + $0x60] sm:$0xff] %v708
                $region121: #{gpt4ts_forward.16} parent=115 // loop_footer
                  %s697 = sadd.s32 1, %s693
                $region122: #{gpt4ts_forward.16} parent=115 // loop_footer_branch
                  %692 = sbr.rel target = $region118
                $region123: #{gpt4ts_forward.16} parent=115 // loop_exit
                  _
              $region116: #{gpt4ts_forward.16} parent=100 // pred_fallthru
                _
              // Predicated region
              $region124: #{gpt4ts_forward.16} parent=100 // pred_check
                _
              $region125: #{gpt4ts_forward.16} parent=100 // pred_check_branch
                %711 = sbr.rel target = $region127
              $region126: #{gpt4ts_forward.16} parent=100 // pred_region
                _
              $region127: #{gpt4ts_forward.16} parent=100 // pred_fallthru
                _
            $region101: #{gpt4ts_forward.16} parent=96 // pred_fallthru
              _
            // Predicated region
            $region102: #{gpt4ts_forward.16} parent=96 // pred_check
              _
            $region103: #{gpt4ts_forward.16} parent=96 // pred_check_branch
              %670 = sbr.rel target = $region105
            $region104: #{gpt4ts_forward.16} parent=96 // pred_region
              loop: start=0, step=1, limit=1
              $region106: #{gpt4ts_forward.16} parent=104 // loop_pre_header
                _
              $region107: #{gpt4ts_forward.16} parent=104 // loop_header
                %s673 = sphi 0, %s677
                %p674 = scmp.ge.s32.totalorder %s673, 1
                %s678 = sphi %s656, %s656
                %s679 = sphi %s664, %s664
              $region108: #{gpt4ts_forward.16} parent=104 // loop_header_branch
                %676 = sbr.rel (%p674) target = $region112
              $region109: #{gpt4ts_forward.16} parent=104 // loop_body
                %v680 = vld [vmem:[%s678] sm:$0xff]
                %681 = vst [vmem:[%s679] sm:$0xff] %v680
                %v682 = vld [vmem:[%s678 + $0x8] sm:$0xff]
                %683 = vst [vmem:[%s679 + $0x18] sm:$0xff] %v682
                %v684 = vld [vmem:[%s678 + $0x10] sm:$0xff]
                %685 = vst [vmem:[%s679 + $0x30] sm:$0xff] %v684
                %v686 = vld [vmem:[%s678 + $0x18] sm:$0xff]
                %687 = vst [vmem:[%s679 + $0x48] sm:$0xff] %v686
                %v688 = vld [vmem:[%s678 + $0x20] sm:$0xff]
                %689 = vst [vmem:[%s679 + $0x60] sm:$0xff] %v688
              $region110: #{gpt4ts_forward.16} parent=104 // loop_footer
                %s677 = sadd.s32 1, %s673
              $region111: #{gpt4ts_forward.16} parent=104 // loop_footer_branch
                %672 = sbr.rel target = $region107
              $region112: #{gpt4ts_forward.16} parent=104 // loop_exit
                _
            $region105: #{gpt4ts_forward.16} parent=96 // pred_fallthru
              _
          $region97: #{gpt4ts_forward.16} parent=92 // pred_fallthru
            _
          %712 = vnop
        $region93: #{gpt4ts_forward.16} parent=76 // pred_fallthru
          _
      $region77: #{gpt4ts_forward.16} parent=5 // pred_fallthru
        _
      %p713 = scmp.le.s32.totalorder 2, %s11
      // Predicated region
      $region128: #{gpt4ts_forward.16} parent=5 // pred_check
        %p714 = pneg %p713
      $region129: #{gpt4ts_forward.16} parent=5 // pred_check_branch
        %716 = sbr.rel (%p714) target = $region131
      $region130: #{gpt4ts_forward.16} parent=5 // pred_region
        %s717 = ssub.s32 %s11, 2
        // Predicated region
        $region132: #{gpt4ts_forward.16} parent=130 // pred_check
          %p718 = pneg %p185
        $region133: #{gpt4ts_forward.16} parent=130 // pred_check_branch
          %720 = sbr.rel (%p718) target = $region135
        $region134: #{gpt4ts_forward.16} parent=130 // pred_region
          %s721 = sand.u32 %s170, 1
          %s722 = sand.u32 %s170, 1
          %s723 = smul.addr %s722, 40
          %s724 = scalar_lea.vmem [#allocation4], %s723
        $region135: #{gpt4ts_forward.16} parent=130 // pred_fallthru
          _
      $region131: #{gpt4ts_forward.16} parent=5 // pred_fallthru
        _
    $region6: #{gpt4ts_forward.16} parent=1 // loop_footer
      %s15 = sadd.s32 1, %s11
    $region7: #{gpt4ts_forward.16} parent=1 // loop_footer_branch
      %10 = sbr.rel target = $region3
    $region8: #{gpt4ts_forward.16} parent=1 // loop_exit
      _

// kernel: gpt4ts_forward.26
$region0: #{gpt4ts_forward.26}
  #allocation0 [shape = 'u32[]', space=smem, size = 0x4, offset = 0x4, fixed_abs, tag = 'smem constant byte address 0x4 - core index']
  #allocation1 [shape = 'u32[144,128]{1,0:T(1,128)}', space=vmem, size = 0x12000, scoped, tag = 'internal scratch']
  %s0 = inlined_call_operand.vmem [shape: f32[40,128], index: 0, kind: input, shape index: {}]
  %s1 = inlined_call_operand.vmem [shape: f32[1,128], index: 1, kind: input, shape index: {}]
  %s2 = inlined_call_operand.vmem [shape: f32[1,128], index: 2, kind: input, shape index: {}]
  %s3 = inlined_call_operand.vmem [shape: f32[40,128], index: 3, kind: output, shape index: {}]
  %s4 = sld [smem:[#allocation0]]
  $region22: #{gpt4ts_forward.26} parent=0
    _
  %s6 = ssub.s32 1, %s4
  %s7 = scalar_select 0, %s6, %s4
  // Predicated region
  $region2: #{gpt4ts_forward.26} parent=0 // pred_check
    _
  $region3: #{gpt4ts_forward.26} parent=0 // pred_check_branch
    %9 = sbr.rel (0) target = $region5
  $region4: #{gpt4ts_forward.26} parent=0 // pred_region
    _
  $region5: #{gpt4ts_forward.26} parent=0 // pred_fallthru
    _
  // Predicated region
  $region6: #{gpt4ts_forward.26} parent=0 // pred_check
    _
  $region7: #{gpt4ts_forward.26} parent=0 // pred_check_branch
    %11 = sbr.rel (0) target = $region9
  $region8: #{gpt4ts_forward.26} parent=0 // pred_region
    _
  $region9: #{gpt4ts_forward.26} parent=0 // pred_fallthru
    _
  // Predicated region
  $region10: #{gpt4ts_forward.26} parent=0 // pred_check
    _
  $region11: #{gpt4ts_forward.26} parent=0 // pred_check_branch
    %13 = sbr.rel (0) target = $region13
  $region12: #{gpt4ts_forward.26} parent=0 // pred_region
    _
  $region13: #{gpt4ts_forward.26} parent=0 // pred_fallthru
    _
  %v14 = vld [vmem:[%s0] sm:$0xff]
  %v15 = vld [vmem:[%s0 + $0x8] sm:$0xff]
  %v16 = vld [vmem:[%s0 + $0x10] sm:$0xff]
  %v17 = vld [vmem:[%s0 + $0x18] sm:$0xff]
  %v18 = vld [vmem:[%s0 + $0x20] sm:$0xff]
  %19 = vadd.xlane.f32.xlu0 %v14
  %v20 = vpop.xlane.xlu0 %19
  %21 = vadd.xlane.f32.xlu0 %v15
  %v22 = vpop.xlane.xlu0 %21
  %23 = vadd.xlane.f32.xlu0 %v16
  %v24 = vpop.xlane.xlu0 %23
  %25 = vadd.xlane.f32.xlu0 %v17
  %v26 = vpop.xlane.xlu0 %25
  %27 = vadd.xlane.f32.xlu0 %v18
  %v28 = vpop.xlane.xlu0 %27
  %v29 = vrcp.pop 128.0
  %v30 = vmul.f32 %v20, %v29
  %v31 = vmul.f32 %v22, %v29
  %v32 = vmul.f32 %v24, %v29
  %v33 = vmul.f32 %v26, %v29
  %v34 = vmul.f32 %v28, %v29
  %v35 = vsub.f32 %v14, %v30
  %v36 = vsub.f32 %v15, %v31
  %v37 = vsub.f32 %v16, %v32
  %v38 = vsub.f32 %v17, %v33
  %v39 = vsub.f32 %v18, %v34
  %v40 = vmul.f32 %v35, %v35
  %v41 = vmul.f32 %v36, %v36
  %v42 = vmul.f32 %v37, %v37
  %v43 = vmul.f32 %v38, %v38
  %v44 = vmul.f32 %v39, %v39
  %45 = vadd.xlane.f32.xlu0 %v40
  %v46 = vpop.xlane.xlu0 %45
  %47 = vadd.xlane.f32.xlu0 %v41
  %v48 = vpop.xlane.xlu0 %47
  %49 = vadd.xlane.f32.xlu0 %v42
  %v50 = vpop.xlane.xlu0 %49
  %51 = vadd.xlane.f32.xlu0 %v43
  %v52 = vpop.xlane.xlu0 %51
  %53 = vadd.xlane.f32.xlu0 %v44
  %v54 = vpop.xlane.xlu0 %53
  %v55 = vmul.f32 %v46, %v29
  %v56 = vmul.f32 %v48, %v29
  %v57 = vmul.f32 %v50, %v29
  %v58 = vmul.f32 %v52, %v29
  %v59 = vmul.f32 %v54, %v29
  %v60 = vadd.f32 %v55, 1e-05
  %v61 = vadd.f32 %v56, 1e-05
  %v62 = vadd.f32 %v57, 1e-05
  %v63 = vadd.f32 %v58, 1e-05
  %v64 = vadd.f32 %v59, 1e-05
  %v65 = vrsqrt.pop %v60
  %v66 = vrsqrt.pop %v61
  %v67 = vrsqrt.pop %v62
  %v68 = vrsqrt.pop %v63
  %v69 = vrsqrt.pop %v64
  %v70 = vmul.f32 %v35, %v65
  %v71 = vmul.f32 %v36, %v66
  %v72 = vmul.f32 %v37, %v67
  %v73 = vmul.f32 %v38, %v68
  %v74 = vmul.f32 %v39, %v69
  %v75 = vld [vmem:[%s1] sm:$0x1]
  %v77 = vlaneseq
  %v78 = vshrl.u32 %v77, 7
  %v79 = vsub.s32 0, %v78
  %v80 = vrot.slane %v75, %v79
  %v82 = vmul.f32 %v70, %v80
  %v83 = vmul.f32 %v71, %v80
  %v84 = vmul.f32 %v72, %v80
  %v85 = vmul.f32 %v73, %v80
  %v86 = vmul.f32 %v74, %v80
  %v87 = vld [vmem:[%s2] sm:$0x1]
  %v89 = vlaneseq
  %v90 = vshrl.u32 %v89, 7
  %v91 = vsub.s32 0, %v90
  %v92 = vrot.slane %v87, %v91
  %v94 = vadd.f32 %v82, %v92
  %v95 = vadd.f32 %v83, %v92
  %v96 = vadd.f32 %v84, %v92
  %v97 = vadd.f32 %v85, %v92
  %v98 = vadd.f32 %v86, %v92
  %99 = vst [vmem:[%s3] sm:$0xff] %v94
  %100 = vst [vmem:[%s3 + $0x8] sm:$0xff] %v95
  %101 = vst [vmem:[%s3 + $0x10] sm:$0xff] %v96
  %102 = vst [vmem:[%s3 + $0x18] sm:$0xff] %v97
  %103 = vst [vmem:[%s3 + $0x20] sm:$0xff] %v98
  // Predicated region
  $region14: #{gpt4ts_forward.26} parent=0 // pred_check
    _
  $region15: #{gpt4ts_forward.26} parent=0 // pred_check_branch
    %105 = sbr.rel (0) target = $region17
  $region16: #{gpt4ts_forward.26} parent=0 // pred_region
    _
  $region17: #{gpt4ts_forward.26} parent=0 // pred_fallthru
    _
  // Predicated region
  $region18: #{gpt4ts_forward.26} parent=0 // pred_check
    _
  $region19: #{gpt4ts_forward.26} parent=0 // pred_check_branch
    %107 = sbr.rel (0) target = $region21
  $region20: #{gpt4ts_forward.26} parent=0 // pred_region
    _
  $region21: #{gpt4ts_forward.26} parent=0 // pred_fallthru
    _

// kernel: gpt4ts_forward.19
$region0: #{gpt4ts_forward.19}
  #allocation0 [shape = 'u32[]', space=smem, size = 0x4, offset = 0x4, fixed_abs, tag = 'smem constant byte address 0x4 - core index']
  #allocation1 [shape = 'u32[144,128]{1,0:T(1,128)}', space=vmem, size = 0x12000, scoped, tag = 'internal scratch']
  #allocation2 [shape = 'f32[40,256]{1,0:T(8,128)}', space=vmem, size = 0xa000, scoped, tag = 'scratch operand']
  %s0 = inlined_call_operand.vmem [shape: f32[40,128], index: 0, kind: input, shape index: {}]
  %s1 = inlined_call_operand.vmem [shape: f32[1,128], index: 1, kind: input, shape index: {}]
  %s2 = inlined_call_operand.vmem [shape: f32[1,128], index: 2, kind: input, shape index: {}]
  %s3 = inlined_call_operand.vmem [shape: bf16[128,512], index: 3, kind: input, shape index: {}]
  %s4 = inlined_call_operand.vmem [shape: f32[1,512], index: 4, kind: input, shape index: {}]
  %s5 = inlined_call_operand.vmem [shape: f32[40,512], index: 5, kind: output, shape index: {}]
  %s6 = sld [smem:[#allocation0]]
  $region118: #{gpt4ts_forward.19} parent=0
    _
  %s8 = ssub.s32 1, %s6
  %s9 = scalar_select 0, %s8, %s6
  $region1: #{gpt4ts_forward.19} parent=0
    #allocation3 [shape = 'u8[131072]{0}', space=vmem, size = 0x20000, scoped, tag = 'input window, operand 3']
    #allocation4 [shape = 'u8[81920]{0}', space=vmem, size = 0x14000, scoped, tag = 'output window, operand 0']
    loop: start=0, step=1, limit=4
    $region2: #{gpt4ts_forward.19} parent=1 // loop_pre_header
      _
    $region3: #{gpt4ts_forward.19} parent=1 // loop_header
      %s11 = sphi 0, %s15
      %p12 = scmp.ge.s32.totalorder %s11, 4
      %s18 = sphi 0, %s37
      %s19 = sphi 0, %s33
      %s20 = sphi 0, %s29
      %s21 = sphi 0, %s18
      %s22 = sphi 0, %s19
      %s23 = sphi 0, %s20
      %s24 = sphi 0, %s21
      %s25 = sphi 0, %s22
      %s26 = sphi 0, %s23
      %s42 = sphi 0, %s44
      %s45 = sphi 0, %s42
      %s46 = sphi 0, %s45
      %s62 = sphi 0, %s46
      %s66 = sphi 0, %s66
      %s68 = sphi 0, %s66
      %s69 = sphi 0, %s68
      %s83 = sphi 0, %s69
      %s87 = sphi 0, %s87
      %s89 = sphi 0, %s87
      %s90 = sphi 0, %s89
      %s104 = sphi 0, %s90
      %s112 = sphi 0, %s114
      %s115 = sphi 0, %s112
      %s116 = sphi 0, %s115
      %s132 = sphi 0, %s116
      %s138 = sphi 0, %s140
      %s141 = sphi 0, %s138
      %s142 = sphi 0, %s141
      %s158 = sphi 0, %s142
      %s166 = sphi 0, %s168
      %s169 = sphi 0, %s166
      %s170 = sphi 0, %s169
      %s186 = sphi 0, %s170
    $region4: #{gpt4ts_forward.19} parent=1 // loop_header_branch
      %14 = sbr.rel (%p12) target = $region8
    $region5: #{gpt4ts_forward.19} parent=1 // loop_body
      %s16 = ssub.s32 %s11, 1
      %s17 = ssub.s32 %s11, 2
      %s27 = sadd.s32 1, %s20
      %p28 = scmp.ge.s32.totalorder %s27, 1
      %s29 = scalar_select %p28, 0, %s27
      %s30 = sadd.s32 1, %s19
      %s31 = scalar_select %p28, %s30, %s19
      %p32 = scmp.ge.s32.totalorder %s31, 2
      %s33 = scalar_select %p32, 0, %s31
      %s34 = sadd.s32 1, %s18
      %s35 = scalar_select %p32, %s34, %s18
      %p36 = scmp.ge.s32.totalorder %s35, 1
      %s37 = scalar_select %p36, 0, %s35
      %s38 = ssub.s32 %s18, %s37
      %s39 = ssub.s32 %s20, %s29
      %s40 = sor.u32 %s38, %s39
      %p41 = scmp.eq.s32.totalorder %s40, 0
      %s43 = sadd.s32 %s42, 1
      %s44 = scalar_select %p41, %s42, %s43
      %p47 = pneg %p41
      %p48 = scmp.eq.s32.totalorder %s11, 1
      %p49 = por %p47, %p48
      %p50 = scmp.ne.s32.totalorder %s42, %s45
      %p51 = scmp.eq.s32.totalorder %s11, 0
      %p52 = por %p50, %p51
      %p53 = scmp.ne.s32.totalorder %s42, %s45
      %p54 = scmp.eq.s32.totalorder %s16, 1
      %p55 = por %p53, %p54
      %p56 = scmp.ne.s32.totalorder %s45, %s46
      %p57 = scmp.eq.s32.totalorder %s16, 0
      %p58 = por %p56, %p57
      %p59 = scmp.ne.s32.totalorder %s45, %s46
      %p60 = scmp.eq.s32.totalorder %s17, 1
      %p61 = por %p59, %p60
      %p63 = scmp.ne.s32.totalorder %s46, %s62
      %p64 = scmp.eq.s32.totalorder %s17, 0
      %p65 = por %p63, %p64
      %s67 = sadd.s32 %s66, 1
      %p70 = scmp.eq.s32.totalorder %s11, 1
      %p71 = scmp.ne.s32.totalorder %s66, %s68
      %p72 = scmp.eq.s32.totalorder %s11, 0
      %p73 = por %p71, %p72
      %p74 = scmp.ne.s32.totalorder %s66, %s68
      %p75 = scmp.eq.s32.totalorder %s16, 1
      %p76 = por %p74, %p75
      %p77 = scmp.ne.s32.totalorder %s68, %s69
      %p78 = scmp.eq.s32.totalorder %s16, 0
      %p79 = por %p77, %p78
      %p80 = scmp.ne.s32.totalorder %s68, %s69
      %p81 = scmp.eq.s32.totalorder %s17, 1
      %p82 = por %p80, %p81
      %p84 = scmp.ne.s32.totalorder %s69, %s83
      %p85 = scmp.eq.s32.totalorder %s17, 0
      %p86 = por %p84, %p85
      %s88 = sadd.s32 %s87, 1
      %p91 = scmp.eq.s32.totalorder %s11, 1
      %p92 = scmp.ne.s32.totalorder %s87, %s89
      %p93 = scmp.eq.s32.totalorder %s11, 0
      %p94 = por %p92, %p93
      %p95 = scmp.ne.s32.totalorder %s87, %s89
      %p96 = scmp.eq.s32.totalorder %s16, 1
      %p97 = por %p95, %p96
      %p98 = scmp.ne.s32.totalorder %s89, %s90
      %p99 = scmp.eq.s32.totalorder %s16, 0
      %p100 = por %p98, %p99
      %p101 = scmp.ne.s32.totalorder %s89, %s90
      %p102 = scmp.eq.s32.totalorder %s17, 1
      %p103 = por %p101, %p102
      %p105 = scmp.ne.s32.totalorder %s90, %s104
      %p106 = scmp.eq.s32.totalorder %s17, 0
      %p107 = por %p105, %p106
      %s108 = ssub.s32 %s20, %s29
      %s109 = ssub.s32 %s19, %s33
      %s110 = sor.u32 %s108, %s109
      %p111 = scmp.eq.s32.totalorder %s110, 0
      %s113 = sadd.s32 %s112, 1
      %s114 = scalar_select %p111, %s112, %s113
      %p117 = pneg %p111
      %p118 = scmp.eq.s32.totalorder %s11, 1
      %p119 = por %p117, %p118
      %p120 = scmp.ne.s32.totalorder %s112, %s115
      %p121 = scmp.eq.s32.totalorder %s11, 0
      %p122 = por %p120, %p121
      %p123 = scmp.ne.s32.totalorder %s112, %s115
      %p124 = scmp.eq.s32.totalorder %s16, 1
      %p125 = por %p123, %p124
      %p126 = scmp.ne.s32.totalorder %s115, %s116
      %p127 = scmp.eq.s32.totalorder %s16, 0
      %p128 = por %p126, %p127
      %p129 = scmp.ne.s32.totalorder %s115, %s116
      %p130 = scmp.eq.s32.totalorder %s17, 1
      %p131 = por %p129, %p130
      %p133 = scmp.ne.s32.totalorder %s116, %s132
      %p134 = scmp.eq.s32.totalorder %s17, 0
      %p135 = por %p133, %p134
      %s136 = ssub.s32 %s19, %s33
      %p137 = scmp.eq.s32.totalorder %s136, 0
      %s139 = sadd.s32 %s138, 1
      %s140 = scalar_select %p137, %s138, %s139
      %p143 = pneg %p137
      %p144 = scmp.eq.s32.totalorder %s11, 1
      %p145 = por %p143, %p144
      %p146 = scmp.ne.s32.totalorder %s138, %s141
      %p147 = scmp.eq.s32.totalorder %s11, 0
      %p148 = por %p146, %p147
      %p149 = scmp.ne.s32.totalorder %s138, %s141
      %p150 = scmp.eq.s32.totalorder %s16, 1
      %p151 = por %p149, %p150
      %p152 = scmp.ne.s32.totalorder %s141, %s142
      %p153 = scmp.eq.s32.totalorder %s16, 0
      %p154 = por %p152, %p153
      %p155 = scmp.ne.s32.totalorder %s141, %s142
      %p156 = scmp.eq.s32.totalorder %s17, 1
      %p157 = por %p155, %p156
      %p159 = scmp.ne.s32.totalorder %s142, %s158
      %p160 = scmp.eq.s32.totalorder %s17, 0
      %p161 = por %p159, %p160
      %s162 = ssub.s32 %s18, %s37
      %s163 = ssub.s32 %s19, %s33
      %s164 = sor.u32 %s162, %s163
      %p165 = scmp.eq.s32.totalorder %s164, 0
      %s167 = sadd.s32 %s166, 1
      %s168 = scalar_select %p165, %s166, %s167
      %p171 = pneg %p165
      %p172 = scmp.eq.s32.totalorder %s11, 1
      %p173 = por %p171, %p172
      %p174 = scmp.ne.s32.totalorder %s166, %s169
      %p175 = scmp.eq.s32.totalorder %s11, 0
      %p176 = por %p174, %p175
      %p177 = scmp.ne.s32.totalorder %s166, %s169
      %p178 = scmp.eq.s32.totalorder %s16, 1
      %p179 = por %p177, %p178
      %p180 = scmp.ne.s32.totalorder %s169, %s170
      %p181 = scmp.eq.s32.totalorder %s16, 0
      %p182 = por %p180, %p181
      %p183 = scmp.ne.s32.totalorder %s169, %s170
      %p184 = scmp.eq.s32.totalorder %s17, 1
      %p185 = por %p183, %p184
      %p187 = scmp.ne.s32.totalorder %s170, %s186
      %p188 = scmp.eq.s32.totalorder %s17, 0
      %p189 = por %p187, %p188
      %p190 = scmp.le.s32.totalorder 1, %s11
      %p191 = scmp.lt.s32.totalorder %s11, 3
      %p192 = pnand %p190, %p191
      %p193 = pneg %p192
      // Predicated region
      $region9: #{gpt4ts_forward.19} parent=5 // pred_check
        _
      $region10: #{gpt4ts_forward.19} parent=5 // pred_check_branch
        %195 = sbr.rel (%p192) target = $region12
      $region11: #{gpt4ts_forward.19} parent=5 // pred_region
        %s196 = ssub.s32 %s11, 1
        // Predicated region
        $region13: #{gpt4ts_forward.19} parent=11 // pred_check
          %p197 = pneg %p58
        $region14: #{gpt4ts_forward.19} parent=11 // pred_check_branch
          %199 = sbr.rel (%p197) target = $region16
        $region15: #{gpt4ts_forward.19} parent=11 // pred_region
          %s200 = smul.u32 5, %s21
          %p201 = scmp.lt.s32.totalorder %s200, 4
          %s202 = scalar_select %p201, %s200, 4
          %p203 = scmp.lt.s32.totalorder %s23, 0
          %s204 = scalar_select %p203, %s23, 0
          %s205 = sadd.s32 %s204, %s202
          %s206 = smul.addr %s205, 8
          %s207 = scalar_lea.vmem %s0, %s206
          %s208 = smul.u32 5, %s21
        $region16: #{gpt4ts_forward.19} parent=11 // pred_fallthru
          _
        // Predicated region
        $region17: #{gpt4ts_forward.19} parent=11 // pred_check
          %p209 = pneg %p79
        $region18: #{gpt4ts_forward.19} parent=11 // pred_check_branch
          %211 = sbr.rel (%p209) target = $region20
        $region19: #{gpt4ts_forward.19} parent=11 // pred_region
          _
        $region20: #{gpt4ts_forward.19} parent=11 // pred_fallthru
          _
        // Predicated region
        $region21: #{gpt4ts_forward.19} parent=11 // pred_check
          %p212 = pneg %p100
        $region22: #{gpt4ts_forward.19} parent=11 // pred_check_branch
          %214 = sbr.rel (%p212) target = $region24
        $region23: #{gpt4ts_forward.19} parent=11 // pred_region
          _
        $region24: #{gpt4ts_forward.19} parent=11 // pred_fallthru
          _
      $region12: #{gpt4ts_forward.19} parent=5 // pred_fallthru
        _
      %p215 = scmp.lt.s32.totalorder %s11, 2
      // Predicated region
      $region25: #{gpt4ts_forward.19} parent=5 // pred_check
        %p216 = pneg %p215
      $region26: #{gpt4ts_forward.19} parent=5 // pred_check_branch
        %218 = sbr.rel (%p216) target = $region28
      $region27: #{gpt4ts_forward.19} parent=5 // pred_region
        // Predicated region
        $region29: #{gpt4ts_forward.19} parent=27 // pred_check
          %p219 = pneg %p122
        $region30: #{gpt4ts_forward.19} parent=27 // pred_check_branch
          %221 = sbr.rel (%p219) target = $region32
        $region31: #{gpt4ts_forward.19} parent=27 // pred_region
          %s222 = sand.u32 %s112, 1
          %s223 = sand.u32 %s112, 1
          %s224 = smul.addr %s223, 128
          %s225 = scalar_lea.vmem [#allocation3], %s224
          %s226 = smul.u32 16, %s20
          %s227 = smul.u32 2, %s19
          %s228 = smul.addr %s226, 4
          %s229 = sadd.s32 %s227, %s228
          %s230 = smul.addr %s229, 4
          %s231 = scalar_lea.vmem %s3, %s230
          // Predicated region
          $region33: #{gpt4ts_forward.19} parent=31 // pred_check
            _
          $region34: #{gpt4ts_forward.19} parent=31 // pred_check_branch
            %233 = sbr.rel (0) target = $region36
          $region35: #{gpt4ts_forward.19} parent=31 // pred_region
            // Predicated region
            $region37: #{gpt4ts_forward.19} parent=35 // pred_check
              _
            $region38: #{gpt4ts_forward.19} parent=35 // pred_check_branch
              %235 = sbr.rel (0) target = $region40
            $region39: #{gpt4ts_forward.19} parent=35 // pred_region
              // Predicated region
              $region52: #{gpt4ts_forward.19} parent=39 // pred_check
                _
              $region53: #{gpt4ts_forward.19} parent=39 // pred_check_branch
                %280 = sbr.rel (0) target = $region55
              $region54: #{gpt4ts_forward.19} parent=39 // pred_region
                loop: start=0, step=1, limit=1
                $region56: #{gpt4ts_forward.19} parent=54 // loop_pre_header
                  _
                $region57: #{gpt4ts_forward.19} parent=54 // loop_header
                  %s282 = sphi 0, %s286
                  %p283 = scmp.ge.s32.totalorder %s282, 1
                  %s287 = sphi %s231, %s231
                  %s288 = sphi %s225, %s225
                $region58: #{gpt4ts_forward.19} parent=54 // loop_header_branch
                  %285 = sbr.rel (%p283) target = $region62
                $region59: #{gpt4ts_forward.19} parent=54 // loop_body
                  %v289 = vld [vmem:[%s287] sm:$0xff]
                  %290 = vst [vmem:[%s288] sm:$0xff] %v289
                  %v291 = vld [vmem:[%s287 + $0x10] sm:$0xff]
                  %292 = vst [vmem:[%s288 + $0x8] sm:$0xff] %v291
                  %v293 = vld [vmem:[%s287 + $0x20] sm:$0xff]
                  %294 = vst [vmem:[%s288 + $0x10] sm:$0xff] %v293
                  %v295 = vld [vmem:[%s287 + $0x30] sm:$0xff]
                  %296 = vst [vmem:[%s288 + $0x18] sm:$0xff] %v295
                  %v297 = vld [vmem:[%s287 + $0x40] sm:$0xff]
                  %298 = vst [vmem:[%s288 + $0x20] sm:$0xff] %v297
                  %v299 = vld [vmem:[%s287 + $0x50] sm:$0xff]
                  %300 = vst [vmem:[%s288 + $0x28] sm:$0xff] %v299
                  %v301 = vld [vmem:[%s287 + $0x60] sm:$0xff]
                  %302 = vst [vmem:[%s288 + $0x30] sm:$0xff] %v301
                  %v303 = vld [vmem:[%s287 + $0x70] sm:$0xff]
                  %304 = vst [vmem:[%s288 + $0x38] sm:$0xff] %v303
                  %v305 = vld [vmem:[%s287 + $0x80] sm:$0xff]
                  %306 = vst [vmem:[%s288 + $0x40] sm:$0xff] %v305
                  %v307 = vld [vmem:[%s287 + $0x90] sm:$0xff]
                  %308 = vst [vmem:[%s288 + $0x48] sm:$0xff] %v307
                  %v309 = vld [vmem:[%s287 + $0xa0] sm:$0xff]
                  %310 = vst [vmem:[%s288 + $0x50] sm:$0xff] %v309
                  %v311 = vld [vmem:[%s287 + $0xb0] sm:$0xff]
                  %312 = vst [vmem:[%s288 + $0x58] sm:$0xff] %v311
                  %v313 = vld [vmem:[%s287 + $0xc0] sm:$0xff]
                  %314 = vst [vmem:[%s288 + $0x60] sm:$0xff] %v313
                  %v315 = vld [vmem:[%s287 + $0xd0] sm:$0xff]
                  %316 = vst [vmem:[%s288 + $0x68] sm:$0xff] %v315
                  %v317 = vld [vmem:[%s287 + $0xe0] sm:$0xff]
                  %318 = vst [vmem:[%s288 + $0x70] sm:$0xff] %v317
                  %v319 = vld [vmem:[%s287 + $0xf0] sm:$0xff]
                  %320 = vst [vmem:[%s288 + $0x78] sm:$0xff] %v319
                $region60: #{gpt4ts_forward.19} parent=54 // loop_footer
                  %s286 = sadd.s32 1, %s282
                $region61: #{gpt4ts_forward.19} parent=54 // loop_footer_branch
                  %281 = sbr.rel target = $region57
                $region62: #{gpt4ts_forward.19} parent=54 // loop_exit
                  _
              $region55: #{gpt4ts_forward.19} parent=39 // pred_fallthru
                _
              // Predicated region
              $region63: #{gpt4ts_forward.19} parent=39 // pred_check
                _
              $region64: #{gpt4ts_forward.19} parent=39 // pred_check_branch
                %322 = sbr.rel target = $region66
              $region65: #{gpt4ts_forward.19} parent=39 // pred_region
                _
              $region66: #{gpt4ts_forward.19} parent=39 // pred_fallthru
                _
            $region40: #{gpt4ts_forward.19} parent=35 // pred_fallthru
              _
            // Predicated region
            $region41: #{gpt4ts_forward.19} parent=35 // pred_check
              _
            $region42: #{gpt4ts_forward.19} parent=35 // pred_check_branch
              %237 = sbr.rel target = $region44
            $region43: #{gpt4ts_forward.19} parent=35 // pred_region
              loop: start=0, step=1, limit=1
              $region45: #{gpt4ts_forward.19} parent=43 // loop_pre_header
                _
              $region46: #{gpt4ts_forward.19} parent=43 // loop_header
                %s240 = sphi 0, %s244
                %p241 = scmp.ge.s32.totalorder %s240, 1
                %s245 = sphi %s231, %s231
                %s246 = sphi %s225, %s225
              $region47: #{gpt4ts_forward.19} parent=43 // loop_header_branch
                %243 = sbr.rel (%p241) target = $region51
              $region48: #{gpt4ts_forward.19} parent=43 // loop_body
                %v247 = vld [vmem:[%s245] sm:$0xff]
                %248 = vst [vmem:[%s246] sm:$0xff] %v247
                %v249 = vld [vmem:[%s245 + $0x10] sm:$0xff]
                %250 = vst [vmem:[%s246 + $0x8] sm:$0xff] %v249
                %v251 = vld [vmem:[%s245 + $0x20] sm:$0xff]
                %252 = vst [vmem:[%s246 + $0x10] sm:$0xff] %v251
                %v253 = vld [vmem:[%s245 + $0x30] sm:$0xff]
                %254 = vst [vmem:[%s246 + $0x18] sm:$0xff] %v253
                %v255 = vld [vmem:[%s245 + $0x40] sm:$0xff]
                %256 = vst [vmem:[%s246 + $0x20] sm:$0xff] %v255
                %v257 = vld [vmem:[%s245 + $0x50] sm:$0xff]
                %258 = vst [vmem:[%s246 + $0x28] sm:$0xff] %v257
                %v259 = vld [vmem:[%s245 + $0x60] sm:$0xff]
                %260 = vst [vmem:[%s246 + $0x30] sm:$0xff] %v259
                %v261 = vld [vmem:[%s245 + $0x70] sm:$0xff]
                %262 = vst [vmem:[%s246 + $0x38] sm:$0xff] %v261
                %v263 = vld [vmem:[%s245 + $0x80] sm:$0xff]
                %264 = vst [vmem:[%s246 + $0x40] sm:$0xff] %v263
                %v265 = vld [vmem:[%s245 + $0x90] sm:$0xff]
                %266 = vst [vmem:[%s246 + $0x48] sm:$0xff] %v265
                %v267 = vld [vmem:[%s245 + $0xa0] sm:$0xff]
                %268 = vst [vmem:[%s246 + $0x50] sm:$0xff] %v267
                %v269 = vld [vmem:[%s245 + $0xb0] sm:$0xff]
                %270 = vst [vmem:[%s246 + $0x58] sm:$0xff] %v269
                %v271 = vld [vmem:[%s245 + $0xc0] sm:$0xff]
                %272 = vst [vmem:[%s246 + $0x60] sm:$0xff] %v271
                %v273 = vld [vmem:[%s245 + $0xd0] sm:$0xff]
                %274 = vst [vmem:[%s246 + $0x68] sm:$0xff] %v273
                %v275 = vld [vmem:[%s245 + $0xe0] sm:$0xff]
                %276 = vst [vmem:[%s246 + $0x70] sm:$0xff] %v275
                %v277 = vld [vmem:[%s245 + $0xf0] sm:$0xff]
                %278 = vst [vmem:[%s246 + $0x78] sm:$0xff] %v277
              $region49: #{gpt4ts_forward.19} parent=43 // loop_footer
                %s244 = sadd.s32 1, %s240
              $region50: #{gpt4ts_forward.19} parent=43 // loop_footer_branch
                %239 = sbr.rel target = $region46
              $region51: #{gpt4ts_forward.19} parent=43 // loop_exit
                _
            $region44: #{gpt4ts_forward.19} parent=35 // pred_fallthru
              _
          $region36: #{gpt4ts_forward.19} parent=31 // pred_fallthru
            _
          %323 = vnop
        $region32: #{gpt4ts_forward.19} parent=27 // pred_fallthru
          _
        // Predicated region
        $region67: #{gpt4ts_forward.19} parent=27 // pred_check
          %p324 = pneg %p148
        $region68: #{gpt4ts_forward.19} parent=27 // pred_check_branch
          %326 = sbr.rel (%p324) target = $region70
        $region69: #{gpt4ts_forward.19} parent=27 // pred_region
          %s327 = smul.u32 2, %s19
          %p328 = scmp.lt.s32.totalorder %s327, 3
          %s329 = scalar_select %p328, %s327, 3
          %s330 = scalar_lea.vmem %s4, %s329
          %s331 = smul.u32 2, %s19
        $region70: #{gpt4ts_forward.19} parent=27 // pred_fallthru
          _
      $region28: #{gpt4ts_forward.19} parent=5 // pred_fallthru
        _
      %p332 = scmp.le.s32.totalorder 1, %s11
      %p333 = scmp.lt.s32.totalorder %s11, 3
      %p334 = pnand %p332, %p333
      %p335 = pneg %p334
      // Predicated region
      $region71: #{gpt4ts_forward.19} parent=5 // pred_check
        _
      $region72: #{gpt4ts_forward.19} parent=5 // pred_check_branch
        %337 = sbr.rel (%p334) target = $region74
      $region73: #{gpt4ts_forward.19} parent=5 // pred_region
        %s338 = ssub.s32 %s11, 1
        %s339 = sand.u32 %s115, 1
        %s340 = sand.u32 %s115, 1
        %s341 = smul.addr %s340, 128
        %s342 = scalar_lea.vmem [#allocation3], %s341
        // Predicated region
        $region75: #{gpt4ts_forward.19} parent=73 // pred_check
          %p343 = pneg %p128
        $region76: #{gpt4ts_forward.19} parent=73 // pred_check_branch
          %345 = sbr.rel (%p343) target = $region78
        $region77: #{gpt4ts_forward.19} parent=73 // pred_region
          _
        $region78: #{gpt4ts_forward.19} parent=73 // pred_fallthru
          _
        %s346 = smul.u32 5, %s21
        %p347 = scmp.lt.s32.totalorder %s346, 4
        %s348 = scalar_select %p347, %s346, 4
        %p349 = scmp.lt.s32.totalorder %s23, 0
        %s350 = scalar_select %p349, %s23, 0
        %s351 = sadd.s32 %s350, %s348
        %s352 = smul.addr %s351, 8
        %s353 = scalar_lea.vmem %s0, %s352
        %p354 = pneg %p58
        %p355 = pneg %p55
        %p356 = pneg %p79
        %p357 = pneg %p76
        %p358 = pneg %p100
        %p359 = pneg %p97
        %s360 = sand.u32 %s115, 1
        %s361 = sand.u32 %s115, 1
        %s362 = smul.addr %s361, 128
        %s363 = scalar_lea.vmem [#allocation3], %s362
        %p364 = pneg %p128
        %p365 = pneg %p125
        %s366 = smul.u32 2, %s22
        %p367 = scmp.lt.s32.totalorder %s366, 3
        %s368 = scalar_select %p367, %s366, 3
        %s369 = scalar_lea.vmem %s4, %s368
        %p370 = pneg %p154
        %p371 = pneg %p151
        %p372 = pneg %p182
        %p373 = pneg %p179
        %s374 = sand.u32 %s169, 1
        %s375 = sand.u32 %s169, 1
        %s376 = smul.addr %s375, 80
        %s377 = scalar_lea.vmem [#allocation4], %s376
        %s378 = smul.u32 5, %s21
        %p379 = scmp.lt.s32.totalorder %s378, 4
        %s380 = scalar_select %p379, %s378, 4
        %p381 = scmp.lt.s32.totalorder %s23, 0
        %s382 = scalar_select %p381, %s23, 0
        %s383 = sadd.s32 %s382, %s380
        %s384 = smul.addr %s383, 8
        %s385 = scalar_lea.vmem %s0, %s384
        %s386 = smul.u32 5, %s21
        %s387 = smul.u32 16, %s23
        %s388 = smul.u32 2, %s22
        %s389 = smul.u32 2, %s22
        %p390 = scmp.lt.s32.totalorder %s389, 3
        %s391 = scalar_select %p390, %s389, 3
        %s392 = scalar_lea.vmem %s4, %s391
        %s393 = smul.u32 2, %s22
        %s394 = smul.u32 5, %s21
        %s395 = smul.u32 2, %s22
        %p397 = scmp.eq.s32.totalorder %s23, 0
        // Predicated region
        $region79: #{gpt4ts_forward.19} parent=73 // pred_check
          %p398 = pneg %p397
        $region80: #{gpt4ts_forward.19} parent=73 // pred_check_branch
          %400 = sbr.rel (%p398) target = $region82
        $region81: #{gpt4ts_forward.19} parent=73 // pred_region
          %401 = vst [vmem:[#allocation2] sm:$0xff] 0.0
          %402 = vst [vmem:[#allocation2 + $0x8] sm:$0xff] 0.0
          %403 = vst [vmem:[#allocation2 + $0x10] sm:$0xff] 0.0
          %404 = vst [vmem:[#allocation2 + $0x18] sm:$0xff] 0.0
          %405 = vst [vmem:[#allocation2 + $0x20] sm:$0xff] 0.0
          %406 = vst [vmem:[#allocation2 + $0x28] sm:$0xff] 0.0
          %407 = vst [vmem:[#allocation2 + $0x30] sm:$0xff] 0.0
          %408 = vst [vmem:[#allocation2 + $0x38] sm:$0xff] 0.0
          %409 = vst [vmem:[#allocation2 + $0x40] sm:$0xff] 0.0
          %410 = vst [vmem:[#allocation2 + $0x48] sm:$0xff] 0.0
        $region82: #{gpt4ts_forward.19} parent=73 // pred_fallthru
          _
        %v411 = vld [vmem:[%s385] sm:$0xff]
        %v412 = vld [vmem:[%s385 + $0x8] sm:$0xff]
        %v413 = vld [vmem:[%s385 + $0x10] sm:$0xff]
        %v414 = vld [vmem:[%s385 + $0x18] sm:$0xff]
        %v415 = vld [vmem:[%s385 + $0x20] sm:$0xff]
        %416 = vadd.xlane.f32.xlu0 %v411
        %v417 = vpop.xlane.xlu0 %416
        %418 = vadd.xlane.f32.xlu0 %v412
        %v419 = vpop.xlane.xlu0 %418
        %420 = vadd.xlane.f32.xlu0 %v413
        %v421 = vpop.xlane.xlu0 %420
        %422 = vadd.xlane.f32.xlu0 %v414
        %v423 = vpop.xlane.xlu0 %422
        %424 = vadd.xlane.f32.xlu0 %v415
        %v425 = vpop.xlane.xlu0 %424
        %v426 = vrcp.pop 128.0
        %v427 = vmul.f32 %v417, %v426
        %v428 = vmul.f32 %v419, %v426
        %v429 = vmul.f32 %v421, %v426
        %v430 = vmul.f32 %v423, %v426
        %v431 = vmul.f32 %v425, %v426
        %v432 = vsub.f32 %v411, %v427
        %v433 = vsub.f32 %v412, %v428
        %v434 = vsub.f32 %v413, %v429
        %v435 = vsub.f32 %v414, %v430
        %v436 = vsub.f32 %v415, %v431
        %v437 = vmul.f32 %v432, %v432
        %v438 = vmul.f32 %v433, %v433
        %v439 = vmul.f32 %v434, %v434
        %v440 = vmul.f32 %v435, %v435
        %v441 = vmul.f32 %v436, %v436
        %442 = vadd.xlane.f32.xlu0 %v437
        %v443 = vpop.xlane.xlu0 %442
        %444 = vadd.xlane.f32.xlu0 %v438
        %v445 = vpop.xlane.xlu0 %444
        %446 = vadd.xlane.f32.xlu0 %v439
        %v447 = vpop.xlane.xlu0 %446
        %448 = vadd.xlane.f32.xlu0 %v440
        %v449 = vpop.xlane.xlu0 %448
        %450 = vadd.xlane.f32.xlu0 %v441
        %v451 = vpop.xlane.xlu0 %450
        %v452 = vmul.f32 %v443, %v426
        %v453 = vmul.f32 %v445, %v426
        %v454 = vmul.f32 %v447, %v426
        %v455 = vmul.f32 %v449, %v426
        %v456 = vmul.f32 %v451, %v426
        %v457 = vadd.f32 %v452, 1e-05
        %v458 = vadd.f32 %v453, 1e-05
        %v459 = vadd.f32 %v454, 1e-05
        %v460 = vadd.f32 %v455, 1e-05
        %v461 = vadd.f32 %v456, 1e-05
        %v462 = vrsqrt.pop %v457
        %v463 = vrsqrt.pop %v458
        %v464 = vrsqrt.pop %v459
        %v465 = vrsqrt.pop %v460
        %v466 = vrsqrt.pop %v461
        %v467 = vmul.f32 %v432, %v462
        %v468 = vmul.f32 %v433, %v463
        %v469 = vmul.f32 %v434, %v464
        %v470 = vmul.f32 %v435, %v465
        %v471 = vmul.f32 %v436, %v466
        %v472 = vld [vmem:[%s1] sm:$0x1]
        %v474 = vlaneseq
        %v475 = vshrl.u32 %v474, 7
        %v476 = vsub.s32 0, %v475
        %v477 = vrot.slane %v472, %v476
        %v479 = vmul.f32 %v467, %v477
        %v480 = vmul.f32 %v468, %v477
        %v481 = vmul.f32 %v469, %v477
        %v482 = vmul.f32 %v470, %v477
        %v483 = vmul.f32 %v471, %v477
        %v484 = vld [vmem:[%s2] sm:$0x1]
        %v486 = vlaneseq
        %v487 = vshrl.u32 %v486, 7
        %v488 = vsub.s32 0, %v487
        %v489 = vrot.slane %v484, %v488
        %v491 = vadd.f32 %v479, %v489
        %v492 = vadd.f32 %v480, %v489
        %v493 = vadd.f32 %v481, %v489
        %v494 = vadd.f32 %v482, %v489
        %v495 = vadd.f32 %v483, %v489
        %v496 = vld [vmem:[#allocation2] sm:$0xff]
        %v497 = vld [vmem:[#allocation2 + $0x8] sm:$0xff]
        %v498 = vld [vmem:[#allocation2 + $0x10] sm:$0xff]
        %v499 = vld [vmem:[#allocation2 + $0x18] sm:$0xff]
        %v500 = vld [vmem:[#allocation2 + $0x20] sm:$0xff]
        %v501 = vld [vmem:[#allocation2 + $0x28] sm:$0xff]
        %v502 = vld [vmem:[#allocation2 + $0x30] sm:$0xff]
        %v503 = vld [vmem:[#allocation2 + $0x38] sm:$0xff]
        %v504 = vld [vmem:[#allocation2 + $0x40] sm:$0xff]
        %v505 = vld [vmem:[#allocation2 + $0x48] sm:$0xff]
        %v506 = vpack.c.bf16 %v492, %v491
        %v507 = vpack.c.bf16 %v494, %v493
        %v508 = vpack.c.bf16 %v495, %v495
        %v509 = vld [vmem:[%s342] sm:$0xff]
        %v510 = vld [vmem:[%s342 + $0x8] sm:$0xff]
        %v511 = vld [vmem:[%s342 + $0x10] sm:$0xff]
        %v512 = vld [vmem:[%s342 + $0x18] sm:$0xff]
        %v513 = vld [vmem:[%s342 + $0x20] sm:$0xff]
        %v514 = vld [vmem:[%s342 + $0x28] sm:$0xff]
        %v515 = vld [vmem:[%s342 + $0x30] sm:$0xff]
        %v516 = vld [vmem:[%s342 + $0x38] sm:$0xff]
        %v517 = vld [vmem:[%s342 + $0x40] sm:$0xff]
        %v518 = vld [vmem:[%s342 + $0x48] sm:$0xff]
        %v519 = vld [vmem:[%s342 + $0x50] sm:$0xff]
        %v520 = vld [vmem:[%s342 + $0x58] sm:$0xff]
        %v521 = vld [vmem:[%s342 + $0x60] sm:$0xff]
        %v522 = vld [vmem:[%s342 + $0x68] sm:$0xff]
        %v523 = vld [vmem:[%s342 + $0x70] sm:$0xff]
        %v524 = vld [vmem:[%s342 + $0x78] sm:$0xff]
        %v541 = vunpack.c.l.b16 %v509
        %v542 = vunpack.c.h.b16 %v509
        %v543 = vunpack.c.l.b16 %v510
        %v544 = vunpack.c.h.b16 %v510
        %v545 = vunpack.c.l.b16 %v511
        %v546 = vunpack.c.h.b16 %v511
        %v547 = vunpack.c.l.b16 %v512
        %v548 = vunpack.c.h.b16 %v512
        %v549 = vunpack.c.l.b16 %v513
        %v550 = vunpack.c.h.b16 %v513
        %v551 = vunpack.c.l.b16 %v514
        %v552 = vunpack.c.h.b16 %v514
        %v553 = vunpack.c.l.b16 %v515
        %v554 = vunpack.c.h.b16 %v515
        %v555 = vunpack.c.l.b16 %v516
        %v556 = vunpack.c.h.b16 %v516
        %v557 = vunpack.c.l.b16 %v517
        %v558 = vunpack.c.h.b16 %v517
        %v559 = vunpack.c.l.b16 %v518
        %v560 = vunpack.c.h.b16 %v518
        %v561 = vunpack.c.l.b16 %v519
        %v562 = vunpack.c.h.b16 %v519
        %v563 = vunpack.c.l.b16 %v520
        %v564 = vunpack.c.h.b16 %v520
        %v565 = vunpack.c.l.b16 %v521
        %v566 = vunpack.c.h.b16 %v521
        %v567 = vunpack.c.l.b16 %v522
        %v568 = vunpack.c.h.b16 %v522
        %v569 = vunpack.c.l.b16 %v523
        %v570 = vunpack.c.h.b16 %v523
        %v571 = vunpack.c.l.b16 %v524
        %v572 = vunpack.c.h.b16 %v524
        %v573 = vpack.c.b16 %v543, %v541
        %v574 = vpack.c.b16 %v544, %v542
        %v575 = vpack.c.b16 %v547, %v545
        %v576 = vpack.c.b16 %v548, %v546
        %v577 = vpack.c.b16 %v551, %v549
        %v578 = vpack.c.b16 %v552, %v550
        %v579 = vpack.c.b16 %v555, %v553
        %v580 = vpack.c.b16 %v556, %v554
        %v581 = vpack.c.b16 %v559, %v557
        %v582 = vpack.c.b16 %v560, %v558
        %v583 = vpack.c.b16 %v563, %v561
        %v584 = vpack.c.b16 %v564, %v562
        %v585 = vpack.c.b16 %v567, %v565
        %v586 = vpack.c.b16 %v568, %v566
        %v587 = vpack.c.b16 %v571, %v569
        %v588 = vpack.c.b16 %v572, %v570
        %605 = vmatprep.subr.bf16.mxu0 %v574
        %606 = vmatpush1.bf16.msra.mxu0 %v573
        %607 = vmatprep.subr.bf16.mxu0 %v576
        %608 = vmatpush1.bf16.msra.mxu0 %v575
        %609 = vmatprep.subr.bf16.mxu0 %v578
        %610 = vmatpush1.bf16.msra.mxu0 %v577
        %611 = vmatprep.subr.bf16.mxu0 %v580
        %612 = vmatpush1.bf16.msra.mxu0 %v579
        %613 = vmatprep.subr.bf16.mxu0 %v582
        %614 = vmatpush1.bf16.msra.mxu0 %v581
        %615 = vmatprep.subr.bf16.mxu0 %v584
        %616 = vmatpush1.bf16.msra.mxu0 %v583
        %617 = vmatprep.subr.bf16.mxu0 %v586
        %618 = vmatpush1.bf16.msra.mxu0 %v585
        %619 = vmatprep.subr.bf16.mxu0 %v588
        %620 = vmatpush1.bf16.msra.mxu0 %v587
        %621 = vmatprep.subr.bf16.mxu0 0
        %622 = vmatpush1.bf16.msra.mxu0 0
        %623 = vmatprep.subr.bf16.mxu0 0
        %624 = vmatpush1.bf16.msra.mxu0 0
        %625 = vmatprep.subr.bf16.mxu0 0
        %626 = vmatpush1.bf16.msra.mxu0 0
        %627 = vmatprep.subr.bf16.mxu0 0
        %628 = vmatpush1.bf16.msra.mxu0 0
        %629 = vmatprep.subr.bf16.mxu0 0
        %630 = vmatpush1.bf16.msra.mxu0 0
        %631 = vmatprep.subr.bf16.mxu0 0
        %632 = vmatpush1.bf16.msra.mxu0 0
        %633 = vmatprep.subr.bf16.mxu0 0
        %634 = vmatpush1.bf16.msra.mxu0 0
        %635 = vmatprep.subr.bf16.mxu0 0
        %636 = vmatpush1.bf16.msra.mxu0 0
        %637 = vmatprep.mubr.bf16.mxu0 0
        %638 = vmatmul.mubr.bf16.gmra.mrb[0].mxu0 %v506
        %v639 = vpop.f32.mrb[0].mxu0
        %v640 = vadd.f32 0.0, %v639
        %v641 = vpop.f32.mrb[0].mxu0
        %v642 = vadd.f32 0.0, %v641
        %v643 = vpop.f32.mrb[0].mxu0
        %v644 = vadd.f32 0.0, %v643
        %v645 = vpop.f32.mrb[0].mxu0
        %v646 = vadd.f32 0.0, %v645
        %647 = vmatprep.mubr.bf16.mxu0 0
        %648 = vmatmul.mubr.bf16.gmra.mrb[0].mxu0 %v507
        %v649 = vpop.f32.mrb[0].mxu0
        %v650 = vadd.f32 0.0, %v649
        %v651 = vpop.f32.mrb[0].mxu0
        %v652 = vadd.f32 0.0, %v651
        %v653 = vpop.f32.mrb[0].mxu0
        %v654 = vadd.f32 0.0, %v653
        %v655 = vpop.f32.mrb[0].mxu0
        %v656 = vadd.f32 0.0, %v655
        %657 = vmatprep.mubr.bf16.mxu0 0
        %658 = vmatmul.mubr.bf16.gmra.mrb[0].mxu0 %v508
        %v659 = vpop.f32.mrb[0].mxu0
        %v660 = vadd.f32 0.0, %v659
        %v661 = vpop.f32.mrb[0].mxu0
        %v662 = vadd.f32 0.0, %v661
        %v663 = vpop.f32.mrb[0].mxu0
        %v664 = vpop.f32.mrb[0].mxu0
        %665 = vdwg.mxu0
        %v666 = vadd.f32 %v496, %v640
        %v667 = vadd.f32 %v497, %v642
        %v668 = vadd.f32 %v498, %v644
        %v669 = vadd.f32 %v499, %v646
        %v670 = vadd.f32 %v500, %v650
        %v671 = vadd.f32 %v501, %v652
        %v672 = vadd.f32 %v502, %v654
        %v673 = vadd.f32 %v503, %v656
        %v674 = vadd.f32 %v504, %v660
        %v675 = vadd.f32 %v505, %v662
        %676 = vst [vmem:[#allocation2] sm:$0xff] %v666
        %677 = vst [vmem:[#allocation2 + $0x8] sm:$0xff] %v667
        %678 = vst [vmem:[#allocation2 + $0x10] sm:$0xff] %v668
        %679 = vst [vmem:[#allocation2 + $0x18] sm:$0xff] %v669
        %680 = vst [vmem:[#allocation2 + $0x20] sm:$0xff] %v670
        %681 = vst [vmem:[#allocation2 + $0x28] sm:$0xff] %v671
        %682 = vst [vmem:[#allocation2 + $0x30] sm:$0xff] %v672
        %683 = vst [vmem:[#allocation2 + $0x38] sm:$0xff] %v673
        %684 = vst [vmem:[#allocation2 + $0x40] sm:$0xff] %v674
        %685 = vst [vmem:[#allocation2 + $0x48] sm:$0xff] %v675
        // Predicated region
        $region83: #{gpt4ts_forward.19} parent=73 // pred_check
          %p686 = pneg %p397
        $region84: #{gpt4ts_forward.19} parent=73 // pred_check_branch
          %688 = sbr.rel (%p686) target = $region86
        $region85: #{gpt4ts_forward.19} parent=73 // pred_region
          %v689 = vld [vmem:[#allocation2] sm:$0xff]
          %v690 = vld [vmem:[#allocation2 + $0x8] sm:$0xff]
          %v691 = vld [vmem:[#allocation2 + $0x10] sm:$0xff]
          %v692 = vld [vmem:[#allocation2 + $0x18] sm:$0xff]
          %v693 = vld [vmem:[#allocation2 + $0x20] sm:$0xff]
          %v694 = vld [vmem:[#allocation2 + $0x28] sm:$0xff]
          %v695 = vld [vmem:[#allocation2 + $0x30] sm:$0xff]
          %v696 = vld [vmem:[#allocation2 + $0x38] sm:$0xff]
          %v697 = vld [vmem:[#allocation2 + $0x40] sm:$0xff]
          %v698 = vld [vmem:[#allocation2 + $0x48] sm:$0xff]
          %v699 = vld [vmem:[%s392] sm:$0x3]
          %v701 = vlaneseq
          %v702 = vshrl.u32 %v701, 7
          %v703 = vsub.s32 0, %v702
          %v704 = vrot.slane %v699, %v703
          %v705 = vlaneseq
          %v706 = vshrl.u32 %v705, 7
          %v707 = vsub.s32 1, %v706
          %v708 = vrot.slane %v699, %v707
          %v711 = vadd.f32 %v689, %v704
          %v712 = vadd.f32 %v690, %v708
          %v713 = vadd.f32 %v691, %v704
          %v714 = vadd.f32 %v692, %v708
          %v715 = vadd.f32 %v693, %v704
          %v716 = vadd.f32 %v694, %v708
          %v717 = vadd.f32 %v695, %v704
          %v718 = vadd.f32 %v696, %v708
          %v719 = vadd.f32 %v697, %v704
          %v720 = vadd.f32 %v698, %v708
          %v721 = vmul.f32 %v711, 0.5
          %v722 = vmul.f32 %v712, 0.5
          %v723 = vmul.f32 %v713, 0.5
          %v724 = vmul.f32 %v714, 0.5
          %v725 = vmul.f32 %v715, 0.5
          %v726 = vmul.f32 %v716, 0.5
          %v727 = vmul.f32 %v717, 0.5
          %v728 = vmul.f32 %v718, 0.5
          %v729 = vmul.f32 %v719, 0.5
          %v730 = vmul.f32 %v720, 0.5
          %v731 = vmul.f32 %v711, 0.044715
          %v732 = vmul.f32 %v712, 0.044715
          %v733 = vmul.f32 %v713, 0.044715
          %v734 = vmul.f32 %v714, 0.044715
          %v735 = vmul.f32 %v715, 0.044715
          %v736 = vmul.f32 %v716, 0.044715
          %v737 = vmul.f32 %v717, 0.044715
          %v738 = vmul.f32 %v718, 0.044715
          %v739 = vmul.f32 %v719, 0.044715
          %v740 = vmul.f32 %v720, 0.044715
          %v741 = vmul.f32 %v731, %v711
          %v742 = vmul.f32 %v732, %v712
          %v743 = vmul.f32 %v733, %v713
          %v744 = vmul.f32 %v734, %v714
          %v745 = vmul.f32 %v735, %v715
          %v746 = vmul.f32 %v736, %v716
          %v747 = vmul.f32 %v737, %v717
          %v748 = vmul.f32 %v738, %v718
          %v749 = vmul.f32 %v739, %v719
          %v750 = vmul.f32 %v740, %v720
          %v751 = vmul.f32 %v741, %v711
          %v752 = vmul.f32 %v742, %v712
          %v753 = vmul.f32 %v743, %v713
          %v754 = vmul.f32 %v744, %v714
          %v755 = vmul.f32 %v745, %v715
          %v756 = vmul.f32 %v746, %v716
          %v757 = vmul.f32 %v747, %v717
          %v758 = vmul.f32 %v748, %v718
          %v759 = vmul.f32 %v749, %v719
          %v760 = vmul.f32 %v750, %v720
          %v761 = vadd.f32 %v711, %v751
          %v762 = vadd.f32 %v712, %v752
          %v763 = vadd.f32 %v713, %v753
          %v764 = vadd.f32 %v714, %v754
          %v765 = vadd.f32 %v715, %v755
          %v766 = vadd.f32 %v716, %v756
          %v767 = vadd.f32 %v717, %v757
          %v768 = vadd.f32 %v718, %v758
          %v769 = vadd.f32 %v719, %v759
          %v770 = vadd.f32 %v720, %v760
          %v771 = vmul.f32 %v761, 0.7978846
          %v772 = vmul.f32 %v762, 0.7978846
          %v773 = vmul.f32 %v763, 0.7978846
          %v774 = vmul.f32 %v764, 0.7978846
          %v775 = vmul.f32 %v765, 0.7978846
          %v776 = vmul.f32 %v766, 0.7978846
          %v777 = vmul.f32 %v767, 0.7978846
          %v778 = vmul.f32 %v768, 0.7978846
          %v779 = vmul.f32 %v769, 0.7978846
          %v780 = vmul.f32 %v770, 0.7978846
          %v781 = vtanh.pop %v771
          %v782 = vtanh.pop %v772
          %v783 = vtanh.pop %v773
          %v784 = vtanh.pop %v774
          %v785 = vtanh.pop %v775
          %v786 = vtanh.pop %v776
          %v787 = vtanh.pop %v777
          %v788 = vtanh.pop %v778
          %v789 = vtanh.pop %v779
          %v790 = vtanh.pop %v780
          %v791 = vadd.f32 %v781, 1.0
          %v792 = vadd.f32 %v782, 1.0
          %v793 = vadd.f32 %v783, 1.0
          %v794 = vadd.f32 %v784, 1.0
          %v795 = vadd.f32 %v785, 1.0
          %v796 = vadd.f32 %v786, 1.0
          %v797 = vadd.f32 %v787, 1.0
          %v798 = vadd.f32 %v788, 1.0
          %v799 = vadd.f32 %v789, 1.0
          %v800 = vadd.f32 %v790, 1.0
          %v801 = vmul.f32 %v721, %v791
          %v802 = vmul.f32 %v722, %v792
          %v803 = vmul.f32 %v723, %v793
          %v804 = vmul.f32 %v724, %v794
          %v805 = vmul.f32 %v725, %v795
          %v806 = vmul.f32 %v726, %v796
          %v807 = vmul.f32 %v727, %v797
          %v808 = vmul.f32 %v728, %v798
          %v809 = vmul.f32 %v729, %v799
          %v810 = vmul.f32 %v730, %v800
          %811 = vst [vmem:[%s377] sm:$0xff] %v801
          %812 = vst [vmem:[%s377 + $0x8] sm:$0xff] %v802
          %813 = vst [vmem:[%s377 + $0x10] sm:$0xff] %v803
          %814 = vst [vmem:[%s377 + $0x18] sm:$0xff] %v804
          %815 = vst [vmem:[%s377 + $0x20] sm:$0xff] %v805
          %816 = vst [vmem:[%s377 + $0x28] sm:$0xff] %v806
          %817 = vst [vmem:[%s377 + $0x30] sm:$0xff] %v807
          %818 = vst [vmem:[%s377 + $0x38] sm:$0xff] %v808
          %819 = vst [vmem:[%s377 + $0x40] sm:$0xff] %v809
          %820 = vst [vmem:[%s377 + $0x48] sm:$0xff] %v810
        $region86: #{gpt4ts_forward.19} parent=73 // pred_fallthru
          _
        %s821 = sand.u32 %s169, 1
        %s822 = sand.u32 %s169, 1
        %s823 = smul.addr %s822, 80
        %s824 = scalar_lea.vmem [#allocation4], %s823
        // Predicated region
        $region87: #{gpt4ts_forward.19} parent=73 // pred_check
          %p825 = pneg %p179
        $region88: #{gpt4ts_forward.19} parent=73 // pred_check_branch
          %827 = sbr.rel (%p825) target = $region90
        $region89: #{gpt4ts_forward.19} parent=73 // pred_region
          %s828 = smul.u32 5, %s21
          %s829 = smul.u32 2, %s22
          %s830 = smul.addr %s828, 4
          %s831 = sadd.s32 %s829, %s830
          %s832 = smul.addr %s831, 8
          %s833 = scalar_lea.vmem %s5, %s832
          // Predicated region
          $region91: #{gpt4ts_forward.19} parent=89 // pred_check
            _
          $region92: #{gpt4ts_forward.19} parent=89 // pred_check_branch
            %835 = sbr.rel (0) target = $region94
          $region93: #{gpt4ts_forward.19} parent=89 // pred_region
            // Predicated region
            $region95: #{gpt4ts_forward.19} parent=93 // pred_check
              _
            $region96: #{gpt4ts_forward.19} parent=93 // pred_check_branch
              %837 = sbr.rel (0) target = $region98
            $region97: #{gpt4ts_forward.19} parent=93 // pred_region
              loop: start=0, step=1, limit=1
              $region99: #{gpt4ts_forward.19} parent=97 // loop_pre_header
                _
              $region100: #{gpt4ts_forward.19} parent=97 // loop_header
                %s839 = sphi 0, %s843
                %p840 = scmp.ge.s32.totalorder %s839, 1
                %s844 = sphi %s824, %s824
                %s845 = sphi %s833, %s833
              $region101: #{gpt4ts_forward.19} parent=97 // loop_header_branch
                %842 = sbr.rel (%p840) target = $region105
              $region102: #{gpt4ts_forward.19} parent=97 // loop_body
                %v846 = vld [vmem:[%s844] sm:$0xff]
                %847 = vst [vmem:[%s845] sm:$0xff] %v846
                %v848 = vld [vmem:[%s844 + $0x8] sm:$0xff]
                %849 = vst [vmem:[%s845 + $0x8] sm:$0xff] %v848
                %v850 = vld [vmem:[%s844 + $0x10] sm:$0xff]
                %851 = vst [vmem:[%s845 + $0x20] sm:$0xff] %v850
                %v852 = vld [vmem:[%s844 + $0x18] sm:$0xff]
                %853 = vst [vmem:[%s845 + $0x28] sm:$0xff] %v852
                %v854 = vld [vmem:[%s844 + $0x20] sm:$0xff]
                %855 = vst [vmem:[%s845 + $0x40] sm:$0xff] %v854
                %v856 = vld [vmem:[%s844 + $0x28] sm:$0xff]
                %857 = vst [vmem:[%s845 + $0x48] sm:$0xff] %v856
                %v858 = vld [vmem:[%s844 + $0x30] sm:$0xff]
                %859 = vst [vmem:[%s845 + $0x60] sm:$0xff] %v858
                %v860 = vld [vmem:[%s844 + $0x38] sm:$0xff]
                %861 = vst [vmem:[%s845 + $0x68] sm:$0xff] %v860
                %v862 = vld [vmem:[%s844 + $0x40] sm:$0xff]
                %863 = vst [vmem:[%s845 + $0x80] sm:$0xff] %v862
                %v864 = vld [vmem:[%s844 + $0x48] sm:$0xff]
                %865 = vst [vmem:[%s845 + $0x88] sm:$0xff] %v864
              $region103: #{gpt4ts_forward.19} parent=97 // loop_footer
                %s843 = sadd.s32 1, %s839
              $region104: #{gpt4ts_forward.19} parent=97 // loop_footer_branch
                %838 = sbr.rel target = $region100
              $region105: #{gpt4ts_forward.19} parent=97 // loop_exit
                _
            $region98: #{gpt4ts_forward.19} parent=93 // pred_fallthru
              _
            // Predicated region
            $region106: #{gpt4ts_forward.19} parent=93 // pred_check
              _
            $region107: #{gpt4ts_forward.19} parent=93 // pred_check_branch
              %867 = sbr.rel target = $region109
            $region108: #{gpt4ts_forward.19} parent=93 // pred_region
              _
            $region109: #{gpt4ts_forward.19} parent=93 // pred_fallthru
              _
          $region94: #{gpt4ts_forward.19} parent=89 // pred_fallthru
            _
          %868 = vnop
        $region90: #{gpt4ts_forward.19} parent=73 // pred_fallthru
          _
      $region74: #{gpt4ts_forward.19} parent=5 // pred_fallthru
        _
      %p869 = scmp.le.s32.totalorder 2, %s11
      // Predicated region
      $region110: #{gpt4ts_forward.19} parent=5 // pred_check
        %p870 = pneg %p869
      $region111: #{gpt4ts_forward.19} parent=5 // pred_check_branch
        %872 = sbr.rel (%p870) target = $region113
      $region112: #{gpt4ts_forward.19} parent=5 // pred_region
        %s873 = ssub.s32 %s11, 2
        // Predicated region
        $region114: #{gpt4ts_forward.19} parent=112 // pred_check
          %p874 = pneg %p185
        $region115: #{gpt4ts_forward.19} parent=112 // pred_check_branch
          %876 = sbr.rel (%p874) target = $region117
        $region116: #{gpt4ts_forward.19} parent=112 // pred_region
          %s877 = sand.u32 %s170, 1
          %s878 = sand.u32 %s170, 1
          %s879 = smul.addr %s878, 80
          %s880 = scalar_lea.vmem [#allocation4], %s879
        $region117: #{gpt4ts_forward.19} parent=112 // pred_fallthru
          _
      $region113: #{gpt4ts_forward.19} parent=5 // pred_fallthru
        _
    $region6: #{gpt4ts_forward.19} parent=1 // loop_footer
      %s15 = sadd.s32 1, %s11
    $region7: #{gpt4ts_forward.19} parent=1 // loop_footer_branch
      %10 = sbr.rel target = $region3
    $region8: #{gpt4ts_forward.19} parent=1 // loop_exit
      _

// kernel: gpt4ts_forward.20
$region0: #{gpt4ts_forward.20}
  #allocation0 [shape = 'u32[]', space=smem, size = 0x4, offset = 0x4, fixed_abs, tag = 'smem constant byte address 0x4 - core index']
  #allocation1 [shape = 'u32[144,128]{1,0:T(1,128)}', space=vmem, size = 0x12000, scoped, tag = 'internal scratch']
  #allocation2 [shape = 'f32[40,128]{1,0:T(8,128)}', space=vmem, size = 0x5000, scoped, tag = 'scratch operand']
  %s0 = inlined_call_operand.vmem [shape: f32[40,512], index: 0, kind: input, shape index: {}]
  %s1 = inlined_call_operand.vmem [shape: bf16[512,128], index: 1, kind: input, shape index: {}]
  %s2 = inlined_call_operand.vmem [shape: f32[1,128], index: 2, kind: input, shape index: {}]
  %s3 = inlined_call_operand.vmem [shape: f32[40,128], index: 3, kind: input, shape index: {}]
  %s4 = inlined_call_operand.vmem [shape: f32[40,128], index: 4, kind: output, shape index: {}]
  %s5 = sld [smem:[#allocation0]]
  $region34: #{gpt4ts_forward.20} parent=0
    _
  %s7 = ssub.s32 1, %s5
  %s8 = scalar_select 0, %s7, %s5
  // Predicated region
  $region2: #{gpt4ts_forward.20} parent=0 // pred_check
    _
  $region3: #{gpt4ts_forward.20} parent=0 // pred_check_branch
    %10 = sbr.rel (0) target = $region5
  $region4: #{gpt4ts_forward.20} parent=0 // pred_region
    _
  $region5: #{gpt4ts_forward.20} parent=0 // pred_fallthru
    _
  // Predicated region
  $region6: #{gpt4ts_forward.20} parent=0 // pred_check
    _
  $region7: #{gpt4ts_forward.20} parent=0 // pred_check_branch
    %12 = sbr.rel (0) target = $region9
  $region8: #{gpt4ts_forward.20} parent=0 // pred_region
    _
  $region9: #{gpt4ts_forward.20} parent=0 // pred_fallthru
    _
  // Predicated region
  $region10: #{gpt4ts_forward.20} parent=0 // pred_check
    _
  $region11: #{gpt4ts_forward.20} parent=0 // pred_check_branch
    %14 = sbr.rel (0) target = $region13
  $region12: #{gpt4ts_forward.20} parent=0 // pred_region
    _
  $region13: #{gpt4ts_forward.20} parent=0 // pred_fallthru
    _
  // Predicated region
  $region14: #{gpt4ts_forward.20} parent=0 // pred_check
    _
  $region15: #{gpt4ts_forward.20} parent=0 // pred_check_branch
    %16 = sbr.rel (0) target = $region17
  $region16: #{gpt4ts_forward.20} parent=0 // pred_region
    _
  $region17: #{gpt4ts_forward.20} parent=0 // pred_fallthru
    _
  %p18 = scmp.eq.s32.totalorder 0, 0
  // Predicated region
  $region18: #{gpt4ts_forward.20} parent=0 // pred_check
    %p19 = pneg %p18
  $region19: #{gpt4ts_forward.20} parent=0 // pred_check_branch
    %21 = sbr.rel (%p19) target = $region21
  $region20: #{gpt4ts_forward.20} parent=0 // pred_region
    %22 = vst [vmem:[#allocation2] sm:$0xff] 0.0
    %23 = vst [vmem:[#allocation2 + $0x8] sm:$0xff] 0.0
    %24 = vst [vmem:[#allocation2 + $0x10] sm:$0xff] 0.0
    %25 = vst [vmem:[#allocation2 + $0x18] sm:$0xff] 0.0
    %26 = vst [vmem:[#allocation2 + $0x20] sm:$0xff] 0.0
  $region21: #{gpt4ts_forward.20} parent=0 // pred_fallthru
    _
  %v27 = vld [vmem:[%s0] sm:$0xff]
  %v28 = vld [vmem:[%s0 + $0x8] sm:$0xff]
  %v29 = vld [vmem:[%s0 + $0x10] sm:$0xff]
  %v30 = vld [vmem:[%s0 + $0x18] sm:$0xff]
  %v31 = vld [vmem:[%s0 + $0x20] sm:$0xff]
  %v32 = vld [vmem:[%s0 + $0x28] sm:$0xff]
  %v33 = vld [vmem:[%s0 + $0x30] sm:$0xff]
  %v34 = vld [vmem:[%s0 + $0x38] sm:$0xff]
  %v35 = vld [vmem:[%s0 + $0x40] sm:$0xff]
  %v36 = vld [vmem:[%s0 + $0x48] sm:$0xff]
  %v37 = vld [vmem:[%s0 + $0x50] sm:$0xff]
  %v38 = vld [vmem:[%s0 + $0x58] sm:$0xff]
  %v39 = vld [vmem:[%s0 + $0x60] sm:$0xff]
  %v40 = vld [vmem:[%s0 + $0x68] sm:$0xff]
  %v41 = vld [vmem:[%s0 + $0x70] sm:$0xff]
  %v42 = vld [vmem:[%s0 + $0x78] sm:$0xff]
  %v43 = vld [vmem:[%s0 + $0x80] sm:$0xff]
  %v44 = vld [vmem:[%s0 + $0x88] sm:$0xff]
  %v45 = vld [vmem:[%s0 + $0x90] sm:$0xff]
  %v46 = vld [vmem:[%s0 + $0x98] sm:$0xff]
  %v47 = vld [vmem:[#allocation2] sm:$0xff]
  %v48 = vld [vmem:[#allocation2 + $0x8] sm:$0xff]
  %v49 = vld [vmem:[#allocation2 + $0x10] sm:$0xff]
  %v50 = vld [vmem:[#allocation2 + $0x18] sm:$0xff]
  %v51 = vld [vmem:[#allocation2 + $0x20] sm:$0xff]
  %v52 = vpack.c.bf16 %v31, %v27
  %v53 = vpack.c.bf16 %v32, %v28
  %v54 = vpack.c.bf16 %v33, %v29
  %v55 = vpack.c.bf16 %v34, %v30
  %v56 = vpack.c.bf16 %v39, %v35
  %v57 = vpack.c.bf16 %v40, %v36
  %v58 = vpack.c.bf16 %v41, %v37
  %v59 = vpack.c.bf16 %v42, %v38
  %v60 = vpack.c.bf16 %v43, %v43
  %v61 = vpack.c.bf16 %v44, %v44
  %v62 = vpack.c.bf16 %v45, %v45
  %v63 = vpack.c.bf16 %v46, %v46
  %v64 = vld [vmem:[%s1] sm:$0xf]
  %v65 = vld [vmem:[%s1 + $0x4] sm:$0xf]
  %v66 = vld [vmem:[%s1 + $0x8] sm:$0xf]
  %v67 = vld [vmem:[%s1 + $0xc] sm:$0xf]
  %v68 = vld [vmem:[%s1 + $0x10] sm:$0xf]
  %v69 = vld [vmem:[%s1 + $0x14] sm:$0xf]
  %v70 = vld [vmem:[%s1 + $0x18] sm:$0xf]
  %v71 = vld [vmem:[%s1 + $0x1c] sm:$0xf]
  %v72 = vld [vmem:[%s1 + $0x20] sm:$0xf]
  %v73 = vld [vmem:[%s1 + $0x24] sm:$0xf]
  %v74 = vld [vmem:[%s1 + $0x28] sm:$0xf]
  %v75 = vld [vmem:[%s1 + $0x2c] sm:$0xf]
  %v76 = vld [vmem:[%s1 + $0x30] sm:$0xf]
  %v77 = vld [vmem:[%s1 + $0x34] sm:$0xf]
  %v78 = vld [vmem:[%s1 + $0x38] sm:$0xf]
  %v79 = vld [vmem:[%s1 + $0x3c] sm:$0xf]
  %v80 = vld [vmem:[%s1 + $0x40] sm:$0xf]
  %v81 = vld [vmem:[%s1 + $0x44] sm:$0xf]
  %v82 = vld [vmem:[%s1 + $0x48] sm:$0xf]
  %v83 = vld [vmem:[%s1 + $0x4c] sm:$0xf]
  %v84 = vld [vmem:[%s1 + $0x50] sm:$0xf]
  %v85 = vld [vmem:[%s1 + $0x54] sm:$0xf]
  %v86 = vld [vmem:[%s1 + $0x58] sm:$0xf]
  %v87 = vld [vmem:[%s1 + $0x5c] sm:$0xf]
  %v88 = vld [vmem:[%s1 + $0x60] sm:$0xf]
  %v89 = vld [vmem:[%s1 + $0x64] sm:$0xf]
  %v90 = vld [vmem:[%s1 + $0x68] sm:$0xf]
  %v91 = vld [vmem:[%s1 + $0x6c] sm:$0xf]
  %v92 = vld [vmem:[%s1 + $0x70] sm:$0xf]
  %v93 = vld [vmem:[%s1 + $0x74] sm:$0xf]
  %v94 = vld [vmem:[%s1 + $0x78] sm:$0xf]
  %v95 = vld [vmem:[%s1 + $0x7c] sm:$0xf]
  %v96 = vld [vmem:[%s1 + $0x80] sm:$0xf]
  %v97 = vld [vmem:[%s1 + $0x84] sm:$0xf]
  %v98 = vld [vmem:[%s1 + $0x88] sm:$0xf]
  %v99 = vld [vmem:[%s1 + $0x8c] sm:$0xf]
  %v100 = vld [vmem:[%s1 + $0x90] sm:$0xf]
  %v101 = vld [vmem:[%s1 + $0x94] sm:$0xf]
  %v102 = vld [vmem:[%s1 + $0x98] sm:$0xf]
  %v103 = vld [vmem:[%s1 + $0x9c] sm:$0xf]
  %v104 = vld [vmem:[%s1 + $0xa0] sm:$0xf]
  %v105 = vld [vmem:[%s1 + $0xa4] sm:$0xf]
  %v106 = vld [vmem:[%s1 + $0xa8] sm:$0xf]
  %v107 = vld [vmem:[%s1 + $0xac] sm:$0xf]
  %v108 = vld [vmem:[%s1 + $0xb0] sm:$0xf]
  %v109 = vld [vmem:[%s1 + $0xb4] sm:$0xf]
  %v110 = vld [vmem:[%s1 + $0xb8] sm:$0xf]
  %v111 = vld [vmem:[%s1 + $0xbc] sm:$0xf]
  %v112 = vld [vmem:[%s1 + $0xc0] sm:$0xf]
  %v113 = vld [vmem:[%s1 + $0xc4] sm:$0xf]
  %v114 = vld [vmem:[%s1 + $0xc8] sm:$0xf]
  %v115 = vld [vmem:[%s1 + $0xcc] sm:$0xf]
  %v116 = vld [vmem:[%s1 + $0xd0] sm:$0xf]
  %v117 = vld [vmem:[%s1 + $0xd4] sm:$0xf]
  %v118 = vld [vmem:[%s1 + $0xd8] sm:$0xf]
  %v119 = vld [vmem:[%s1 + $0xdc] sm:$0xf]
  %v120 = vld [vmem:[%s1 + $0xe0] sm:$0xf]
  %v121 = vld [vmem:[%s1 + $0xe4] sm:$0xf]
  %v122 = vld [vmem:[%s1 + $0xe8] sm:$0xf]
  %v123 = vld [vmem:[%s1 + $0xec] sm:$0xf]
  %v124 = vld [vmem:[%s1 + $0xf0] sm:$0xf]
  %v125 = vld [vmem:[%s1 + $0xf4] sm:$0xf]
  %v126 = vld [vmem:[%s1 + $0xf8] sm:$0xf]
  %v127 = vld [vmem:[%s1 + $0xfc] sm:$0xf]
  %v192 = vunpack.c.l.b16 %v64
  %v193 = vunpack.c.l.b16 %v65
  %v194 = vunpack.c.l.b16 %v66
  %v195 = vunpack.c.l.b16 %v67
  %v196 = vunpack.c.l.b16 %v68
  %v197 = vunpack.c.l.b16 %v69
  %v198 = vunpack.c.l.b16 %v70
  %v199 = vunpack.c.l.b16 %v71
  %v200 = vunpack.c.l.b16 %v72
  %v201 = vunpack.c.l.b16 %v73
  %v202 = vunpack.c.l.b16 %v74
  %v203 = vunpack.c.l.b16 %v75
  %v204 = vunpack.c.l.b16 %v76
  %v205 = vunpack.c.l.b16 %v77
  %v206 = vunpack.c.l.b16 %v78
  %v207 = vunpack.c.l.b16 %v79
  %v208 = vunpack.c.l.b16 %v80
  %v209 = vunpack.c.l.b16 %v81
  %v210 = vunpack.c.l.b16 %v82
  %v211 = vunpack.c.l.b16 %v83
  %v212 = vunpack.c.l.b16 %v84
  %v213 = vunpack.c.l.b16 %v85
  %v214 = vunpack.c.l.b16 %v86
  %v215 = vunpack.c.l.b16 %v87
  %v216 = vunpack.c.l.b16 %v88
  %v217 = vunpack.c.l.b16 %v89
  %v218 = vunpack.c.l.b16 %v90
  %v219 = vunpack.c.l.b16 %v91
  %v220 = vunpack.c.l.b16 %v92
  %v221 = vunpack.c.l.b16 %v93
  %v222 = vunpack.c.l.b16 %v94
  %v223 = vunpack.c.l.b16 %v95
  %v224 = vunpack.c.l.b16 %v96
  %v225 = vunpack.c.l.b16 %v97
  %v226 = vunpack.c.l.b16 %v98
  %v227 = vunpack.c.l.b16 %v99
  %v228 = vunpack.c.l.b16 %v100
  %v229 = vunpack.c.l.b16 %v101
  %v230 = vunpack.c.l.b16 %v102
  %v231 = vunpack.c.l.b16 %v103
  %v232 = vunpack.c.l.b16 %v104
  %v233 = vunpack.c.l.b16 %v105
  %v234 = vunpack.c.l.b16 %v106
  %v235 = vunpack.c.l.b16 %v107
  %v236 = vunpack.c.l.b16 %v108
  %v237 = vunpack.c.l.b16 %v109
  %v238 = vunpack.c.l.b16 %v110
  %v239 = vunpack.c.l.b16 %v111
  %v240 = vunpack.c.l.b16 %v112
  %v241 = vunpack.c.l.b16 %v113
  %v242 = vunpack.c.l.b16 %v114
  %v243 = vunpack.c.l.b16 %v115
  %v244 = vunpack.c.l.b16 %v116
  %v245 = vunpack.c.l.b16 %v117
  %v246 = vunpack.c.l.b16 %v118
  %v247 = vunpack.c.l.b16 %v119
  %v248 = vunpack.c.l.b16 %v120
  %v249 = vunpack.c.l.b16 %v121
  %v250 = vunpack.c.l.b16 %v122
  %v251 = vunpack.c.l.b16 %v123
  %v252 = vunpack.c.l.b16 %v124
  %v253 = vunpack.c.l.b16 %v125
  %v254 = vunpack.c.l.b16 %v126
  %v255 = vunpack.c.l.b16 %v127
  %v256 = vpack.c.b16 %v193, %v192
  %v257 = vpack.c.b16 %v195, %v194
  %v258 = vpack.c.b16 %v197, %v196
  %v259 = vpack.c.b16 %v199, %v198
  %v260 = vpack.c.b16 %v201, %v200
  %v261 = vpack.c.b16 %v203, %v202
  %v262 = vpack.c.b16 %v205, %v204
  %v263 = vpack.c.b16 %v207, %v206
  %v264 = vpack.c.b16 %v209, %v208
  %v265 = vpack.c.b16 %v211, %v210
  %v266 = vpack.c.b16 %v213, %v212
  %v267 = vpack.c.b16 %v215, %v214
  %v268 = vpack.c.b16 %v217, %v216
  %v269 = vpack.c.b16 %v219, %v218
  %v270 = vpack.c.b16 %v221, %v220
  %v271 = vpack.c.b16 %v223, %v222
  %v272 = vpack.c.b16 %v225, %v224
  %v273 = vpack.c.b16 %v227, %v226
  %v274 = vpack.c.b16 %v229, %v228
  %v275 = vpack.c.b16 %v231, %v230
  %v276 = vpack.c.b16 %v233, %v232
  %v277 = vpack.c.b16 %v235, %v234
  %v278 = vpack.c.b16 %v237, %v236
  %v279 = vpack.c.b16 %v239, %v238
  %v280 = vpack.c.b16 %v241, %v240
  %v281 = vpack.c.b16 %v243, %v242
  %v282 = vpack.c.b16 %v245, %v244
  %v283 = vpack.c.b16 %v247, %v246
  %v284 = vpack.c.b16 %v249, %v248
  %v285 = vpack.c.b16 %v251, %v250
  %v286 = vpack.c.b16 %v253, %v252
  %v287 = vpack.c.b16 %v255, %v254
  %320 = vmatprep.subr.bf16.mxu0 0
  %321 = vmatpush1.bf16.msra.mxu0 %v256
  %322 = vmatprep.subr.bf16.mxu0 0
  %323 = vmatpush1.bf16.msra.mxu0 %v257
  %324 = vmatprep.subr.bf16.mxu0 0
  %325 = vmatpush1.bf16.msra.mxu0 %v258
  %326 = vmatprep.subr.bf16.mxu0 0
  %327 = vmatpush1.bf16.msra.mxu0 %v259
  %328 = vmatprep.subr.bf16.mxu0 0
  %329 = vmatpush1.bf16.msra.mxu0 %v260
  %330 = vmatprep.subr.bf16.mxu0 0
  %331 = vmatpush1.bf16.msra.mxu0 %v261
  %332 = vmatprep.subr.bf16.mxu0 0
  %333 = vmatpush1.bf16.msra.mxu0 %v262
  %334 = vmatprep.subr.bf16.mxu0 0
  %335 = vmatpush1.bf16.msra.mxu0 %v263
  %336 = vmatprep.subr.bf16.mxu0 0
  %337 = vmatpush1.bf16.msra.mxu0 %v264
  %338 = vmatprep.subr.bf16.mxu0 0
  %339 = vmatpush1.bf16.msra.mxu0 %v265
  %340 = vmatprep.subr.bf16.mxu0 0
  %341 = vmatpush1.bf16.msra.mxu0 %v266
  %342 = vmatprep.subr.bf16.mxu0 0
  %343 = vmatpush1.bf16.msra.mxu0 %v267
  %344 = vmatprep.subr.bf16.mxu0 0
  %345 = vmatpush1.bf16.msra.mxu0 %v268
  %346 = vmatprep.subr.bf16.mxu0 0
  %347 = vmatpush1.bf16.msra.mxu0 %v269
  %348 = vmatprep.subr.bf16.mxu0 0
  %349 = vmatpush1.bf16.msra.mxu0 %v270
  %350 = vmatprep.subr.bf16.mxu0 0
  %351 = vmatpush1.bf16.msra.mxu0 %v271
  %352 = vmatprep.mubr.bf16.mxu0 %v53
  %353 = vmatmul.mubr.bf16.gmra.mrb[0].mxu0 %v52
  %v354 = vpop.f32.mrb[0].mxu0
  %v355 = vadd.f32 0.0, %v354
  %v356 = vpop.f32.mrb[0].mxu0
  %v357 = vpop.f32.mrb[0].mxu0
  %v358 = vadd.f32 0.0, %v357
  %v359 = vpop.f32.mrb[0].mxu0
  %360 = vmatprep.mubr.bf16.mxu0 %v57
  %361 = vmatmul.mubr.bf16.gmra.mrb[0].mxu0 %v56
  %v362 = vpop.f32.mrb[0].mxu0
  %v363 = vadd.f32 0.0, %v362
  %v364 = vpop.f32.mrb[0].mxu0
  %v365 = vpop.f32.mrb[0].mxu0
  %v366 = vadd.f32 0.0, %v365
  %v367 = vpop.f32.mrb[0].mxu0
  %368 = vmatprep.mubr.bf16.mxu0 %v61
  %369 = vmatmul.mubr.bf16.gmra.mrb[0].mxu0 %v60
  %v370 = vpop.f32.mrb[0].mxu0
  %v371 = vadd.f32 0.0, %v370
  %v372 = vpop.f32.mrb[0].mxu0
  %v373 = vpop.f32.mrb[0].mxu0
  %v374 = vpop.f32.mrb[0].mxu0
  %375 = vdwg.mxu0
  %376 = vmatprep.subr.bf16.mxu0 0
  %377 = vmatpush1.bf16.msra.mxu0 %v272
  %378 = vmatprep.subr.bf16.mxu0 0
  %379 = vmatpush1.bf16.msra.mxu0 %v273
  %380 = vmatprep.subr.bf16.mxu0 0
  %381 = vmatpush1.bf16.msra.mxu0 %v274
  %382 = vmatprep.subr.bf16.mxu0 0
  %383 = vmatpush1.bf16.msra.mxu0 %v275
  %384 = vmatprep.subr.bf16.mxu0 0
  %385 = vmatpush1.bf16.msra.mxu0 %v276
  %386 = vmatprep.subr.bf16.mxu0 0
  %387 = vmatpush1.bf16.msra.mxu0 %v277
  %388 = vmatprep.subr.bf16.mxu0 0
  %389 = vmatpush1.bf16.msra.mxu0 %v278
  %390 = vmatprep.subr.bf16.mxu0 0
  %391 = vmatpush1.bf16.msra.mxu0 %v279
  %392 = vmatprep.subr.bf16.mxu0 0
  %393 = vmatpush1.bf16.msra.mxu0 %v280
  %394 = vmatprep.subr.bf16.mxu0 0
  %395 = vmatpush1.bf16.msra.mxu0 %v281
  %396 = vmatprep.subr.bf16.mxu0 0
  %397 = vmatpush1.bf16.msra.mxu0 %v282
  %398 = vmatprep.subr.bf16.mxu0 0
  %399 = vmatpush1.bf16.msra.mxu0 %v283
  %400 = vmatprep.subr.bf16.mxu0 0
  %401 = vmatpush1.bf16.msra.mxu0 %v284
  %402 = vmatprep.subr.bf16.mxu0 0
  %403 = vmatpush1.bf16.msra.mxu0 %v285
  %404 = vmatprep.subr.bf16.mxu0 0
  %405 = vmatpush1.bf16.msra.mxu0 %v286
  %406 = vmatprep.subr.bf16.mxu0 0
  %407 = vmatpush1.bf16.msra.mxu0 %v287
  %408 = vmatprep.mubr.bf16.mxu0 %v55
  %409 = vmatmul.mubr.bf16.gmra.mrb[0].mxu0 %v54
  %v410 = vpop.f32.mrb[0].mxu0
  %v411 = vadd.f32 %v355, %v410
  %v412 = vpop.f32.mrb[0].mxu0
  %v413 = vpop.f32.mrb[0].mxu0
  %v414 = vadd.f32 %v358, %v413
  %v415 = vpop.f32.mrb[0].mxu0
  %416 = vmatprep.mubr.bf16.mxu0 %v59
  %417 = vmatmul.mubr.bf16.gmra.mrb[0].mxu0 %v58
  %v418 = vpop.f32.mrb[0].mxu0
  %v419 = vadd.f32 %v363, %v418
  %v420 = vpop.f32.mrb[0].mxu0
  %v421 = vpop.f32.mrb[0].mxu0
  %v422 = vadd.f32 %v366, %v421
  %v423 = vpop.f32.mrb[0].mxu0
  %424 = vmatprep.mubr.bf16.mxu0 %v63
  %425 = vmatmul.mubr.bf16.gmra.mrb[0].mxu0 %v62
  %v426 = vpop.f32.mrb[0].mxu0
  %v427 = vadd.f32 %v371, %v426
  %v428 = vpop.f32.mrb[0].mxu0
  %v429 = vpop.f32.mrb[0].mxu0
  %v430 = vpop.f32.mrb[0].mxu0
  %431 = vdwg.mxu0
  %v432 = vadd.f32 %v47, %v411
  %v433 = vadd.f32 %v48, %v414
  %v434 = vadd.f32 %v49, %v419
  %v435 = vadd.f32 %v50, %v422
  %v436 = vadd.f32 %v51, %v427
  %437 = vst [vmem:[#allocation2] sm:$0xff] %v432
  %438 = vst [vmem:[#allocation2 + $0x8] sm:$0xff] %v433
  %439 = vst [vmem:[#allocation2 + $0x10] sm:$0xff] %v434
  %440 = vst [vmem:[#allocation2 + $0x18] sm:$0xff] %v435
  %441 = vst [vmem:[#allocation2 + $0x20] sm:$0xff] %v436
  // Predicated region
  $region22: #{gpt4ts_forward.20} parent=0 // pred_check
    %p442 = pneg %p18
  $region23: #{gpt4ts_forward.20} parent=0 // pred_check_branch
    %444 = sbr.rel (%p442) target = $region25
  $region24: #{gpt4ts_forward.20} parent=0 // pred_region
    %v445 = vld [vmem:[#allocation2] sm:$0xff]
    %v446 = vld [vmem:[#allocation2 + $0x8] sm:$0xff]
    %v447 = vld [vmem:[#allocation2 + $0x10] sm:$0xff]
    %v448 = vld [vmem:[#allocation2 + $0x18] sm:$0xff]
    %v449 = vld [vmem:[#allocation2 + $0x20] sm:$0xff]
    %v450 = vld [vmem:[%s2] sm:$0x1]
    %v452 = vlaneseq
    %v453 = vshrl.u32 %v452, 7
    %v454 = vsub.s32 0, %v453
    %v455 = vrot.slane %v450, %v454
    %v457 = vadd.f32 %v445, %v455
    %v458 = vadd.f32 %v446, %v455
    %v459 = vadd.f32 %v447, %v455
    %v460 = vadd.f32 %v448, %v455
    %v461 = vadd.f32 %v449, %v455
    %v462 = vld [vmem:[%s3] sm:$0xff]
    %v463 = vld [vmem:[%s3 + $0x8] sm:$0xff]
    %v464 = vld [vmem:[%s3 + $0x10] sm:$0xff]
    %v465 = vld [vmem:[%s3 + $0x18] sm:$0xff]
    %v466 = vld [vmem:[%s3 + $0x20] sm:$0xff]
    %v467 = vadd.f32 %v457, %v462
    %v468 = vadd.f32 %v458, %v463
    %v469 = vadd.f32 %v459, %v464
    %v470 = vadd.f32 %v460, %v465
    %v471 = vadd.f32 %v461, %v466
    %472 = vst [vmem:[%s4] sm:$0xff] %v467
    %473 = vst [vmem:[%s4 + $0x8] sm:$0xff] %v468
    %474 = vst [vmem:[%s4 + $0x10] sm:$0xff] %v469
    %475 = vst [vmem:[%s4 + $0x18] sm:$0xff] %v470
    %476 = vst [vmem:[%s4 + $0x20] sm:$0xff] %v471
  $region25: #{gpt4ts_forward.20} parent=0 // pred_fallthru
    _
  // Predicated region
  $region26: #{gpt4ts_forward.20} parent=0 // pred_check
    _
  $region27: #{gpt4ts_forward.20} parent=0 // pred_check_branch
    %478 = sbr.rel (0) target = $region29
  $region28: #{gpt4ts_forward.20} parent=0 // pred_region
    _
  $region29: #{gpt4ts_forward.20} parent=0 // pred_fallthru
    _
  // Predicated region
  $region30: #{gpt4ts_forward.20} parent=0 // pred_check
    _
  $region31: #{gpt4ts_forward.20} parent=0 // pred_check_branch
    %480 = sbr.rel (0) target = $region33
  $region32: #{gpt4ts_forward.20} parent=0 // pred_region
    _
  $region33: #{gpt4ts_forward.20} parent=0 // pred_fallthru
    _

// kernel: gpt4ts_forward.17
$region0: #{gpt4ts_forward.17}
  #allocation0 [shape = 'u32[]', space=smem, size = 0x4, offset = 0x4, fixed_abs, tag = 'smem constant byte address 0x4 - core index']
  #allocation1 [shape = 'u32[144,128]{1,0:T(1,128)}', space=vmem, size = 0x12000, scoped, tag = 'internal scratch']
  %s0 = inlined_call_operand.vmem [shape: f32[8,5,384], index: 0, kind: input, shape index: {}, may-alias: {0,1,2}]
  %s1 = inlined_call_operand.vmem [shape: f32[8,5,384], index: 1, kind: input, shape index: {}, may-alias: {0,1,2}]
  %s2 = inlined_call_operand.vmem [shape: f32[8,5,384], index: 2, kind: input, shape index: {}, may-alias: {0,1,2}]
  %s3 = inlined_call_operand.vmem [shape: f32[8,5,128], index: 3, kind: output, shape index: {}]
  %s4 = sld [smem:[#allocation0]]
  $region136: #{gpt4ts_forward.17} parent=0
    _
  %s6 = ssub.s32 1, %s4
  %s7 = scalar_select 0, %s6, %s4
  $region1: #{gpt4ts_forward.17} parent=0
    #allocation2 [shape = 'u8[32768]{0}', space=vmem, size = 0x8000, scoped, tag = 'input window, operand 0, single buffered']
    #allocation3 [shape = 'u8[32768]{0}', space=vmem, size = 0x8000, scoped, tag = 'input window, operand 1, single buffered']
    #allocation4 [shape = 'u8[32768]{0}', space=vmem, size = 0x8000, scoped, tag = 'input window, operand 2, single buffered']
    // Predicated region
    $region2: #{gpt4ts_forward.17} parent=1 // pred_check
      _
    $region3: #{gpt4ts_forward.17} parent=1 // pred_check_branch
      %9 = sbr.rel (0) target = $region5
    $region4: #{gpt4ts_forward.17} parent=1 // pred_region
      // Predicated region
      $region6: #{gpt4ts_forward.17} parent=4 // pred_check
        _
      $region7: #{gpt4ts_forward.17} parent=4 // pred_check_branch
        %11 = sbr.rel (0) target = $region9
      $region8: #{gpt4ts_forward.17} parent=4 // pred_region
        // Predicated region
        $region10: #{gpt4ts_forward.17} parent=8 // pred_check
          _
        $region11: #{gpt4ts_forward.17} parent=8 // pred_check_branch
          %13 = sbr.rel (0) target = $region13
        $region12: #{gpt4ts_forward.17} parent=8 // pred_region
          // Predicated region
          $region25: #{gpt4ts_forward.17} parent=12 // pred_check
            _
          $region26: #{gpt4ts_forward.17} parent=12 // pred_check_branch
            %42 = sbr.rel (0) target = $region28
          $region27: #{gpt4ts_forward.17} parent=12 // pred_region
            loop: start=0, step=1, limit=1
            $region29: #{gpt4ts_forward.17} parent=27 // loop_pre_header
              _
            $region30: #{gpt4ts_forward.17} parent=27 // loop_header
              %s44 = sphi 0, %s48
              %p45 = scmp.ge.s32.totalorder %s44, 1
              %s49 = sphi %s0, %s0
              %s50 = sphi [#allocation2], [#allocation2]
            $region31: #{gpt4ts_forward.17} parent=27 // loop_header_branch
              %47 = sbr.rel (%p45) target = $region35
            $region32: #{gpt4ts_forward.17} parent=27 // loop_body
              %v51 = vld [vmem:[%s49] sm:$0xff]
              %52 = vst [vmem:[%s50] sm:$0xff] %v51
              %v53 = vld [vmem:[%s49 + $0x18] sm:$0xff]
              %54 = vst [vmem:[%s50 + $0x8] sm:$0xff] %v53
              %v55 = vld [vmem:[%s49 + $0x30] sm:$0xff]
              %56 = vst [vmem:[%s50 + $0x10] sm:$0xff] %v55
              %v57 = vld [vmem:[%s49 + $0x48] sm:$0xff]
              %58 = vst [vmem:[%s50 + $0x18] sm:$0xff] %v57
              %v59 = vld [vmem:[%s49 + $0x60] sm:$0xff]
              %60 = vst [vmem:[%s50 + $0x20] sm:$0xff] %v59
              %v61 = vld [vmem:[%s49 + $0x78] sm:$0xff]
              %62 = vst [vmem:[%s50 + $0x28] sm:$0xff] %v61
              %v63 = vld [vmem:[%s49 + $0x90] sm:$0xff]
              %64 = vst [vmem:[%s50 + $0x30] sm:$0xff] %v63
              %v65 = vld [vmem:[%s49 + $0xa8] sm:$0xff]
              %66 = vst [vmem:[%s50 + $0x38] sm:$0xff] %v65
            $region33: #{gpt4ts_forward.17} parent=27 // loop_footer
              %s48 = sadd.s32 1, %s44
            $region34: #{gpt4ts_forward.17} parent=27 // loop_footer_branch
              %43 = sbr.rel target = $region30
            $region35: #{gpt4ts_forward.17} parent=27 // loop_exit
              _
          $region28: #{gpt4ts_forward.17} parent=12 // pred_fallthru
            _
          // Predicated region
          $region36: #{gpt4ts_forward.17} parent=12 // pred_check
            _
          $region37: #{gpt4ts_forward.17} parent=12 // pred_check_branch
            %68 = sbr.rel target = $region39
          $region38: #{gpt4ts_forward.17} parent=12 // pred_region
            _
          $region39: #{gpt4ts_forward.17} parent=12 // pred_fallthru
            _
        $region13: #{gpt4ts_forward.17} parent=8 // pred_fallthru
          _
        // Predicated region
        $region14: #{gpt4ts_forward.17} parent=8 // pred_check
          _
        $region15: #{gpt4ts_forward.17} parent=8 // pred_check_branch
          %15 = sbr.rel target = $region17
        $region16: #{gpt4ts_forward.17} parent=8 // pred_region
          loop: start=0, step=1, limit=1
          $region18: #{gpt4ts_forward.17} parent=16 // loop_pre_header
            _
          $region19: #{gpt4ts_forward.17} parent=16 // loop_header
            %s18 = sphi 0, %s22
            %p19 = scmp.ge.s32.totalorder %s18, 1
            %s23 = sphi %s0, %s0
            %s24 = sphi [#allocation2], [#allocation2]
          $region20: #{gpt4ts_forward.17} parent=16 // loop_header_branch
            %21 = sbr.rel (%p19) target = $region24
          $region21: #{gpt4ts_forward.17} parent=16 // loop_body
            %v25 = vld [vmem:[%s23] sm:$0xff]
            %26 = vst [vmem:[%s24] sm:$0xff] %v25
            %v27 = vld [vmem:[%s23 + $0x18] sm:$0xff]
            %28 = vst [vmem:[%s24 + $0x8] sm:$0xff] %v27
            %v29 = vld [vmem:[%s23 + $0x30] sm:$0xff]
            %30 = vst [vmem:[%s24 + $0x10] sm:$0xff] %v29
            %v31 = vld [vmem:[%s23 + $0x48] sm:$0xff]
            %32 = vst [vmem:[%s24 + $0x18] sm:$0xff] %v31
            %v33 = vld [vmem:[%s23 + $0x60] sm:$0xff]
            %34 = vst [vmem:[%s24 + $0x20] sm:$0xff] %v33
            %v35 = vld [vmem:[%s23 + $0x78] sm:$0xff]
            %36 = vst [vmem:[%s24 + $0x28] sm:$0xff] %v35
            %v37 = vld [vmem:[%s23 + $0x90] sm:$0xff]
            %38 = vst [vmem:[%s24 + $0x30] sm:$0xff] %v37
            %v39 = vld [vmem:[%s23 + $0xa8] sm:$0xff]
            %40 = vst [vmem:[%s24 + $0x38] sm:$0xff] %v39
          $region22: #{gpt4ts_forward.17} parent=16 // loop_footer
            %s22 = sadd.s32 1, %s18
          $region23: #{gpt4ts_forward.17} parent=16 // loop_footer_branch
            %17 = sbr.rel target = $region19
          $region24: #{gpt4ts_forward.17} parent=16 // loop_exit
            _
        $region17: #{gpt4ts_forward.17} parent=8 // pred_fallthru
          _
      $region9: #{gpt4ts_forward.17} parent=4 // pred_fallthru
        _
      %69 = vnop
    $region5: #{gpt4ts_forward.17} parent=1 // pred_fallthru
      _
    // Predicated region
    $region40: #{gpt4ts_forward.17} parent=1 // pred_check
      _
    $region41: #{gpt4ts_forward.17} parent=1 // pred_check_branch
      %71 = sbr.rel (0) target = $region43
    $region42: #{gpt4ts_forward.17} parent=1 // pred_region
      %s72 = scalar_lea.vmem %s1, 8
      // Predicated region
      $region44: #{gpt4ts_forward.17} parent=42 // pred_check
        _
      $region45: #{gpt4ts_forward.17} parent=42 // pred_check_branch
        %74 = sbr.rel (0) target = $region47
      $region46: #{gpt4ts_forward.17} parent=42 // pred_region
        // Predicated region
        $region48: #{gpt4ts_forward.17} parent=46 // pred_check
          _
        $region49: #{gpt4ts_forward.17} parent=46 // pred_check_branch
          %76 = sbr.rel (0) target = $region51
        $region50: #{gpt4ts_forward.17} parent=46 // pred_region
          // Predicated region
          $region63: #{gpt4ts_forward.17} parent=50 // pred_check
            _
          $region64: #{gpt4ts_forward.17} parent=50 // pred_check_branch
            %105 = sbr.rel (0) target = $region66
          $region65: #{gpt4ts_forward.17} parent=50 // pred_region
            loop: start=0, step=1, limit=1
            $region67: #{gpt4ts_forward.17} parent=65 // loop_pre_header
              _
            $region68: #{gpt4ts_forward.17} parent=65 // loop_header
              %s107 = sphi 0, %s111
              %p108 = scmp.ge.s32.totalorder %s107, 1
              %s112 = sphi %s72, %s72
              %s113 = sphi [#allocation3], [#allocation3]
            $region69: #{gpt4ts_forward.17} parent=65 // loop_header_branch
              %110 = sbr.rel (%p108) target = $region73
            $region70: #{gpt4ts_forward.17} parent=65 // loop_body
              %v114 = vld [vmem:[%s112] sm:$0xff]
              %115 = vst [vmem:[%s113] sm:$0xff] %v114
              %v116 = vld [vmem:[%s112 + $0x18] sm:$0xff]
              %117 = vst [vmem:[%s113 + $0x8] sm:$0xff] %v116
              %v118 = vld [vmem:[%s112 + $0x30] sm:$0xff]
              %119 = vst [vmem:[%s113 + $0x10] sm:$0xff] %v118
              %v120 = vld [vmem:[%s112 + $0x48] sm:$0xff]
              %121 = vst [vmem:[%s113 + $0x18] sm:$0xff] %v120
              %v122 = vld [vmem:[%s112 + $0x60] sm:$0xff]
              %123 = vst [vmem:[%s113 + $0x20] sm:$0xff] %v122
              %v124 = vld [vmem:[%s112 + $0x78] sm:$0xff]
              %125 = vst [vmem:[%s113 + $0x28] sm:$0xff] %v124
              %v126 = vld [vmem:[%s112 + $0x90] sm:$0xff]
              %127 = vst [vmem:[%s113 + $0x30] sm:$0xff] %v126
              %v128 = vld [vmem:[%s112 + $0xa8] sm:$0xff]
              %129 = vst [vmem:[%s113 + $0x38] sm:$0xff] %v128
            $region71: #{gpt4ts_forward.17} parent=65 // loop_footer
              %s111 = sadd.s32 1, %s107
            $region72: #{gpt4ts_forward.17} parent=65 // loop_footer_branch
              %106 = sbr.rel target = $region68
            $region73: #{gpt4ts_forward.17} parent=65 // loop_exit
              _
          $region66: #{gpt4ts_forward.17} parent=50 // pred_fallthru
            _
          // Predicated region
          $region74: #{gpt4ts_forward.17} parent=50 // pred_check
            _
          $region75: #{gpt4ts_forward.17} parent=50 // pred_check_branch
            %131 = sbr.rel target = $region77
          $region76: #{gpt4ts_forward.17} parent=50 // pred_region
            _
          $region77: #{gpt4ts_forward.17} parent=50 // pred_fallthru
            _
        $region51: #{gpt4ts_forward.17} parent=46 // pred_fallthru
          _
        // Predicated region
        $region52: #{gpt4ts_forward.17} parent=46 // pred_check
          _
        $region53: #{gpt4ts_forward.17} parent=46 // pred_check_branch
          %78 = sbr.rel target = $region55
        $region54: #{gpt4ts_forward.17} parent=46 // pred_region
          loop: start=0, step=1, limit=1
          $region56: #{gpt4ts_forward.17} parent=54 // loop_pre_header
            _
          $region57: #{gpt4ts_forward.17} parent=54 // loop_header
            %s81 = sphi 0, %s85
            %p82 = scmp.ge.s32.totalorder %s81, 1
            %s86 = sphi %s72, %s72
            %s87 = sphi [#allocation3], [#allocation3]
          $region58: #{gpt4ts_forward.17} parent=54 // loop_header_branch
            %84 = sbr.rel (%p82) target = $region62
          $region59: #{gpt4ts_forward.17} parent=54 // loop_body
            %v88 = vld [vmem:[%s86] sm:$0xff]
            %89 = vst [vmem:[%s87] sm:$0xff] %v88
            %v90 = vld [vmem:[%s86 + $0x18] sm:$0xff]
            %91 = vst [vmem:[%s87 + $0x8] sm:$0xff] %v90
            %v92 = vld [vmem:[%s86 + $0x30] sm:$0xff]
            %93 = vst [vmem:[%s87 + $0x10] sm:$0xff] %v92
            %v94 = vld [vmem:[%s86 + $0x48] sm:$0xff]
            %95 = vst [vmem:[%s87 + $0x18] sm:$0xff] %v94
            %v96 = vld [vmem:[%s86 + $0x60] sm:$0xff]
            %97 = vst [vmem:[%s87 + $0x20] sm:$0xff] %v96
            %v98 = vld [vmem:[%s86 + $0x78] sm:$0xff]
            %99 = vst [vmem:[%s87 + $0x28] sm:$0xff] %v98
            %v100 = vld [vmem:[%s86 + $0x90] sm:$0xff]
            %101 = vst [vmem:[%s87 + $0x30] sm:$0xff] %v100
            %v102 = vld [vmem:[%s86 + $0xa8] sm:$0xff]
            %103 = vst [vmem:[%s87 + $0x38] sm:$0xff] %v102
          $region60: #{gpt4ts_forward.17} parent=54 // loop_footer
            %s85 = sadd.s32 1, %s81
          $region61: #{gpt4ts_forward.17} parent=54 // loop_footer_branch
            %80 = sbr.rel target = $region57
          $region62: #{gpt4ts_forward.17} parent=54 // loop_exit
            _
        $region55: #{gpt4ts_forward.17} parent=46 // pred_fallthru
          _
      $region47: #{gpt4ts_forward.17} parent=42 // pred_fallthru
        _
      %132 = vnop
    $region43: #{gpt4ts_forward.17} parent=1 // pred_fallthru
      _
    // Predicated region
    $region78: #{gpt4ts_forward.17} parent=1 // pred_check
      _
    $region79: #{gpt4ts_forward.17} parent=1 // pred_check_branch
      %134 = sbr.rel (0) target = $region81
    $region80: #{gpt4ts_forward.17} parent=1 // pred_region
      %s135 = scalar_lea.vmem %s2, 16
      // Predicated region
      $region82: #{gpt4ts_forward.17} parent=80 // pred_check
        _
      $region83: #{gpt4ts_forward.17} parent=80 // pred_check_branch
        %137 = sbr.rel (0) target = $region85
      $region84: #{gpt4ts_forward.17} parent=80 // pred_region
        // Predicated region
        $region86: #{gpt4ts_forward.17} parent=84 // pred_check
          _
        $region87: #{gpt4ts_forward.17} parent=84 // pred_check_branch
          %139 = sbr.rel (0) target = $region89
        $region88: #{gpt4ts_forward.17} parent=84 // pred_region
          // Predicated region
          $region101: #{gpt4ts_forward.17} parent=88 // pred_check
            _
          $region102: #{gpt4ts_forward.17} parent=88 // pred_check_branch
            %168 = sbr.rel (0) target = $region104
          $region103: #{gpt4ts_forward.17} parent=88 // pred_region
            loop: start=0, step=1, limit=1
            $region105: #{gpt4ts_forward.17} parent=103 // loop_pre_header
              _
            $region106: #{gpt4ts_forward.17} parent=103 // loop_header
              %s170 = sphi 0, %s174
              %p171 = scmp.ge.s32.totalorder %s170, 1
              %s175 = sphi %s135, %s135
              %s176 = sphi [#allocation4], [#allocation4]
            $region107: #{gpt4ts_forward.17} parent=103 // loop_header_branch
              %173 = sbr.rel (%p171) target = $region111
            $region108: #{gpt4ts_forward.17} parent=103 // loop_body
              %v177 = vld [vmem:[%s175] sm:$0xff]
              %178 = vst [vmem:[%s176] sm:$0xff] %v177
              %v179 = vld [vmem:[%s175 + $0x18] sm:$0xff]
              %180 = vst [vmem:[%s176 + $0x8] sm:$0xff] %v179
              %v181 = vld [vmem:[%s175 + $0x30] sm:$0xff]
              %182 = vst [vmem:[%s176 + $0x10] sm:$0xff] %v181
              %v183 = vld [vmem:[%s175 + $0x48] sm:$0xff]
              %184 = vst [vmem:[%s176 + $0x18] sm:$0xff] %v183
              %v185 = vld [vmem:[%s175 + $0x60] sm:$0xff]
              %186 = vst [vmem:[%s176 + $0x20] sm:$0xff] %v185
              %v187 = vld [vmem:[%s175 + $0x78] sm:$0xff]
              %188 = vst [vmem:[%s176 + $0x28] sm:$0xff] %v187
              %v189 = vld [vmem:[%s175 + $0x90] sm:$0xff]
              %190 = vst [vmem:[%s176 + $0x30] sm:$0xff] %v189
              %v191 = vld [vmem:[%s175 + $0xa8] sm:$0xff]
              %192 = vst [vmem:[%s176 + $0x38] sm:$0xff] %v191
            $region109: #{gpt4ts_forward.17} parent=103 // loop_footer
              %s174 = sadd.s32 1, %s170
            $region110: #{gpt4ts_forward.17} parent=103 // loop_footer_branch
              %169 = sbr.rel target = $region106
            $region111: #{gpt4ts_forward.17} parent=103 // loop_exit
              _
          $region104: #{gpt4ts_forward.17} parent=88 // pred_fallthru
            _
          // Predicated region
          $region112: #{gpt4ts_forward.17} parent=88 // pred_check
            _
          $region113: #{gpt4ts_forward.17} parent=88 // pred_check_branch
            %194 = sbr.rel target = $region115
          $region114: #{gpt4ts_forward.17} parent=88 // pred_region
            _
          $region115: #{gpt4ts_forward.17} parent=88 // pred_fallthru
            _
        $region89: #{gpt4ts_forward.17} parent=84 // pred_fallthru
          _
        // Predicated region
        $region90: #{gpt4ts_forward.17} parent=84 // pred_check
          _
        $region91: #{gpt4ts_forward.17} parent=84 // pred_check_branch
          %141 = sbr.rel target = $region93
        $region92: #{gpt4ts_forward.17} parent=84 // pred_region
          loop: start=0, step=1, limit=1
          $region94: #{gpt4ts_forward.17} parent=92 // loop_pre_header
            _
          $region95: #{gpt4ts_forward.17} parent=92 // loop_header
            %s144 = sphi 0, %s148
            %p145 = scmp.ge.s32.totalorder %s144, 1
            %s149 = sphi %s135, %s135
            %s150 = sphi [#allocation4], [#allocation4]
          $region96: #{gpt4ts_forward.17} parent=92 // loop_header_branch
            %147 = sbr.rel (%p145) target = $region100
          $region97: #{gpt4ts_forward.17} parent=92 // loop_body
            %v151 = vld [vmem:[%s149] sm:$0xff]
            %152 = vst [vmem:[%s150] sm:$0xff] %v151
            %v153 = vld [vmem:[%s149 + $0x18] sm:$0xff]
            %154 = vst [vmem:[%s150 + $0x8] sm:$0xff] %v153
            %v155 = vld [vmem:[%s149 + $0x30] sm:$0xff]
            %156 = vst [vmem:[%s150 + $0x10] sm:$0xff] %v155
            %v157 = vld [vmem:[%s149 + $0x48] sm:$0xff]
            %158 = vst [vmem:[%s150 + $0x18] sm:$0xff] %v157
            %v159 = vld [vmem:[%s149 + $0x60] sm:$0xff]
            %160 = vst [vmem:[%s150 + $0x20] sm:$0xff] %v159
            %v161 = vld [vmem:[%s149 + $0x78] sm:$0xff]
            %162 = vst [vmem:[%s150 + $0x28] sm:$0xff] %v161
            %v163 = vld [vmem:[%s149 + $0x90] sm:$0xff]
            %164 = vst [vmem:[%s150 + $0x30] sm:$0xff] %v163
            %v165 = vld [vmem:[%s149 + $0xa8] sm:$0xff]
            %166 = vst [vmem:[%s150 + $0x38] sm:$0xff] %v165
          $region98: #{gpt4ts_forward.17} parent=92 // loop_footer
            %s148 = sadd.s32 1, %s144
          $region99: #{gpt4ts_forward.17} parent=92 // loop_footer_branch
            %143 = sbr.rel target = $region95
          $region100: #{gpt4ts_forward.17} parent=92 // loop_exit
            _
        $region93: #{gpt4ts_forward.17} parent=84 // pred_fallthru
          _
      $region85: #{gpt4ts_forward.17} parent=80 // pred_fallthru
        _
      %195 = vnop
    $region81: #{gpt4ts_forward.17} parent=1 // pred_fallthru
      _
    // Predicated region
    $region116: #{gpt4ts_forward.17} parent=1 // pred_check
      _
    $region117: #{gpt4ts_forward.17} parent=1 // pred_check_branch
      %197 = sbr.rel (0) target = $region119
    $region118: #{gpt4ts_forward.17} parent=1 // pred_region
      _
    $region119: #{gpt4ts_forward.17} parent=1 // pred_fallthru
      _
    // Predicated region
    $region120: #{gpt4ts_forward.17} parent=1 // pred_check
      _
    $region121: #{gpt4ts_forward.17} parent=1 // pred_check_branch
      %199 = sbr.rel (0) target = $region123
    $region122: #{gpt4ts_forward.17} parent=1 // pred_region
      _
    $region123: #{gpt4ts_forward.17} parent=1 // pred_fallthru
      _
    // Predicated region
    $region124: #{gpt4ts_forward.17} parent=1 // pred_check
      _
    $region125: #{gpt4ts_forward.17} parent=1 // pred_check_branch
      %201 = sbr.rel (0) target = $region127
    $region126: #{gpt4ts_forward.17} parent=1 // pred_region
      _
    $region127: #{gpt4ts_forward.17} parent=1 // pred_fallthru
      _
    %v203 = vld [vmem:[#allocation2] sm:$0x1f]
    %v204 = vld [vmem:[#allocation2 + $0x8] sm:$0x1f]
    %v205 = vld [vmem:[#allocation2 + $0x10] sm:$0x1f]
    %v206 = vld [vmem:[#allocation2 + $0x18] sm:$0x1f]
    %v207 = vld [vmem:[#allocation2 + $0x20] sm:$0x1f]
    %v208 = vld [vmem:[#allocation2 + $0x28] sm:$0x1f]
    %v209 = vld [vmem:[#allocation2 + $0x30] sm:$0x1f]
    %v210 = vld [vmem:[#allocation2 + $0x38] sm:$0x1f]
    %v211 = vld [vmem:[#allocation3] sm:$0x1f]
    %v212 = vld [vmem:[#allocation3 + $0x8] sm:$0x1f]
    %v213 = vld [vmem:[#allocation3 + $0x10] sm:$0x1f]
    %v214 = vld [vmem:[#allocation3 + $0x18] sm:$0x1f]
    %v215 = vld [vmem:[#allocation3 + $0x20] sm:$0x1f]
    %v216 = vld [vmem:[#allocation3 + $0x28] sm:$0x1f]
    %v217 = vld [vmem:[#allocation3 + $0x30] sm:$0x1f]
    %v218 = vld [vmem:[#allocation3 + $0x38] sm:$0x1f]
    %v219 = vld [vmem:[#allocation4] sm:$0x1f]
    %v220 = vld [vmem:[#allocation4 + $0x8] sm:$0x1f]
    %v221 = vld [vmem:[#allocation4 + $0x10] sm:$0x1f]
    %v222 = vld [vmem:[#allocation4 + $0x18] sm:$0x1f]
    %v223 = vld [vmem:[#allocation4 + $0x20] sm:$0x1f]
    %v224 = vld [vmem:[#allocation4 + $0x28] sm:$0x1f]
    %v225 = vld [vmem:[#allocation4 + $0x30] sm:$0x1f]
    %v226 = vld [vmem:[#allocation4 + $0x38] sm:$0x1f]
    %v227 = vlaneseq
    %v228 = vshrl.u32 %v227, 7
    %v229 = vlaneseq
    %v230 = vand.u32 %v229, 127
    %vm231 = vcmp.le.s32.totalorder %v230, %v228
    %v232 = vpack.c.bf16 %v203, %v203
    %v233 = vpack.c.bf16 %v204, %v204
    %v234 = vpack.c.bf16 %v205, %v205
    %v235 = vpack.c.bf16 %v206, %v206
    %v236 = vpack.c.bf16 %v207, %v207
    %v237 = vpack.c.bf16 %v208, %v208
    %v238 = vpack.c.bf16 %v209, %v209
    %v239 = vpack.c.bf16 %v210, %v210
    %v240 = vpack.c.bf16 %v211, %v211
    %v241 = vpack.c.bf16 %v212, %v212
    %v242 = vpack.c.bf16 %v213, %v213
    %v243 = vpack.c.bf16 %v214, %v214
    %v244 = vpack.c.bf16 %v215, %v215
    %v245 = vpack.c.bf16 %v216, %v216
    %v246 = vpack.c.bf16 %v217, %v217
    %v247 = vpack.c.bf16 %v218, %v218
    %v248 = vpack.c.bf16 %v219, %v219
    %v249 = vpack.c.bf16 %v220, %v220
    %v250 = vpack.c.bf16 %v221, %v221
    %v251 = vpack.c.bf16 %v222, %v222
    %v252 = vpack.c.bf16 %v223, %v223
    %v253 = vpack.c.bf16 %v224, %v224
    %v254 = vpack.c.bf16 %v225, %v225
    %v255 = vpack.c.bf16 %v226, %v226
    %vm256 = vcmask 261120
    %v258 = vsel %vm256, %v232, 0
    %v261 = vsel %vm256, %v240, 0
    %263 = vmatprep.subr.bf16.mxu0 0
    %264 = vmatpush1.bf16.xpose.msra.mxu0 %v261
    %265 = vmatprep.subr.bf16.mxu0 0
    %266 = vmatpush1.bf16.xpose.msra.mxu0 0
    %267 = vmatprep.subr.bf16.mxu0 0
    %268 = vmatpush1.bf16.xpose.msra.mxu0 0
    %269 = vmatprep.subr.bf16.mxu0 0
    %270 = vmatpush1.bf16.xpose.msra.mxu0 0
    %271 = vmatprep.subr.bf16.mxu0 0
    %272 = vmatpush1.bf16.xpose.msra.mxu0 0
    %273 = vmatprep.subr.bf16.mxu0 0
    %274 = vmatpush1.bf16.xpose.msra.mxu0 0
    %275 = vmatprep.subr.bf16.mxu0 0
    %276 = vmatpush1.bf16.xpose.msra.mxu0 0
    %277 = vmatprep.subr.bf16.mxu0 0
    %278 = vmatpush1.bf16.xpose.msra.mxu0 0
    %279 = vmatprep.subr.bf16.mxu0 0
    %280 = vmatpush1.bf16.xpose.msra.mxu0 0
    %281 = vmatprep.subr.bf16.mxu0 0
    %282 = vmatpush1.bf16.xpose.msra.mxu0 0
    %283 = vmatprep.subr.bf16.mxu0 0
    %284 = vmatpush1.bf16.xpose.msra.mxu0 0
    %285 = vmatprep.subr.bf16.mxu0 0
    %286 = vmatpush1.bf16.xpose.msra.mxu0 0
    %287 = vmatprep.subr.bf16.mxu0 0
    %288 = vmatpush1.bf16.xpose.msra.mxu0 0
    %289 = vmatprep.subr.bf16.mxu0 0
    %290 = vmatpush1.bf16.xpose.msra.mxu0 0
    %291 = vmatprep.subr.bf16.mxu0 0
    %292 = vmatpush1.bf16.xpose.msra.mxu0 0
    %293 = vmatprep.subr.bf16.mxu0 0
    %294 = vmatpush1.bf16.xpose.msra.mxu0 0
    %295 = vmatprep.mubr.bf16.mxu0 0
    %296 = vmatmul.mubr.bf16.gmra.mrb[0].mxu0 %v258
    %v297 = vpop.f32.mrb[0].mxu0
    %v298 = vadd.f32 0.0, %v297
    %v299 = vpop.f32.mrb[0].mxu0
    %v300 = vpop.f32.mrb[0].mxu0
    %v301 = vpop.f32.mrb[0].mxu0
    %302 = vdwg.mxu0
    %v304 = vsel %vm256, %v233, 0
    %v307 = vsel %vm256, %v241, 0
    %309 = vmatprep.subr.bf16.mxu0 0
    %310 = vmatpush1.bf16.xpose.msra.mxu0 %v307
    %311 = vmatprep.subr.bf16.mxu0 0
    %312 = vmatpush1.bf16.xpose.msra.mxu0 0
    %313 = vmatprep.subr.bf16.mxu0 0
    %314 = vmatpush1.bf16.xpose.msra.mxu0 0
    %315 = vmatprep.subr.bf16.mxu0 0
    %316 = vmatpush1.bf16.xpose.msra.mxu0 0
    %317 = vmatprep.subr.bf16.mxu0 0
    %318 = vmatpush1.bf16.xpose.msra.mxu0 0
    %319 = vmatprep.subr.bf16.mxu0 0
    %320 = vmatpush1.bf16.xpose.msra.mxu0 0
    %321 = vmatprep.subr.bf16.mxu0 0
    %322 = vmatpush1.bf16.xpose.msra.mxu0 0
    %323 = vmatprep.subr.bf16.mxu0 0
    %324 = vmatpush1.bf16.xpose.msra.mxu0 0
    %325 = vmatprep.subr.bf16.mxu0 0
    %326 = vmatpush1.bf16.xpose.msra.mxu0 0
    %327 = vmatprep.subr.bf16.mxu0 0
    %328 = vmatpush1.bf16.xpose.msra.mxu0 0
    %329 = vmatprep.subr.bf16.mxu0 0
    %330 = vmatpush1.bf16.xpose.msra.mxu0 0
    %331 = vmatprep.subr.bf16.mxu0 0
    %332 = vmatpush1.bf16.xpose.msra.mxu0 0
    %333 = vmatprep.subr.bf16.mxu0 0
    %334 = vmatpush1.bf16.xpose.msra.mxu0 0
    %335 = vmatprep.subr.bf16.mxu0 0
    %336 = vmatpush1.bf16.xpose.msra.mxu0 0
    %337 = vmatprep.subr.bf16.mxu0 0
    %338 = vmatpush1.bf16.xpose.msra.mxu0 0
    %339 = vmatprep.subr.bf16.mxu0 0
    %340 = vmatpush1.bf16.xpose.msra.mxu0 0
    %341 = vmatprep.mubr.bf16.mxu0 0
    %342 = vmatmul.mubr.bf16.gmra.mrb[0].mxu0 %v304
    %v343 = vpop.f32.mrb[0].mxu0
    %v344 = vadd.f32 0.0, %v343
    %v345 = vpop.f32.mrb[0].mxu0
    %v346 = vpop.f32.mrb[0].mxu0
    %v347 = vpop.f32.mrb[0].mxu0
    %348 = vdwg.mxu0
    %v350 = vsel %vm256, %v234, 0
    %v353 = vsel %vm256, %v242, 0
    %355 = vmatprep.subr.bf16.mxu0 0
    %356 = vmatpush1.bf16.xpose.msra.mxu0 %v353
    %357 = vmatprep.subr.bf16.mxu0 0
    %358 = vmatpush1.bf16.xpose.msra.mxu0 0
    %359 = vmatprep.subr.bf16.mxu0 0
    %360 = vmatpush1.bf16.xpose.msra.mxu0 0
    %361 = vmatprep.subr.bf16.mxu0 0
    %362 = vmatpush1.bf16.xpose.msra.mxu0 0
    %363 = vmatprep.subr.bf16.mxu0 0
    %364 = vmatpush1.bf16.xpose.msra.mxu0 0
    %365 = vmatprep.subr.bf16.mxu0 0
    %366 = vmatpush1.bf16.xpose.msra.mxu0 0
    %367 = vmatprep.subr.bf16.mxu0 0
    %368 = vmatpush1.bf16.xpose.msra.mxu0 0
    %369 = vmatprep.subr.bf16.mxu0 0
    %370 = vmatpush1.bf16.xpose.msra.mxu0 0
    %371 = vmatprep.subr.bf16.mxu0 0
    %372 = vmatpush1.bf16.xpose.msra.mxu0 0
    %373 = vmatprep.subr.bf16.mxu0 0
    %374 = vmatpush1.bf16.xpose.msra.mxu0 0
    %375 = vmatprep.subr.bf16.mxu0 0
    %376 = vmatpush1.bf16.xpose.msra.mxu0 0
    %377 = vmatprep.subr.bf16.mxu0 0
    %378 = vmatpush1.bf16.xpose.msra.mxu0 0
    %379 = vmatprep.subr.bf16.mxu0 0
    %380 = vmatpush1.bf16.xpose.msra.mxu0 0
    %381 = vmatprep.subr.bf16.mxu0 0
    %382 = vmatpush1.bf16.xpose.msra.mxu0 0
    %383 = vmatprep.subr.bf16.mxu0 0
    %384 = vmatpush1.bf16.xpose.msra.mxu0 0
    %385 = vmatprep.subr.bf16.mxu0 0
    %386 = vmatpush1.bf16.xpose.msra.mxu0 0
    %387 = vmatprep.mubr.bf16.mxu0 0
    %388 = vmatmul.mubr.bf16.gmra.mrb[0].mxu0 %v350
    %v389 = vpop.f32.mrb[0].mxu0
    %v390 = vadd.f32 0.0, %v389
    %v391 = vpop.f32.mrb[0].mxu0
    %v392 = vpop.f32.mrb[0].mxu0
    %v393 = vpop.f32.mrb[0].mxu0
    %394 = vdwg.mxu0
    %v396 = vsel %vm256, %v235, 0
    %v399 = vsel %vm256, %v243, 0
    %401 = vmatprep.subr.bf16.mxu0 0
    %402 = vmatpush1.bf16.xpose.msra.mxu0 %v399
    %403 = vmatprep.subr.bf16.mxu0 0
    %404 = vmatpush1.bf16.xpose.msra.mxu0 0
    %405 = vmatprep.subr.bf16.mxu0 0
    %406 = vmatpush1.bf16.xpose.msra.mxu0 0
    %407 = vmatprep.subr.bf16.mxu0 0
    %408 = vmatpush1.bf16.xpose.msra.mxu0 0
    %409 = vmatprep.subr.bf16.mxu0 0
    %410 = vmatpush1.bf16.xpose.msra.mxu0 0
    %411 = vmatprep.subr.bf16.mxu0 0
    %412 = vmatpush1.bf16.xpose.msra.mxu0 0
    %413 = vmatprep.subr.bf16.mxu0 0
    %414 = vmatpush1.bf16.xpose.msra.mxu0 0
    %415 = vmatprep.subr.bf16.mxu0 0
    %416 = vmatpush1.bf16.xpose.msra.mxu0 0
    %417 = vmatprep.subr.bf16.mxu0 0
    %418 = vmatpush1.bf16.xpose.msra.mxu0 0
    %419 = vmatprep.subr.bf16.mxu0 0
    %420 = vmatpush1.bf16.xpose.msra.mxu0 0
    %421 = vmatprep.subr.bf16.mxu0 0
    %422 = vmatpush1.bf16.xpose.msra.mxu0 0
    %423 = vmatprep.subr.bf16.mxu0 0
    %424 = vmatpush1.bf16.xpose.msra.mxu0 0
    %425 = vmatprep.subr.bf16.mxu0 0
    %426 = vmatpush1.bf16.xpose.msra.mxu0 0
    %427 = vmatprep.subr.bf16.mxu0 0
    %428 = vmatpush1.bf16.xpose.msra.mxu0 0
    %429 = vmatprep.subr.bf16.mxu0 0
    %430 = vmatpush1.bf16.xpose.msra.mxu0 0
    %431 = vmatprep.subr.bf16.mxu0 0
    %432 = vmatpush1.bf16.xpose.msra.mxu0 0
    %433 = vmatprep.mubr.bf16.mxu0 0
    %434 = vmatmul.mubr.bf16.gmra.mrb[0].mxu0 %v396
    %v435 = vpop.f32.mrb[0].mxu0
    %v436 = vadd.f32 0.0, %v435
    %v437 = vpop.f32.mrb[0].mxu0
    %v438 = vpop.f32.mrb[0].mxu0
    %v439 = vpop.f32.mrb[0].mxu0
    %440 = vdwg.mxu0
    %v442 = vsel %vm256, %v236, 0
    %v445 = vsel %vm256, %v244, 0
    %447 = vmatprep.subr.bf16.mxu0 0
    %448 = vmatpush1.bf16.xpose.msra.mxu0 %v445
    %449 = vmatprep.subr.bf16.mxu0 0
    %450 = vmatpush1.bf16.xpose.msra.mxu0 0
    %451 = vmatprep.subr.bf16.mxu0 0
    %452 = vmatpush1.bf16.xpose.msra.mxu0 0
    %453 = vmatprep.subr.bf16.mxu0 0
    %454 = vmatpush1.bf16.xpose.msra.mxu0 0
    %455 = vmatprep.subr.bf16.mxu0 0
    %456 = vmatpush1.bf16.xpose.msra.mxu0 0
    %457 = vmatprep.subr.bf16.mxu0 0
    %458 = vmatpush1.bf16.xpose.msra.mxu0 0
    %459 = vmatprep.subr.bf16.mxu0 0
    %460 = vmatpush1.bf16.xpose.msra.mxu0 0
    %461 = vmatprep.subr.bf16.mxu0 0
    %462 = vmatpush1.bf16.xpose.msra.mxu0 0
    %463 = vmatprep.subr.bf16.mxu0 0
    %464 = vmatpush1.bf16.xpose.msra.mxu0 0
    %465 = vmatprep.subr.bf16.mxu0 0
    %466 = vmatpush1.bf16.xpose.msra.mxu0 0
    %467 = vmatprep.subr.bf16.mxu0 0
    %468 = vmatpush1.bf16.xpose.msra.mxu0 0
    %469 = vmatprep.subr.bf16.mxu0 0
    %470 = vmatpush1.bf16.xpose.msra.mxu0 0
    %471 = vmatprep.subr.bf16.mxu0 0
    %472 = vmatpush1.bf16.xpose.msra.mxu0 0
    %473 = vmatprep.subr.bf16.mxu0 0
    %474 = vmatpush1.bf16.xpose.msra.mxu0 0
    %475 = vmatprep.subr.bf16.mxu0 0
    %476 = vmatpush1.bf16.xpose.msra.mxu0 0
    %477 = vmatprep.subr.bf16.mxu0 0
    %478 = vmatpush1.bf16.xpose.msra.mxu0 0
    %479 = vmatprep.mubr.bf16.mxu0 0
    %480 = vmatmul.mubr.bf16.gmra.mrb[0].mxu0 %v442
    %v481 = vpop.f32.mrb[0].mxu0
    %v482 = vadd.f32 0.0, %v481
    %v483 = vpop.f32.mrb[0].mxu0
    %v484 = vpop.f32.mrb[0].mxu0
    %v485 = vpop.f32.mrb[0].mxu0
    %486 = vdwg.mxu0
    %v488 = vsel %vm256, %v237, 0
    %v491 = vsel %vm256, %v245, 0
    %493 = vmatprep.subr.bf16.mxu0 0
    %494 = vmatpush1.bf16.xpose.msra.mxu0 %v491
    %495 = vmatprep.subr.bf16.mxu0 0
    %496 = vmatpush1.bf16.xpose.msra.mxu0 0
    %497 = vmatprep.subr.bf16.mxu0 0
    %498 = vmatpush1.bf16.xpose.msra.mxu0 0
    %499 = vmatprep.subr.bf16.mxu0 0
    %500 = vmatpush1.bf16.xpose.msra.mxu0 0
    %501 = vmatprep.subr.bf16.mxu0 0
    %502 = vmatpush1.bf16.xpose.msra.mxu0 0
    %503 = vmatprep.subr.bf16.mxu0 0
    %504 = vmatpush1.bf16.xpose.msra.mxu0 0
    %505 = vmatprep.subr.bf16.mxu0 0
    %506 = vmatpush1.bf16.xpose.msra.mxu0 0
    %507 = vmatprep.subr.bf16.mxu0 0
    %508 = vmatpush1.bf16.xpose.msra.mxu0 0
    %509 = vmatprep.subr.bf16.mxu0 0
    %510 = vmatpush1.bf16.xpose.msra.mxu0 0
    %511 = vmatprep.subr.bf16.mxu0 0
    %512 = vmatpush1.bf16.xpose.msra.mxu0 0
    %513 = vmatprep.subr.bf16.mxu0 0
    %514 = vmatpush1.bf16.xpose.msra.mxu0 0
    %515 = vmatprep.subr.bf16.mxu0 0
    %516 = vmatpush1.bf16.xpose.msra.mxu0 0
    %517 = vmatprep.subr.bf16.mxu0 0
    %518 = vmatpush1.bf16.xpose.msra.mxu0 0
    %519 = vmatprep.subr.bf16.mxu0 0
    %520 = vmatpush1.bf16.xpose.msra.mxu0 0
    %521 = vmatprep.subr.bf16.mxu0 0
    %522 = vmatpush1.bf16.xpose.msra.mxu0 0
    %523 = vmatprep.subr.bf16.mxu0 0
    %524 = vmatpush1.bf16.xpose.msra.mxu0 0
    %525 = vmatprep.mubr.bf16.mxu0 0
    %526 = vmatmul.mubr.bf16.gmra.mrb[0].mxu0 %v488
    %v527 = vpop.f32.mrb[0].mxu0
    %v528 = vadd.f32 0.0, %v527
    %v529 = vpop.f32.mrb[0].mxu0
    %v530 = vpop.f32.mrb[0].mxu0
    %v531 = vpop.f32.mrb[0].mxu0
    %532 = vdwg.mxu0
    %v534 = vsel %vm256, %v238, 0
    %v537 = vsel %vm256, %v246, 0
    %539 = vmatprep.subr.bf16.mxu0 0
    %540 = vmatpush1.bf16.xpose.msra.mxu0 %v537
    %541 = vmatprep.subr.bf16.mxu0 0
    %542 = vmatpush1.bf16.xpose.msra.mxu0 0
    %543 = vmatprep.subr.bf16.mxu0 0
    %544 = vmatpush1.bf16.xpose.msra.mxu0 0
    %545 = vmatprep.subr.bf16.mxu0 0
    %546 = vmatpush1.bf16.xpose.msra.mxu0 0
    %547 = vmatprep.subr.bf16.mxu0 0
    %548 = vmatpush1.bf16.xpose.msra.mxu0 0
    %549 = vmatprep.subr.bf16.mxu0 0
    %550 = vmatpush1.bf16.xpose.msra.mxu0 0
    %551 = vmatprep.subr.bf16.mxu0 0
    %552 = vmatpush1.bf16.xpose.msra.mxu0 0
    %553 = vmatprep.subr.bf16.mxu0 0
    %554 = vmatpush1.bf16.xpose.msra.mxu0 0
    %555 = vmatprep.subr.bf16.mxu0 0
    %556 = vmatpush1.bf16.xpose.msra.mxu0 0
    %557 = vmatprep.subr.bf16.mxu0 0
    %558 = vmatpush1.bf16.xpose.msra.mxu0 0
    %559 = vmatprep.subr.bf16.mxu0 0
    %560 = vmatpush1.bf16.xpose.msra.mxu0 0
    %561 = vmatprep.subr.bf16.mxu0 0
    %562 = vmatpush1.bf16.xpose.msra.mxu0 0
    %563 = vmatprep.subr.bf16.mxu0 0
    %564 = vmatpush1.bf16.xpose.msra.mxu0 0
    %565 = vmatprep.subr.bf16.mxu0 0
    %566 = vmatpush1.bf16.xpose.msra.mxu0 0
    %567 = vmatprep.subr.bf16.mxu0 0
    %568 = vmatpush1.bf16.xpose.msra.mxu0 0
    %569 = vmatprep.subr.bf16.mxu0 0
    %570 = vmatpush1.bf16.xpose.msra.mxu0 0
    %571 = vmatprep.mubr.bf16.mxu0 0
    %572 = vmatmul.mubr.bf16.gmra.mrb[0].mxu0 %v534
    %v573 = vpop.f32.mrb[0].mxu0
    %v574 = vadd.f32 0.0, %v573
    %v575 = vpop.f32.mrb[0].mxu0
    %v576 = vpop.f32.mrb[0].mxu0
    %v577 = vpop.f32.mrb[0].mxu0
    %578 = vdwg.mxu0
    %v580 = vsel %vm256, %v239, 0
    %v583 = vsel %vm256, %v247, 0
    %585 = vmatprep.subr.bf16.mxu0 0
    %586 = vmatpush1.bf16.xpose.msra.mxu0 %v583
    %587 = vmatprep.subr.bf16.mxu0 0
    %588 = vmatpush1.bf16.xpose.msra.mxu0 0
    %589 = vmatprep.subr.bf16.mxu0 0
    %590 = vmatpush1.bf16.xpose.msra.mxu0 0
    %591 = vmatprep.subr.bf16.mxu0 0
    %592 = vmatpush1.bf16.xpose.msra.mxu0 0
    %593 = vmatprep.subr.bf16.mxu0 0
    %594 = vmatpush1.bf16.xpose.msra.mxu0 0
    %595 = vmatprep.subr.bf16.mxu0 0
    %596 = vmatpush1.bf16.xpose.msra.mxu0 0
    %597 = vmatprep.subr.bf16.mxu0 0
    %598 = vmatpush1.bf16.xpose.msra.mxu0 0
    %599 = vmatprep.subr.bf16.mxu0 0
    %600 = vmatpush1.bf16.xpose.msra.mxu0 0
    %601 = vmatprep.subr.bf16.mxu0 0
    %602 = vmatpush1.bf16.xpose.msra.mxu0 0
    %603 = vmatprep.subr.bf16.mxu0 0
    %604 = vmatpush1.bf16.xpose.msra.mxu0 0
    %605 = vmatprep.subr.bf16.mxu0 0
    %606 = vmatpush1.bf16.xpose.msra.mxu0 0
    %607 = vmatprep.subr.bf16.mxu0 0
    %608 = vmatpush1.bf16.xpose.msra.mxu0 0
    %609 = vmatprep.subr.bf16.mxu0 0
    %610 = vmatpush1.bf16.xpose.msra.mxu0 0
    %611 = vmatprep.subr.bf16.mxu0 0
    %612 = vmatpush1.bf16.xpose.msra.mxu0 0
    %613 = vmatprep.subr.bf16.mxu0 0
    %614 = vmatpush1.bf16.xpose.msra.mxu0 0
    %615 = vmatprep.subr.bf16.mxu0 0
    %616 = vmatpush1.bf16.xpose.msra.mxu0 0
    %617 = vmatprep.mubr.bf16.mxu0 0
    %618 = vmatmul.mubr.bf16.gmra.mrb[0].mxu0 %v580
    %v619 = vpop.f32.mrb[0].mxu0
    %v620 = vadd.f32 0.0, %v619
    %v621 = vpop.f32.mrb[0].mxu0
    %v622 = vpop.f32.mrb[0].mxu0
    %v623 = vpop.f32.mrb[0].mxu0
    %624 = vdwg.mxu0
    %v625 = vmul.f32 %v298, 0.17677669
    %v626 = vmul.f32 %v344, 0.17677669
    %v627 = vmul.f32 %v390, 0.17677669
    %v628 = vmul.f32 %v436, 0.17677669
    %v629 = vmul.f32 %v482, 0.17677669
    %v630 = vmul.f32 %v528, 0.17677669
    %v631 = vmul.f32 %v574, 0.17677669
    %v632 = vmul.f32 %v620, 0.17677669
    %v633 = vsel %vm231, 1, 0
    %vm634 = vcmp.eq.s32.totalorder %v633, 1
    %v635 = vsel %vm634, %v625, -1e+30
    %v636 = vsel %vm634, %v626, -1e+30
    %v637 = vsel %vm634, %v627, -1e+30
    %v638 = vsel %vm634, %v628, -1e+30
    %v639 = vsel %vm634, %v629, -1e+30
    %v640 = vsel %vm634, %v630, -1e+30
    %v641 = vsel %vm634, %v631, -1e+30
    %v642 = vsel %vm634, %v632, -1e+30
    %vm643 = vcmask 36864
    %v644 = vsel %vm643, %v635, -inf
    %645 = vmax.xlane.f32.xlu0 %v644
    %v646 = vpop.xlane.xlu0 %645
    %v647 = vsel %vm643, %v636, -inf
    %648 = vmax.xlane.f32.xlu0 %v647
    %v649 = vpop.xlane.xlu0 %648
    %v650 = vsel %vm643, %v637, -inf
    %651 = vmax.xlane.f32.xlu0 %v650
    %v652 = vpop.xlane.xlu0 %651
    %v653 = vsel %vm643, %v638, -inf
    %654 = vmax.xlane.f32.xlu0 %v653
    %v655 = vpop.xlane.xlu0 %654
    %v656 = vsel %vm643, %v639, -inf
    %657 = vmax.xlane.f32.xlu0 %v656
    %v658 = vpop.xlane.xlu0 %657
    %v659 = vsel %vm643, %v640, -inf
    %660 = vmax.xlane.f32.xlu0 %v659
    %v661 = vpop.xlane.xlu0 %660
    %v662 = vsel %vm643, %v641, -inf
    %663 = vmax.xlane.f32.xlu0 %v662
    %v664 = vpop.xlane.xlu0 %663
    %v665 = vsel %vm643, %v642, -inf
    %666 = vmax.xlane.f32.xlu0 %v665
    %v667 = vpop.xlane.xlu0 %666
    %v668 = vsub.f32 %v635, %v646
    %v669 = vsub.f32 %v636, %v649
    %v670 = vsub.f32 %v637, %v652
    %v671 = vsub.f32 %v638, %v655
    %v672 = vsub.f32 %v639, %v658
    %v673 = vsub.f32 %v640, %v661
    %v674 = vsub.f32 %v641, %v664
    %v675 = vsub.f32 %v642, %v667
    %v676 = vmul.f32 %v668, 1.442695
    %v677 = vpow.pop %v676
    %v678 = vmul.f32 %v669, 1.442695
    %v679 = vpow.pop %v678
    %v680 = vmul.f32 %v670, 1.442695
    %v681 = vpow.pop %v680
    %v682 = vmul.f32 %v671, 1.442695
    %v683 = vpow.pop %v682
    %v684 = vmul.f32 %v672, 1.442695
    %v685 = vpow.pop %v684
    %v686 = vmul.f32 %v673, 1.442695
    %v687 = vpow.pop %v686
    %v688 = vmul.f32 %v674, 1.442695
    %v689 = vpow.pop %v688
    %v690 = vmul.f32 %v675, 1.442695
    %v691 = vpow.pop %v690
    %v692 = vsel %vm643, %v677, 0.0
    %693 = vadd.xlane.f32.xlu0 %v692
    %v694 = vpop.xlane.xlu0 %693
    %v695 = vsel %vm643, %v679, 0.0
    %696 = vadd.xlane.f32.xlu0 %v695
    %v697 = vpop.xlane.xlu0 %696
    %v698 = vsel %vm643, %v681, 0.0
    %699 = vadd.xlane.f32.xlu0 %v698
    %v700 = vpop.xlane.xlu0 %699
    %v701 = vsel %vm643, %v683, 0.0
    %702 = vadd.xlane.f32.xlu0 %v701
    %v703 = vpop.xlane.xlu0 %702
    %v704 = vsel %vm643, %v685, 0.0
    %705 = vadd.xlane.f32.xlu0 %v704
    %v706 = vpop.xlane.xlu0 %705
    %v707 = vsel %vm643, %v687, 0.0
    %708 = vadd.xlane.f32.xlu0 %v707
    %v709 = vpop.xlane.xlu0 %708
    %v710 = vsel %vm643, %v689, 0.0
    %711 = vadd.xlane.f32.xlu0 %v710
    %v712 = vpop.xlane.xlu0 %711
    %v713 = vsel %vm643, %v691, 0.0
    %714 = vadd.xlane.f32.xlu0 %v713
    %v715 = vpop.xlane.xlu0 %714
    %v716 = vrcp.pop %v694
    %v717 = vrcp.pop %v697
    %v718 = vrcp.pop %v700
    %v719 = vrcp.pop %v703
    %v720 = vrcp.pop %v706
    %v721 = vrcp.pop %v709
    %v722 = vrcp.pop %v712
    %v723 = vrcp.pop %v715
    %v724 = vmul.f32 %v677, %v716
    %v725 = vmul.f32 %v679, %v717
    %v726 = vmul.f32 %v681, %v718
    %v727 = vmul.f32 %v683, %v719
    %v728 = vmul.f32 %v685, %v720
    %v729 = vmul.f32 %v687, %v721
    %v730 = vmul.f32 %v689, %v722
    %v731 = vmul.f32 %v691, %v723
    %v732 = vpack.c.bf16 %v724, %v724
    %v733 = vpack.c.bf16 %v725, %v725
    %v734 = vpack.c.bf16 %v726, %v726
    %v735 = vpack.c.bf16 %v727, %v727
    %v736 = vpack.c.bf16 %v728, %v728
    %v737 = vpack.c.bf16 %v729, %v729
    %v738 = vpack.c.bf16 %v730, %v730
    %v739 = vpack.c.bf16 %v731, %v731
    %vm740 = vcmask 39936
    %v742 = vsel %vm740, %v732, 0
    %vm744 = vcmask 1041408
    %vm745 = vcmask 1042432
    %v746 = vsel %vm744, 4294967295, 65535
    %v747 = vsel %vm745, %v746, 0
    %v749 = vand.u32 %v248, %v747
    %751 = vmatprep.subr.bf16.mxu0 0
    %752 = vmatpush1.bf16.msra.mxu0 %v749
    %753 = vmatprep.subr.bf16.mxu0 0
    %754 = vmatpush1.bf16.msra.mxu0 0
    %755 = vmatprep.subr.bf16.mxu0 0
    %756 = vmatpush1.bf16.msra.mxu0 0
    %757 = vmatprep.subr.bf16.mxu0 0
    %758 = vmatpush1.bf16.msra.mxu0 0
    %759 = vmatprep.subr.bf16.mxu0 0
    %760 = vmatpush1.bf16.msra.mxu0 0
    %761 = vmatprep.subr.bf16.mxu0 0
    %762 = vmatpush1.bf16.msra.mxu0 0
    %763 = vmatprep.subr.bf16.mxu0 0
    %764 = vmatpush1.bf16.msra.mxu0 0
    %765 = vmatprep.subr.bf16.mxu0 0
    %766 = vmatpush1.bf16.msra.mxu0 0
    %767 = vmatprep.subr.bf16.mxu0 0
    %768 = vmatpush1.bf16.msra.mxu0 0
    %769 = vmatprep.subr.bf16.mxu0 0
    %770 = vmatpush1.bf16.msra.mxu0 0
    %771 = vmatprep.subr.bf16.mxu0 0
    %772 = vmatpush1.bf16.msra.mxu0 0
    %773 = vmatprep.subr.bf16.mxu0 0
    %774 = vmatpush1.bf16.msra.mxu0 0
    %775 = vmatprep.subr.bf16.mxu0 0
    %776 = vmatpush1.bf16.msra.mxu0 0
    %777 = vmatprep.subr.bf16.mxu0 0
    %778 = vmatpush1.bf16.msra.mxu0 0
    %779 = vmatprep.subr.bf16.mxu0 0
    %780 = vmatpush1.bf16.msra.mxu0 0
    %781 = vmatprep.subr.bf16.mxu0 0
    %782 = vmatpush1.bf16.msra.mxu0 0
    %783 = vmatprep.mubr.bf16.mxu0 0
    %784 = vmatmul.mubr.bf16.gmra.mrb[0].mxu0 %v742
    %v785 = vpop.f32.mrb[0].mxu0
    %v786 = vadd.f32 0.0, %v785
    %v787 = vpop.f32.mrb[0].mxu0
    %v788 = vpop.f32.mrb[0].mxu0
    %v789 = vpop.f32.mrb[0].mxu0
    %790 = vdwg.mxu0
    %v792 = vsel %vm740, %v733, 0
    %v795 = vand.u32 %v249, %v747
    %797 = vmatprep.subr.bf16.mxu0 0
    %798 = vmatpush1.bf16.msra.mxu0 %v795
    %799 = vmatprep.subr.bf16.mxu0 0
    %800 = vmatpush1.bf16.msra.mxu0 0
    %801 = vmatprep.subr.bf16.mxu0 0
    %802 = vmatpush1.bf16.msra.mxu0 0
    %803 = vmatprep.subr.bf16.mxu0 0
    %804 = vmatpush1.bf16.msra.mxu0 0
    %805 = vmatprep.subr.bf16.mxu0 0
    %806 = vmatpush1.bf16.msra.mxu0 0
    %807 = vmatprep.subr.bf16.mxu0 0
    %808 = vmatpush1.bf16.msra.mxu0 0
    %809 = vmatprep.subr.bf16.mxu0 0
    %810 = vmatpush1.bf16.msra.mxu0 0
    %811 = vmatprep.subr.bf16.mxu0 0
    %812 = vmatpush1.bf16.msra.mxu0 0
    %813 = vmatprep.subr.bf16.mxu0 0
    %814 = vmatpush1.bf16.msra.mxu0 0
    %815 = vmatprep.subr.bf16.mxu0 0
    %816 = vmatpush1.bf16.msra.mxu0 0
    %817 = vmatprep.subr.bf16.mxu0 0
    %818 = vmatpush1.bf16.msra.mxu0 0
    %819 = vmatprep.subr.bf16.mxu0 0
    %820 = vmatpush1.bf16.msra.mxu0 0
    %821 = vmatprep.subr.bf16.mxu0 0
    %822 = vmatpush1.bf16.msra.mxu0 0
    %823 = vmatprep.subr.bf16.mxu0 0
    %824 = vmatpush1.bf16.msra.mxu0 0
    %825 = vmatprep.subr.bf16.mxu0 0
    %826 = vmatpush1.bf16.msra.mxu0 0
    %827 = vmatprep.subr.bf16.mxu0 0
    %828 = vmatpush1.bf16.msra.mxu0 0
    %829 = vmatprep.mubr.bf16.mxu0 0
    %830 = vmatmul.mubr.bf16.gmra.mrb[0].mxu0 %v792
    %v831 = vpop.f32.mrb[0].mxu0
    %v832 = vadd.f32 0.0, %v831
    %v833 = vpop.f32.mrb[0].mxu0
    %v834 = vpop.f32.mrb[0].mxu0
    %v835 = vpop.f32.mrb[0].mxu0
    %836 = vdwg.mxu0
    %v838 = vsel %vm740, %v734, 0
    %v841 = vand.u32 %v250, %v747
    %843 = vmatprep.subr.bf16.mxu0 0
    %844 = vmatpush1.bf16.msra.mxu0 %v841
    %845 = vmatprep.subr.bf16.mxu0 0
    %846 = vmatpush1.bf16.msra.mxu0 0
    %847 = vmatprep.subr.bf16.mxu0 0
    %848 = vmatpush1.bf16.msra.mxu0 0
    %849 = vmatprep.subr.bf16.mxu0 0
    %850 = vmatpush1.bf16.msra.mxu0 0
    %851 = vmatprep.subr.bf16.mxu0 0
    %852 = vmatpush1.bf16.msra.mxu0 0
    %853 = vmatprep.subr.bf16.mxu0 0
    %854 = vmatpush1.bf16.msra.mxu0 0
    %855 = vmatprep.subr.bf16.mxu0 0
    %856 = vmatpush1.bf16.msra.mxu0 0
    %857 = vmatprep.subr.bf16.mxu0 0
    %858 = vmatpush1.bf16.msra.mxu0 0
    %859 = vmatprep.subr.bf16.mxu0 0
    %860 = vmatpush1.bf16.msra.mxu0 0
    %861 = vmatprep.subr.bf16.mxu0 0
    %862 = vmatpush1.bf16.msra.mxu0 0
    %863 = vmatprep.subr.bf16.mxu0 0
    %864 = vmatpush1.bf16.msra.mxu0 0
    %865 = vmatprep.subr.bf16.mxu0 0
    %866 = vmatpush1.bf16.msra.mxu0 0
    %867 = vmatprep.subr.bf16.mxu0 0
    %868 = vmatpush1.bf16.msra.mxu0 0
    %869 = vmatprep.subr.bf16.mxu0 0
    %870 = vmatpush1.bf16.msra.mxu0 0
    %871 = vmatprep.subr.bf16.mxu0 0
    %872 = vmatpush1.bf16.msra.mxu0 0
    %873 = vmatprep.subr.bf16.mxu0 0
    %874 = vmatpush1.bf16.msra.mxu0 0
    %875 = vmatprep.mubr.bf16.mxu0 0
    %876 = vmatmul.mubr.bf16.gmra.mrb[0].mxu0 %v838
    %v877 = vpop.f32.mrb[0].mxu0
    %v878 = vadd.f32 0.0, %v877
    %v879 = vpop.f32.mrb[0].mxu0
    %v880 = vpop.f32.mrb[0].mxu0
    %v881 = vpop.f32.mrb[0].mxu0
    %882 = vdwg.mxu0
    %v884 = vsel %vm740, %v735, 0
    %v887 = vand.u32 %v251, %v747
    %889 = vmatprep.subr.bf16.mxu0 0
    %890 = vmatpush1.bf16.msra.mxu0 %v887
    %891 = vmatprep.subr.bf16.mxu0 0
    %892 = vmatpush1.bf16.msra.mxu0 0
    %893 = vmatprep.subr.bf16.mxu0 0
    %894 = vmatpush1.bf16.msra.mxu0 0
    %895 = vmatprep.subr.bf16.mxu0 0
    %896 = vmatpush1.bf16.msra.mxu0 0
    %897 = vmatprep.subr.bf16.mxu0 0
    %898 = vmatpush1.bf16.msra.mxu0 0
    %899 = vmatprep.subr.bf16.mxu0 0
    %900 = vmatpush1.bf16.msra.mxu0 0
    %901 = vmatprep.subr.bf16.mxu0 0
    %902 = vmatpush1.bf16.msra.mxu0 0
    %903 = vmatprep.subr.bf16.mxu0 0
    %904 = vmatpush1.bf16.msra.mxu0 0
    %905 = vmatprep.subr.bf16.mxu0 0
    %906 = vmatpush1.bf16.msra.mxu0 0
    %907 = vmatprep.subr.bf16.mxu0 0
    %908 = vmatpush1.bf16.msra.mxu0 0
    %909 = vmatprep.subr.bf16.mxu0 0
    %910 = vmatpush1.bf16.msra.mxu0 0
    %911 = vmatprep.subr.bf16.mxu0 0
    %912 = vmatpush1.bf16.msra.mxu0 0
    %913 = vmatprep.subr.bf16.mxu0 0
    %914 = vmatpush1.bf16.msra.mxu0 0
    %915 = vmatprep.subr.bf16.mxu0 0
    %916 = vmatpush1.bf16.msra.mxu0 0
    %917 = vmatprep.subr.bf16.mxu0 0
    %918 = vmatpush1.bf16.msra.mxu0 0
    %919 = vmatprep.subr.bf16.mxu0 0
    %920 = vmatpush1.bf16.msra.mxu0 0
    %921 = vmatprep.mubr.bf16.mxu0 0
    %922 = vmatmul.mubr.bf16.gmra.mrb[0].mxu0 %v884
    %v923 = vpop.f32.mrb[0].mxu0
    %v924 = vadd.f32 0.0, %v923
    %v925 = vpop.f32.mrb[0].mxu0
    %v926 = vpop.f32.mrb[0].mxu0
    %v927 = vpop.f32.mrb[0].mxu0
    %928 = vdwg.mxu0
    %v930 = vsel %vm740, %v736, 0
    %v933 = vand.u32 %v252, %v747
    %935 = vmatprep.subr.bf16.mxu0 0
    %936 = vmatpush1.bf16.msra.mxu0 %v933
    %937 = vmatprep.subr.bf16.mxu0 0
    %938 = vmatpush1.bf16.msra.mxu0 0
    %939 = vmatprep.subr.bf16.mxu0 0
    %940 = vmatpush1.bf16.msra.mxu0 0
    %941 = vmatprep.subr.bf16.mxu0 0
    %942 = vmatpush1.bf16.msra.mxu0 0
    %943 = vmatprep.subr.bf16.mxu0 0
    %944 = vmatpush1.bf16.msra.mxu0 0
    %945 = vmatprep.subr.bf16.mxu0 0
    %946 = vmatpush1.bf16.msra.mxu0 0
    %947 = vmatprep.subr.bf16.mxu0 0
    %948 = vmatpush1.bf16.msra.mxu0 0
    %949 = vmatprep.subr.bf16.mxu0 0
    %950 = vmatpush1.bf16.msra.mxu0 0
    %951 = vmatprep.subr.bf16.mxu0 0
    %952 = vmatpush1.bf16.msra.mxu0 0
    %953 = vmatprep.subr.bf16.mxu0 0
    %954 = vmatpush1.bf16.msra.mxu0 0
    %955 = vmatprep.subr.bf16.mxu0 0
    %956 = vmatpush1.bf16.msra.mxu0 0
    %957 = vmatprep.subr.bf16.mxu0 0
    %958 = vmatpush1.bf16.msra.mxu0 0
    %959 = vmatprep.subr.bf16.mxu0 0
    %960 = vmatpush1.bf16.msra.mxu0 0
    %961 = vmatprep.subr.bf16.mxu0 0
    %962 = vmatpush1.bf16.msra.mxu0 0
    %963 = vmatprep.subr.bf16.mxu0 0
    %964 = vmatpush1.bf16.msra.mxu0 0
    %965 = vmatprep.subr.bf16.mxu0 0
    %966 = vmatpush1.bf16.msra.mxu0 0
    %967 = vmatprep.mubr.bf16.mxu0 0
    %968 = vmatmul.mubr.bf16.gmra.mrb[0].mxu0 %v930
    %v969 = vpop.f32.mrb[0].mxu0
    %v970 = vadd.f32 0.0, %v969
    %v971 = vpop.f32.mrb[0].mxu0
    %v972 = vpop.f32.mrb[0].mxu0
    %v973 = vpop.f32.mrb[0].mxu0
    %974 = vdwg.mxu0
    %v976 = vsel %vm740, %v737, 0
    %v979 = vand.u32 %v253, %v747
    %981 = vmatprep.subr.bf16.mxu0 0
    %982 = vmatpush1.bf16.msra.mxu0 %v979
    %983 = vmatprep.subr.bf16.mxu0 0
    %984 = vmatpush1.bf16.msra.mxu0 0
    %985 = vmatprep.subr.bf16.mxu0 0
    %986 = vmatpush1.bf16.msra.mxu0 0
    %987 = vmatprep.subr.bf16.mxu0 0
    %988 = vmatpush1.bf16.msra.mxu0 0
    %989 = vmatprep.subr.bf16.mxu0 0
    %990 = vmatpush1.bf16.msra.mxu0 0
    %991 = vmatprep.subr.bf16.mxu0 0
    %992 = vmatpush1.bf16.msra.mxu0 0
    %993 = vmatprep.subr.bf16.mxu0 0
    %994 = vmatpush1.bf16.msra.mxu0 0
    %995 = vmatprep.subr.bf16.mxu0 0
    %996 = vmatpush1.bf16.msra.mxu0 0
    %997 = vmatprep.subr.bf16.mxu0 0
    %998 = vmatpush1.bf16.msra.mxu0 0
    %999 = vmatprep.subr.bf16.mxu0 0
    %1000 = vmatpush1.bf16.msra.mxu0 0
    %1001 = vmatprep.subr.bf16.mxu0 0
    %1002 = vmatpush1.bf16.msra.mxu0 0
    %1003 = vmatprep.subr.bf16.mxu0 0
    %1004 = vmatpush1.bf16.msra.mxu0 0
    %1005 = vmatprep.subr.bf16.mxu0 0
    %1006 = vmatpush1.bf16.msra.mxu0 0
    %1007 = vmatprep.subr.bf16.mxu0 0
    %1008 = vmatpush1.bf16.msra.mxu0 0
    %1009 = vmatprep.subr.bf16.mxu0 0
    %1010 = vmatpush1.bf16.msra.mxu0 0
    %1011 = vmatprep.subr.bf16.mxu0 0
    %1012 = vmatpush1.bf16.msra.mxu0 0
    %1013 = vmatprep.mubr.bf16.mxu0 0
    %1014 = vmatmul.mubr.bf16.gmra.mrb[0].mxu0 %v976
    %v1015 = vpop.f32.mrb[0].mxu0
    %v1016 = vadd.f32 0.0, %v1015
    %v1017 = vpop.f32.mrb[0].mxu0
    %v1018 = vpop.f32.mrb[0].mxu0
    %v1019 = vpop.f32.mrb[0].mxu0
    %1020 = vdwg.mxu0
    %v1022 = vsel %vm740, %v738, 0
    %v1025 = vand.u32 %v254, %v747
    %1027 = vmatprep.subr.bf16.mxu0 0
    %1028 = vmatpush1.bf16.msra.mxu0 %v1025
    %1029 = vmatprep.subr.bf16.mxu0 0
    %1030 = vmatpush1.bf16.msra.mxu0 0
    %1031 = vmatprep.subr.bf16.mxu0 0
    %1032 = vmatpush1.bf16.msra.mxu0 0
    %1033 = vmatprep.subr.bf16.mxu0 0
    %1034 = vmatpush1.bf16.msra.mxu0 0
    %1035 = vmatprep.subr.bf16.mxu0 0
    %1036 = vmatpush1.bf16.msra.mxu0 0
    %1037 = vmatprep.subr.bf16.mxu0 0
    %1038 = vmatpush1.bf16.msra.mxu0 0
    %1039 = vmatprep.subr.bf16.mxu0 0
    %1040 = vmatpush1.bf16.msra.mxu0 0
    %1041 = vmatprep.subr.bf16.mxu0 0
    %1042 = vmatpush1.bf16.msra.mxu0 0
    %1043 = vmatprep.subr.bf16.mxu0 0
    %1044 = vmatpush1.bf16.msra.mxu0 0
    %1045 = vmatprep.subr.bf16.mxu0 0
    %1046 = vmatpush1.bf16.msra.mxu0 0
    %1047 = vmatprep.subr.bf16.mxu0 0
    %1048 = vmatpush1.bf16.msra.mxu0 0
    %1049 = vmatprep.subr.bf16.mxu0 0
    %1050 = vmatpush1.bf16.msra.mxu0 0
    %1051 = vmatprep.subr.bf16.mxu0 0
    %1052 = vmatpush1.bf16.msra.mxu0 0
    %1053 = vmatprep.subr.bf16.mxu0 0
    %1054 = vmatpush1.bf16.msra.mxu0 0
    %1055 = vmatprep.subr.bf16.mxu0 0
    %1056 = vmatpush1.bf16.msra.mxu0 0
    %1057 = vmatprep.subr.bf16.mxu0 0
    %1058 = vmatpush1.bf16.msra.mxu0 0
    %1059 = vmatprep.mubr.bf16.mxu0 0
    %1060 = vmatmul.mubr.bf16.gmra.mrb[0].mxu0 %v1022
    %v1061 = vpop.f32.mrb[0].mxu0
    %v1062 = vadd.f32 0.0, %v1061
    %v1063 = vpop.f32.mrb[0].mxu0
    %v1064 = vpop.f32.mrb[0].mxu0
    %v1065 = vpop.f32.mrb[0].mxu0
    %1066 = vdwg.mxu0
    %v1068 = vsel %vm740, %v739, 0
    %v1071 = vand.u32 %v255, %v747
    %1073 = vmatprep.subr.bf16.mxu0 0
    %1074 = vmatpush1.bf16.msra.mxu0 %v1071
    %1075 = vmatprep.subr.bf16.mxu0 0
    %1076 = vmatpush1.bf16.msra.mxu0 0
    %1077 = vmatprep.subr.bf16.mxu0 0
    %1078 = vmatpush1.bf16.msra.mxu0 0
    %1079 = vmatprep.subr.bf16.mxu0 0
    %1080 = vmatpush1.bf16.msra.mxu0 0
    %1081 = vmatprep.subr.bf16.mxu0 0
    %1082 = vmatpush1.bf16.msra.mxu0 0
    %1083 = vmatprep.subr.bf16.mxu0 0
    %1084 = vmatpush1.bf16.msra.mxu0 0
    %1085 = vmatprep.subr.bf16.mxu0 0
    %1086 = vmatpush1.bf16.msra.mxu0 0
    %1087 = vmatprep.subr.bf16.mxu0 0
    %1088 = vmatpush1.bf16.msra.mxu0 0
    %1089 = vmatprep.subr.bf16.mxu0 0
    %1090 = vmatpush1.bf16.msra.mxu0 0
    %1091 = vmatprep.subr.bf16.mxu0 0
    %1092 = vmatpush1.bf16.msra.mxu0 0
    %1093 = vmatprep.subr.bf16.mxu0 0
    %1094 = vmatpush1.bf16.msra.mxu0 0
    %1095 = vmatprep.subr.bf16.mxu0 0
    %1096 = vmatpush1.bf16.msra.mxu0 0
    %1097 = vmatprep.subr.bf16.mxu0 0
    %1098 = vmatpush1.bf16.msra.mxu0 0
    %1099 = vmatprep.subr.bf16.mxu0 0
    %1100 = vmatpush1.bf16.msra.mxu0 0
    %1101 = vmatprep.subr.bf16.mxu0 0
    %1102 = vmatpush1.bf16.msra.mxu0 0
    %1103 = vmatprep.subr.bf16.mxu0 0
    %1104 = vmatpush1.bf16.msra.mxu0 0
    %1105 = vmatprep.mubr.bf16.mxu0 0
    %1106 = vmatmul.mubr.bf16.gmra.mrb[0].mxu0 %v1068
    %v1107 = vpop.f32.mrb[0].mxu0
    %v1108 = vadd.f32 0.0, %v1107
    %v1109 = vpop.f32.mrb[0].mxu0
    %v1110 = vpop.f32.mrb[0].mxu0
    %v1111 = vpop.f32.mrb[0].mxu0
    %1112 = vdwg.mxu0
    %1114 = vrot.lane.b32.xlu0 %v232, 96
    %v1115 = vpop.permute.xlu0 %1114
    %1117 = vrot.lane.b32.xlu0 %v240, 96
    %v1118 = vpop.permute.xlu0 %1117
    %v1120 = vsel %vm256, %v1115, 0
    %v1123 = vsel %vm256, %v1118, 0
    %1125 = vmatprep.subr.bf16.mxu0 0
    %1126 = vmatpush1.bf16.xpose.msra.mxu0 %v1123
    %1127 = vmatprep.subr.bf16.mxu0 0
    %1128 = vmatpush1.bf16.xpose.msra.mxu0 0
    %1129 = vmatprep.subr.bf16.mxu0 0
    %1130 = vmatpush1.bf16.xpose.msra.mxu0 0
    %1131 = vmatprep.subr.bf16.mxu0 0
    %1132 = vmatpush1.bf16.xpose.msra.mxu0 0
    %1133 = vmatprep.subr.bf16.mxu0 0
    %1134 = vmatpush1.bf16.xpose.msra.mxu0 0
    %1135 = vmatprep.subr.bf16.mxu0 0
    %1136 = vmatpush1.bf16.xpose.msra.mxu0 0
    %1137 = vmatprep.subr.bf16.mxu0 0
    %1138 = vmatpush1.bf16.xpose.msra.mxu0 0
    %1139 = vmatprep.subr.bf16.mxu0 0
    %1140 = vmatpush1.bf16.xpose.msra.mxu0 0
    %1141 = vmatprep.subr.bf16.mxu0 0
    %1142 = vmatpush1.bf16.xpose.msra.mxu0 0
    %1143 = vmatprep.subr.bf16.mxu0 0
    %1144 = vmatpush1.bf16.xpose.msra.mxu0 0
    %1145 = vmatprep.subr.bf16.mxu0 0
    %1146 = vmatpush1.bf16.xpose.msra.mxu0 0
    %1147 = vmatprep.subr.bf16.mxu0 0
    %1148 = vmatpush1.bf16.xpose.msra.mxu0 0
    %1149 = vmatprep.subr.bf16.mxu0 0
    %1150 = vmatpush1.bf16.xpose.msra.mxu0 0
    %1151 = vmatprep.subr.bf16.mxu0 0
    %1152 = vmatpush1.bf16.xpose.msra.mxu0 0
    %1153 = vmatprep.subr.bf16.mxu0 0
    %1154 = vmatpush1.bf16.xpose.msra.mxu0 0
    %1155 = vmatprep.subr.bf16.mxu0 0
    %1156 = vmatpush1.bf16.xpose.msra.mxu0 0
    %1157 = vmatprep.mubr.bf16.mxu0 0
    %1158 = vmatmul.mubr.bf16.gmra.mrb[0].mxu0 %v1120
    %v1159 = vpop.f32.mrb[0].mxu0
    %v1160 = vadd.f32 0.0, %v1159
    %v1161 = vpop.f32.mrb[0].mxu0
    %v1162 = vpop.f32.mrb[0].mxu0
    %v1163 = vpop.f32.mrb[0].mxu0
    %1164 = vdwg.mxu0
    %1166 = vrot.lane.b32.xlu0 %v233, 96
    %v1167 = vpop.permute.xlu0 %1166
    %1169 = vrot.lane.b32.xlu0 %v241, 96
    %v1170 = vpop.permute.xlu0 %1169
    %v1172 = vsel %vm256, %v1167, 0
    %v1175 = vsel %vm256, %v1170, 0
    %1177 = vmatprep.subr.bf16.mxu0 0
    %1178 = vmatpush1.bf16.xpose.msra.mxu0 %v1175
    %1179 = vmatprep.subr.bf16.mxu0 0
    %1180 = vmatpush1.bf16.xpose.msra.mxu0 0
    %1181 = vmatprep.subr.bf16.mxu0 0
    %1182 = vmatpush1.bf16.xpose.msra.mxu0 0
    %1183 = vmatprep.subr.bf16.mxu0 0
    %1184 = vmatpush1.bf16.xpose.msra.mxu0 0
    %1185 = vmatprep.subr.bf16.mxu0 0
    %1186 = vmatpush1.bf16.xpose.msra.mxu0 0
    %1187 = vmatprep.subr.bf16.mxu0 0
    %1188 = vmatpush1.bf16.xpose.msra.mxu0 0
    %1189 = vmatprep.subr.bf16.mxu0 0
    %1190 = vmatpush1.bf16.xpose.msra.mxu0 0
    %1191 = vmatprep.subr.bf16.mxu0 0
    %1192 = vmatpush1.bf16.xpose.msra.mxu0 0
    %1193 = vmatprep.subr.bf16.mxu0 0
    %1194 = vmatpush1.bf16.xpose.msra.mxu0 0
    %1195 = vmatprep.subr.bf16.mxu0 0
    %1196 = vmatpush1.bf16.xpose.msra.mxu0 0
    %1197 = vmatprep.subr.bf16.mxu0 0
    %1198 = vmatpush1.bf16.xpose.msra.mxu0 0
    %1199 = vmatprep.subr.bf16.mxu0 0
    %1200 = vmatpush1.bf16.xpose.msra.mxu0 0
    %1201 = vmatprep.subr.bf16.mxu0 0
    %1202 = vmatpush1.bf16.xpose.msra.mxu0 0
    %1203 = vmatprep.subr.bf16.mxu0 0
    %1204 = vmatpush1.bf16.xpose.msra.mxu0 0
    %1205 = vmatprep.subr.bf16.mxu0 0
    %1206 = vmatpush1.bf16.xpose.msra.mxu0 0
    %1207 = vmatprep.subr.bf16.mxu0 0
    %1208 = vmatpush1.bf16.xpose.msra.mxu0 0
    %1209 = vmatprep.mubr.bf16.mxu0 0
    %1210 = vmatmul.mubr.bf16.gmra.mrb[0].mxu0 %v1172
    %v1211 = vpop.f32.mrb[0].mxu0
    %v1212 = vadd.f32 0.0, %v1211
    %v1213 = vpop.f32.mrb[0].mxu0
    %v1214 = vpop.f32.mrb[0].mxu0
    %v1215 = vpop.f32.mrb[0].mxu0
    %1216 = vdwg.mxu0
    %1218 = vrot.lane.b32.xlu0 %v234, 96
    %v1219 = vpop.permute.xlu0 %1218
    %1221 = vrot.lane.b32.xlu0 %v242, 96
    %v1222 = vpop.permute.xlu0 %1221
    %v1224 = vsel %vm256, %v1219, 0
    %v1227 = vsel %vm256, %v1222, 0
    %1229 = vmatprep.subr.bf16.mxu0 0
    %1230 = vmatpush1.bf16.xpose.msra.mxu0 %v1227
    %1231 = vmatprep.subr.bf16.mxu0 0
    %1232 = vmatpush1.bf16.xpose.msra.mxu0 0
    %1233 = vmatprep.subr.bf16.mxu0 0
    %1234 = vmatpush1.bf16.xpose.msra.mxu0 0
    %1235 = vmatprep.subr.bf16.mxu0 0
    %1236 = vmatpush1.bf16.xpose.msra.mxu0 0
    %1237 = vmatprep.subr.bf16.mxu0 0
    %1238 = vmatpush1.bf16.xpose.msra.mxu0 0
    %1239 = vmatprep.subr.bf16.mxu0 0
    %1240 = vmatpush1.bf16.xpose.msra.mxu0 0
    %1241 = vmatprep.subr.bf16.mxu0 0
    %1242 = vmatpush1.bf16.xpose.msra.mxu0 0
    %1243 = vmatprep.subr.bf16.mxu0 0
    %1244 = vmatpush1.bf16.xpose.msra.mxu0 0
    %1245 = vmatprep.subr.bf16.mxu0 0
    %1246 = vmatpush1.bf16.xpose.msra.mxu0 0
    %1247 = vmatprep.subr.bf16.mxu0 0
    %1248 = vmatpush1.bf16.xpose.msra.mxu0 0
    %1249 = vmatprep.subr.bf16.mxu0 0
    %1250 = vmatpush1.bf16.xpose.msra.mxu0 0
    %1251 = vmatprep.subr.bf16.mxu0 0
    %1252 = vmatpush1.bf16.xpose.msra.mxu0 0
    %1253 = vmatprep.subr.bf16.mxu0 0
    %1254 = vmatpush1.bf16.xpose.msra.mxu0 0
    %1255 = vmatprep.subr.bf16.mxu0 0
    %1256 = vmatpush1.bf16.xpose.msra.mxu0 0
    %1257 = vmatprep.subr.bf16.mxu0 0
    %1258 = vmatpush1.bf16.xpose.msra.mxu0 0
    %1259 = vmatprep.subr.bf16.mxu0 0
    %1260 = vmatpush1.bf16.xpose.msra.mxu0 0
    %1261 = vmatprep.mubr.bf16.mxu0 0
    %1262 = vmatmul.mubr.bf16.gmra.mrb[0].mxu0 %v1224
    %v1263 = vpop.f32.mrb[0].mxu0
    %v1264 = vadd.f32 0.0, %v1263
    %v1265 = vpop.f32.mrb[0].mxu0
    %v1266 = vpop.f32.mrb[0].mxu0
    %v1267 = vpop.f32.mrb[0].mxu0
    %1268 = vdwg.mxu0
    %1270 = vrot.lane.b32.xlu0 %v235, 96
    %v1271 = vpop.permute.xlu0 %1270
    %1273 = vrot.lane.b32.xlu0 %v243, 96
    %v1274 = vpop.permute.xlu0 %1273
    %v1276 = vsel %vm256, %v1271, 0
    %v1279 = vsel %vm256, %v1274, 0
    %1281 = vmatprep.subr.bf16.mxu0 0
    %1282 = vmatpush1.bf16.xpose.msra.mxu0 %v1279
    %1283 = vmatprep.subr.bf16.mxu0 0
    %1284 = vmatpush1.bf16.xpose.msra.mxu0 0
    %1285 = vmatprep.subr.bf16.mxu0 0
    %1286 = vmatpush1.bf16.xpose.msra.mxu0 0
    %1287 = vmatprep.subr.bf16.mxu0 0
    %1288 = vmatpush1.bf16.xpose.msra.mxu0 0
    %1289 = vmatprep.subr.bf16.mxu0 0
    %1290 = vmatpush1.bf16.xpose.msra.mxu0 0
    %1291 = vmatprep.subr.bf16.mxu0 0
    %1292 = vmatpush1.bf16.xpose.msra.mxu0 0
    %1293 = vmatprep.subr.bf16.mxu0 0
    %1294 = vmatpush1.bf16.xpose.msra.mxu0 0
    %1295 = vmatprep.subr.bf16.mxu0 0
    %1296 = vmatpush1.bf16.xpose.msra.mxu0 0
    %1297 = vmatprep.subr.bf16.mxu0 0
    %1298 = vmatpush1.bf16.xpose.msra.mxu0 0
    %1299 = vmatprep.subr.bf16.mxu0 0
    %1300 = vmatpush1.bf16.xpose.msra.mxu0 0
    %1301 = vmatprep.subr.bf16.mxu0 0
    %1302 = vmatpush1.bf16.xpose.msra.mxu0 0
    %1303 = vmatprep.subr.bf16.mxu0 0
    %1304 = vmatpush1.bf16.xpose.msra.mxu0 0
    %1305 = vmatprep.subr.bf16.mxu0 0
    %1306 = vmatpush1.bf16.xpose.msra.mxu0 0
    %1307 = vmatprep.subr.bf16.mxu0 0
    %1308 = vmatpush1.bf16.xpose.msra.mxu0 0
    %1309 = vmatprep.subr.bf16.mxu0 0
    %1310 = vmatpush1.bf16.xpose.msra.mxu0 0
    %1311 = vmatprep.subr.bf16.mxu0 0
    %1312 = vmatpush1.bf16.xpose.msra.mxu0 0
    %1313 = vmatprep.mubr.bf16.mxu0 0
    %1314 = vmatmul.mubr.bf16.gmra.mrb[0].mxu0 %v1276
    %v1315 = vpop.f32.mrb[0].mxu0
    %v1316 = vadd.f32 0.0, %v1315
    %v1317 = vpop.f32.mrb[0].mxu0
    %v1318 = vpop.f32.mrb[0].mxu0
    %v1319 = vpop.f32.mrb[0].mxu0
    %1320 = vdwg.mxu0
    %1322 = vrot.lane.b32.xlu0 %v236, 96
    %v1323 = vpop.permute.xlu0 %1322
    %1325 = vrot.lane.b32.xlu0 %v244, 96
    %v1326 = vpop.permute.xlu0 %1325
    %v1328 = vsel %vm256, %v1323, 0
    %v1331 = vsel %vm256, %v1326, 0
    %1333 = vmatprep.subr.bf16.mxu0 0
    %1334 = vmatpush1.bf16.xpose.msra.mxu0 %v1331
    %1335 = vmatprep.subr.bf16.mxu0 0
    %1336 = vmatpush1.bf16.xpose.msra.mxu0 0
    %1337 = vmatprep.subr.bf16.mxu0 0
    %1338 = vmatpush1.bf16.xpose.msra.mxu0 0
    %1339 = vmatprep.subr.bf16.mxu0 0
    %1340 = vmatpush1.bf16.xpose.msra.mxu0 0
    %1341 = vmatprep.subr.bf16.mxu0 0
    %1342 = vmatpush1.bf16.xpose.msra.mxu0 0
    %1343 = vmatprep.subr.bf16.mxu0 0
    %1344 = vmatpush1.bf16.xpose.msra.mxu0 0
    %1345 = vmatprep.subr.bf16.mxu0 0
    %1346 = vmatpush1.bf16.xpose.msra.mxu0 0
    %1347 = vmatprep.subr.bf16.mxu0 0
    %1348 = vmatpush1.bf16.xpose.msra.mxu0 0
    %1349 = vmatprep.subr.bf16.mxu0 0
    %1350 = vmatpush1.bf16.xpose.msra.mxu0 0
    %1351 = vmatprep.subr.bf16.mxu0 0
    %1352 = vmatpush1.bf16.xpose.msra.mxu0 0
    %1353 = vmatprep.subr.bf16.mxu0 0
    %1354 = vmatpush1.bf16.xpose.msra.mxu0 0
    %1355 = vmatprep.subr.bf16.mxu0 0
    %1356 = vmatpush1.bf16.xpose.msra.mxu0 0
    %1357 = vmatprep.subr.bf16.mxu0 0
    %1358 = vmatpush1.bf16.xpose.msra.mxu0 0
    %1359 = vmatprep.subr.bf16.mxu0 0
    %1360 = vmatpush1.bf16.xpose.msra.mxu0 0
    %1361 = vmatprep.subr.bf16.mxu0 0
    %1362 = vmatpush1.bf16.xpose.msra.mxu0 0
    %1363 = vmatprep.subr.bf16.mxu0 0
    %1364 = vmatpush1.bf16.xpose.msra.mxu0 0
    %1365 = vmatprep.mubr.bf16.mxu0 0
    %1366 = vmatmul.mubr.bf16.gmra.mrb[0].mxu0 %v1328
    %v1367 = vpop.f32.mrb[0].mxu0
    %v1368 = vadd.f32 0.0, %v1367
    %v1369 = vpop.f32.mrb[0].mxu0
    %v1370 = vpop.f32.mrb[0].mxu0
    %v1371 = vpop.f32.mrb[0].mxu0
    %1372 = vdwg.mxu0
    %1374 = vrot.lane.b32.xlu0 %v237, 96
    %v1375 = vpop.permute.xlu0 %1374
    %1377 = vrot.lane.b32.xlu0 %v245, 96
    %v1378 = vpop.permute.xlu0 %1377
    %v1380 = vsel %vm256, %v1375, 0
    %v1383 = vsel %vm256, %v1378, 0
    %1385 = vmatprep.subr.bf16.mxu0 0
    %1386 = vmatpush1.bf16.xpose.msra.mxu0 %v1383
    %1387 = vmatprep.subr.bf16.mxu0 0
    %1388 = vmatpush1.bf16.xpose.msra.mxu0 0
    %1389 = vmatprep.subr.bf16.mxu0 0
    %1390 = vmatpush1.bf16.xpose.msra.mxu0 0
    %1391 = vmatprep.subr.bf16.mxu0 0
    %1392 = vmatpush1.bf16.xpose.msra.mxu0 0
    %1393 = vmatprep.subr.bf16.mxu0 0
    %1394 = vmatpush1.bf16.xpose.msra.mxu0 0
    %1395 = vmatprep.subr.bf16.mxu0 0
    %1396 = vmatpush1.bf16.xpose.msra.mxu0 0
    %1397 = vmatprep.subr.bf16.mxu0 0
    %1398 = vmatpush1.bf16.xpose.msra.mxu0 0
    %1399 = vmatprep.subr.bf16.mxu0 0
    %1400 = vmatpush1.bf16.xpose.msra.mxu0 0
    %1401 = vmatprep.subr.bf16.mxu0 0
    %1402 = vmatpush1.bf16.xpose.msra.mxu0 0
    %1403 = vmatprep.subr.bf16.mxu0 0
    %1404 = vmatpush1.bf16.xpose.msra.mxu0 0
    %1405 = vmatprep.subr.bf16.mxu0 0
    %1406 = vmatpush1.bf16.xpose.msra.mxu0 0
    %1407 = vmatprep.subr.bf16.mxu0 0
    %1408 = vmatpush1.bf16.xpose.msra.mxu0 0
    %1409 = vmatprep.subr.bf16.mxu0 0
    %1410 = vmatpush1.bf16.xpose.msra.mxu0 0
    %1411 = vmatprep.subr.bf16.mxu0 0
    %1412 = vmatpush1.bf16.xpose.msra.mxu0 0
    %1413 = vmatprep.subr.bf16.mxu0 0
    %1414 = vmatpush1.bf16.xpose.msra.mxu0 0
    %1415 = vmatprep.subr.bf16.mxu0 0
    %1416 = vmatpush1.bf16.xpose.msra.mxu0 0
    %1417 = vmatprep.mubr.bf16.mxu0 0
    %1418 = vmatmul.mubr.bf16.gmra.mrb[0].mxu0 %v1380
    %v1419 = vpop.f32.mrb[0].mxu0
    %v1420 = vadd.f32 0.0, %v1419
    %v1421 = vpop.f32.mrb[0].mxu0
    %v1422 = vpop.f32.mrb[0].mxu0
    %v1423 = vpop.f32.mrb[0].mxu0
    %1424 = vdwg.mxu0
    %1426 = vrot.lane.b32.xlu0 %v238, 96
    %v1427 = vpop.permute.xlu0 %1426
    %1429 = vrot.lane.b32.xlu0 %v246, 96
    %v1430 = vpop.permute.xlu0 %1429
    %v1432 = vsel %vm256, %v1427, 0
    %v1435 = vsel %vm256, %v1430, 0
    %1437 = vmatprep.subr.bf16.mxu0 0
    %1438 = vmatpush1.bf16.xpose.msra.mxu0 %v1435
    %1439 = vmatprep.subr.bf16.mxu0 0
    %1440 = vmatpush1.bf16.xpose.msra.mxu0 0
    %1441 = vmatprep.subr.bf16.mxu0 0
    %1442 = vmatpush1.bf16.xpose.msra.mxu0 0
    %1443 = vmatprep.subr.bf16.mxu0 0
    %1444 = vmatpush1.bf16.xpose.msra.mxu0 0
    %1445 = vmatprep.subr.bf16.mxu0 0
    %1446 = vmatpush1.bf16.xpose.msra.mxu0 0
    %1447 = vmatprep.subr.bf16.mxu0 0
    %1448 = vmatpush1.bf16.xpose.msra.mxu0 0
    %1449 = vmatprep.subr.bf16.mxu0 0
    %1450 = vmatpush1.bf16.xpose.msra.mxu0 0
    %1451 = vmatprep.subr.bf16.mxu0 0
    %1452 = vmatpush1.bf16.xpose.msra.mxu0 0
    %1453 = vmatprep.subr.bf16.mxu0 0
    %1454 = vmatpush1.bf16.xpose.msra.mxu0 0
    %1455 = vmatprep.subr.bf16.mxu0 0
    %1456 = vmatpush1.bf16.xpose.msra.mxu0 0
    %1457 = vmatprep.subr.bf16.mxu0 0
    %1458 = vmatpush1.bf16.xpose.msra.mxu0 0
    %1459 = vmatprep.subr.bf16.mxu0 0
    %1460 = vmatpush1.bf16.xpose.msra.mxu0 0
    %1461 = vmatprep.subr.bf16.mxu0 0
    %1462 = vmatpush1.bf16.xpose.msra.mxu0 0
    %1463 = vmatprep.subr.bf16.mxu0 0
    %1464 = vmatpush1.bf16.xpose.msra.mxu0 0
    %1465 = vmatprep.subr.bf16.mxu0 0
    %1466 = vmatpush1.bf16.xpose.msra.mxu0 0
    %1467 = vmatprep.subr.bf16.mxu0 0
    %1468 = vmatpush1.bf16.xpose.msra.mxu0 0
    %1469 = vmatprep.mubr.bf16.mxu0 0
    %1470 = vmatmul.mubr.bf16.gmra.mrb[0].mxu0 %v1432
    %v1471 = vpop.f32.mrb[0].mxu0
    %v1472 = vadd.f32 0.0, %v1471
    %v1473 = vpop.f32.mrb[0].mxu0
    %v1474 = vpop.f32.mrb[0].mxu0
    %v1475 = vpop.f32.mrb[0].mxu0
    %1476 = vdwg.mxu0
    %1478 = vrot.lane.b32.xlu0 %v239, 96
    %v1479 = vpop.permute.xlu0 %1478
    %1481 = vrot.lane.b32.xlu0 %v247, 96
    %v1482 = vpop.permute.xlu0 %1481
    %v1484 = vsel %vm256, %v1479, 0
    %v1487 = vsel %vm256, %v1482, 0
    %1489 = vmatprep.subr.bf16.mxu0 0
    %1490 = vmatpush1.bf16.xpose.msra.mxu0 %v1487
    %1491 = vmatprep.subr.bf16.mxu0 0
    %1492 = vmatpush1.bf16.xpose.msra.mxu0 0
    %1493 = vmatprep.subr.bf16.mxu0 0
    %1494 = vmatpush1.bf16.xpose.msra.mxu0 0
    %1495 = vmatprep.subr.bf16.mxu0 0
    %1496 = vmatpush1.bf16.xpose.msra.mxu0 0
    %1497 = vmatprep.subr.bf16.mxu0 0
    %1498 = vmatpush1.bf16.xpose.msra.mxu0 0
    %1499 = vmatprep.subr.bf16.mxu0 0
    %1500 = vmatpush1.bf16.xpose.msra.mxu0 0
    %1501 = vmatprep.subr.bf16.mxu0 0
    %1502 = vmatpush1.bf16.xpose.msra.mxu0 0
    %1503 = vmatprep.subr.bf16.mxu0 0
    %1504 = vmatpush1.bf16.xpose.msra.mxu0 0
    %1505 = vmatprep.subr.bf16.mxu0 0
    %1506 = vmatpush1.bf16.xpose.msra.mxu0 0
    %1507 = vmatprep.subr.bf16.mxu0 0
    %1508 = vmatpush1.bf16.xpose.msra.mxu0 0
    %1509 = vmatprep.subr.bf16.mxu0 0
    %1510 = vmatpush1.bf16.xpose.msra.mxu0 0
    %1511 = vmatprep.subr.bf16.mxu0 0
    %1512 = vmatpush1.bf16.xpose.msra.mxu0 0
    %1513 = vmatprep.subr.bf16.mxu0 0
    %1514 = vmatpush1.bf16.xpose.msra.mxu0 0
    %1515 = vmatprep.subr.bf16.mxu0 0
    %1516 = vmatpush1.bf16.xpose.msra.mxu0 0
    %1517 = vmatprep.subr.bf16.mxu0 0
    %1518 = vmatpush1.bf16.xpose.msra.mxu0 0
    %1519 = vmatprep.subr.bf16.mxu0 0
    %1520 = vmatpush1.bf16.xpose.msra.mxu0 0
    %1521 = vmatprep.mubr.bf16.mxu0 0
    %1522 = vmatmul.mubr.bf16.gmra.mrb[0].mxu0 %v1484
    %v1523 = vpop.f32.mrb[0].mxu0
    %v1524 = vadd.f32 0.0, %v1523
    %v1525 = vpop.f32.mrb[0].mxu0
    %v1526 = vpop.f32.mrb[0].mxu0
    %v1527 = vpop.f32.mrb[0].mxu0
    %1528 = vdwg.mxu0
    %v1529 = vmul.f32 %v1160, 0.17677669
    %v1530 = vmul.f32 %v1212, 0.17677669
    %v1531 = vmul.f32 %v1264, 0.17677669
    %v1532 = vmul.f32 %v1316, 0.17677669
    %v1533 = vmul.f32 %v1368, 0.17677669
    %v1534 = vmul.f32 %v1420, 0.17677669
    %v1535 = vmul.f32 %v1472, 0.17677669
    %v1536 = vmul.f32 %v1524, 0.17677669
    %v1537 = vsel %vm634, %v1529, -1e+30
    %v1538 = vsel %vm634, %v1530, -1e+30
    %v1539 = vsel %vm634, %v1531, -1e+30
    %v1540 = vsel %vm634, %v1532, -1e+30
    %v1541 = vsel %vm634, %v1533, -1e+30
    %v1542 = vsel %vm634, %v1534, -1e+30
    %v1543 = vsel %vm634, %v1535, -1e+30
    %v1544 = vsel %vm634, %v1536, -1e+30
    %v1545 = vsel %vm643, %v1537, -inf
    %1546 = vmax.xlane.f32.xlu0 %v1545
    %v1547 = vpop.xlane.xlu0 %1546
    %v1548 = vsel %vm643, %v1538, -inf
    %1549 = vmax.xlane.f32.xlu0 %v1548
    %v1550 = vpop.xlane.xlu0 %1549
    %v1551 = vsel %vm643, %v1539, -inf
    %1552 = vmax.xlane.f32.xlu0 %v1551
    %v1553 = vpop.xlane.xlu0 %1552
    %v1554 = vsel %vm643, %v1540, -inf
    %1555 = vmax.xlane.f32.xlu0 %v1554
    %v1556 = vpop.xlane.xlu0 %1555
    %v1557 = vsel %vm643, %v1541, -inf
    %1558 = vmax.xlane.f32.xlu0 %v1557
    %v1559 = vpop.xlane.xlu0 %1558
    %v1560 = vsel %vm643, %v1542, -inf
    %1561 = vmax.xlane.f32.xlu0 %v1560
    %v1562 = vpop.xlane.xlu0 %1561
    %v1563 = vsel %vm643, %v1543, -inf
    %1564 = vmax.xlane.f32.xlu0 %v1563
    %v1565 = vpop.xlane.xlu0 %1564
    %v1566 = vsel %vm643, %v1544, -inf
    %1567 = vmax.xlane.f32.xlu0 %v1566
    %v1568 = vpop.xlane.xlu0 %1567
    %v1569 = vsub.f32 %v1537, %v1547
    %v1570 = vsub.f32 %v1538, %v1550
    %v1571 = vsub.f32 %v1539, %v1553
    %v1572 = vsub.f32 %v1540, %v1556
    %v1573 = vsub.f32 %v1541, %v1559
    %v1574 = vsub.f32 %v1542, %v1562
    %v1575 = vsub.f32 %v1543, %v1565
    %v1576 = vsub.f32 %v1544, %v1568
    %v1577 = vmul.f32 %v1569, 1.442695
    %v1578 = vpow.pop %v1577
    %v1579 = vmul.f32 %v1570, 1.442695
    %v1580 = vpow.pop %v1579
    %v1581 = vmul.f32 %v1571, 1.442695
    %v1582 = vpow.pop %v1581
    %v1583 = vmul.f32 %v1572, 1.442695
    %v1584 = vpow.pop %v1583
    %v1585 = vmul.f32 %v1573, 1.442695
    %v1586 = vpow.pop %v1585
    %v1587 = vmul.f32 %v1574, 1.442695
    %v1588 = vpow.pop %v1587
    %v1589 = vmul.f32 %v1575, 1.442695
    %v1590 = vpow.pop %v1589
    %v1591 = vmul.f32 %v1576, 1.442695
    %v1592 = vpow.pop %v1591
    %v1593 = vsel %vm643, %v1578, 0.0
    %1594 = vadd.xlane.f32.xlu0 %v1593
    %v1595 = vpop.xlane.xlu0 %1594
    %v1596 = vsel %vm643, %v1580, 0.0
    %1597 = vadd.xlane.f32.xlu0 %v1596
    %v1598 = vpop.xlane.xlu0 %1597
    %v1599 = vsel %vm643, %v1582, 0.0
    %1600 = vadd.xlane.f32.xlu0 %v1599
    %v1601 = vpop.xlane.xlu0 %1600
    %v1602 = vsel %vm643, %v1584, 0.0
    %1603 = vadd.xlane.f32.xlu0 %v1602
    %v1604 = vpop.xlane.xlu0 %1603
    %v1605 = vsel %vm643, %v1586, 0.0
    %1606 = vadd.xlane.f32.xlu0 %v1605
    %v1607 = vpop.xlane.xlu0 %1606
    %v1608 = vsel %vm643, %v1588, 0.0
    %1609 = vadd.xlane.f32.xlu0 %v1608
    %v1610 = vpop.xlane.xlu0 %1609
    %v1611 = vsel %vm643, %v1590, 0.0
    %1612 = vadd.xlane.f32.xlu0 %v1611
    %v1613 = vpop.xlane.xlu0 %1612
    %v1614 = vsel %vm643, %v1592, 0.0
    %1615 = vadd.xlane.f32.xlu0 %v1614
    %v1616 = vpop.xlane.xlu0 %1615
    %v1617 = vrcp.pop %v1595
    %v1618 = vrcp.pop %v1598
    %v1619 = vrcp.pop %v1601
    %v1620 = vrcp.pop %v1604
    %v1621 = vrcp.pop %v1607
    %v1622 = vrcp.pop %v1610
    %v1623 = vrcp.pop %v1613
    %v1624 = vrcp.pop %v1616
    %v1625 = vmul.f32 %v1578, %v1617
    %v1626 = vmul.f32 %v1580, %v1618
    %v1627 = vmul.f32 %v1582, %v1619
    %v1628 = vmul.f32 %v1584, %v1620
    %v1629 = vmul.f32 %v1586, %v1621
    %v1630 = vmul.f32 %v1588, %v1622
    %v1631 = vmul.f32 %v1590, %v1623
    %v1632 = vmul.f32 %v1592, %v1624
    %v1633 = vpack.c.bf16 %v1625, %v1625
    %v1634 = vpack.c.bf16 %v1626, %v1626
    %v1635 = vpack.c.bf16 %v1627, %v1627
    %v1636 = vpack.c.bf16 %v1628, %v1628
    %v1637 = vpack.c.bf16 %v1629, %v1629
    %v1638 = vpack.c.bf16 %v1630, %v1630
    %v1639 = vpack.c.bf16 %v1631, %v1631
    %v1640 = vpack.c.bf16 %v1632, %v1632
    %1642 = vrot.lane.b32.xlu0 %v248, 96
    %v1643 = vpop.permute.xlu0 %1642
    %v1645 = vsel %vm740, %v1633, 0
    %v1648 = vand.u32 %v1643, %v747
    %1650 = vmatprep.subr.bf16.mxu0 0
    %1651 = vmatpush1.bf16.msra.mxu0 %v1648
    %1652 = vmatprep.subr.bf16.mxu0 0
    %1653 = vmatpush1.bf16.msra.mxu0 0
    %1654 = vmatprep.subr.bf16.mxu0 0
    %1655 = vmatpush1.bf16.msra.mxu0 0
    %1656 = vmatprep.subr.bf16.mxu0 0
    %1657 = vmatpush1.bf16.msra.mxu0 0
    %1658 = vmatprep.subr.bf16.mxu0 0
    %1659 = vmatpush1.bf16.msra.mxu0 0
    %1660 = vmatprep.subr.bf16.mxu0 0
    %1661 = vmatpush1.bf16.msra.mxu0 0
    %1662 = vmatprep.subr.bf16.mxu0 0
    %1663 = vmatpush1.bf16.msra.mxu0 0
    %1664 = vmatprep.subr.bf16.mxu0 0
    %1665 = vmatpush1.bf16.msra.mxu0 0
    %1666 = vmatprep.subr.bf16.mxu0 0
    %1667 = vmatpush1.bf16.msra.mxu0 0
    %1668 = vmatprep.subr.bf16.mxu0 0
    %1669 = vmatpush1.bf16.msra.mxu0 0
    %1670 = vmatprep.subr.bf16.mxu0 0
    %1671 = vmatpush1.bf16.msra.mxu0 0
    %1672 = vmatprep.subr.bf16.mxu0 0
    %1673 = vmatpush1.bf16.msra.mxu0 0
    %1674 = vmatprep.subr.bf16.mxu0 0
    %1675 = vmatpush1.bf16.msra.mxu0 0
    %1676 = vmatprep.subr.bf16.mxu0 0
    %1677 = vmatpush1.bf16.msra.mxu0 0
    %1678 = vmatprep.subr.bf16.mxu0 0
    %1679 = vmatpush1.bf16.msra.mxu0 0
    %1680 = vmatprep.subr.bf16.mxu0 0
    %1681 = vmatpush1.bf16.msra.mxu0 0
    %1682 = vmatprep.mubr.bf16.mxu0 0
    %1683 = vmatmul.mubr.bf16.gmra.mrb[0].mxu0 %v1645
    %v1684 = vpop.f32.mrb[0].mxu0
    %v1685 = vadd.f32 0.0, %v1684
    %v1686 = vpop.f32.mrb[0].mxu0
    %v1687 = vpop.f32.mrb[0].mxu0
    %v1688 = vpop.f32.mrb[0].mxu0
    %1689 = vdwg.mxu0
    %1691 = vrot.lane.b32.xlu0 %v249, 96
    %v1692 = vpop.permute.xlu0 %1691
    %v1694 = vsel %vm740, %v1634, 0
    %v1697 = vand.u32 %v1692, %v747
    %1699 = vmatprep.subr.bf16.mxu0 0
    %1700 = vmatpush1.bf16.msra.mxu0 %v1697
    %1701 = vmatprep.subr.bf16.mxu0 0
    %1702 = vmatpush1.bf16.msra.mxu0 0
    %1703 = vmatprep.subr.bf16.mxu0 0
    %1704 = vmatpush1.bf16.msra.mxu0 0
    %1705 = vmatprep.subr.bf16.mxu0 0
    %1706 = vmatpush1.bf16.msra.mxu0 0
    %1707 = vmatprep.subr.bf16.mxu0 0
    %1708 = vmatpush1.bf16.msra.mxu0 0
    %1709 = vmatprep.subr.bf16.mxu0 0
    %1710 = vmatpush1.bf16.msra.mxu0 0
    %1711 = vmatprep.subr.bf16.mxu0 0
    %1712 = vmatpush1.bf16.msra.mxu0 0
    %1713 = vmatprep.subr.bf16.mxu0 0
    %1714 = vmatpush1.bf16.msra.mxu0 0
    %1715 = vmatprep.subr.bf16.mxu0 0
    %1716 = vmatpush1.bf16.msra.mxu0 0
    %1717 = vmatprep.subr.bf16.mxu0 0
    %1718 = vmatpush1.bf16.msra.mxu0 0
    %1719 = vmatprep.subr.bf16.mxu0 0
    %1720 = vmatpush1.bf16.msra.mxu0 0
    %1721 = vmatprep.subr.bf16.mxu0 0
    %1722 = vmatpush1.bf16.msra.mxu0 0
    %1723 = vmatprep.subr.bf16.mxu0 0
    %1724 = vmatpush1.bf16.msra.mxu0 0
    %1725 = vmatprep.subr.bf16.mxu0 0
    %1726 = vmatpush1.bf16.msra.mxu0 0
    %1727 = vmatprep.subr.bf16.mxu0 0
    %1728 = vmatpush1.bf16.msra.mxu0 0
    %1729 = vmatprep.subr.bf16.mxu0 0
    %1730 = vmatpush1.bf16.msra.mxu0 0
    %1731 = vmatprep.mubr.bf16.mxu0 0
    %1732 = vmatmul.mubr.bf16.gmra.mrb[0].mxu0 %v1694
    %v1733 = vpop.f32.mrb[0].mxu0
    %v1734 = vadd.f32 0.0, %v1733
    %v1735 = vpop.f32.mrb[0].mxu0
    %v1736 = vpop.f32.mrb[0].mxu0
    %v1737 = vpop.f32.mrb[0].mxu0
    %1738 = vdwg.mxu0
    %1740 = vrot.lane.b32.xlu0 %v250, 96
    %v1741 = vpop.permute.xlu0 %1740
    %v1743 = vsel %vm740, %v1635, 0
    %v1746 = vand.u32 %v1741, %v747
    %1748 = vmatprep.subr.bf16.mxu0 0
    %1749 = vmatpush1.bf16.msra.mxu0 %v1746
    %1750 = vmatprep.subr.bf16.mxu0 0
    %1751 = vmatpush1.bf16.msra.mxu0 0
    %1752 = vmatprep.subr.bf16.mxu0 0
    %1753 = vmatpush1.bf16.msra.mxu0 0
    %1754 = vmatprep.subr.bf16.mxu0 0
    %1755 = vmatpush1.bf16.msra.mxu0 0
    %1756 = vmatprep.subr.bf16.mxu0 0
    %1757 = vmatpush1.bf16.msra.mxu0 0
    %1758 = vmatprep.subr.bf16.mxu0 0
    %1759 = vmatpush1.bf16.msra.mxu0 0
    %1760 = vmatprep.subr.bf16.mxu0 0
    %1761 = vmatpush1.bf16.msra.mxu0 0
    %1762 = vmatprep.subr.bf16.mxu0 0
    %1763 = vmatpush1.bf16.msra.mxu0 0
    %1764 = vmatprep.subr.bf16.mxu0 0
    %1765 = vmatpush1.bf16.msra.mxu0 0
    %1766 = vmatprep.subr.bf16.mxu0 0
    %1767 = vmatpush1.bf16.msra.mxu0 0
    %1768 = vmatprep.subr.bf16.mxu0 0
    %1769 = vmatpush1.bf16.msra.mxu0 0
    %1770 = vmatprep.subr.bf16.mxu0 0
    %1771 = vmatpush1.bf16.msra.mxu0 0
    %1772 = vmatprep.subr.bf16.mxu0 0
    %1773 = vmatpush1.bf16.msra.mxu0 0
    %1774 = vmatprep.subr.bf16.mxu0 0
    %1775 = vmatpush1.bf16.msra.mxu0 0
    %1776 = vmatprep.subr.bf16.mxu0 0
    %1777 = vmatpush1.bf16.msra.mxu0 0
    %1778 = vmatprep.subr.bf16.mxu0 0
    %1779 = vmatpush1.bf16.msra.mxu0 0
    %1780 = vmatprep.mubr.bf16.mxu0 0
    %1781 = vmatmul.mubr.bf16.gmra.mrb[0].mxu0 %v1743
    %v1782 = vpop.f32.mrb[0].mxu0
    %v1783 = vadd.f32 0.0, %v1782
    %v1784 = vpop.f32.mrb[0].mxu0
    %v1785 = vpop.f32.mrb[0].mxu0
    %v1786 = vpop.f32.mrb[0].mxu0
    %1787 = vdwg.mxu0
    %1789 = vrot.lane.b32.xlu0 %v251, 96
    %v1790 = vpop.permute.xlu0 %1789
    %v1792 = vsel %vm740, %v1636, 0
    %v1795 = vand.u32 %v1790, %v747
    %1797 = vmatprep.subr.bf16.mxu0 0
    %1798 = vmatpush1.bf16.msra.mxu0 %v1795
    %1799 = vmatprep.subr.bf16.mxu0 0
    %1800 = vmatpush1.bf16.msra.mxu0 0
    %1801 = vmatprep.subr.bf16.mxu0 0
    %1802 = vmatpush1.bf16.msra.mxu0 0
    %1803 = vmatprep.subr.bf16.mxu0 0
    %1804 = vmatpush1.bf16.msra.mxu0 0
    %1805 = vmatprep.subr.bf16.mxu0 0
    %1806 = vmatpush1.bf16.msra.mxu0 0
    %1807 = vmatprep.subr.bf16.mxu0 0
    %1808 = vmatpush1.bf16.msra.mxu0 0
    %1809 = vmatprep.subr.bf16.mxu0 0
    %1810 = vmatpush1.bf16.msra.mxu0 0
    %1811 = vmatprep.subr.bf16.mxu0 0
    %1812 = vmatpush1.bf16.msra.mxu0 0
    %1813 = vmatprep.subr.bf16.mxu0 0
    %1814 = vmatpush1.bf16.msra.mxu0 0
    %1815 = vmatprep.subr.bf16.mxu0 0
    %1816 = vmatpush1.bf16.msra.mxu0 0
    %1817 = vmatprep.subr.bf16.mxu0 0
    %1818 = vmatpush1.bf16.msra.mxu0 0
    %1819 = vmatprep.subr.bf16.mxu0 0
    %1820 = vmatpush1.bf16.msra.mxu0 0
    %1821 = vmatprep.subr.bf16.mxu0 0
    %1822 = vmatpush1.bf16.msra.mxu0 0
    %1823 = vmatprep.subr.bf16.mxu0 0
    %1824 = vmatpush1.bf16.msra.mxu0 0
    %1825 = vmatprep.subr.bf16.mxu0 0
    %1826 = vmatpush1.bf16.msra.mxu0 0
    %1827 = vmatprep.subr.bf16.mxu0 0
    %1828 = vmatpush1.bf16.msra.mxu0 0
    %1829 = vmatprep.mubr.bf16.mxu0 0
    %1830 = vmatmul.mubr.bf16.gmra.mrb[0].mxu0 %v1792
    %v1831 = vpop.f32.mrb[0].mxu0
    %v1832 = vadd.f32 0.0, %v1831
    %v1833 = vpop.f32.mrb[0].mxu0
    %v1834 = vpop.f32.mrb[0].mxu0
    %v1835 = vpop.f32.mrb[0].mxu0
    %1836 = vdwg.mxu0
    %1838 = vrot.lane.b32.xlu0 %v252, 96
    %v1839 = vpop.permute.xlu0 %1838
    %v1841 = vsel %vm740, %v1637, 0
    %v1844 = vand.u32 %v1839, %v747
    %1846 = vmatprep.subr.bf16.mxu0 0
    %1847 = vmatpush1.bf16.msra.mxu0 %v1844
    %1848 = vmatprep.subr.bf16.mxu0 0
    %1849 = vmatpush1.bf16.msra.mxu0 0
    %1850 = vmatprep.subr.bf16.mxu0 0
    %1851 = vmatpush1.bf16.msra.mxu0 0
    %1852 = vmatprep.subr.bf16.mxu0 0
    %1853 = vmatpush1.bf16.msra.mxu0 0
    %1854 = vmatprep.subr.bf16.mxu0 0
    %1855 = vmatpush1.bf16.msra.mxu0 0
    %1856 = vmatprep.subr.bf16.mxu0 0
    %1857 = vmatpush1.bf16.msra.mxu0 0
    %1858 = vmatprep.subr.bf16.mxu0 0
    %1859 = vmatpush1.bf16.msra.mxu0 0
    %1860 = vmatprep.subr.bf16.mxu0 0
    %1861 = vmatpush1.bf16.msra.mxu0 0
    %1862 = vmatprep.subr.bf16.mxu0 0
    %1863 = vmatpush1.bf16.msra.mxu0 0
    %1864 = vmatprep.subr.bf16.mxu0 0
    %1865 = vmatpush1.bf16.msra.mxu0 0
    %1866 = vmatprep.subr.bf16.mxu0 0
    %1867 = vmatpush1.bf16.msra.mxu0 0
    %1868 = vmatprep.subr.bf16.mxu0 0
    %1869 = vmatpush1.bf16.msra.mxu0 0
    %1870 = vmatprep.subr.bf16.mxu0 0
    %1871 = vmatpush1.bf16.msra.mxu0 0
    %1872 = vmatprep.subr.bf16.mxu0 0
    %1873 = vmatpush1.bf16.msra.mxu0 0
    %1874 = vmatprep.subr.bf16.mxu0 0
    %1875 = vmatpush1.bf16.msra.mxu0 0
    %1876 = vmatprep.subr.bf16.mxu0 0
    %1877 = vmatpush1.bf16.msra.mxu0 0
    %1878 = vmatprep.mubr.bf16.mxu0 0
    %1879 = vmatmul.mubr.bf16.gmra.mrb[0].mxu0 %v1841
    %v1880 = vpop.f32.mrb[0].mxu0
    %v1881 = vadd.f32 0.0, %v1880
    %v1882 = vpop.f32.mrb[0].mxu0
    %v1883 = vpop.f32.mrb[0].mxu0
    %v1884 = vpop.f32.mrb[0].mxu0
    %1885 = vdwg.mxu0
    %1887 = vrot.lane.b32.xlu0 %v253, 96
    %v1888 = vpop.permute.xlu0 %1887
    %v1890 = vsel %vm740, %v1638, 0
    %v1893 = vand.u32 %v1888, %v747
    %1895 = vmatprep.subr.bf16.mxu0 0
    %1896 = vmatpush1.bf16.msra.mxu0 %v1893
    %1897 = vmatprep.subr.bf16.mxu0 0
    %1898 = vmatpush1.bf16.msra.mxu0 0
    %1899 = vmatprep.subr.bf16.mxu0 0
    %1900 = vmatpush1.bf16.msra.mxu0 0
    %1901 = vmatprep.subr.bf16.mxu0 0
    %1902 = vmatpush1.bf16.msra.mxu0 0
    %1903 = vmatprep.subr.bf16.mxu0 0
    %1904 = vmatpush1.bf16.msra.mxu0 0
    %1905 = vmatprep.subr.bf16.mxu0 0
    %1906 = vmatpush1.bf16.msra.mxu0 0
    %1907 = vmatprep.subr.bf16.mxu0 0
    %1908 = vmatpush1.bf16.msra.mxu0 0
    %1909 = vmatprep.subr.bf16.mxu0 0
    %1910 = vmatpush1.bf16.msra.mxu0 0
    %1911 = vmatprep.subr.bf16.mxu0 0
    %1912 = vmatpush1.bf16.msra.mxu0 0
    %1913 = vmatprep.subr.bf16.mxu0 0
    %1914 = vmatpush1.bf16.msra.mxu0 0
    %1915 = vmatprep.subr.bf16.mxu0 0
    %1916 = vmatpush1.bf16.msra.mxu0 0
    %1917 = vmatprep.subr.bf16.mxu0 0
    %1918 = vmatpush1.bf16.msra.mxu0 0
    %1919 = vmatprep.subr.bf16.mxu0 0
    %1920 = vmatpush1.bf16.msra.mxu0 0
    %1921 = vmatprep.subr.bf16.mxu0 0
    %1922 = vmatpush1.bf16.msra.mxu0 0
    %1923 = vmatprep.subr.bf16.mxu0 0
    %1924 = vmatpush1.bf16.msra.mxu0 0
    %1925 = vmatprep.subr.bf16.mxu0 0
    %1926 = vmatpush1.bf16.msra.mxu0 0
    %1927 = vmatprep.mubr.bf16.mxu0 0
    %1928 = vmatmul.mubr.bf16.gmra.mrb[0].mxu0 %v1890
    %v1929 = vpop.f32.mrb[0].mxu0
    %v1930 = vadd.f32 0.0, %v1929
    %v1931 = vpop.f32.mrb[0].mxu0
    %v1932 = vpop.f32.mrb[0].mxu0
    %v1933 = vpop.f32.mrb[0].mxu0
    %1934 = vdwg.mxu0
    %1936 = vrot.lane.b32.xlu0 %v254, 96
    %v1937 = vpop.permute.xlu0 %1936
    %v1939 = vsel %vm740, %v1639, 0
    %v1942 = vand.u32 %v1937, %v747
    %1944 = vmatprep.subr.bf16.mxu0 0
    %1945 = vmatpush1.bf16.msra.mxu0 %v1942
    %1946 = vmatprep.subr.bf16.mxu0 0
    %1947 = vmatpush1.bf16.msra.mxu0 0
    %1948 = vmatprep.subr.bf16.mxu0 0
    %1949 = vmatpush1.bf16.msra.mxu0 0
    %1950 = vmatprep.subr.bf16.mxu0 0
    %1951 = vmatpush1.bf16.msra.mxu0 0
    %1952 = vmatprep.subr.bf16.mxu0 0
    %1953 = vmatpush1.bf16.msra.mxu0 0
    %1954 = vmatprep.subr.bf16.mxu0 0
    %1955 = vmatpush1.bf16.msra.mxu0 0
    %1956 = vmatprep.subr.bf16.mxu0 0
    %1957 = vmatpush1.bf16.msra.mxu0 0
    %1958 = vmatprep.subr.bf16.mxu0 0
    %1959 = vmatpush1.bf16.msra.mxu0 0
    %1960 = vmatprep.subr.bf16.mxu0 0
    %1961 = vmatpush1.bf16.msra.mxu0 0
    %1962 = vmatprep.subr.bf16.mxu0 0
    %1963 = vmatpush1.bf16.msra.mxu0 0
    %1964 = vmatprep.subr.bf16.mxu0 0
    %1965 = vmatpush1.bf16.msra.mxu0 0
    %1966 = vmatprep.subr.bf16.mxu0 0
    %1967 = vmatpush1.bf16.msra.mxu0 0
    %1968 = vmatprep.subr.bf16.mxu0 0
    %1969 = vmatpush1.bf16.msra.mxu0 0
    %1970 = vmatprep.subr.bf16.mxu0 0
    %1971 = vmatpush1.bf16.msra.mxu0 0
    %1972 = vmatprep.subr.bf16.mxu0 0
    %1973 = vmatpush1.bf16.msra.mxu0 0
    %1974 = vmatprep.subr.bf16.mxu0 0
    %1975 = vmatpush1.bf16.msra.mxu0 0
    %1976 = vmatprep.mubr.bf16.mxu0 0
    %1977 = vmatmul.mubr.bf16.gmra.mrb[0].mxu0 %v1939
    %v1978 = vpop.f32.mrb[0].mxu0
    %v1979 = vadd.f32 0.0, %v1978
    %v1980 = vpop.f32.mrb[0].mxu0
    %v1981 = vpop.f32.mrb[0].mxu0
    %v1982 = vpop.f32.mrb[0].mxu0
    %1983 = vdwg.mxu0
    %1985 = vrot.lane.b32.xlu0 %v255, 96
    %v1986 = vpop.permute.xlu0 %1985
    %v1988 = vsel %vm740, %v1640, 0
    %v1991 = vand.u32 %v1986, %v747
    %1993 = vmatprep.subr.bf16.mxu0 0
    %1994 = vmatpush1.bf16.msra.mxu0 %v1991
    %1995 = vmatprep.subr.bf16.mxu0 0
    %1996 = vmatpush1.bf16.msra.mxu0 0
    %1997 = vmatprep.subr.bf16.mxu0 0
    %1998 = vmatpush1.bf16.msra.mxu0 0
    %1999 = vmatprep.subr.bf16.mxu0 0
    %2000 = vmatpush1.bf16.msra.mxu0 0
    %2001 = vmatprep.subr.bf16.mxu0 0
    %2002 = vmatpush1.bf16.msra.mxu0 0
    %2003 = vmatprep.subr.bf16.mxu0 0
    %2004 = vmatpush1.bf16.msra.mxu0 0
    %2005 = vmatprep.subr.bf16.mxu0 0
    %2006 = vmatpush1.bf16.msra.mxu0 0
    %2007 = vmatprep.subr.bf16.mxu0 0
    %2008 = vmatpush1.bf16.msra.mxu0 0
    %2009 = vmatprep.subr.bf16.mxu0 0
    %2010 = vmatpush1.bf16.msra.mxu0 0
    %2011 = vmatprep.subr.bf16.mxu0 0
    %2012 = vmatpush1.bf16.msra.mxu0 0
    %2013 = vmatprep.subr.bf16.mxu0 0
    %2014 = vmatpush1.bf16.msra.mxu0 0
    %2015 = vmatprep.subr.bf16.mxu0 0
    %2016 = vmatpush1.bf16.msra.mxu0 0
    %2017 = vmatprep.subr.bf16.mxu0 0
    %2018 = vmatpush1.bf16.msra.mxu0 0
    %2019 = vmatprep.subr.bf16.mxu0 0
    %2020 = vmatpush1.bf16.msra.mxu0 0
    %2021 = vmatprep.subr.bf16.mxu0 0
    %2022 = vmatpush1.bf16.msra.mxu0 0
    %2023 = vmatprep.subr.bf16.mxu0 0
    %2024 = vmatpush1.bf16.msra.mxu0 0
    %2025 = vmatprep.mubr.bf16.mxu0 0
    %2026 = vmatmul.mubr.bf16.gmra.mrb[0].mxu0 %v1988
    %v2027 = vpop.f32.mrb[0].mxu0
    %v2028 = vadd.f32 0.0, %v2027
    %v2029 = vpop.f32.mrb[0].mxu0
    %v2030 = vpop.f32.mrb[0].mxu0
    %v2031 = vpop.f32.mrb[0].mxu0
    %2032 = vdwg.mxu0
    %2033 = vrot.lane.b32.xlu0 %v232, 64
    %v2034 = vpop.permute.xlu0 %2033
    %2035 = vrot.lane.b32.xlu0 %v240, 64
    %v2036 = vpop.permute.xlu0 %2035
    %v2038 = vsel %vm256, %v2034, 0
    %v2041 = vsel %vm256, %v2036, 0
    %2043 = vmatprep.subr.bf16.mxu0 0
    %2044 = vmatpush1.bf16.xpose.msra.mxu0 %v2041
    %2045 = vmatprep.subr.bf16.mxu0 0
    %2046 = vmatpush1.bf16.xpose.msra.mxu0 0
    %2047 = vmatprep.subr.bf16.mxu0 0
    %2048 = vmatpush1.bf16.xpose.msra.mxu0 0
    %2049 = vmatprep.subr.bf16.mxu0 0
    %2050 = vmatpush1.bf16.xpose.msra.mxu0 0
    %2051 = vmatprep.subr.bf16.mxu0 0
    %2052 = vmatpush1.bf16.xpose.msra.mxu0 0
    %2053 = vmatprep.subr.bf16.mxu0 0
    %2054 = vmatpush1.bf16.xpose.msra.mxu0 0
    %2055 = vmatprep.subr.bf16.mxu0 0
    %2056 = vmatpush1.bf16.xpose.msra.mxu0 0
    %2057 = vmatprep.subr.bf16.mxu0 0
    %2058 = vmatpush1.bf16.xpose.msra.mxu0 0
    %2059 = vmatprep.subr.bf16.mxu0 0
    %2060 = vmatpush1.bf16.xpose.msra.mxu0 0
    %2061 = vmatprep.subr.bf16.mxu0 0
    %2062 = vmatpush1.bf16.xpose.msra.mxu0 0
    %2063 = vmatprep.subr.bf16.mxu0 0
    %2064 = vmatpush1.bf16.xpose.msra.mxu0 0
    %2065 = vmatprep.subr.bf16.mxu0 0
    %2066 = vmatpush1.bf16.xpose.msra.mxu0 0
    %2067 = vmatprep.subr.bf16.mxu0 0
    %2068 = vmatpush1.bf16.xpose.msra.mxu0 0
    %2069 = vmatprep.subr.bf16.mxu0 0
    %2070 = vmatpush1.bf16.xpose.msra.mxu0 0
    %2071 = vmatprep.subr.bf16.mxu0 0
    %2072 = vmatpush1.bf16.xpose.msra.mxu0 0
    %2073 = vmatprep.subr.bf16.mxu0 0
    %2074 = vmatpush1.bf16.xpose.msra.mxu0 0
    %2075 = vmatprep.mubr.bf16.mxu0 0
    %2076 = vmatmul.mubr.bf16.gmra.mrb[0].mxu0 %v2038
    %v2077 = vpop.f32.mrb[0].mxu0
    %v2078 = vadd.f32 0.0, %v2077
    %v2079 = vpop.f32.mrb[0].mxu0
    %v2080 = vpop.f32.mrb[0].mxu0
    %v2081 = vpop.f32.mrb[0].mxu0
    %2082 = vdwg.mxu0
    %2083 = vrot.lane.b32.xlu0 %v233, 64
    %v2084 = vpop.permute.xlu0 %2083
    %2085 = vrot.lane.b32.xlu0 %v241, 64
    %v2086 = vpop.permute.xlu0 %2085
    %v2088 = vsel %vm256, %v2084, 0
    %v2091 = vsel %vm256, %v2086, 0
    %2093 = vmatprep.subr.bf16.mxu0 0
    %2094 = vmatpush1.bf16.xpose.msra.mxu0 %v2091
    %2095 = vmatprep.subr.bf16.mxu0 0
    %2096 = vmatpush1.bf16.xpose.msra.mxu0 0
    %2097 = vmatprep.subr.bf16.mxu0 0
    %2098 = vmatpush1.bf16.xpose.msra.mxu0 0
    %2099 = vmatprep.subr.bf16.mxu0 0
    %2100 = vmatpush1.bf16.xpose.msra.mxu0 0
    %2101 = vmatprep.subr.bf16.mxu0 0
    %2102 = vmatpush1.bf16.xpose.msra.mxu0 0
    %2103 = vmatprep.subr.bf16.mxu0 0
    %2104 = vmatpush1.bf16.xpose.msra.mxu0 0
    %2105 = vmatprep.subr.bf16.mxu0 0
    %2106 = vmatpush1.bf16.xpose.msra.mxu0 0
    %2107 = vmatprep.subr.bf16.mxu0 0
    %2108 = vmatpush1.bf16.xpose.msra.mxu0 0
    %2109 = vmatprep.subr.bf16.mxu0 0
    %2110 = vmatpush1.bf16.xpose.msra.mxu0 0
    %2111 = vmatprep.subr.bf16.mxu0 0
    %2112 = vmatpush1.bf16.xpose.msra.mxu0 0
    %2113 = vmatprep.subr.bf16.mxu0 0
    %2114 = vmatpush1.bf16.xpose.msra.mxu0 0
    %2115 = vmatprep.subr.bf16.mxu0 0
    %2116 = vmatpush1.bf16.xpose.msra.mxu0 0
    %2117 = vmatprep.subr.bf16.mxu0 0
    %2118 = vmatpush1.bf16.xpose.msra.mxu0 0
    %2119 = vmatprep.subr.bf16.mxu0 0
    %2120 = vmatpush1.bf16.xpose.msra.mxu0 0
    %2121 = vmatprep.subr.bf16.mxu0 0
    %2122 = vmatpush1.bf16.xpose.msra.mxu0 0
    %2123 = vmatprep.subr.bf16.mxu0 0
    %2124 = vmatpush1.bf16.xpose.msra.mxu0 0
    %2125 = vmatprep.mubr.bf16.mxu0 0
    %2126 = vmatmul.mubr.bf16.gmra.mrb[0].mxu0 %v2088
    %v2127 = vpop.f32.mrb[0].mxu0
    %v2128 = vadd.f32 0.0, %v2127
    %v2129 = vpop.f32.mrb[0].mxu0
    %v2130 = vpop.f32.mrb[0].mxu0
    %v2131 = vpop.f32.mrb[0].mxu0
    %2132 = vdwg.mxu0
    %2133 = vrot.lane.b32.xlu0 %v234, 64
    %v2134 = vpop.permute.xlu0 %2133
    %2135 = vrot.lane.b32.xlu0 %v242, 64
    %v2136 = vpop.permute.xlu0 %2135
    %v2138 = vsel %vm256, %v2134, 0
    %v2141 = vsel %vm256, %v2136, 0
    %2143 = vmatprep.subr.bf16.mxu0 0
    %2144 = vmatpush1.bf16.xpose.msra.mxu0 %v2141
    %2145 = vmatprep.subr.bf16.mxu0 0
    %2146 = vmatpush1.bf16.xpose.msra.mxu0 0
    %2147 = vmatprep.subr.bf16.mxu0 0
    %2148 = vmatpush1.bf16.xpose.msra.mxu0 0
    %2149 = vmatprep.subr.bf16.mxu0 0
    %2150 = vmatpush1.bf16.xpose.msra.mxu0 0
    %2151 = vmatprep.subr.bf16.mxu0 0
    %2152 = vmatpush1.bf16.xpose.msra.mxu0 0
    %2153 = vmatprep.subr.bf16.mxu0 0
    %2154 = vmatpush1.bf16.xpose.msra.mxu0 0
    %2155 = vmatprep.subr.bf16.mxu0 0
    %2156 = vmatpush1.bf16.xpose.msra.mxu0 0
    %2157 = vmatprep.subr.bf16.mxu0 0
    %2158 = vmatpush1.bf16.xpose.msra.mxu0 0
    %2159 = vmatprep.subr.bf16.mxu0 0
    %2160 = vmatpush1.bf16.xpose.msra.mxu0 0
    %2161 = vmatprep.subr.bf16.mxu0 0
    %2162 = vmatpush1.bf16.xpose.msra.mxu0 0
    %2163 = vmatprep.subr.bf16.mxu0 0
    %2164 = vmatpush1.bf16.xpose.msra.mxu0 0
    %2165 = vmatprep.subr.bf16.mxu0 0
    %2166 = vmatpush1.bf16.xpose.msra.mxu0 0
    %2167 = vmatprep.subr.bf16.mxu0 0
    %2168 = vmatpush1.bf16.xpose.msra.mxu0 0
    %2169 = vmatprep.subr.bf16.mxu0 0
    %2170 = vmatpush1.bf16.xpose.msra.mxu0 0
    %2171 = vmatprep.subr.bf16.mxu0 0
    %2172 = vmatpush1.bf16.xpose.msra.mxu0 0
    %2173 = vmatprep.subr.bf16.mxu0 0
    %2174 = vmatpush1.bf16.xpose.msra.mxu0 0
    %2175 = vmatprep.mubr.bf16.mxu0 0
    %2176 = vmatmul.mubr.bf16.gmra.mrb[0].mxu0 %v2138
    %v2177 = vpop.f32.mrb[0].mxu0
    %v2178 = vadd.f32 0.0, %v2177
    %v2179 = vpop.f32.mrb[0].mxu0
    %v2180 = vpop.f32.mrb[0].mxu0
    %v2181 = vpop.f32.mrb[0].mxu0
    %2182 = vdwg.mxu0
    %2183 = vrot.lane.b32.xlu0 %v235, 64
    %v2184 = vpop.permute.xlu0 %2183
    %2185 = vrot.lane.b32.xlu0 %v243, 64
    %v2186 = vpop.permute.xlu0 %2185
    %v2188 = vsel %vm256, %v2184, 0
    %v2191 = vsel %vm256, %v2186, 0
    %2193 = vmatprep.subr.bf16.mxu0 0
    %2194 = vmatpush1.bf16.xpose.msra.mxu0 %v2191
    %2195 = vmatprep.subr.bf16.mxu0 0
    %2196 = vmatpush1.bf16.xpose.msra.mxu0 0
    %2197 = vmatprep.subr.bf16.mxu0 0
    %2198 = vmatpush1.bf16.xpose.msra.mxu0 0
    %2199 = vmatprep.subr.bf16.mxu0 0
    %2200 = vmatpush1.bf16.xpose.msra.mxu0 0
    %2201 = vmatprep.subr.bf16.mxu0 0
    %2202 = vmatpush1.bf16.xpose.msra.mxu0 0
    %2203 = vmatprep.subr.bf16.mxu0 0
    %2204 = vmatpush1.bf16.xpose.msra.mxu0 0
    %2205 = vmatprep.subr.bf16.mxu0 0
    %2206 = vmatpush1.bf16.xpose.msra.mxu0 0
    %2207 = vmatprep.subr.bf16.mxu0 0
    %2208 = vmatpush1.bf16.xpose.msra.mxu0 0
    %2209 = vmatprep.subr.bf16.mxu0 0
    %2210 = vmatpush1.bf16.xpose.msra.mxu0 0
    %2211 = vmatprep.subr.bf16.mxu0 0
    %2212 = vmatpush1.bf16.xpose.msra.mxu0 0
    %2213 = vmatprep.subr.bf16.mxu0 0
    %2214 = vmatpush1.bf16.xpose.msra.mxu0 0
    %2215 = vmatprep.subr.bf16.mxu0 0
    %2216 = vmatpush1.bf16.xpose.msra.mxu0 0
    %2217 = vmatprep.subr.bf16.mxu0 0
    %2218 = vmatpush1.bf16.xpose.msra.mxu0 0
    %2219 = vmatprep.subr.bf16.mxu0 0
    %2220 = vmatpush1.bf16.xpose.msra.mxu0 0
    %2221 = vmatprep.subr.bf16.mxu0 0
    %2222 = vmatpush1.bf16.xpose.msra.mxu0 0
    %2223 = vmatprep.subr.bf16.mxu0 0
    %2224 = vmatpush1.bf16.xpose.msra.mxu0 0
    %2225 = vmatprep.mubr.bf16.mxu0 0
    %2226 = vmatmul.mubr.bf16.gmra.mrb[0].mxu0 %v2188
    %v2227 = vpop.f32.mrb[0].mxu0
    %v2228 = vadd.f32 0.0, %v2227
    %v2229 = vpop.f32.mrb[0].mxu0
    %v2230 = vpop.f32.mrb[0].mxu0
    %v2231 = vpop.f32.mrb[0].mxu0
    %2232 = vdwg.mxu0
    %2233 = vrot.lane.b32.xlu0 %v236, 64
    %v2234 = vpop.permute.xlu0 %2233
    %2235 = vrot.lane.b32.xlu0 %v244, 64
    %v2236 = vpop.permute.xlu0 %2235
    %v2238 = vsel %vm256, %v2234, 0
    %v2241 = vsel %vm256, %v2236, 0
    %2243 = vmatprep.subr.bf16.mxu0 0
    %2244 = vmatpush1.bf16.xpose.msra.mxu0 %v2241
    %2245 = vmatprep.subr.bf16.mxu0 0
    %2246 = vmatpush1.bf16.xpose.msra.mxu0 0
    %2247 = vmatprep.subr.bf16.mxu0 0
    %2248 = vmatpush1.bf16.xpose.msra.mxu0 0
    %2249 = vmatprep.subr.bf16.mxu0 0
    %2250 = vmatpush1.bf16.xpose.msra.mxu0 0
    %2251 = vmatprep.subr.bf16.mxu0 0
    %2252 = vmatpush1.bf16.xpose.msra.mxu0 0
    %2253 = vmatprep.subr.bf16.mxu0 0
    %2254 = vmatpush1.bf16.xpose.msra.mxu0 0
    %2255 = vmatprep.subr.bf16.mxu0 0
    %2256 = vmatpush1.bf16.xpose.msra.mxu0 0
    %2257 = vmatprep.subr.bf16.mxu0 0
    %2258 = vmatpush1.bf16.xpose.msra.mxu0 0
    %2259 = vmatprep.subr.bf16.mxu0 0
    %2260 = vmatpush1.bf16.xpose.msra.mxu0 0
    %2261 = vmatprep.subr.bf16.mxu0 0
    %2262 = vmatpush1.bf16.xpose.msra.mxu0 0
    %2263 = vmatprep.subr.bf16.mxu0 0
    %2264 = vmatpush1.bf16.xpose.msra.mxu0 0
    %2265 = vmatprep.subr.bf16.mxu0 0
    %2266 = vmatpush1.bf16.xpose.msra.mxu0 0
    %2267 = vmatprep.subr.bf16.mxu0 0
    %2268 = vmatpush1.bf16.xpose.msra.mxu0 0
    %2269 = vmatprep.subr.bf16.mxu0 0
    %2270 = vmatpush1.bf16.xpose.msra.mxu0 0
    %2271 = vmatprep.subr.bf16.mxu0 0
    %2272 = vmatpush1.bf16.xpose.msra.mxu0 0
    %2273 = vmatprep.subr.bf16.mxu0 0
    %2274 = vmatpush1.bf16.xpose.msra.mxu0 0
    %2275 = vmatprep.mubr.bf16.mxu0 0
    %2276 = vmatmul.mubr.bf16.gmra.mrb[0].mxu0 %v2238
    %v2277 = vpop.f32.mrb[0].mxu0
    %v2278 = vadd.f32 0.0, %v2277
    %v2279 = vpop.f32.mrb[0].mxu0
    %v2280 = vpop.f32.mrb[0].mxu0
    %v2281 = vpop.f32.mrb[0].mxu0
    %2282 = vdwg.mxu0
    %2283 = vrot.lane.b32.xlu0 %v237, 64
    %v2284 = vpop.permute.xlu0 %2283
    %2285 = vrot.lane.b32.xlu0 %v245, 64
    %v2286 = vpop.permute.xlu0 %2285
    %v2288 = vsel %vm256, %v2284, 0
    %v2291 = vsel %vm256, %v2286, 0
    %2293 = vmatprep.subr.bf16.mxu0 0
    %2294 = vmatpush1.bf16.xpose.msra.mxu0 %v2291
    %2295 = vmatprep.subr.bf16.mxu0 0
    %2296 = vmatpush1.bf16.xpose.msra.mxu0 0
    %2297 = vmatprep.subr.bf16.mxu0 0
    %2298 = vmatpush1.bf16.xpose.msra.mxu0 0
    %2299 = vmatprep.subr.bf16.mxu0 0
    %2300 = vmatpush1.bf16.xpose.msra.mxu0 0
    %2301 = vmatprep.subr.bf16.mxu0 0
    %2302 = vmatpush1.bf16.xpose.msra.mxu0 0
    %2303 = vmatprep.subr.bf16.mxu0 0
    %2304 = vmatpush1.bf16.xpose.msra.mxu0 0
    %2305 = vmatprep.subr.bf16.mxu0 0
    %2306 = vmatpush1.bf16.xpose.msra.mxu0 0
    %2307 = vmatprep.subr.bf16.mxu0 0
    %2308 = vmatpush1.bf16.xpose.msra.mxu0 0
    %2309 = vmatprep.subr.bf16.mxu0 0
    %2310 = vmatpush1.bf16.xpose.msra.mxu0 0
    %2311 = vmatprep.subr.bf16.mxu0 0
    %2312 = vmatpush1.bf16.xpose.msra.mxu0 0
    %2313 = vmatprep.subr.bf16.mxu0 0
    %2314 = vmatpush1.bf16.xpose.msra.mxu0 0
    %2315 = vmatprep.subr.bf16.mxu0 0
    %2316 = vmatpush1.bf16.xpose.msra.mxu0 0
    %2317 = vmatprep.subr.bf16.mxu0 0
    %2318 = vmatpush1.bf16.xpose.msra.mxu0 0
    %2319 = vmatprep.subr.bf16.mxu0 0
    %2320 = vmatpush1.bf16.xpose.msra.mxu0 0
    %2321 = vmatprep.subr.bf16.mxu0 0
    %2322 = vmatpush1.bf16.xpose.msra.mxu0 0
    %2323 = vmatprep.subr.bf16.mxu0 0
    %2324 = vmatpush1.bf16.xpose.msra.mxu0 0
    %2325 = vmatprep.mubr.bf16.mxu0 0
    %2326 = vmatmul.mubr.bf16.gmra.mrb[0].mxu0 %v2288
    %v2327 = vpop.f32.mrb[0].mxu0
    %v2328 = vadd.f32 0.0, %v2327
    %v2329 = vpop.f32.mrb[0].mxu0
    %v2330 = vpop.f32.mrb[0].mxu0
    %v2331 = vpop.f32.mrb[0].mxu0
    %2332 = vdwg.mxu0
    %2333 = vrot.lane.b32.xlu0 %v238, 64
    %v2334 = vpop.permute.xlu0 %2333
    %2335 = vrot.lane.b32.xlu0 %v246, 64
    %v2336 = vpop.permute.xlu0 %2335
    %v2338 = vsel %vm256, %v2334, 0
    %v2341 = vsel %vm256, %v2336, 0
    %2343 = vmatprep.subr.bf16.mxu0 0
    %2344 = vmatpush1.bf16.xpose.msra.mxu0 %v2341
    %2345 = vmatprep.subr.bf16.mxu0 0
    %2346 = vmatpush1.bf16.xpose.msra.mxu0 0
    %2347 = vmatprep.subr.bf16.mxu0 0
    %2348 = vmatpush1.bf16.xpose.msra.mxu0 0
    %2349 = vmatprep.subr.bf16.mxu0 0
    %2350 = vmatpush1.bf16.xpose.msra.mxu0 0
    %2351 = vmatprep.subr.bf16.mxu0 0
    %2352 = vmatpush1.bf16.xpose.msra.mxu0 0
    %2353 = vmatprep.subr.bf16.mxu0 0
    %2354 = vmatpush1.bf16.xpose.msra.mxu0 0
    %2355 = vmatprep.subr.bf16.mxu0 0
    %2356 = vmatpush1.bf16.xpose.msra.mxu0 0
    %2357 = vmatprep.subr.bf16.mxu0 0
    %2358 = vmatpush1.bf16.xpose.msra.mxu0 0
    %2359 = vmatprep.subr.bf16.mxu0 0
    %2360 = vmatpush1.bf16.xpose.msra.mxu0 0
    %2361 = vmatprep.subr.bf16.mxu0 0
    %2362 = vmatpush1.bf16.xpose.msra.mxu0 0
    %2363 = vmatprep.subr.bf16.mxu0 0
    %2364 = vmatpush1.bf16.xpose.msra.mxu0 0
    %2365 = vmatprep.subr.bf16.mxu0 0
    %2366 = vmatpush1.bf16.xpose.msra.mxu0 0
    %2367 = vmatprep.subr.bf16.mxu0 0
    %2368 = vmatpush1.bf16.xpose.msra.mxu0 0
    %2369 = vmatprep.subr.bf16.mxu0 0
    %2370 = vmatpush1.bf16.xpose.msra.mxu0 0
    %2371 = vmatprep.subr.bf16.mxu0 0
    %2372 = vmatpush1.bf16.xpose.msra.mxu0 0
    %2373 = vmatprep.subr.bf16.mxu0 0
    %2374 = vmatpush1.bf16.xpose.msra.mxu0 0
    %2375 = vmatprep.mubr.bf16.mxu0 0
    %2376 = vmatmul.mubr.bf16.gmra.mrb[0].mxu0 %v2338
    %v2377 = vpop.f32.mrb[0].mxu0
    %v2378 = vadd.f32 0.0, %v2377
    %v2379 = vpop.f32.mrb[0].mxu0
    %v2380 = vpop.f32.mrb[0].mxu0
    %v2381 = vpop.f32.mrb[0].mxu0
    %2382 = vdwg.mxu0
    %2383 = vrot.lane.b32.xlu0 %v239, 64
    %v2384 = vpop.permute.xlu0 %2383
    %2385 = vrot.lane.b32.xlu0 %v247, 64
    %v2386 = vpop.permute.xlu0 %2385
    %v2388 = vsel %vm256, %v2384, 0
    %v2391 = vsel %vm256, %v2386, 0
    %2393 = vmatprep.subr.bf16.mxu0 0
    %2394 = vmatpush1.bf16.xpose.msra.mxu0 %v2391
    %2395 = vmatprep.subr.bf16.mxu0 0
    %2396 = vmatpush1.bf16.xpose.msra.mxu0 0
    %2397 = vmatprep.subr.bf16.mxu0 0
    %2398 = vmatpush1.bf16.xpose.msra.mxu0 0
    %2399 = vmatprep.subr.bf16.mxu0 0
    %2400 = vmatpush1.bf16.xpose.msra.mxu0 0
    %2401 = vmatprep.subr.bf16.mxu0 0
    %2402 = vmatpush1.bf16.xpose.msra.mxu0 0
    %2403 = vmatprep.subr.bf16.mxu0 0
    %2404 = vmatpush1.bf16.xpose.msra.mxu0 0
    %2405 = vmatprep.subr.bf16.mxu0 0
    %2406 = vmatpush1.bf16.xpose.msra.mxu0 0
    %2407 = vmatprep.subr.bf16.mxu0 0
    %2408 = vmatpush1.bf16.xpose.msra.mxu0 0
    %2409 = vmatprep.subr.bf16.mxu0 0
    %2410 = vmatpush1.bf16.xpose.msra.mxu0 0
    %2411 = vmatprep.subr.bf16.mxu0 0
    %2412 = vmatpush1.bf16.xpose.msra.mxu0 0
    %2413 = vmatprep.subr.bf16.mxu0 0
    %2414 = vmatpush1.bf16.xpose.msra.mxu0 0
    %2415 = vmatprep.subr.bf16.mxu0 0
    %2416 = vmatpush1.bf16.xpose.msra.mxu0 0
    %2417 = vmatprep.subr.bf16.mxu0 0
    %2418 = vmatpush1.bf16.xpose.msra.mxu0 0
    %2419 = vmatprep.subr.bf16.mxu0 0
    %2420 = vmatpush1.bf16.xpose.msra.mxu0 0
    %2421 = vmatprep.subr.bf16.mxu0 0
    %2422 = vmatpush1.bf16.xpose.msra.mxu0 0
    %2423 = vmatprep.subr.bf16.mxu0 0
    %2424 = vmatpush1.bf16.xpose.msra.mxu0 0
    %2425 = vmatprep.mubr.bf16.mxu0 0
    %2426 = vmatmul.mubr.bf16.gmra.mrb[0].mxu0 %v2388
    %v2427 = vpop.f32.mrb[0].mxu0
    %v2428 = vadd.f32 0.0, %v2427
    %v2429 = vpop.f32.mrb[0].mxu0
    %v2430 = vpop.f32.mrb[0].mxu0
    %v2431 = vpop.f32.mrb[0].mxu0
    %2432 = vdwg.mxu0
    %v2433 = vmul.f32 %v2078, 0.17677669
    %v2434 = vmul.f32 %v2128, 0.17677669
    %v2435 = vmul.f32 %v2178, 0.17677669
    %v2436 = vmul.f32 %v2228, 0.17677669
    %v2437 = vmul.f32 %v2278, 0.17677669
    %v2438 = vmul.f32 %v2328, 0.17677669
    %v2439 = vmul.f32 %v2378, 0.17677669
    %v2440 = vmul.f32 %v2428, 0.17677669
    %v2441 = vsel %vm634, %v2433, -1e+30
    %v2442 = vsel %vm634, %v2434, -1e+30
    %v2443 = vsel %vm634, %v2435, -1e+30
    %v2444 = vsel %vm634, %v2436, -1e+30
    %v2445 = vsel %vm634, %v2437, -1e+30
    %v2446 = vsel %vm634, %v2438, -1e+30
    %v2447 = vsel %vm634, %v2439, -1e+30
    %v2448 = vsel %vm634, %v2440, -1e+30
    %v2449 = vsel %vm643, %v2441, -inf
    %2450 = vmax.xlane.f32.xlu0 %v2449
    %v2451 = vpop.xlane.xlu0 %2450
    %v2452 = vsel %vm643, %v2442, -inf
    %2453 = vmax.xlane.f32.xlu0 %v2452
    %v2454 = vpop.xlane.xlu0 %2453
    %v2455 = vsel %vm643, %v2443, -inf
    %2456 = vmax.xlane.f32.xlu0 %v2455
    %v2457 = vpop.xlane.xlu0 %2456
    %v2458 = vsel %vm643, %v2444, -inf
    %2459 = vmax.xlane.f32.xlu0 %v2458
    %v2460 = vpop.xlane.xlu0 %2459
    %v2461 = vsel %vm643, %v2445, -inf
    %2462 = vmax.xlane.f32.xlu0 %v2461
    %v2463 = vpop.xlane.xlu0 %2462
    %v2464 = vsel %vm643, %v2446, -inf
    %2465 = vmax.xlane.f32.xlu0 %v2464
    %v2466 = vpop.xlane.xlu0 %2465
    %v2467 = vsel %vm643, %v2447, -inf
    %2468 = vmax.xlane.f32.xlu0 %v2467
    %v2469 = vpop.xlane.xlu0 %2468
    %v2470 = vsel %vm643, %v2448, -inf
    %2471 = vmax.xlane.f32.xlu0 %v2470
    %v2472 = vpop.xlane.xlu0 %2471
    %v2473 = vsub.f32 %v2441, %v2451
    %v2474 = vsub.f32 %v2442, %v2454
    %v2475 = vsub.f32 %v2443, %v2457
    %v2476 = vsub.f32 %v2444, %v2460
    %v2477 = vsub.f32 %v2445, %v2463
    %v2478 = vsub.f32 %v2446, %v2466
    %v2479 = vsub.f32 %v2447, %v2469
    %v2480 = vsub.f32 %v2448, %v2472
    %v2481 = vmul.f32 %v2473, 1.442695
    %v2482 = vpow.pop %v2481
    %v2483 = vmul.f32 %v2474, 1.442695
    %v2484 = vpow.pop %v2483
    %v2485 = vmul.f32 %v2475, 1.442695
    %v2486 = vpow.pop %v2485
    %v2487 = vmul.f32 %v2476, 1.442695
    %v2488 = vpow.pop %v2487
    %v2489 = vmul.f32 %v2477, 1.442695
    %v2490 = vpow.pop %v2489
    %v2491 = vmul.f32 %v2478, 1.442695
    %v2492 = vpow.pop %v2491
    %v2493 = vmul.f32 %v2479, 1.442695
    %v2494 = vpow.pop %v2493
    %v2495 = vmul.f32 %v2480, 1.442695
    %v2496 = vpow.pop %v2495
    %v2497 = vsel %vm643, %v2482, 0.0
    %2498 = vadd.xlane.f32.xlu0 %v2497
    %v2499 = vpop.xlane.xlu0 %2498
    %v2500 = vsel %vm643, %v2484, 0.0
    %2501 = vadd.xlane.f32.xlu0 %v2500
    %v2502 = vpop.xlane.xlu0 %2501
    %v2503 = vsel %vm643, %v2486, 0.0
    %2504 = vadd.xlane.f32.xlu0 %v2503
    %v2505 = vpop.xlane.xlu0 %2504
    %v2506 = vsel %vm643, %v2488, 0.0
    %2507 = vadd.xlane.f32.xlu0 %v2506
    %v2508 = vpop.xlane.xlu0 %2507
    %v2509 = vsel %vm643, %v2490, 0.0
    %2510 = vadd.xlane.f32.xlu0 %v2509
    %v2511 = vpop.xlane.xlu0 %2510
    %v2512 = vsel %vm643, %v2492, 0.0
    %2513 = vadd.xlane.f32.xlu0 %v2512
    %v2514 = vpop.xlane.xlu0 %2513
    %v2515 = vsel %vm643, %v2494, 0.0
    %2516 = vadd.xlane.f32.xlu0 %v2515
    %v2517 = vpop.xlane.xlu0 %2516
    %v2518 = vsel %vm643, %v2496, 0.0
    %2519 = vadd.xlane.f32.xlu0 %v2518
    %v2520 = vpop.xlane.xlu0 %2519
    %v2521 = vrcp.pop %v2499
    %v2522 = vrcp.pop %v2502
    %v2523 = vrcp.pop %v2505
    %v2524 = vrcp.pop %v2508
    %v2525 = vrcp.pop %v2511
    %v2526 = vrcp.pop %v2514
    %v2527 = vrcp.pop %v2517
    %v2528 = vrcp.pop %v2520
    %v2529 = vmul.f32 %v2482, %v2521
    %v2530 = vmul.f32 %v2484, %v2522
    %v2531 = vmul.f32 %v2486, %v2523
    %v2532 = vmul.f32 %v2488, %v2524
    %v2533 = vmul.f32 %v2490, %v2525
    %v2534 = vmul.f32 %v2492, %v2526
    %v2535 = vmul.f32 %v2494, %v2527
    %v2536 = vmul.f32 %v2496, %v2528
    %v2537 = vpack.c.bf16 %v2529, %v2529
    %v2538 = vpack.c.bf16 %v2530, %v2530
    %v2539 = vpack.c.bf16 %v2531, %v2531
    %v2540 = vpack.c.bf16 %v2532, %v2532
    %v2541 = vpack.c.bf16 %v2533, %v2533
    %v2542 = vpack.c.bf16 %v2534, %v2534
    %v2543 = vpack.c.bf16 %v2535, %v2535
    %v2544 = vpack.c.bf16 %v2536, %v2536
    %2545 = vrot.lane.b32.xlu0 %v248, 64
    %v2546 = vpop.permute.xlu0 %2545
    %v2548 = vsel %vm740, %v2537, 0
    %v2551 = vand.u32 %v2546, %v747
    %2553 = vmatprep.subr.bf16.mxu0 0
    %2554 = vmatpush1.bf16.msra.mxu0 %v2551
    %2555 = vmatprep.subr.bf16.mxu0 0
    %2556 = vmatpush1.bf16.msra.mxu0 0
    %2557 = vmatprep.subr.bf16.mxu0 0
    %2558 = vmatpush1.bf16.msra.mxu0 0
    %2559 = vmatprep.subr.bf16.mxu0 0
    %2560 = vmatpush1.bf16.msra.mxu0 0
    %2561 = vmatprep.subr.bf16.mxu0 0
    %2562 = vmatpush1.bf16.msra.mxu0 0
    %2563 = vmatprep.subr.bf16.mxu0 0
    %2564 = vmatpush1.bf16.msra.mxu0 0
    %2565 = vmatprep.subr.bf16.mxu0 0
    %2566 = vmatpush1.bf16.msra.mxu0 0
    %2567 = vmatprep.subr.bf16.mxu0 0
    %2568 = vmatpush1.bf16.msra.mxu0 0
    %2569 = vmatprep.subr.bf16.mxu0 0
    %2570 = vmatpush1.bf16.msra.mxu0 0
    %2571 = vmatprep.subr.bf16.mxu0 0
    %2572 = vmatpush1.bf16.msra.mxu0 0
    %2573 = vmatprep.subr.bf16.mxu0 0
    %2574 = vmatpush1.bf16.msra.mxu0 0
    %2575 = vmatprep.subr.bf16.mxu0 0
    %2576 = vmatpush1.bf16.msra.mxu0 0
    %2577 = vmatprep.subr.bf16.mxu0 0
    %2578 = vmatpush1.bf16.msra.mxu0 0
    %2579 = vmatprep.subr.bf16.mxu0 0
    %2580 = vmatpush1.bf16.msra.mxu0 0
    %2581 = vmatprep.subr.bf16.mxu0 0
    %2582 = vmatpush1.bf16.msra.mxu0 0
    %2583 = vmatprep.subr.bf16.mxu0 0
    %2584 = vmatpush1.bf16.msra.mxu0 0
    %2585 = vmatprep.mubr.bf16.mxu0 0
    %2586 = vmatmul.mubr.bf16.gmra.mrb[0].mxu0 %v2548
    %v2587 = vpop.f32.mrb[0].mxu0
    %v2588 = vadd.f32 0.0, %v2587
    %v2589 = vpop.f32.mrb[0].mxu0
    %v2590 = vpop.f32.mrb[0].mxu0
    %v2591 = vpop.f32.mrb[0].mxu0
    %2592 = vdwg.mxu0
    %2593 = vrot.lane.b32.xlu0 %v249, 64
    %v2594 = vpop.permute.xlu0 %2593
    %v2596 = vsel %vm740, %v2538, 0
    %v2599 = vand.u32 %v2594, %v747
    %2601 = vmatprep.subr.bf16.mxu0 0
    %2602 = vmatpush1.bf16.msra.mxu0 %v2599
    %2603 = vmatprep.subr.bf16.mxu0 0
    %2604 = vmatpush1.bf16.msra.mxu0 0
    %2605 = vmatprep.subr.bf16.mxu0 0
    %2606 = vmatpush1.bf16.msra.mxu0 0
    %2607 = vmatprep.subr.bf16.mxu0 0
    %2608 = vmatpush1.bf16.msra.mxu0 0
    %2609 = vmatprep.subr.bf16.mxu0 0
    %2610 = vmatpush1.bf16.msra.mxu0 0
    %2611 = vmatprep.subr.bf16.mxu0 0
    %2612 = vmatpush1.bf16.msra.mxu0 0
    %2613 = vmatprep.subr.bf16.mxu0 0
    %2614 = vmatpush1.bf16.msra.mxu0 0
    %2615 = vmatprep.subr.bf16.mxu0 0
    %2616 = vmatpush1.bf16.msra.mxu0 0
    %2617 = vmatprep.subr.bf16.mxu0 0
    %2618 = vmatpush1.bf16.msra.mxu0 0
    %2619 = vmatprep.subr.bf16.mxu0 0
    %2620 = vmatpush1.bf16.msra.mxu0 0
    %2621 = vmatprep.subr.bf16.mxu0 0
    %2622 = vmatpush1.bf16.msra.mxu0 0
    %2623 = vmatprep.subr.bf16.mxu0 0
    %2624 = vmatpush1.bf16.msra.mxu0 0
    %2625 = vmatprep.subr.bf16.mxu0 0
    %2626 = vmatpush1.bf16.msra.mxu0 0
    %2627 = vmatprep.subr.bf16.mxu0 0
    %2628 = vmatpush1.bf16.msra.mxu0 0
    %2629 = vmatprep.subr.bf16.mxu0 0
    %2630 = vmatpush1.bf16.msra.mxu0 0
    %2631 = vmatprep.subr.bf16.mxu0 0
    %2632 = vmatpush1.bf16.msra.mxu0 0
    %2633 = vmatprep.mubr.bf16.mxu0 0
    %2634 = vmatmul.mubr.bf16.gmra.mrb[0].mxu0 %v2596
    %v2635 = vpop.f32.mrb[0].mxu0
    %v2636 = vadd.f32 0.0, %v2635
    %v2637 = vpop.f32.mrb[0].mxu0
    %v2638 = vpop.f32.mrb[0].mxu0
    %v2639 = vpop.f32.mrb[0].mxu0
    %2640 = vdwg.mxu0
    %2641 = vrot.lane.b32.xlu0 %v250, 64
    %v2642 = vpop.permute.xlu0 %2641
    %v2644 = vsel %vm740, %v2539, 0
    %v2647 = vand.u32 %v2642, %v747
    %2649 = vmatprep.subr.bf16.mxu0 0
    %2650 = vmatpush1.bf16.msra.mxu0 %v2647
    %2651 = vmatprep.subr.bf16.mxu0 0
    %2652 = vmatpush1.bf16.msra.mxu0 0
    %2653 = vmatprep.subr.bf16.mxu0 0
    %2654 = vmatpush1.bf16.msra.mxu0 0
    %2655 = vmatprep.subr.bf16.mxu0 0
    %2656 = vmatpush1.bf16.msra.mxu0 0
    %2657 = vmatprep.subr.bf16.mxu0 0
    %2658 = vmatpush1.bf16.msra.mxu0 0
    %2659 = vmatprep.subr.bf16.mxu0 0
    %2660 = vmatpush1.bf16.msra.mxu0 0
    %2661 = vmatprep.subr.bf16.mxu0 0
    %2662 = vmatpush1.bf16.msra.mxu0 0
    %2663 = vmatprep.subr.bf16.mxu0 0
    %2664 = vmatpush1.bf16.msra.mxu0 0
    %2665 = vmatprep.subr.bf16.mxu0 0
    %2666 = vmatpush1.bf16.msra.mxu0 0
    %2667 = vmatprep.subr.bf16.mxu0 0
    %2668 = vmatpush1.bf16.msra.mxu0 0
    %2669 = vmatprep.subr.bf16.mxu0 0
    %2670 = vmatpush1.bf16.msra.mxu0 0
    %2671 = vmatprep.subr.bf16.mxu0 0
    %2672 = vmatpush1.bf16.msra.mxu0 0
    %2673 = vmatprep.subr.bf16.mxu0 0
    %2674 = vmatpush1.bf16.msra.mxu0 0
    %2675 = vmatprep.subr.bf16.mxu0 0
    %2676 = vmatpush1.bf16.msra.mxu0 0
    %2677 = vmatprep.subr.bf16.mxu0 0
    %2678 = vmatpush1.bf16.msra.mxu0 0
    %2679 = vmatprep.subr.bf16.mxu0 0
    %2680 = vmatpush1.bf16.msra.mxu0 0
    %2681 = vmatprep.mubr.bf16.mxu0 0
    %2682 = vmatmul.mubr.bf16.gmra.mrb[0].mxu0 %v2644
    %v2683 = vpop.f32.mrb[0].mxu0
    %v2684 = vadd.f32 0.0, %v2683
    %v2685 = vpop.f32.mrb[0].mxu0
    %v2686 = vpop.f32.mrb[0].mxu0
    %v2687 = vpop.f32.mrb[0].mxu0
    %2688 = vdwg.mxu0
    %2689 = vrot.lane.b32.xlu0 %v251, 64
    %v2690 = vpop.permute.xlu0 %2689
    %v2692 = vsel %vm740, %v2540, 0
    %v2695 = vand.u32 %v2690, %v747
    %2697 = vmatprep.subr.bf16.mxu0 0
    %2698 = vmatpush1.bf16.msra.mxu0 %v2695
    %2699 = vmatprep.subr.bf16.mxu0 0
    %2700 = vmatpush1.bf16.msra.mxu0 0
    %2701 = vmatprep.subr.bf16.mxu0 0
    %2702 = vmatpush1.bf16.msra.mxu0 0
    %2703 = vmatprep.subr.bf16.mxu0 0
    %2704 = vmatpush1.bf16.msra.mxu0 0
    %2705 = vmatprep.subr.bf16.mxu0 0
    %2706 = vmatpush1.bf16.msra.mxu0 0
    %2707 = vmatprep.subr.bf16.mxu0 0
    %2708 = vmatpush1.bf16.msra.mxu0 0
    %2709 = vmatprep.subr.bf16.mxu0 0
    %2710 = vmatpush1.bf16.msra.mxu0 0
    %2711 = vmatprep.subr.bf16.mxu0 0
    %2712 = vmatpush1.bf16.msra.mxu0 0
    %2713 = vmatprep.subr.bf16.mxu0 0
    %2714 = vmatpush1.bf16.msra.mxu0 0
    %2715 = vmatprep.subr.bf16.mxu0 0
    %2716 = vmatpush1.bf16.msra.mxu0 0
    %2717 = vmatprep.subr.bf16.mxu0 0
    %2718 = vmatpush1.bf16.msra.mxu0 0
    %2719 = vmatprep.subr.bf16.mxu0 0
    %2720 = vmatpush1.bf16.msra.mxu0 0
    %2721 = vmatprep.subr.bf16.mxu0 0
    %2722 = vmatpush1.bf16.msra.mxu0 0
    %2723 = vmatprep.subr.bf16.mxu0 0
    %2724 = vmatpush1.bf16.msra.mxu0 0
    %2725 = vmatprep.subr.bf16.mxu0 0
    %2726 = vmatpush1.bf16.msra.mxu0 0
    %2727 = vmatprep.subr.bf16.mxu0 0
    %2728 = vmatpush1.bf16.msra.mxu0 0
    %2729 = vmatprep.mubr.bf16.mxu0 0
    %2730 = vmatmul.mubr.bf16.gmra.mrb[0].mxu0 %v2692
    %v2731 = vpop.f32.mrb[0].mxu0
    %v2732 = vadd.f32 0.0, %v2731
    %v2733 = vpop.f32.mrb[0].mxu0
    %v2734 = vpop.f32.mrb[0].mxu0
    %v2735 = vpop.f32.mrb[0].mxu0
    %2736 = vdwg.mxu0
    %2737 = vrot.lane.b32.xlu0 %v252, 64
    %v2738 = vpop.permute.xlu0 %2737
    %v2740 = vsel %vm740, %v2541, 0
    %v2743 = vand.u32 %v2738, %v747
    %2745 = vmatprep.subr.bf16.mxu0 0
    %2746 = vmatpush1.bf16.msra.mxu0 %v2743
    %2747 = vmatprep.subr.bf16.mxu0 0
    %2748 = vmatpush1.bf16.msra.mxu0 0
    %2749 = vmatprep.subr.bf16.mxu0 0
    %2750 = vmatpush1.bf16.msra.mxu0 0
    %2751 = vmatprep.subr.bf16.mxu0 0
    %2752 = vmatpush1.bf16.msra.mxu0 0
    %2753 = vmatprep.subr.bf16.mxu0 0
    %2754 = vmatpush1.bf16.msra.mxu0 0
    %2755 = vmatprep.subr.bf16.mxu0 0
    %2756 = vmatpush1.bf16.msra.mxu0 0
    %2757 = vmatprep.subr.bf16.mxu0 0
    %2758 = vmatpush1.bf16.msra.mxu0 0
    %2759 = vmatprep.subr.bf16.mxu0 0
    %2760 = vmatpush1.bf16.msra.mxu0 0
    %2761 = vmatprep.subr.bf16.mxu0 0
    %2762 = vmatpush1.bf16.msra.mxu0 0
    %2763 = vmatprep.subr.bf16.mxu0 0
    %2764 = vmatpush1.bf16.msra.mxu0 0
    %2765 = vmatprep.subr.bf16.mxu0 0
    %2766 = vmatpush1.bf16.msra.mxu0 0
    %2767 = vmatprep.subr.bf16.mxu0 0
    %2768 = vmatpush1.bf16.msra.mxu0 0
    %2769 = vmatprep.subr.bf16.mxu0 0
    %2770 = vmatpush1.bf16.msra.mxu0 0
    %2771 = vmatprep.subr.bf16.mxu0 0
    %2772 = vmatpush1.bf16.msra.mxu0 0
    %2773 = vmatprep.subr.bf16.mxu0 0
    %2774 = vmatpush1.bf16.msra.mxu0 0
    %2775 = vmatprep.subr.bf16.mxu0 0
    %2776 = vmatpush1.bf16.msra.mxu0 0
    %2777 = vmatprep.mubr.bf16.mxu0 0
    %2778 = vmatmul.mubr.bf16.gmra.mrb[0].mxu0 %v2740
    %v2779 = vpop.f32.mrb[0].mxu0
    %v2780 = vadd.f32 0.0, %v2779
    %v2781 = vpop.f32.mrb[0].mxu0
    %v2782 = vpop.f32.mrb[0].mxu0
    %v2783 = vpop.f32.mrb[0].mxu0
    %2784 = vdwg.mxu0
    %2785 = vrot.lane.b32.xlu0 %v253, 64
    %v2786 = vpop.permute.xlu0 %2785
    %v2788 = vsel %vm740, %v2542, 0
    %v2791 = vand.u32 %v2786, %v747
    %2793 = vmatprep.subr.bf16.mxu0 0
    %2794 = vmatpush1.bf16.msra.mxu0 %v2791
    %2795 = vmatprep.subr.bf16.mxu0 0
    %2796 = vmatpush1.bf16.msra.mxu0 0
    %2797 = vmatprep.subr.bf16.mxu0 0
    %2798 = vmatpush1.bf16.msra.mxu0 0
    %2799 = vmatprep.subr.bf16.mxu0 0
    %2800 = vmatpush1.bf16.msra.mxu0 0
    %2801 = vmatprep.subr.bf16.mxu0 0
    %2802 = vmatpush1.bf16.msra.mxu0 0
    %2803 = vmatprep.subr.bf16.mxu0 0
    %2804 = vmatpush1.bf16.msra.mxu0 0
    %2805 = vmatprep.subr.bf16.mxu0 0
    %2806 = vmatpush1.bf16.msra.mxu0 0
    %2807 = vmatprep.subr.bf16.mxu0 0
    %2808 = vmatpush1.bf16.msra.mxu0 0
    %2809 = vmatprep.subr.bf16.mxu0 0
    %2810 = vmatpush1.bf16.msra.mxu0 0
    %2811 = vmatprep.subr.bf16.mxu0 0
    %2812 = vmatpush1.bf16.msra.mxu0 0
    %2813 = vmatprep.subr.bf16.mxu0 0
    %2814 = vmatpush1.bf16.msra.mxu0 0
    %2815 = vmatprep.subr.bf16.mxu0 0
    %2816 = vmatpush1.bf16.msra.mxu0 0
    %2817 = vmatprep.subr.bf16.mxu0 0
    %2818 = vmatpush1.bf16.msra.mxu0 0
    %2819 = vmatprep.subr.bf16.mxu0 0
    %2820 = vmatpush1.bf16.msra.mxu0 0
    %2821 = vmatprep.subr.bf16.mxu0 0
    %2822 = vmatpush1.bf16.msra.mxu0 0
    %2823 = vmatprep.subr.bf16.mxu0 0
    %2824 = vmatpush1.bf16.msra.mxu0 0
    %2825 = vmatprep.mubr.bf16.mxu0 0
    %2826 = vmatmul.mubr.bf16.gmra.mrb[0].mxu0 %v2788
    %v2827 = vpop.f32.mrb[0].mxu0
    %v2828 = vadd.f32 0.0, %v2827
    %v2829 = vpop.f32.mrb[0].mxu0
    %v2830 = vpop.f32.mrb[0].mxu0
    %v2831 = vpop.f32.mrb[0].mxu0
    %2832 = vdwg.mxu0
    %2833 = vrot.lane.b32.xlu0 %v254, 64
    %v2834 = vpop.permute.xlu0 %2833
    %v2836 = vsel %vm740, %v2543, 0
    %v2839 = vand.u32 %v2834, %v747
    %2841 = vmatprep.subr.bf16.mxu0 0
    %2842 = vmatpush1.bf16.msra.mxu0 %v2839
    %2843 = vmatprep.subr.bf16.mxu0 0
    %2844 = vmatpush1.bf16.msra.mxu0 0
    %2845 = vmatprep.subr.bf16.mxu0 0
    %2846 = vmatpush1.bf16.msra.mxu0 0
    %2847 = vmatprep.subr.bf16.mxu0 0
    %2848 = vmatpush1.bf16.msra.mxu0 0
    %2849 = vmatprep.subr.bf16.mxu0 0
    %2850 = vmatpush1.bf16.msra.mxu0 0
    %2851 = vmatprep.subr.bf16.mxu0 0
    %2852 = vmatpush1.bf16.msra.mxu0 0
    %2853 = vmatprep.subr.bf16.mxu0 0
    %2854 = vmatpush1.bf16.msra.mxu0 0
    %2855 = vmatprep.subr.bf16.mxu0 0
    %2856 = vmatpush1.bf16.msra.mxu0 0
    %2857 = vmatprep.subr.bf16.mxu0 0
    %2858 = vmatpush1.bf16.msra.mxu0 0
    %2859 = vmatprep.subr.bf16.mxu0 0
    %2860 = vmatpush1.bf16.msra.mxu0 0
    %2861 = vmatprep.subr.bf16.mxu0 0
    %2862 = vmatpush1.bf16.msra.mxu0 0
    %2863 = vmatprep.subr.bf16.mxu0 0
    %2864 = vmatpush1.bf16.msra.mxu0 0
    %2865 = vmatprep.subr.bf16.mxu0 0
    %2866 = vmatpush1.bf16.msra.mxu0 0
    %2867 = vmatprep.subr.bf16.mxu0 0
    %2868 = vmatpush1.bf16.msra.mxu0 0
    %2869 = vmatprep.subr.bf16.mxu0 0
    %2870 = vmatpush1.bf16.msra.mxu0 0
    %2871 = vmatprep.subr.bf16.mxu0 0
    %2872 = vmatpush1.bf16.msra.mxu0 0
    %2873 = vmatprep.mubr.bf16.mxu0 0
    %2874 = vmatmul.mubr.bf16.gmra.mrb[0].mxu0 %v2836
    %v2875 = vpop.f32.mrb[0].mxu0
    %v2876 = vadd.f32 0.0, %v2875
    %v2877 = vpop.f32.mrb[0].mxu0
    %v2878 = vpop.f32.mrb[0].mxu0
    %v2879 = vpop.f32.mrb[0].mxu0
    %2880 = vdwg.mxu0
    %2881 = vrot.lane.b32.xlu0 %v255, 64
    %v2882 = vpop.permute.xlu0 %2881
    %v2884 = vsel %vm740, %v2544, 0
    %v2887 = vand.u32 %v2882, %v747
    %2889 = vmatprep.subr.bf16.mxu0 0
    %2890 = vmatpush1.bf16.msra.mxu0 %v2887
    %2891 = vmatprep.subr.bf16.mxu0 0
    %2892 = vmatpush1.bf16.msra.mxu0 0
    %2893 = vmatprep.subr.bf16.mxu0 0
    %2894 = vmatpush1.bf16.msra.mxu0 0
    %2895 = vmatprep.subr.bf16.mxu0 0
    %2896 = vmatpush1.bf16.msra.mxu0 0
    %2897 = vmatprep.subr.bf16.mxu0 0
    %2898 = vmatpush1.bf16.msra.mxu0 0
    %2899 = vmatprep.subr.bf16.mxu0 0
    %2900 = vmatpush1.bf16.msra.mxu0 0
    %2901 = vmatprep.subr.bf16.mxu0 0
    %2902 = vmatpush1.bf16.msra.mxu0 0
    %2903 = vmatprep.subr.bf16.mxu0 0
    %2904 = vmatpush1.bf16.msra.mxu0 0
    %2905 = vmatprep.subr.bf16.mxu0 0
    %2906 = vmatpush1.bf16.msra.mxu0 0
    %2907 = vmatprep.subr.bf16.mxu0 0
    %2908 = vmatpush1.bf16.msra.mxu0 0
    %2909 = vmatprep.subr.bf16.mxu0 0
    %2910 = vmatpush1.bf16.msra.mxu0 0
    %2911 = vmatprep.subr.bf16.mxu0 0
    %2912 = vmatpush1.bf16.msra.mxu0 0
    %2913 = vmatprep.subr.bf16.mxu0 0
    %2914 = vmatpush1.bf16.msra.mxu0 0
    %2915 = vmatprep.subr.bf16.mxu0 0
    %2916 = vmatpush1.bf16.msra.mxu0 0
    %2917 = vmatprep.subr.bf16.mxu0 0
    %2918 = vmatpush1.bf16.msra.mxu0 0
    %2919 = vmatprep.subr.bf16.mxu0 0
    %2920 = vmatpush1.bf16.msra.mxu0 0
    %2921 = vmatprep.mubr.bf16.mxu0 0
    %2922 = vmatmul.mubr.bf16.gmra.mrb[0].mxu0 %v2884
    %v2923 = vpop.f32.mrb[0].mxu0
    %v2924 = vadd.f32 0.0, %v2923
    %v2925 = vpop.f32.mrb[0].mxu0
    %v2926 = vpop.f32.mrb[0].mxu0
    %v2927 = vpop.f32.mrb[0].mxu0
    %2928 = vdwg.mxu0
    %2929 = vrot.lane.b32.xlu0 %v232, 32
    %v2930 = vpop.permute.xlu0 %2929
    %2931 = vrot.lane.b32.xlu0 %v240, 32
    %v2932 = vpop.permute.xlu0 %2931
    %v2934 = vsel %vm256, %v2930, 0
    %v2937 = vsel %vm256, %v2932, 0
    %2939 = vmatprep.subr.bf16.mxu0 0
    %2940 = vmatpush1.bf16.xpose.msra.mxu0 %v2937
    %2941 = vmatprep.subr.bf16.mxu0 0
    %2942 = vmatpush1.bf16.xpose.msra.mxu0 0
    %2943 = vmatprep.subr.bf16.mxu0 0
    %2944 = vmatpush1.bf16.xpose.msra.mxu0 0
    %2945 = vmatprep.subr.bf16.mxu0 0
    %2946 = vmatpush1.bf16.xpose.msra.mxu0 0
    %2947 = vmatprep.subr.bf16.mxu0 0
    %2948 = vmatpush1.bf16.xpose.msra.mxu0 0
    %2949 = vmatprep.subr.bf16.mxu0 0
    %2950 = vmatpush1.bf16.xpose.msra.mxu0 0
    %2951 = vmatprep.subr.bf16.mxu0 0
    %2952 = vmatpush1.bf16.xpose.msra.mxu0 0
    %2953 = vmatprep.subr.bf16.mxu0 0
    %2954 = vmatpush1.bf16.xpose.msra.mxu0 0
    %2955 = vmatprep.subr.bf16.mxu0 0
    %2956 = vmatpush1.bf16.xpose.msra.mxu0 0
    %2957 = vmatprep.subr.bf16.mxu0 0
    %2958 = vmatpush1.bf16.xpose.msra.mxu0 0
    %2959 = vmatprep.subr.bf16.mxu0 0
    %2960 = vmatpush1.bf16.xpose.msra.mxu0 0
    %2961 = vmatprep.subr.bf16.mxu0 0
    %2962 = vmatpush1.bf16.xpose.msra.mxu0 0
    %2963 = vmatprep.subr.bf16.mxu0 0
    %2964 = vmatpush1.bf16.xpose.msra.mxu0 0
    %2965 = vmatprep.subr.bf16.mxu0 0
    %2966 = vmatpush1.bf16.xpose.msra.mxu0 0
    %2967 = vmatprep.subr.bf16.mxu0 0
    %2968 = vmatpush1.bf16.xpose.msra.mxu0 0
    %2969 = vmatprep.subr.bf16.mxu0 0
    %2970 = vmatpush1.bf16.xpose.msra.mxu0 0
    %2971 = vmatprep.mubr.bf16.mxu0 0
    %2972 = vmatmul.mubr.bf16.gmra.mrb[0].mxu0 %v2934
    %v2973 = vpop.f32.mrb[0].mxu0
    %v2974 = vadd.f32 0.0, %v2973
    %v2975 = vpop.f32.mrb[0].mxu0
    %v2976 = vpop.f32.mrb[0].mxu0
    %v2977 = vpop.f32.mrb[0].mxu0
    %2978 = vdwg.mxu0
    %2979 = vrot.lane.b32.xlu0 %v233, 32
    %v2980 = vpop.permute.xlu0 %2979
    %2981 = vrot.lane.b32.xlu0 %v241, 32
    %v2982 = vpop.permute.xlu0 %2981
    %v2984 = vsel %vm256, %v2980, 0
    %v2987 = vsel %vm256, %v2982, 0
    %2989 = vmatprep.subr.bf16.mxu0 0
    %2990 = vmatpush1.bf16.xpose.msra.mxu0 %v2987
    %2991 = vmatprep.subr.bf16.mxu0 0
    %2992 = vmatpush1.bf16.xpose.msra.mxu0 0
    %2993 = vmatprep.subr.bf16.mxu0 0
    %2994 = vmatpush1.bf16.xpose.msra.mxu0 0
    %2995 = vmatprep.subr.bf16.mxu0 0
    %2996 = vmatpush1.bf16.xpose.msra.mxu0 0
    %2997 = vmatprep.subr.bf16.mxu0 0
    %2998 = vmatpush1.bf16.xpose.msra.mxu0 0
    %2999 = vmatprep.subr.bf16.mxu0 0
    %3000 = vmatpush1.bf16.xpose.msra.mxu0 0
    %3001 = vmatprep.subr.bf16.mxu0 0
    %3002 = vmatpush1.bf16.xpose.msra.mxu0 0
    %3003 = vmatprep.subr.bf16.mxu0 0
    %3004 = vmatpush1.bf16.xpose.msra.mxu0 0
    %3005 = vmatprep.subr.bf16.mxu0 0
    %3006 = vmatpush1.bf16.xpose.msra.mxu0 0
    %3007 = vmatprep.subr.bf16.mxu0 0
    %3008 = vmatpush1.bf16.xpose.msra.mxu0 0
    %3009 = vmatprep.subr.bf16.mxu0 0
    %3010 = vmatpush1.bf16.xpose.msra.mxu0 0
    %3011 = vmatprep.subr.bf16.mxu0 0
    %3012 = vmatpush1.bf16.xpose.msra.mxu0 0
    %3013 = vmatprep.subr.bf16.mxu0 0
    %3014 = vmatpush1.bf16.xpose.msra.mxu0 0
    %3015 = vmatprep.subr.bf16.mxu0 0
    %3016 = vmatpush1.bf16.xpose.msra.mxu0 0
    %3017 = vmatprep.subr.bf16.mxu0 0
    %3018 = vmatpush1.bf16.xpose.msra.mxu0 0
    %3019 = vmatprep.subr.bf16.mxu0 0
    %3020 = vmatpush1.bf16.xpose.msra.mxu0 0
    %3021 = vmatprep.mubr.bf16.mxu0 0
    %3022 = vmatmul.mubr.bf16.gmra.mrb[0].mxu0 %v2984
    %v3023 = vpop.f32.mrb[0].mxu0
    %v3024 = vadd.f32 0.0, %v3023
    %v3025 = vpop.f32.mrb[0].mxu0
    %v3026 = vpop.f32.mrb[0].mxu0
    %v3027 = vpop.f32.mrb[0].mxu0
    %3028 = vdwg.mxu0
    %3029 = vrot.lane.b32.xlu0 %v234, 32
    %v3030 = vpop.permute.xlu0 %3029
    %3031 = vrot.lane.b32.xlu0 %v242, 32
    %v3032 = vpop.permute.xlu0 %3031
    %v3034 = vsel %vm256, %v3030, 0
    %v3037 = vsel %vm256, %v3032, 0
    %3039 = vmatprep.subr.bf16.mxu0 0
    %3040 = vmatpush1.bf16.xpose.msra.mxu0 %v3037
    %3041 = vmatprep.subr.bf16.mxu0 0
    %3042 = vmatpush1.bf16.xpose.msra.mxu0 0
    %3043 = vmatprep.subr.bf16.mxu0 0
    %3044 = vmatpush1.bf16.xpose.msra.mxu0 0
    %3045 = vmatprep.subr.bf16.mxu0 0
    %3046 = vmatpush1.bf16.xpose.msra.mxu0 0
    %3047 = vmatprep.subr.bf16.mxu0 0
    %3048 = vmatpush1.bf16.xpose.msra.mxu0 0
    %3049 = vmatprep.subr.bf16.mxu0 0
    %3050 = vmatpush1.bf16.xpose.msra.mxu0 0
    %3051 = vmatprep.subr.bf16.mxu0 0
    %3052 = vmatpush1.bf16.xpose.msra.mxu0 0
    %3053 = vmatprep.subr.bf16.mxu0 0
    %3054 = vmatpush1.bf16.xpose.msra.mxu0 0
    %3055 = vmatprep.subr.bf16.mxu0 0
    %3056 = vmatpush1.bf16.xpose.msra.mxu0 0
    %3057 = vmatprep.subr.bf16.mxu0 0
    %3058 = vmatpush1.bf16.xpose.msra.mxu0 0
    %3059 = vmatprep.subr.bf16.mxu0 0
    %3060 = vmatpush1.bf16.xpose.msra.mxu0 0
    %3061 = vmatprep.subr.bf16.mxu0 0
    %3062 = vmatpush1.bf16.xpose.msra.mxu0 0
    %3063 = vmatprep.subr.bf16.mxu0 0
    %3064 = vmatpush1.bf16.xpose.msra.mxu0 0
    %3065 = vmatprep.subr.bf16.mxu0 0
    %3066 = vmatpush1.bf16.xpose.msra.mxu0 0
    %3067 = vmatprep.subr.bf16.mxu0 0
    %3068 = vmatpush1.bf16.xpose.msra.mxu0 0
    %3069 = vmatprep.subr.bf16.mxu0 0
    %3070 = vmatpush1.bf16.xpose.msra.mxu0 0
    %3071 = vmatprep.mubr.bf16.mxu0 0
    %3072 = vmatmul.mubr.bf16.gmra.mrb[0].mxu0 %v3034
    %v3073 = vpop.f32.mrb[0].mxu0
    %v3074 = vadd.f32 0.0, %v3073
    %v3075 = vpop.f32.mrb[0].mxu0
    %v3076 = vpop.f32.mrb[0].mxu0
    %v3077 = vpop.f32.mrb[0].mxu0
    %3078 = vdwg.mxu0
    %3079 = vrot.lane.b32.xlu0 %v235, 32
    %v3080 = vpop.permute.xlu0 %3079
    %3081 = vrot.lane.b32.xlu0 %v243, 32
    %v3082 = vpop.permute.xlu0 %3081
    %v3084 = vsel %vm256, %v3080, 0
    %v3087 = vsel %vm256, %v3082, 0
    %3089 = vmatprep.subr.bf16.mxu0 0
    %3090 = vmatpush1.bf16.xpose.msra.mxu0 %v3087
    %3091 = vmatprep.subr.bf16.mxu0 0
    %3092 = vmatpush1.bf16.xpose.msra.mxu0 0
    %3093 = vmatprep.subr.bf16.mxu0 0
    %3094 = vmatpush1.bf16.xpose.msra.mxu0 0
    %3095 = vmatprep.subr.bf16.mxu0 0
    %3096 = vmatpush1.bf16.xpose.msra.mxu0 0
    %3097 = vmatprep.subr.bf16.mxu0 0
    %3098 = vmatpush1.bf16.xpose.msra.mxu0 0
    %3099 = vmatprep.subr.bf16.mxu0 0
    %3100 = vmatpush1.bf16.xpose.msra.mxu0 0
    %3101 = vmatprep.subr.bf16.mxu0 0
    %3102 = vmatpush1.bf16.xpose.msra.mxu0 0
    %3103 = vmatprep.subr.bf16.mxu0 0
    %3104 = vmatpush1.bf16.xpose.msra.mxu0 0
    %3105 = vmatprep.subr.bf16.mxu0 0
    %3106 = vmatpush1.bf16.xpose.msra.mxu0 0
    %3107 = vmatprep.subr.bf16.mxu0 0
    %3108 = vmatpush1.bf16.xpose.msra.mxu0 0
    %3109 = vmatprep.subr.bf16.mxu0 0
    %3110 = vmatpush1.bf16.xpose.msra.mxu0 0
    %3111 = vmatprep.subr.bf16.mxu0 0
    %3112 = vmatpush1.bf16.xpose.msra.mxu0 0
    %3113 = vmatprep.subr.bf16.mxu0 0
    %3114 = vmatpush1.bf16.xpose.msra.mxu0 0
    %3115 = vmatprep.subr.bf16.mxu0 0
    %3116 = vmatpush1.bf16.xpose.msra.mxu0 0
    %3117 = vmatprep.subr.bf16.mxu0 0
    %3118 = vmatpush1.bf16.xpose.msra.mxu0 0
    %3119 = vmatprep.subr.bf16.mxu0 0
    %3120 = vmatpush1.bf16.xpose.msra.mxu0 0
    %3121 = vmatprep.mubr.bf16.mxu0 0
    %3122 = vmatmul.mubr.bf16.gmra.mrb[0].mxu0 %v3084
    %v3123 = vpop.f32.mrb[0].mxu0
    %v3124 = vadd.f32 0.0, %v3123
    %v3125 = vpop.f32.mrb[0].mxu0
    %v3126 = vpop.f32.mrb[0].mxu0
    %v3127 = vpop.f32.mrb[0].mxu0
    %3128 = vdwg.mxu0
    %3129 = vrot.lane.b32.xlu0 %v236, 32
    %v3130 = vpop.permute.xlu0 %3129
    %3131 = vrot.lane.b32.xlu0 %v244, 32
    %v3132 = vpop.permute.xlu0 %3131
    %v3134 = vsel %vm256, %v3130, 0
    %v3137 = vsel %vm256, %v3132, 0
    %3139 = vmatprep.subr.bf16.mxu0 0
    %3140 = vmatpush1.bf16.xpose.msra.mxu0 %v3137
    %3141 = vmatprep.subr.bf16.mxu0 0
    %3142 = vmatpush1.bf16.xpose.msra.mxu0 0
    %3143 = vmatprep.subr.bf16.mxu0 0
    %3144 = vmatpush1.bf16.xpose.msra.mxu0 0
    %3145 = vmatprep.subr.bf16.mxu0 0
    %3146 = vmatpush1.bf16.xpose.msra.mxu0 0
    %3147 = vmatprep.subr.bf16.mxu0 0
    %3148 = vmatpush1.bf16.xpose.msra.mxu0 0
    %3149 = vmatprep.subr.bf16.mxu0 0
    %3150 = vmatpush1.bf16.xpose.msra.mxu0 0
    %3151 = vmatprep.subr.bf16.mxu0 0
    %3152 = vmatpush1.bf16.xpose.msra.mxu0 0
    %3153 = vmatprep.subr.bf16.mxu0 0
    %3154 = vmatpush1.bf16.xpose.msra.mxu0 0
    %3155 = vmatprep.subr.bf16.mxu0 0
    %3156 = vmatpush1.bf16.xpose.msra.mxu0 0
    %3157 = vmatprep.subr.bf16.mxu0 0
    %3158 = vmatpush1.bf16.xpose.msra.mxu0 0
    %3159 = vmatprep.subr.bf16.mxu0 0
    %3160 = vmatpush1.bf16.xpose.msra.mxu0 0
    %3161 = vmatprep.subr.bf16.mxu0 0
    %3162 = vmatpush1.bf16.xpose.msra.mxu0 0
    %3163 = vmatprep.subr.bf16.mxu0 0
    %3164 = vmatpush1.bf16.xpose.msra.mxu0 0
    %3165 = vmatprep.subr.bf16.mxu0 0
    %3166 = vmatpush1.bf16.xpose.msra.mxu0 0
    %3167 = vmatprep.subr.bf16.mxu0 0
    %3168 = vmatpush1.bf16.xpose.msra.mxu0 0
    %3169 = vmatprep.subr.bf16.mxu0 0
    %3170 = vmatpush1.bf16.xpose.msra.mxu0 0
    %3171 = vmatprep.mubr.bf16.mxu0 0
    %3172 = vmatmul.mubr.bf16.gmra.mrb[0].mxu0 %v3134
    %v3173 = vpop.f32.mrb[0].mxu0
    %v3174 = vadd.f32 0.0, %v3173
    %v3175 = vpop.f32.mrb[0].mxu0
    %v3176 = vpop.f32.mrb[0].mxu0
    %v3177 = vpop.f32.mrb[0].mxu0
    %3178 = vdwg.mxu0
    %3179 = vrot.lane.b32.xlu0 %v237, 32
    %v3180 = vpop.permute.xlu0 %3179
    %3181 = vrot.lane.b32.xlu0 %v245, 32
    %v3182 = vpop.permute.xlu0 %3181
    %v3184 = vsel %vm256, %v3180, 0
    %v3187 = vsel %vm256, %v3182, 0
    %3189 = vmatprep.subr.bf16.mxu0 0
    %3190 = vmatpush1.bf16.xpose.msra.mxu0 %v3187
    %3191 = vmatprep.subr.bf16.mxu0 0
    %3192 = vmatpush1.bf16.xpose.msra.mxu0 0
    %3193 = vmatprep.subr.bf16.mxu0 0
    %3194 = vmatpush1.bf16.xpose.msra.mxu0 0
    %3195 = vmatprep.subr.bf16.mxu0 0
    %3196 = vmatpush1.bf16.xpose.msra.mxu0 0
    %3197 = vmatprep.subr.bf16.mxu0 0
    %3198 = vmatpush1.bf16.xpose.msra.mxu0 0
    %3199 = vmatprep.subr.bf16.mxu0 0
    %3200 = vmatpush1.bf16.xpose.msra.mxu0 0
    %3201 = vmatprep.subr.bf16.mxu0 0
    %3202 = vmatpush1.bf16.xpose.msra.mxu0 0
    %3203 = vmatprep.subr.bf16.mxu0 0
    %3204 = vmatpush1.bf16.xpose.msra.mxu0 0
    %3205 = vmatprep.subr.bf16.mxu0 0
    %3206 = vmatpush1.bf16.xpose.msra.mxu0 0
    %3207 = vmatprep.subr.bf16.mxu0 0
    %3208 = vmatpush1.bf16.xpose.msra.mxu0 0
    %3209 = vmatprep.subr.bf16.mxu0 0
    %3210 = vmatpush1.bf16.xpose.msra.mxu0 0
    %3211 = vmatprep.subr.bf16.mxu0 0
    %3212 = vmatpush1.bf16.xpose.msra.mxu0 0
    %3213 = vmatprep.subr.bf16.mxu0 0
    %3214 = vmatpush1.bf16.xpose.msra.mxu0 0
    %3215 = vmatprep.subr.bf16.mxu0 0
    %3216 = vmatpush1.bf16.xpose.msra.mxu0 0
    %3217 = vmatprep.subr.bf16.mxu0 0
    %3218 = vmatpush1.bf16.xpose.msra.mxu0 0
    %3219 = vmatprep.subr.bf16.mxu0 0
    %3220 = vmatpush1.bf16.xpose.msra.mxu0 0
    %3221 = vmatprep.mubr.bf16.mxu0 0
    %3222 = vmatmul.mubr.bf16.gmra.mrb[0].mxu0 %v3184
    %v3223 = vpop.f32.mrb[0].mxu0
    %v3224 = vadd.f32 0.0, %v3223
    %v3225 = vpop.f32.mrb[0].mxu0
    %v3226 = vpop.f32.mrb[0].mxu0
    %v3227 = vpop.f32.mrb[0].mxu0
    %3228 = vdwg.mxu0
    %3229 = vrot.lane.b32.xlu0 %v238, 32
    %v3230 = vpop.permute.xlu0 %3229
    %3231 = vrot.lane.b32.xlu0 %v246, 32
    %v3232 = vpop.permute.xlu0 %3231
    %v3234 = vsel %vm256, %v3230, 0
    %v3237 = vsel %vm256, %v3232, 0
    %3239 = vmatprep.subr.bf16.mxu0 0
    %3240 = vmatpush1.bf16.xpose.msra.mxu0 %v3237
    %3241 = vmatprep.subr.bf16.mxu0 0
    %3242 = vmatpush1.bf16.xpose.msra.mxu0 0
    %3243 = vmatprep.subr.bf16.mxu0 0
    %3244 = vmatpush1.bf16.xpose.msra.mxu0 0
    %3245 = vmatprep.subr.bf16.mxu0 0
    %3246 = vmatpush1.bf16.xpose.msra.mxu0 0
    %3247 = vmatprep.subr.bf16.mxu0 0
    %3248 = vmatpush1.bf16.xpose.msra.mxu0 0
    %3249 = vmatprep.subr.bf16.mxu0 0
    %3250 = vmatpush1.bf16.xpose.msra.mxu0 0
    %3251 = vmatprep.subr.bf16.mxu0 0
    %3252 = vmatpush1.bf16.xpose.msra.mxu0 0
    %3253 = vmatprep.subr.bf16.mxu0 0
    %3254 = vmatpush1.bf16.xpose.msra.mxu0 0
    %3255 = vmatprep.subr.bf16.mxu0 0
    %3256 = vmatpush1.bf16.xpose.msra.mxu0 0
    %3257 = vmatprep.subr.bf16.mxu0 0
    %3258 = vmatpush1.bf16.xpose.msra.mxu0 0
    %3259 = vmatprep.subr.bf16.mxu0 0
    %3260 = vmatpush1.bf16.xpose.msra.mxu0 0
    %3261 = vmatprep.subr.bf16.mxu0 0
    %3262 = vmatpush1.bf16.xpose.msra.mxu0 0
    %3263 = vmatprep.subr.bf16.mxu0 0
    %3264 = vmatpush1.bf16.xpose.msra.mxu0 0
    %3265 = vmatprep.subr.bf16.mxu0 0
    %3266 = vmatpush1.bf16.xpose.msra.mxu0 0
    %3267 = vmatprep.subr.bf16.mxu0 0
    %3268 = vmatpush1.bf16.xpose.msra.mxu0 0
    %3269 = vmatprep.subr.bf16.mxu0 0
    %3270 = vmatpush1.bf16.xpose.msra.mxu0 0
    %3271 = vmatprep.mubr.bf16.mxu0 0
    %3272 = vmatmul.mubr.bf16.gmra.mrb[0].mxu0 %v3234
    %v3273 = vpop.f32.mrb[0].mxu0
    %v3274 = vadd.f32 0.0, %v3273
    %v3275 = vpop.f32.mrb[0].mxu0
    %v3276 = vpop.f32.mrb[0].mxu0
    %v3277 = vpop.f32.mrb[0].mxu0
    %3278 = vdwg.mxu0
    %3279 = vrot.lane.b32.xlu0 %v239, 32
    %v3280 = vpop.permute.xlu0 %3279
    %3281 = vrot.lane.b32.xlu0 %v247, 32
    %v3282 = vpop.permute.xlu0 %3281
    %v3284 = vsel %vm256, %v3280, 0
    %v3287 = vsel %vm256, %v3282, 0
    %3289 = vmatprep.subr.bf16.mxu0 0
    %3290 = vmatpush1.bf16.xpose.msra.mxu0 %v3287
    %3291 = vmatprep.subr.bf16.mxu0 0
    %3292 = vmatpush1.bf16.xpose.msra.mxu0 0
    %3293 = vmatprep.subr.bf16.mxu0 0
    %3294 = vmatpush1.bf16.xpose.msra.mxu0 0
    %3295 = vmatprep.subr.bf16.mxu0 0
    %3296 = vmatpush1.bf16.xpose.msra.mxu0 0
    %3297 = vmatprep.subr.bf16.mxu0 0
    %3298 = vmatpush1.bf16.xpose.msra.mxu0 0
    %3299 = vmatprep.subr.bf16.mxu0 0
    %3300 = vmatpush1.bf16.xpose.msra.mxu0 0
    %3301 = vmatprep.subr.bf16.mxu0 0
    %3302 = vmatpush1.bf16.xpose.msra.mxu0 0
    %3303 = vmatprep.subr.bf16.mxu0 0
    %3304 = vmatpush1.bf16.xpose.msra.mxu0 0
    %3305 = vmatprep.subr.bf16.mxu0 0
    %3306 = vmatpush1.bf16.xpose.msra.mxu0 0
    %3307 = vmatprep.subr.bf16.mxu0 0
    %3308 = vmatpush1.bf16.xpose.msra.mxu0 0
    %3309 = vmatprep.subr.bf16.mxu0 0
    %3310 = vmatpush1.bf16.xpose.msra.mxu0 0
    %3311 = vmatprep.subr.bf16.mxu0 0
    %3312 = vmatpush1.bf16.xpose.msra.mxu0 0
    %3313 = vmatprep.subr.bf16.mxu0 0
    %3314 = vmatpush1.bf16.xpose.msra.mxu0 0
    %3315 = vmatprep.subr.bf16.mxu0 0
    %3316 = vmatpush1.bf16.xpose.msra.mxu0 0
    %3317 = vmatprep.subr.bf16.mxu0 0
    %3318 = vmatpush1.bf16.xpose.msra.mxu0 0
    %3319 = vmatprep.subr.bf16.mxu0 0
    %3320 = vmatpush1.bf16.xpose.msra.mxu0 0
    %3321 = vmatprep.mubr.bf16.mxu0 0
    %3322 = vmatmul.mubr.bf16.gmra.mrb[0].mxu0 %v3284
    %v3323 = vpop.f32.mrb[0].mxu0
    %v3324 = vadd.f32 0.0, %v3323
    %v3325 = vpop.f32.mrb[0].mxu0
    %v3326 = vpop.f32.mrb[0].mxu0
    %v3327 = vpop.f32.mrb[0].mxu0
    %3328 = vdwg.mxu0
    %v3329 = vmul.f32 %v2974, 0.17677669
    %v3330 = vmul.f32 %v3024, 0.17677669
    %v3331 = vmul.f32 %v3074, 0.17677669
    %v3332 = vmul.f32 %v3124, 0.17677669
    %v3333 = vmul.f32 %v3174, 0.17677669
    %v3334 = vmul.f32 %v3224, 0.17677669
    %v3335 = vmul.f32 %v3274, 0.17677669
    %v3336 = vmul.f32 %v3324, 0.17677669
    %v3337 = vsel %vm634, %v3329, -1e+30
    %v3338 = vsel %vm634, %v3330, -1e+30
    %v3339 = vsel %vm634, %v3331, -1e+30
    %v3340 = vsel %vm634, %v3332, -1e+30
    %v3341 = vsel %vm634, %v3333, -1e+30
    %v3342 = vsel %vm634, %v3334, -1e+30
    %v3343 = vsel %vm634, %v3335, -1e+30
    %v3344 = vsel %vm634, %v3336, -1e+30
    %v3345 = vsel %vm643, %v3337, -inf
    %3346 = vmax.xlane.f32.xlu0 %v3345
    %v3347 = vpop.xlane.xlu0 %3346
    %v3348 = vsel %vm643, %v3338, -inf
    %3349 = vmax.xlane.f32.xlu0 %v3348
    %v3350 = vpop.xlane.xlu0 %3349
    %v3351 = vsel %vm643, %v3339, -inf
    %3352 = vmax.xlane.f32.xlu0 %v3351
    %v3353 = vpop.xlane.xlu0 %3352
    %v3354 = vsel %vm643, %v3340, -inf
    %3355 = vmax.xlane.f32.xlu0 %v3354
    %v3356 = vpop.xlane.xlu0 %3355
    %v3357 = vsel %vm643, %v3341, -inf
    %3358 = vmax.xlane.f32.xlu0 %v3357
    %v3359 = vpop.xlane.xlu0 %3358
    %v3360 = vsel %vm643, %v3342, -inf
    %3361 = vmax.xlane.f32.xlu0 %v3360
    %v3362 = vpop.xlane.xlu0 %3361
    %v3363 = vsel %vm643, %v3343, -inf
    %3364 = vmax.xlane.f32.xlu0 %v3363
    %v3365 = vpop.xlane.xlu0 %3364
    %v3366 = vsel %vm643, %v3344, -inf
    %3367 = vmax.xlane.f32.xlu0 %v3366
    %v3368 = vpop.xlane.xlu0 %3367
    %v3369 = vsub.f32 %v3337, %v3347
    %v3370 = vsub.f32 %v3338, %v3350
    %v3371 = vsub.f32 %v3339, %v3353
    %v3372 = vsub.f32 %v3340, %v3356
    %v3373 = vsub.f32 %v3341, %v3359
    %v3374 = vsub.f32 %v3342, %v3362
    %v3375 = vsub.f32 %v3343, %v3365
    %v3376 = vsub.f32 %v3344, %v3368
    %v3377 = vmul.f32 %v3369, 1.442695
    %v3378 = vpow.pop %v3377
    %v3379 = vmul.f32 %v3370, 1.442695
    %v3380 = vpow.pop %v3379
    %v3381 = vmul.f32 %v3371, 1.442695
    %v3382 = vpow.pop %v3381
    %v3383 = vmul.f32 %v3372, 1.442695
    %v3384 = vpow.pop %v3383
    %v3385 = vmul.f32 %v3373, 1.442695
    %v3386 = vpow.pop %v3385
    %v3387 = vmul.f32 %v3374, 1.442695
    %v3388 = vpow.pop %v3387
    %v3389 = vmul.f32 %v3375, 1.442695
    %v3390 = vpow.pop %v3389
    %v3391 = vmul.f32 %v3376, 1.442695
    %v3392 = vpow.pop %v3391
    %v3393 = vsel %vm643, %v3378, 0.0
    %3394 = vadd.xlane.f32.xlu0 %v3393
    %v3395 = vpop.xlane.xlu0 %3394
    %v3396 = vsel %vm643, %v3380, 0.0
    %3397 = vadd.xlane.f32.xlu0 %v3396
    %v3398 = vpop.xlane.xlu0 %3397
    %v3399 = vsel %vm643, %v3382, 0.0
    %3400 = vadd.xlane.f32.xlu0 %v3399
    %v3401 = vpop.xlane.xlu0 %3400
    %v3402 = vsel %vm643, %v3384, 0.0
    %3403 = vadd.xlane.f32.xlu0 %v3402
    %v3404 = vpop.xlane.xlu0 %3403
    %v3405 = vsel %vm643, %v3386, 0.0
    %3406 = vadd.xlane.f32.xlu0 %v3405
    %v3407 = vpop.xlane.xlu0 %3406
    %v3408 = vsel %vm643, %v3388, 0.0
    %3409 = vadd.xlane.f32.xlu0 %v3408
    %v3410 = vpop.xlane.xlu0 %3409
    %v3411 = vsel %vm643, %v3390, 0.0
    %3412 = vadd.xlane.f32.xlu0 %v3411
    %v3413 = vpop.xlane.xlu0 %3412
    %v3414 = vsel %vm643, %v3392, 0.0
    %3415 = vadd.xlane.f32.xlu0 %v3414
    %v3416 = vpop.xlane.xlu0 %3415
    %v3417 = vrcp.pop %v3395
    %v3418 = vrcp.pop %v3398
    %v3419 = vrcp.pop %v3401
    %v3420 = vrcp.pop %v3404
    %v3421 = vrcp.pop %v3407
    %v3422 = vrcp.pop %v3410
    %v3423 = vrcp.pop %v3413
    %v3424 = vrcp.pop %v3416
    %v3425 = vmul.f32 %v3378, %v3417
    %v3426 = vmul.f32 %v3380, %v3418
    %v3427 = vmul.f32 %v3382, %v3419
    %v3428 = vmul.f32 %v3384, %v3420
    %v3429 = vmul.f32 %v3386, %v3421
    %v3430 = vmul.f32 %v3388, %v3422
    %v3431 = vmul.f32 %v3390, %v3423
    %v3432 = vmul.f32 %v3392, %v3424
    %v3433 = vpack.c.bf16 %v3425, %v3425
    %v3434 = vpack.c.bf16 %v3426, %v3426
    %v3435 = vpack.c.bf16 %v3427, %v3427
    %v3436 = vpack.c.bf16 %v3428, %v3428
    %v3437 = vpack.c.bf16 %v3429, %v3429
    %v3438 = vpack.c.bf16 %v3430, %v3430
    %v3439 = vpack.c.bf16 %v3431, %v3431
    %v3440 = vpack.c.bf16 %v3432, %v3432
    %3441 = vrot.lane.b32.xlu0 %v248, 32
    %v3442 = vpop.permute.xlu0 %3441
    %v3444 = vsel %vm740, %v3433, 0
    %v3447 = vand.u32 %v3442, %v747
    %3449 = vmatprep.subr.bf16.mxu0 0
    %3450 = vmatpush1.bf16.msra.mxu0 %v3447
    %3451 = vmatprep.subr.bf16.mxu0 0
    %3452 = vmatpush1.bf16.msra.mxu0 0
    %3453 = vmatprep.subr.bf16.mxu0 0
    %3454 = vmatpush1.bf16.msra.mxu0 0
    %3455 = vmatprep.subr.bf16.mxu0 0
    %3456 = vmatpush1.bf16.msra.mxu0 0
    %3457 = vmatprep.subr.bf16.mxu0 0
    %3458 = vmatpush1.bf16.msra.mxu0 0
    %3459 = vmatprep.subr.bf16.mxu0 0
    %3460 = vmatpush1.bf16.msra.mxu0 0
    %3461 = vmatprep.subr.bf16.mxu0 0
    %3462 = vmatpush1.bf16.msra.mxu0 0
    %3463 = vmatprep.subr.bf16.mxu0 0
    %3464 = vmatpush1.bf16.msra.mxu0 0
    %3465 = vmatprep.subr.bf16.mxu0 0
    %3466 = vmatpush1.bf16.msra.mxu0 0
    %3467 = vmatprep.subr.bf16.mxu0 0
    %3468 = vmatpush1.bf16.msra.mxu0 0
    %3469 = vmatprep.subr.bf16.mxu0 0
    %3470 = vmatpush1.bf16.msra.mxu0 0
    %3471 = vmatprep.subr.bf16.mxu0 0
    %3472 = vmatpush1.bf16.msra.mxu0 0
    %3473 = vmatprep.subr.bf16.mxu0 0
    %3474 = vmatpush1.bf16.msra.mxu0 0
    %3475 = vmatprep.subr.bf16.mxu0 0
    %3476 = vmatpush1.bf16.msra.mxu0 0
    %3477 = vmatprep.subr.bf16.mxu0 0
    %3478 = vmatpush1.bf16.msra.mxu0 0
    %3479 = vmatprep.subr.bf16.mxu0 0
    %3480 = vmatpush1.bf16.msra.mxu0 0
    %3481 = vmatprep.mubr.bf16.mxu0 0
    %3482 = vmatmul.mubr.bf16.gmra.mrb[0].mxu0 %v3444
    %v3483 = vpop.f32.mrb[0].mxu0
    %v3484 = vadd.f32 0.0, %v3483
    %v3485 = vpop.f32.mrb[0].mxu0
    %v3486 = vpop.f32.mrb[0].mxu0
    %v3487 = vpop.f32.mrb[0].mxu0
    %3488 = vdwg.mxu0
    %3489 = vrot.lane.b32.xlu0 %v249, 32
    %v3490 = vpop.permute.xlu0 %3489
    %v3492 = vsel %vm740, %v3434, 0
    %v3495 = vand.u32 %v3490, %v747
    %3497 = vmatprep.subr.bf16.mxu0 0
    %3498 = vmatpush1.bf16.msra.mxu0 %v3495
    %3499 = vmatprep.subr.bf16.mxu0 0
    %3500 = vmatpush1.bf16.msra.mxu0 0
    %3501 = vmatprep.subr.bf16.mxu0 0
    %3502 = vmatpush1.bf16.msra.mxu0 0
    %3503 = vmatprep.subr.bf16.mxu0 0
    %3504 = vmatpush1.bf16.msra.mxu0 0
    %3505 = vmatprep.subr.bf16.mxu0 0
    %3506 = vmatpush1.bf16.msra.mxu0 0
    %3507 = vmatprep.subr.bf16.mxu0 0
    %3508 = vmatpush1.bf16.msra.mxu0 0
    %3509 = vmatprep.subr.bf16.mxu0 0
    %3510 = vmatpush1.bf16.msra.mxu0 0
    %3511 = vmatprep.subr.bf16.mxu0 0
    %3512 = vmatpush1.bf16.msra.mxu0 0
    %3513 = vmatprep.subr.bf16.mxu0 0
    %3514 = vmatpush1.bf16.msra.mxu0 0
    %3515 = vmatprep.subr.bf16.mxu0 0
    %3516 = vmatpush1.bf16.msra.mxu0 0
    %3517 = vmatprep.subr.bf16.mxu0 0
    %3518 = vmatpush1.bf16.msra.mxu0 0
    %3519 = vmatprep.subr.bf16.mxu0 0
    %3520 = vmatpush1.bf16.msra.mxu0 0
    %3521 = vmatprep.subr.bf16.mxu0 0
    %3522 = vmatpush1.bf16.msra.mxu0 0
    %3523 = vmatprep.subr.bf16.mxu0 0
    %3524 = vmatpush1.bf16.msra.mxu0 0
    %3525 = vmatprep.subr.bf16.mxu0 0
    %3526 = vmatpush1.bf16.msra.mxu0 0
    %3527 = vmatprep.subr.bf16.mxu0 0
    %3528 = vmatpush1.bf16.msra.mxu0 0
    %3529 = vmatprep.mubr.bf16.mxu0 0
    %3530 = vmatmul.mubr.bf16.gmra.mrb[0].mxu0 %v3492
    %v3531 = vpop.f32.mrb[0].mxu0
    %v3532 = vadd.f32 0.0, %v3531
    %v3533 = vpop.f32.mrb[0].mxu0
    %v3534 = vpop.f32.mrb[0].mxu0
    %v3535 = vpop.f32.mrb[0].mxu0
    %3536 = vdwg.mxu0
    %3537 = vrot.lane.b32.xlu0 %v250, 32
    %v3538 = vpop.permute.xlu0 %3537
    %v3540 = vsel %vm740, %v3435, 0
    %v3543 = vand.u32 %v3538, %v747
    %3545 = vmatprep.subr.bf16.mxu0 0
    %3546 = vmatpush1.bf16.msra.mxu0 %v3543
    %3547 = vmatprep.subr.bf16.mxu0 0
    %3548 = vmatpush1.bf16.msra.mxu0 0
    %3549 = vmatprep.subr.bf16.mxu0 0
    %3550 = vmatpush1.bf16.msra.mxu0 0
    %3551 = vmatprep.subr.bf16.mxu0 0
    %3552 = vmatpush1.bf16.msra.mxu0 0
    %3553 = vmatprep.subr.bf16.mxu0 0
    %3554 = vmatpush1.bf16.msra.mxu0 0
    %3555 = vmatprep.subr.bf16.mxu0 0
    %3556 = vmatpush1.bf16.msra.mxu0 0
    %3557 = vmatprep.subr.bf16.mxu0 0
    %3558 = vmatpush1.bf16.msra.mxu0 0
    %3559 = vmatprep.subr.bf16.mxu0 0
    %3560 = vmatpush1.bf16.msra.mxu0 0
    %3561 = vmatprep.subr.bf16.mxu0 0
    %3562 = vmatpush1.bf16.msra.mxu0 0
    %3563 = vmatprep.subr.bf16.mxu0 0
    %3564 = vmatpush1.bf16.msra.mxu0 0
    %3565 = vmatprep.subr.bf16.mxu0 0
    %3566 = vmatpush1.bf16.msra.mxu0 0
    %3567 = vmatprep.subr.bf16.mxu0 0
    %3568 = vmatpush1.bf16.msra.mxu0 0
    %3569 = vmatprep.subr.bf16.mxu0 0
    %3570 = vmatpush1.bf16.msra.mxu0 0
    %3571 = vmatprep.subr.bf16.mxu0 0
    %3572 = vmatpush1.bf16.msra.mxu0 0
    %3573 = vmatprep.subr.bf16.mxu0 0
    %3574 = vmatpush1.bf16.msra.mxu0 0
    %3575 = vmatprep.subr.bf16.mxu0 0
    %3576 = vmatpush1.bf16.msra.mxu0 0
    %3577 = vmatprep.mubr.bf16.mxu0 0
    %3578 = vmatmul.mubr.bf16.gmra.mrb[0].mxu0 %v3540
    %v3579 = vpop.f32.mrb[0].mxu0
    %v3580 = vadd.f32 0.0, %v3579
    %v3581 = vpop.f32.mrb[0].mxu0
    %v3582 = vpop.f32.mrb[0].mxu0
    %v3583 = vpop.f32.mrb[0].mxu0
    %3584 = vdwg.mxu0
    %3585 = vrot.lane.b32.xlu0 %v251, 32
    %v3586 = vpop.permute.xlu0 %3585
    %v3588 = vsel %vm740, %v3436, 0
    %v3591 = vand.u32 %v3586, %v747
    %3593 = vmatprep.subr.bf16.mxu0 0
    %3594 = vmatpush1.bf16.msra.mxu0 %v3591
    %3595 = vmatprep.subr.bf16.mxu0 0
    %3596 = vmatpush1.bf16.msra.mxu0 0
    %3597 = vmatprep.subr.bf16.mxu0 0
    %3598 = vmatpush1.bf16.msra.mxu0 0
    %3599 = vmatprep.subr.bf16.mxu0 0
    %3600 = vmatpush1.bf16.msra.mxu0 0
    %3601 = vmatprep.subr.bf16.mxu0 0
    %3602 = vmatpush1.bf16.msra.mxu0 0
    %3603 = vmatprep.subr.bf16.mxu0 0
    %3604 = vmatpush1.bf16.msra.mxu0 0
    %3605 = vmatprep.subr.bf16.mxu0 0
    %3606 = vmatpush1.bf16.msra.mxu0 0
    %3607 = vmatprep.subr.bf16.mxu0 0
    %3608 = vmatpush1.bf16.msra.mxu0 0
    %3609 = vmatprep.subr.bf16.mxu0 0
    %3610 = vmatpush1.bf16.msra.mxu0 0
    %3611 = vmatprep.subr.bf16.mxu0 0
    %3612 = vmatpush1.bf16.msra.mxu0 0
    %3613 = vmatprep.subr.bf16.mxu0 0
    %3614 = vmatpush1.bf16.msra.mxu0 0
    %3615 = vmatprep.subr.bf16.mxu0 0
    %3616 = vmatpush1.bf16.msra.mxu0 0
    %3617 = vmatprep.subr.bf16.mxu0 0
    %3618 = vmatpush1.bf16.msra.mxu0 0
    %3619 = vmatprep.subr.bf16.mxu0 0
    %3620 = vmatpush1.bf16.msra.mxu0 0
    %3621 = vmatprep.subr.bf16.mxu0 0
    %3622 = vmatpush1.bf16.msra.mxu0 0
    %3623 = vmatprep.subr.bf16.mxu0 0
    %3624 = vmatpush1.bf16.msra.mxu0 0
    %3625 = vmatprep.mubr.bf16.mxu0 0
    %3626 = vmatmul.mubr.bf16.gmra.mrb[0].mxu0 %v3588
    %v3627 = vpop.f32.mrb[0].mxu0
    %v3628 = vadd.f32 0.0, %v3627
    %v3629 = vpop.f32.mrb[0].mxu0
    %v3630 = vpop.f32.mrb[0].mxu0
    %v3631 = vpop.f32.mrb[0].mxu0
    %3632 = vdwg.mxu0
    %3633 = vrot.lane.b32.xlu0 %v252, 32
    %v3634 = vpop.permute.xlu0 %3633
    %v3636 = vsel %vm740, %v3437, 0
    %v3639 = vand.u32 %v3634, %v747
    %3641 = vmatprep.subr.bf16.mxu0 0
    %3642 = vmatpush1.bf16.msra.mxu0 %v3639
    %3643 = vmatprep.subr.bf16.mxu0 0
    %3644 = vmatpush1.bf16.msra.mxu0 0
    %3645 = vmatprep.subr.bf16.mxu0 0
    %3646 = vmatpush1.bf16.msra.mxu0 0
    %3647 = vmatprep.subr.bf16.mxu0 0
    %3648 = vmatpush1.bf16.msra.mxu0 0
    %3649 = vmatprep.subr.bf16.mxu0 0
    %3650 = vmatpush1.bf16.msra.mxu0 0
    %3651 = vmatprep.subr.bf16.mxu0 0
    %3652 = vmatpush1.bf16.msra.mxu0 0
    %3653 = vmatprep.subr.bf16.mxu0 0
    %3654 = vmatpush1.bf16.msra.mxu0 0
    %3655 = vmatprep.subr.bf16.mxu0 0
    %3656 = vmatpush1.bf16.msra.mxu0 0
    %3657 = vmatprep.subr.bf16.mxu0 0
    %3658 = vmatpush1.bf16.msra.mxu0 0
    %3659 = vmatprep.subr.bf16.mxu0 0
    %3660 = vmatpush1.bf16.msra.mxu0 0
    %3661 = vmatprep.subr.bf16.mxu0 0
    %3662 = vmatpush1.bf16.msra.mxu0 0
    %3663 = vmatprep.subr.bf16.mxu0 0
    %3664 = vmatpush1.bf16.msra.mxu0 0
    %3665 = vmatprep.subr.bf16.mxu0 0
    %3666 = vmatpush1.bf16.msra.mxu0 0
    %3667 = vmatprep.subr.bf16.mxu0 0
    %3668 = vmatpush1.bf16.msra.mxu0 0
    %3669 = vmatprep.subr.bf16.mxu0 0
    %3670 = vmatpush1.bf16.msra.mxu0 0
    %3671 = vmatprep.subr.bf16.mxu0 0
    %3672 = vmatpush1.bf16.msra.mxu0 0
    %3673 = vmatprep.mubr.bf16.mxu0 0
    %3674 = vmatmul.mubr.bf16.gmra.mrb[0].mxu0 %v3636
    %v3675 = vpop.f32.mrb[0].mxu0
    %v3676 = vadd.f32 0.0, %v3675
    %v3677 = vpop.f32.mrb[0].mxu0
    %v3678 = vpop.f32.mrb[0].mxu0
    %v3679 = vpop.f32.mrb[0].mxu0
    %3680 = vdwg.mxu0
    %3681 = vrot.lane.b32.xlu0 %v253, 32
    %v3682 = vpop.permute.xlu0 %3681
    %v3684 = vsel %vm740, %v3438, 0
    %v3687 = vand.u32 %v3682, %v747
    %3689 = vmatprep.subr.bf16.mxu0 0
    %3690 = vmatpush1.bf16.msra.mxu0 %v3687
    %3691 = vmatprep.subr.bf16.mxu0 0
    %3692 = vmatpush1.bf16.msra.mxu0 0
    %3693 = vmatprep.subr.bf16.mxu0 0
    %3694 = vmatpush1.bf16.msra.mxu0 0
    %3695 = vmatprep.subr.bf16.mxu0 0
    %3696 = vmatpush1.bf16.msra.mxu0 0
    %3697 = vmatprep.subr.bf16.mxu0 0
    %3698 = vmatpush1.bf16.msra.mxu0 0
    %3699 = vmatprep.subr.bf16.mxu0 0
    %3700 = vmatpush1.bf16.msra.mxu0 0
    %3701 = vmatprep.subr.bf16.mxu0 0
    %3702 = vmatpush1.bf16.msra.mxu0 0
    %3703 = vmatprep.subr.bf16.mxu0 0
    %3704 = vmatpush1.bf16.msra.mxu0 0
    %3705 = vmatprep.subr.bf16.mxu0 0
    %3706 = vmatpush1.bf16.msra.mxu0 0
    %3707 = vmatprep.subr.bf16.mxu0 0
    %3708 = vmatpush1.bf16.msra.mxu0 0
    %3709 = vmatprep.subr.bf16.mxu0 0
    %3710 = vmatpush1.bf16.msra.mxu0 0
    %3711 = vmatprep.subr.bf16.mxu0 0
    %3712 = vmatpush1.bf16.msra.mxu0 0
    %3713 = vmatprep.subr.bf16.mxu0 0
    %3714 = vmatpush1.bf16.msra.mxu0 0
    %3715 = vmatprep.subr.bf16.mxu0 0
    %3716 = vmatpush1.bf16.msra.mxu0 0
    %3717 = vmatprep.subr.bf16.mxu0 0
    %3718 = vmatpush1.bf16.msra.mxu0 0
    %3719 = vmatprep.subr.bf16.mxu0 0
    %3720 = vmatpush1.bf16.msra.mxu0 0
    %3721 = vmatprep.mubr.bf16.mxu0 0
    %3722 = vmatmul.mubr.bf16.gmra.mrb[0].mxu0 %v3684
    %v3723 = vpop.f32.mrb[0].mxu0
    %v3724 = vadd.f32 0.0, %v3723
    %v3725 = vpop.f32.mrb[0].mxu0
    %v3726 = vpop.f32.mrb[0].mxu0
    %v3727 = vpop.f32.mrb[0].mxu0
    %3728 = vdwg.mxu0
    %3729 = vrot.lane.b32.xlu0 %v254, 32
    %v3730 = vpop.permute.xlu0 %3729
    %v3732 = vsel %vm740, %v3439, 0
    %v3735 = vand.u32 %v3730, %v747
    %3737 = vmatprep.subr.bf16.mxu0 0
    %3738 = vmatpush1.bf16.msra.mxu0 %v3735
    %3739 = vmatprep.subr.bf16.mxu0 0
    %3740 = vmatpush1.bf16.msra.mxu0 0
    %3741 = vmatprep.subr.bf16.mxu0 0
    %3742 = vmatpush1.bf16.msra.mxu0 0
    %3743 = vmatprep.subr.bf16.mxu0 0
    %3744 = vmatpush1.bf16.msra.mxu0 0
    %3745 = vmatprep.subr.bf16.mxu0 0
    %3746 = vmatpush1.bf16.msra.mxu0 0
    %3747 = vmatprep.subr.bf16.mxu0 0
    %3748 = vmatpush1.bf16.msra.mxu0 0
    %3749 = vmatprep.subr.bf16.mxu0 0
    %3750 = vmatpush1.bf16.msra.mxu0 0
    %3751 = vmatprep.subr.bf16.mxu0 0
    %3752 = vmatpush1.bf16.msra.mxu0 0
    %3753 = vmatprep.subr.bf16.mxu0 0
    %3754 = vmatpush1.bf16.msra.mxu0 0
    %3755 = vmatprep.subr.bf16.mxu0 0
    %3756 = vmatpush1.bf16.msra.mxu0 0
    %3757 = vmatprep.subr.bf16.mxu0 0
    %3758 = vmatpush1.bf16.msra.mxu0 0
    %3759 = vmatprep.subr.bf16.mxu0 0
    %3760 = vmatpush1.bf16.msra.mxu0 0
    %3761 = vmatprep.subr.bf16.mxu0 0
    %3762 = vmatpush1.bf16.msra.mxu0 0
    %3763 = vmatprep.subr.bf16.mxu0 0
    %3764 = vmatpush1.bf16.msra.mxu0 0
    %3765 = vmatprep.subr.bf16.mxu0 0
    %3766 = vmatpush1.bf16.msra.mxu0 0
    %3767 = vmatprep.subr.bf16.mxu0 0
    %3768 = vmatpush1.bf16.msra.mxu0 0
    %3769 = vmatprep.mubr.bf16.mxu0 0
    %3770 = vmatmul.mubr.bf16.gmra.mrb[0].mxu0 %v3732
    %v3771 = vpop.f32.mrb[0].mxu0
    %v3772 = vadd.f32 0.0, %v3771
    %v3773 = vpop.f32.mrb[0].mxu0
    %v3774 = vpop.f32.mrb[0].mxu0
    %v3775 = vpop.f32.mrb[0].mxu0
    %3776 = vdwg.mxu0
    %3777 = vrot.lane.b32.xlu0 %v255, 32
    %v3778 = vpop.permute.xlu0 %3777
    %v3780 = vsel %vm740, %v3440, 0
    %v3783 = vand.u32 %v3778, %v747
    %3785 = vmatprep.subr.bf16.mxu0 0
    %3786 = vmatpush1.bf16.msra.mxu0 %v3783
    %3787 = vmatprep.subr.bf16.mxu0 0
    %3788 = vmatpush1.bf16.msra.mxu0 0
    %3789 = vmatprep.subr.bf16.mxu0 0
    %3790 = vmatpush1.bf16.msra.mxu0 0
    %3791 = vmatprep.subr.bf16.mxu0 0
    %3792 = vmatpush1.bf16.msra.mxu0 0
    %3793 = vmatprep.subr.bf16.mxu0 0
    %3794 = vmatpush1.bf16.msra.mxu0 0
    %3795 = vmatprep.subr.bf16.mxu0 0
    %3796 = vmatpush1.bf16.msra.mxu0 0
    %3797 = vmatprep.subr.bf16.mxu0 0
    %3798 = vmatpush1.bf16.msra.mxu0 0
    %3799 = vmatprep.subr.bf16.mxu0 0
    %3800 = vmatpush1.bf16.msra.mxu0 0
    %3801 = vmatprep.subr.bf16.mxu0 0
    %3802 = vmatpush1.bf16.msra.mxu0 0
    %3803 = vmatprep.subr.bf16.mxu0 0
    %3804 = vmatpush1.bf16.msra.mxu0 0
    %3805 = vmatprep.subr.bf16.mxu0 0
    %3806 = vmatpush1.bf16.msra.mxu0 0
    %3807 = vmatprep.subr.bf16.mxu0 0
    %3808 = vmatpush1.bf16.msra.mxu0 0
    %3809 = vmatprep.subr.bf16.mxu0 0
    %3810 = vmatpush1.bf16.msra.mxu0 0
    %3811 = vmatprep.subr.bf16.mxu0 0
    %3812 = vmatpush1.bf16.msra.mxu0 0
    %3813 = vmatprep.subr.bf16.mxu0 0
    %3814 = vmatpush1.bf16.msra.mxu0 0
    %3815 = vmatprep.subr.bf16.mxu0 0
    %3816 = vmatpush1.bf16.msra.mxu0 0
    %3817 = vmatprep.mubr.bf16.mxu0 0
    %3818 = vmatmul.mubr.bf16.gmra.mrb[0].mxu0 %v3780
    %v3819 = vpop.f32.mrb[0].mxu0
    %v3820 = vadd.f32 0.0, %v3819
    %v3821 = vpop.f32.mrb[0].mxu0
    %v3822 = vpop.f32.mrb[0].mxu0
    %v3823 = vpop.f32.mrb[0].mxu0
    %3824 = vdwg.mxu0
    %3833 = vrot.lane.b32.xlu0 %v1685, 32
    %v3834 = vpop.permute.xlu0 %3833
    %3835 = vrot.lane.b32.xlu0 %v1734, 32
    %v3836 = vpop.permute.xlu0 %3835
    %3837 = vrot.lane.b32.xlu0 %v1783, 32
    %v3838 = vpop.permute.xlu0 %3837
    %3839 = vrot.lane.b32.xlu0 %v1832, 32
    %v3840 = vpop.permute.xlu0 %3839
    %3841 = vrot.lane.b32.xlu0 %v1881, 32
    %v3842 = vpop.permute.xlu0 %3841
    %3843 = vrot.lane.b32.xlu0 %v1930, 32
    %v3844 = vpop.permute.xlu0 %3843
    %3845 = vrot.lane.b32.xlu0 %v1979, 32
    %v3846 = vpop.permute.xlu0 %3845
    %3847 = vrot.lane.b32.xlu0 %v2028, 32
    %v3848 = vpop.permute.xlu0 %3847
    %3865 = vrot.lane.b32.xlu0 %v2588, 64
    %v3866 = vpop.permute.xlu0 %3865
    %3867 = vrot.lane.b32.xlu0 %v2636, 64
    %v3868 = vpop.permute.xlu0 %3867
    %3869 = vrot.lane.b32.xlu0 %v2684, 64
    %v3870 = vpop.permute.xlu0 %3869
    %3871 = vrot.lane.b32.xlu0 %v2732, 64
    %v3872 = vpop.permute.xlu0 %3871
    %3873 = vrot.lane.b32.xlu0 %v2780, 64
    %v3874 = vpop.permute.xlu0 %3873
    %3875 = vrot.lane.b32.xlu0 %v2828, 64
    %v3876 = vpop.permute.xlu0 %3875
    %3877 = vrot.lane.b32.xlu0 %v2876, 64
    %v3878 = vpop.permute.xlu0 %3877
    %3879 = vrot.lane.b32.xlu0 %v2924, 64
    %v3880 = vpop.permute.xlu0 %3879
    %3897 = vrot.lane.b32.xlu0 %v3484, 96
    %v3898 = vpop.permute.xlu0 %3897
    %3899 = vrot.lane.b32.xlu0 %v3532, 96
    %v3900 = vpop.permute.xlu0 %3899
    %3901 = vrot.lane.b32.xlu0 %v3580, 96
    %v3902 = vpop.permute.xlu0 %3901
    %3903 = vrot.lane.b32.xlu0 %v3628, 96
    %v3904 = vpop.permute.xlu0 %3903
    %3905 = vrot.lane.b32.xlu0 %v3676, 96
    %v3906 = vpop.permute.xlu0 %3905
    %3907 = vrot.lane.b32.xlu0 %v3724, 96
    %v3908 = vpop.permute.xlu0 %3907
    %3909 = vrot.lane.b32.xlu0 %v3772, 96
    %v3910 = vpop.permute.xlu0 %3909
    %3911 = vrot.lane.b32.xlu0 %v3820, 96
    %v3912 = vpop.permute.xlu0 %3911
    %v3921 = vsel %vm256, %v786, %v3834
    %v3922 = vsel %vm256, %v832, %v3836
    %v3923 = vsel %vm256, %v878, %v3838
    %v3924 = vsel %vm256, %v924, %v3840
    %v3925 = vsel %vm256, %v970, %v3842
    %v3926 = vsel %vm256, %v1016, %v3844
    %v3927 = vsel %vm256, %v1062, %v3846
    %v3928 = vsel %vm256, %v1108, %v3848
    %vm3929 = vcmask 523264
    %v3930 = vsel %vm3929, %v3921, %v3866
    %v3931 = vsel %vm3929, %v3922, %v3868
    %v3932 = vsel %vm3929, %v3923, %v3870
    %v3933 = vsel %vm3929, %v3924, %v3872
    %v3934 = vsel %vm3929, %v3925, %v3874
    %v3935 = vsel %vm3929, %v3926, %v3876
    %v3936 = vsel %vm3929, %v3927, %v3878
    %v3937 = vsel %vm3929, %v3928, %v3880
    %vm3938 = vcmask 785408
    %v3939 = vsel %vm3938, %v3930, %v3898
    %v3940 = vsel %vm3938, %v3931, %v3900
    %v3941 = vsel %vm3938, %v3932, %v3902
    %v3942 = vsel %vm3938, %v3933, %v3904
    %v3943 = vsel %vm3938, %v3934, %v3906
    %v3944 = vsel %vm3938, %v3935, %v3908
    %v3945 = vsel %vm3938, %v3936, %v3910
    %v3946 = vsel %vm3938, %v3937, %v3912
    %3947 = vst [vmem:[%s3] sm:$0x1f] %v3939
    %3948 = vst [vmem:[%s3 + $0x8] sm:$0x1f] %v3940
    %3949 = vst [vmem:[%s3 + $0x10] sm:$0x1f] %v3941
    %3950 = vst [vmem:[%s3 + $0x18] sm:$0x1f] %v3942
    %3951 = vst [vmem:[%s3 + $0x20] sm:$0x1f] %v3943
    %3952 = vst [vmem:[%s3 + $0x28] sm:$0x1f] %v3944
    %3953 = vst [vmem:[%s3 + $0x30] sm:$0x1f] %v3945
    %3954 = vst [vmem:[%s3 + $0x38] sm:$0x1f] %v3946
    // Predicated region
    $region128: #{gpt4ts_forward.17} parent=1 // pred_check
      _
    $region129: #{gpt4ts_forward.17} parent=1 // pred_check_branch
      %3956 = sbr.rel (0) target = $region131
    $region130: #{gpt4ts_forward.17} parent=1 // pred_region
      _
    $region131: #{gpt4ts_forward.17} parent=1 // pred_fallthru
      _
    // Predicated region
    $region132: #{gpt4ts_forward.17} parent=1 // pred_check
      _
    $region133: #{gpt4ts_forward.17} parent=1 // pred_check_branch
      %3958 = sbr.rel (0) target = $region135
    $region134: #{gpt4ts_forward.17} parent=1 // pred_region
      _
    $region135: #{gpt4ts_forward.17} parent=1 // pred_fallthru
      _

// kernel: gpt4ts_forward.27
$region0: #{gpt4ts_forward.27}
  #allocation0 [shape = 'u32[]', space=smem, size = 0x4, offset = 0x4, fixed_abs, tag = 'smem constant byte address 0x4 - core index']
  #allocation1 [shape = 'u32[144,128]{1,0:T(1,128)}', space=vmem, size = 0x12000, scoped, tag = 'internal scratch']
  #allocation2 [shape = 'f32[8,8]{1,0:T(8,128)}', space=vmem, size = 0x1000, scoped, tag = 'scratch operand']
  %s0 = inlined_call_operand.vmem [shape: f32[8,640], index: 0, kind: input, shape index: {}]
  %s1 = inlined_call_operand.vmem [shape: bf16[640,8], index: 1, kind: input, shape index: {}]
  %s2 = inlined_call_operand.vmem [shape: f32[1,8], index: 2, kind: input, shape index: {}]
  %s3 = inlined_call_operand.vmem [shape: f32[8,1], index: 3, kind: input, shape index: {}]
  %s4 = inlined_call_operand.vmem [shape: f32[8,1], index: 4, kind: input, shape index: {}]
  %s5 = inlined_call_operand.hbm [shape: f32[8,8], index: 5, kind: output, shape index: {}]
  %s6 = sld [smem:[#allocation0]]
  $region61: #{gpt4ts_forward.27} parent=0
    _
  %s8 = ssub.s32 1, %s6
  %s9 = scalar_select 0, %s8, %s6
  $region1: #{gpt4ts_forward.27} parent=0
    #allocation3 [shape = 'u8[4096]{0}', space=vmem, size = 0x1000, scoped, tag = 'output window, operand 0, single buffered']
    #allocation4 [shape = 's32[2]{0}', space=sflag, size = 0x8, scoped, tag = 'scoped memory for gpt4ts_forward.27']
    %10 = vsyncpa [#allocation4], 0
    loop: start=0, step=1, limit=7
    $region2: #{gpt4ts_forward.27} parent=1 // loop_pre_header
      _
    $region3: #{gpt4ts_forward.27} parent=1 // loop_header
      %s12 = sphi 0, %s16
      %p13 = scmp.ge.s32.totalorder %s12, 7
      %s19 = sphi 0, %s38
      %s20 = sphi 0, %s34
      %s21 = sphi 0, %s30
      %s22 = sphi 0, %s19
      %s23 = sphi 0, %s20
      %s24 = sphi 0, %s21
      %s25 = sphi 0, %s22
      %s26 = sphi 0, %s23
      %s27 = sphi 0, %s24
      %s43 = sphi 0, %s45
      %s46 = sphi 0, %s43
      %s47 = sphi 0, %s46
      %s63 = sphi 0, %s47
      %s71 = sphi 0, %s73
      %s74 = sphi 0, %s71
      %s75 = sphi 0, %s74
      %s91 = sphi 0, %s75
      %s97 = sphi 0, %s99
      %s100 = sphi 0, %s97
      %s101 = sphi 0, %s100
      %s117 = sphi 0, %s101
      %s123 = sphi 0, %s125
      %s126 = sphi 0, %s123
      %s127 = sphi 0, %s126
      %s143 = sphi 0, %s127
      %s149 = sphi 0, %s151
      %s152 = sphi 0, %s149
      %s153 = sphi 0, %s152
      %s169 = sphi 0, %s153
      %s177 = sphi 0, %s179
      %s180 = sphi 0, %s177
      %s181 = sphi 0, %s180
      %s197 = sphi 0, %s181
    $region4: #{gpt4ts_forward.27} parent=1 // loop_header_branch
      %15 = sbr.rel (%p13) target = $region8
    $region5: #{gpt4ts_forward.27} parent=1 // loop_body
      %s17 = ssub.s32 %s12, 1
      %s18 = ssub.s32 %s12, 2
      %s28 = sadd.s32 1, %s21
      %p29 = scmp.ge.s32.totalorder %s28, 5
      %s30 = scalar_select %p29, 0, %s28
      %s31 = sadd.s32 1, %s20
      %s32 = scalar_select %p29, %s31, %s20
      %p33 = scmp.ge.s32.totalorder %s32, 1
      %s34 = scalar_select %p33, 0, %s32
      %s35 = sadd.s32 1, %s19
      %s36 = scalar_select %p33, %s35, %s19
      %p37 = scmp.ge.s32.totalorder %s36, 1
      %s38 = scalar_select %p37, 0, %s36
      %s39 = ssub.s32 %s19, %s38
      %s40 = ssub.s32 %s21, %s30
      %s41 = sor.u32 %s39, %s40
      %p42 = scmp.eq.s32.totalorder %s41, 0
      %s44 = sadd.s32 %s43, 1
      %s45 = scalar_select %p42, %s43, %s44
      %p48 = pneg %p42
      %p49 = scmp.eq.s32.totalorder %s12, 4
      %p50 = por %p48, %p49
      %p51 = scmp.ne.s32.totalorder %s43, %s46
      %p52 = scmp.eq.s32.totalorder %s12, 0
      %p53 = por %p51, %p52
      %p54 = scmp.ne.s32.totalorder %s43, %s46
      %p55 = scmp.eq.s32.totalorder %s17, 4
      %p56 = por %p54, %p55
      %p57 = scmp.ne.s32.totalorder %s46, %s47
      %p58 = scmp.eq.s32.totalorder %s17, 0
      %p59 = por %p57, %p58
      %p60 = scmp.ne.s32.totalorder %s46, %s47
      %p61 = scmp.eq.s32.totalorder %s18, 4
      %p62 = por %p60, %p61
      %p64 = scmp.ne.s32.totalorder %s47, %s63
      %p65 = scmp.eq.s32.totalorder %s18, 0
      %p66 = por %p64, %p65
      %s67 = ssub.s32 %s21, %s30
      %s68 = ssub.s32 %s20, %s34
      %s69 = sor.u32 %s67, %s68
      %p70 = scmp.eq.s32.totalorder %s69, 0
      %s72 = sadd.s32 %s71, 1
      %s73 = scalar_select %p70, %s71, %s72
      %p76 = pneg %p70
      %p77 = scmp.eq.s32.totalorder %s12, 4
      %p78 = por %p76, %p77
      %p79 = scmp.ne.s32.totalorder %s71, %s74
      %p80 = scmp.eq.s32.totalorder %s12, 0
      %p81 = por %p79, %p80
      %p82 = scmp.ne.s32.totalorder %s71, %s74
      %p83 = scmp.eq.s32.totalorder %s17, 4
      %p84 = por %p82, %p83
      %p85 = scmp.ne.s32.totalorder %s74, %s75
      %p86 = scmp.eq.s32.totalorder %s17, 0
      %p87 = por %p85, %p86
      %p88 = scmp.ne.s32.totalorder %s74, %s75
      %p89 = scmp.eq.s32.totalorder %s18, 4
      %p90 = por %p88, %p89
      %p92 = scmp.ne.s32.totalorder %s75, %s91
      %p93 = scmp.eq.s32.totalorder %s18, 0
      %p94 = por %p92, %p93
      %s95 = ssub.s32 %s20, %s34
      %p96 = scmp.eq.s32.totalorder %s95, 0
      %s98 = sadd.s32 %s97, 1
      %s99 = scalar_select %p96, %s97, %s98
      %p102 = pneg %p96
      %p103 = scmp.eq.s32.totalorder %s12, 4
      %p104 = por %p102, %p103
      %p105 = scmp.ne.s32.totalorder %s97, %s100
      %p106 = scmp.eq.s32.totalorder %s12, 0
      %p107 = por %p105, %p106
      %p108 = scmp.ne.s32.totalorder %s97, %s100
      %p109 = scmp.eq.s32.totalorder %s17, 4
      %p110 = por %p108, %p109
      %p111 = scmp.ne.s32.totalorder %s100, %s101
      %p112 = scmp.eq.s32.totalorder %s17, 0
      %p113 = por %p111, %p112
      %p114 = scmp.ne.s32.totalorder %s100, %s101
      %p115 = scmp.eq.s32.totalorder %s18, 4
      %p116 = por %p114, %p115
      %p118 = scmp.ne.s32.totalorder %s101, %s117
      %p119 = scmp.eq.s32.totalorder %s18, 0
      %p120 = por %p118, %p119
      %s121 = ssub.s32 %s19, %s38
      %p122 = scmp.eq.s32.totalorder %s121, 0
      %s124 = sadd.s32 %s123, 1
      %s125 = scalar_select %p122, %s123, %s124
      %p128 = pneg %p122
      %p129 = scmp.eq.s32.totalorder %s12, 4
      %p130 = por %p128, %p129
      %p131 = scmp.ne.s32.totalorder %s123, %s126
      %p132 = scmp.eq.s32.totalorder %s12, 0
      %p133 = por %p131, %p132
      %p134 = scmp.ne.s32.totalorder %s123, %s126
      %p135 = scmp.eq.s32.totalorder %s17, 4
      %p136 = por %p134, %p135
      %p137 = scmp.ne.s32.totalorder %s126, %s127
      %p138 = scmp.eq.s32.totalorder %s17, 0
      %p139 = por %p137, %p138
      %p140 = scmp.ne.s32.totalorder %s126, %s127
      %p141 = scmp.eq.s32.totalorder %s18, 4
      %p142 = por %p140, %p141
      %p144 = scmp.ne.s32.totalorder %s127, %s143
      %p145 = scmp.eq.s32.totalorder %s18, 0
      %p146 = por %p144, %p145
      %s147 = ssub.s32 %s19, %s38
      %p148 = scmp.eq.s32.totalorder %s147, 0
      %s150 = sadd.s32 %s149, 1
      %s151 = scalar_select %p148, %s149, %s150
      %p154 = pneg %p148
      %p155 = scmp.eq.s32.totalorder %s12, 4
      %p156 = por %p154, %p155
      %p157 = scmp.ne.s32.totalorder %s149, %s152
      %p158 = scmp.eq.s32.totalorder %s12, 0
      %p159 = por %p157, %p158
      %p160 = scmp.ne.s32.totalorder %s149, %s152
      %p161 = scmp.eq.s32.totalorder %s17, 4
      %p162 = por %p160, %p161
      %p163 = scmp.ne.s32.totalorder %s152, %s153
      %p164 = scmp.eq.s32.totalorder %s17, 0
      %p165 = por %p163, %p164
      %p166 = scmp.ne.s32.totalorder %s152, %s153
      %p167 = scmp.eq.s32.totalorder %s18, 4
      %p168 = por %p166, %p167
      %p170 = scmp.ne.s32.totalorder %s153, %s169
      %p171 = scmp.eq.s32.totalorder %s18, 0
      %p172 = por %p170, %p171
      %s173 = ssub.s32 %s19, %s38
      %s174 = ssub.s32 %s20, %s34
      %s175 = sor.u32 %s173, %s174
      %p176 = scmp.eq.s32.totalorder %s175, 0
      %s178 = sadd.s32 %s177, 1
      %s179 = scalar_select %p176, %s177, %s178
      %p182 = pneg %p176
      %p183 = scmp.eq.s32.totalorder %s12, 4
      %p184 = por %p182, %p183
      %p185 = scmp.ne.s32.totalorder %s177, %s180
      %p186 = scmp.eq.s32.totalorder %s12, 0
      %p187 = por %p185, %p186
      %p188 = scmp.ne.s32.totalorder %s177, %s180
      %p189 = scmp.eq.s32.totalorder %s17, 4
      %p190 = por %p188, %p189
      %p191 = scmp.ne.s32.totalorder %s180, %s181
      %p192 = scmp.eq.s32.totalorder %s17, 0
      %p193 = por %p191, %p192
      %p194 = scmp.ne.s32.totalorder %s180, %s181
      %p195 = scmp.eq.s32.totalorder %s18, 4
      %p196 = por %p194, %p195
      %p198 = scmp.ne.s32.totalorder %s181, %s197
      %p199 = scmp.eq.s32.totalorder %s18, 0
      %p200 = por %p198, %p199
      %p201 = scmp.le.s32.totalorder 1, %s12
      %p202 = scmp.lt.s32.totalorder %s12, 6
      %p203 = pnand %p201, %p202
      %p204 = pneg %p203
      // Predicated region
      $region9: #{gpt4ts_forward.27} parent=5 // pred_check
        _
      $region10: #{gpt4ts_forward.27} parent=5 // pred_check_branch
        %206 = sbr.rel (%p203) target = $region12
      $region11: #{gpt4ts_forward.27} parent=5 // pred_region
        %s207 = ssub.s32 %s12, 1
        // Predicated region
        $region13: #{gpt4ts_forward.27} parent=11 // pred_check
          %p208 = pneg %p113
        $region14: #{gpt4ts_forward.27} parent=11 // pred_check_branch
          %210 = sbr.rel (%p208) target = $region16
        $region15: #{gpt4ts_forward.27} parent=11 // pred_region
          %p211 = scmp.lt.s32.totalorder %s23, 0
          %s212 = scalar_select %p211, %s23, 0
          %s213 = scalar_lea.vmem %s2, %s212
        $region16: #{gpt4ts_forward.27} parent=11 // pred_fallthru
          _
        // Predicated region
        $region17: #{gpt4ts_forward.27} parent=11 // pred_check
          %p214 = pneg %p139
        $region18: #{gpt4ts_forward.27} parent=11 // pred_check_branch
          %216 = sbr.rel (%p214) target = $region20
        $region19: #{gpt4ts_forward.27} parent=11 // pred_region
          %p217 = scmp.lt.s32.totalorder %s22, 0
          %s218 = scalar_select %p217, %s22, 0
          %s219 = smul.addr %s218, 8
          %s220 = scalar_lea.vmem %s3, %s219
        $region20: #{gpt4ts_forward.27} parent=11 // pred_fallthru
          _
        // Predicated region
        $region21: #{gpt4ts_forward.27} parent=11 // pred_check
          %p221 = pneg %p165
        $region22: #{gpt4ts_forward.27} parent=11 // pred_check_branch
          %223 = sbr.rel (%p221) target = $region24
        $region23: #{gpt4ts_forward.27} parent=11 // pred_region
          %p224 = scmp.lt.s32.totalorder %s22, 0
          %s225 = scalar_select %p224, %s22, 0
          %s226 = smul.addr %s225, 8
          %s227 = scalar_lea.vmem %s4, %s226
        $region24: #{gpt4ts_forward.27} parent=11 // pred_fallthru
          _
      $region12: #{gpt4ts_forward.27} parent=5 // pred_fallthru
        _
      %p228 = scmp.lt.s32.totalorder %s12, 5
      // Predicated region
      $region25: #{gpt4ts_forward.27} parent=5 // pred_check
        %p229 = pneg %p228
      $region26: #{gpt4ts_forward.27} parent=5 // pred_check_branch
        %231 = sbr.rel (%p229) target = $region28
      $region27: #{gpt4ts_forward.27} parent=5 // pred_region
        // Predicated region
        $region29: #{gpt4ts_forward.27} parent=27 // pred_check
          %p232 = pneg %p53
        $region30: #{gpt4ts_forward.27} parent=27 // pred_check_branch
          %234 = sbr.rel (%p232) target = $region32
        $region31: #{gpt4ts_forward.27} parent=27 // pred_region
          %p235 = scmp.lt.s32.totalorder %s19, 0
          %s236 = scalar_select %p235, %s19, 0
          %p237 = scmp.lt.s32.totalorder %s21, 4
          %s238 = scalar_select %p237, %s21, 4
          %s239 = smul.addr %s236, 5
          %s240 = sadd.s32 %s238, %s239
          %s241 = smul.addr %s240, 8
          %s242 = scalar_lea.vmem %s0, %s241
        $region32: #{gpt4ts_forward.27} parent=27 // pred_fallthru
          _
        // Predicated region
        $region33: #{gpt4ts_forward.27} parent=27 // pred_check
          %p243 = pneg %p81
        $region34: #{gpt4ts_forward.27} parent=27 // pred_check_branch
          %245 = sbr.rel (%p243) target = $region36
        $region35: #{gpt4ts_forward.27} parent=27 // pred_region
          %s246 = smul.u32 16, %s21
          %p247 = scmp.lt.s32.totalorder %s246, 79
          %s248 = scalar_select %p247, %s246, 79
          %p249 = scmp.lt.s32.totalorder %s20, 0
          %s250 = scalar_select %p249, %s20, 0
          %s251 = sadd.s32 %s250, %s248
          %s252 = smul.addr %s251, 4
          %s253 = scalar_lea.vmem %s1, %s252
          %s254 = smul.u32 16, %s21
        $region36: #{gpt4ts_forward.27} parent=27 // pred_fallthru
          _
      $region28: #{gpt4ts_forward.27} parent=5 // pred_fallthru
        _
      %p255 = scmp.le.s32.totalorder 1, %s12
      %p256 = scmp.lt.s32.totalorder %s12, 6
      %p257 = pnand %p255, %p256
      %p258 = pneg %p257
      // Predicated region
      $region37: #{gpt4ts_forward.27} parent=5 // pred_check
        _
      $region38: #{gpt4ts_forward.27} parent=5 // pred_check_branch
        %260 = sbr.rel (%p257) target = $region40
      $region39: #{gpt4ts_forward.27} parent=5 // pred_region
        %s261 = ssub.s32 %s12, 1
        %p262 = scmp.lt.s32.totalorder %s22, 0
        %s263 = scalar_select %p262, %s22, 0
        %p264 = scmp.lt.s32.totalorder %s24, 4
        %s265 = scalar_select %p264, %s24, 4
        %s266 = smul.addr %s263, 5
        %s267 = sadd.s32 %s265, %s266
        %s268 = smul.addr %s267, 8
        %s269 = scalar_lea.vmem %s0, %s268
        %p270 = pneg %p59
        %p271 = pneg %p56
        %s272 = smul.u32 16, %s24
        %p273 = scmp.lt.s32.totalorder %s272, 79
        %s274 = scalar_select %p273, %s272, 79
        %p275 = scmp.lt.s32.totalorder %s23, 0
        %s276 = scalar_select %p275, %s23, 0
        %s277 = sadd.s32 %s276, %s274
        %s278 = smul.addr %s277, 4
        %s279 = scalar_lea.vmem %s1, %s278
        %p280 = pneg %p87
        %p281 = pneg %p84
        %p282 = scmp.lt.s32.totalorder %s23, 0
        %s283 = scalar_select %p282, %s23, 0
        %s284 = scalar_lea.vmem %s2, %s283
        %p285 = pneg %p113
        %p286 = pneg %p110
        %p287 = scmp.lt.s32.totalorder %s22, 0
        %s288 = scalar_select %p287, %s22, 0
        %s289 = smul.addr %s288, 8
        %s290 = scalar_lea.vmem %s3, %s289
        %p291 = pneg %p139
        %p292 = pneg %p136
        %p293 = scmp.lt.s32.totalorder %s22, 0
        %s294 = scalar_select %p293, %s22, 0
        %s295 = smul.addr %s294, 8
        %s296 = scalar_lea.vmem %s4, %s295
        %p297 = pneg %p165
        %p298 = pneg %p162
        %p299 = pneg %p193
        %p300 = pneg %p190
        %p301 = scmp.lt.s32.totalorder %s22, 0
        %s302 = scalar_select %p301, %s22, 0
        %p303 = scmp.lt.s32.totalorder %s24, 4
        %s304 = scalar_select %p303, %s24, 4
        %s305 = smul.addr %s302, 5
        %s306 = sadd.s32 %s304, %s305
        %s307 = smul.addr %s306, 8
        %s308 = scalar_lea.vmem %s0, %s307
        %s309 = smul.u32 16, %s24
        %p310 = scmp.lt.s32.totalorder %s309, 79
        %s311 = scalar_select %p310, %s309, 79
        %p312 = scmp.lt.s32.totalorder %s23, 0
        %s313 = scalar_select %p312, %s23, 0
        %s314 = sadd.s32 %s313, %s311
        %s315 = smul.addr %s314, 4
        %s316 = scalar_lea.vmem %s1, %s315
        %s317 = smul.u32 16, %s24
        %p318 = scmp.lt.s32.totalorder %s23, 0
        %s319 = scalar_select %p318, %s23, 0
        %s320 = scalar_lea.vmem %s2, %s319
        %p321 = scmp.lt.s32.totalorder %s22, 0
        %s322 = scalar_select %p321, %s22, 0
        %s323 = smul.addr %s322, 8
        %s324 = scalar_lea.vmem %s3, %s323
        %p325 = scmp.lt.s32.totalorder %s22, 0
        %s326 = scalar_select %p325, %s22, 0
        %s327 = smul.addr %s326, 8
        %s328 = scalar_lea.vmem %s4, %s327
        %p330 = scmp.eq.s32.totalorder %s24, 0
        // Predicated region
        $region41: #{gpt4ts_forward.27} parent=39 // pred_check
          %p331 = pneg %p330
        $region42: #{gpt4ts_forward.27} parent=39 // pred_check_branch
          %333 = sbr.rel (%p331) target = $region44
        $region43: #{gpt4ts_forward.27} parent=39 // pred_region
          %vm334 = vcmask 64512
          %335 = vst.msk [vmem:[#allocation2] sm:$0xff] %vm334, 0.0
        $region44: #{gpt4ts_forward.27} parent=39 // pred_fallthru
          _
        %v336 = vld [vmem:[%s308] sm:$0xff]
        %v337 = vld [vmem:[#allocation2] sm:$0xff]
        %v338 = vpack.c.bf16 %v336, %v336
        %v339 = vld [vmem:[%s316] sm:$0xf]
        %v340 = vld [vmem:[%s316 + $0x4] sm:$0xf]
        %v341 = vld [vmem:[%s316 + $0x8] sm:$0xf]
        %v342 = vld [vmem:[%s316 + $0xc] sm:$0xf]
        %v343 = vld [vmem:[%s316 + $0x10] sm:$0xf]
        %v344 = vld [vmem:[%s316 + $0x14] sm:$0xf]
        %v345 = vld [vmem:[%s316 + $0x18] sm:$0xf]
        %v346 = vld [vmem:[%s316 + $0x1c] sm:$0xf]
        %v347 = vld [vmem:[%s316 + $0x20] sm:$0xf]
        %v348 = vld [vmem:[%s316 + $0x24] sm:$0xf]
        %v349 = vld [vmem:[%s316 + $0x28] sm:$0xf]
        %v350 = vld [vmem:[%s316 + $0x2c] sm:$0xf]
        %v351 = vld [vmem:[%s316 + $0x30] sm:$0xf]
        %v352 = vld [vmem:[%s316 + $0x34] sm:$0xf]
        %v353 = vld [vmem:[%s316 + $0x38] sm:$0xf]
        %v354 = vld [vmem:[%s316 + $0x3c] sm:$0xf]
        %v371 = vunpack.c.l.b16 %v339
        %v372 = vunpack.c.l.b16 %v340
        %v373 = vunpack.c.l.b16 %v341
        %v374 = vunpack.c.l.b16 %v342
        %v375 = vunpack.c.l.b16 %v343
        %v376 = vunpack.c.l.b16 %v344
        %v377 = vunpack.c.l.b16 %v345
        %v378 = vunpack.c.l.b16 %v346
        %v379 = vunpack.c.l.b16 %v347
        %v380 = vunpack.c.l.b16 %v348
        %v381 = vunpack.c.l.b16 %v349
        %v382 = vunpack.c.l.b16 %v350
        %v383 = vunpack.c.l.b16 %v351
        %v384 = vunpack.c.l.b16 %v352
        %v385 = vunpack.c.l.b16 %v353
        %v386 = vunpack.c.l.b16 %v354
        %v387 = vpack.c.b16 %v372, %v371
        %v388 = vpack.c.b16 %v374, %v373
        %v389 = vpack.c.b16 %v376, %v375
        %v390 = vpack.c.b16 %v378, %v377
        %v391 = vpack.c.b16 %v380, %v379
        %v392 = vpack.c.b16 %v382, %v381
        %v393 = vpack.c.b16 %v384, %v383
        %v394 = vpack.c.b16 %v386, %v385
        %403 = vmatprep.subr.bf16.mxu0 0
        %404 = vmatpush1.bf16.msra.mxu0 %v387
        %405 = vmatprep.subr.bf16.mxu0 0
        %406 = vmatpush1.bf16.msra.mxu0 %v388
        %407 = vmatprep.subr.bf16.mxu0 0
        %408 = vmatpush1.bf16.msra.mxu0 %v389
        %409 = vmatprep.subr.bf16.mxu0 0
        %410 = vmatpush1.bf16.msra.mxu0 %v390
        %411 = vmatprep.subr.bf16.mxu0 0
        %412 = vmatpush1.bf16.msra.mxu0 %v391
        %413 = vmatprep.subr.bf16.mxu0 0
        %414 = vmatpush1.bf16.msra.mxu0 %v392
        %415 = vmatprep.subr.bf16.mxu0 0
        %416 = vmatpush1.bf16.msra.mxu0 %v393
        %417 = vmatprep.subr.bf16.mxu0 0
        %418 = vmatpush1.bf16.msra.mxu0 %v394
        %419 = vmatprep.subr.bf16.mxu0 0
        %420 = vmatpush1.bf16.msra.mxu0 0
        %421 = vmatprep.subr.bf16.mxu0 0
        %422 = vmatpush1.bf16.msra.mxu0 0
        %423 = vmatprep.subr.bf16.mxu0 0
        %424 = vmatpush1.bf16.msra.mxu0 0
        %425 = vmatprep.subr.bf16.mxu0 0
        %426 = vmatpush1.bf16.msra.mxu0 0
        %427 = vmatprep.subr.bf16.mxu0 0
        %428 = vmatpush1.bf16.msra.mxu0 0
        %429 = vmatprep.subr.bf16.mxu0 0
        %430 = vmatpush1.bf16.msra.mxu0 0
        %431 = vmatprep.subr.bf16.mxu0 0
        %432 = vmatpush1.bf16.msra.mxu0 0
        %433 = vmatprep.subr.bf16.mxu0 0
        %434 = vmatpush1.bf16.msra.mxu0 0
        %435 = vmatprep.mubr.bf16.mxu0 0
        %436 = vmatmul.mubr.bf16.gmra.mrb[0].mxu0 %v338
        %v437 = vpop.f32.mrb[0].mxu0
        %v438 = vadd.f32 0.0, %v437
        %v439 = vpop.f32.mrb[0].mxu0
        %v440 = vpop.f32.mrb[0].mxu0
        %v441 = vpop.f32.mrb[0].mxu0
        %442 = vdwg.mxu0
        %v443 = vadd.f32 %v337, %v438
        %vm444 = vcmask 64512
        %445 = vst.msk [vmem:[#allocation2] sm:$0xff] %vm444, %v443
        %p446 = scmp.eq.s32.totalorder %s24, 4
        // Predicated region
        $region45: #{gpt4ts_forward.27} parent=39 // pred_check
          %p447 = pneg %p446
        $region46: #{gpt4ts_forward.27} parent=39 // pred_check_branch
          %449 = sbr.rel (%p447) target = $region48
        $region47: #{gpt4ts_forward.27} parent=39 // pred_region
          %v450 = vld [vmem:[#allocation2] sm:$0xff]
          %v451 = vld [vmem:[%s320] sm:$0x1]
          %v453 = vlaneseq
          %v454 = vshrl.u32 %v453, 7
          %v455 = vsub.s32 0, %v454
          %v456 = vrot.slane %v451, %v455
          %v458 = vadd.f32 %v450, %v456
          %v459 = vld [vmem:[%s324] sm:$0xff]
          %461 = vset.pattern.permute.xlu0 0
          %462 = vperm.xlu0 %461, %v459
          %v463 = vpop.permute.xlu0 %462
          %v465 = vmul.f32 %v458, %v463
          %v466 = vld [vmem:[%s328] sm:$0xff]
          %468 = vset.pattern.permute.xlu0 0
          %469 = vperm.xlu0 %468, %v466
          %v470 = vpop.permute.xlu0 %469
          %v472 = vadd.f32 %v465, %v470
          %473 = vst.msk [vmem:[#allocation3] sm:$0xff] %vm444, %v472
        $region48: #{gpt4ts_forward.27} parent=39 // pred_fallthru
          _
        // Predicated region
        $region49: #{gpt4ts_forward.27} parent=39 // pred_check
          %p474 = pneg %p190
        $region50: #{gpt4ts_forward.27} parent=39 // pred_check_branch
          %476 = sbr.rel (%p474) target = $region52
        $region51: #{gpt4ts_forward.27} parent=39 // pred_region
          %s478 = ssub.s32 128, 128
          %479 = vsyncadd [#allocation4], %s478
          %s480 = sadd.s32 %s23, %s22
          %s481 = smul.addr %s480, 128
          %s482 = scalar_lea.hbm %s5, %s481
          %s484 = sshll.u32 [#allocation3], 4
          %s485 = int_to_ptr.vmem [resolvable:$true] %s484
          %487 = dma.vmem_to_hbm [thread:$0]  %s485, 128, %s482, [#allocation4]
        $region52: #{gpt4ts_forward.27} parent=39 // pred_fallthru
          _
        // Predicated region
        $region53: #{gpt4ts_forward.27} parent=39 // pred_check
          %p488 = pneg %p190
        $region54: #{gpt4ts_forward.27} parent=39 // pred_check_branch
          %490 = sbr.rel (%p488) target = $region56
        $region55: #{gpt4ts_forward.27} parent=39 // pred_region
          %491 = dma.done [#allocation4], 128
        $region56: #{gpt4ts_forward.27} parent=39 // pred_fallthru
          _
      $region40: #{gpt4ts_forward.27} parent=5 // pred_fallthru
        _
      %p492 = scmp.le.s32.totalorder 2, %s12
      // Predicated region
      $region57: #{gpt4ts_forward.27} parent=5 // pred_check
        %p493 = pneg %p492
      $region58: #{gpt4ts_forward.27} parent=5 // pred_check_branch
        %495 = sbr.rel (%p493) target = $region60
      $region59: #{gpt4ts_forward.27} parent=5 // pred_region
        %s496 = ssub.s32 %s12, 2
      $region60: #{gpt4ts_forward.27} parent=5 // pred_fallthru
        _
    $region6: #{gpt4ts_forward.27} parent=1 // loop_footer
      %s16 = sadd.s32 1, %s12
    $region7: #{gpt4ts_forward.27} parent=1 // loop_footer_branch
      %11 = sbr.rel target = $region3
    $region8: #{gpt4ts_forward.27} parent=1 // loop_exit
      _
    %497 = vsyncpa [#allocation4], 1
    %s498 = scalar_lea.sflag [#allocation4], 1
    %499 = vsyncpa %s498, 1

</llo_original>
